<compile_context>
chip_gen: v5e
topology: v5e:2x2
jax: 0.10.0
libtpu: 0.0.40
codegen_flags: <defaults>
</compile_context>

<pallas_src>
import jax
import jax.numpy as jnp
from jax import lax
from jax.experimental import pallas as pl
from jax.experimental.pallas import tpu as pltpu

STRUCT_STR = "conv/pool/conv/pool"   # 64 -> 62 -> 31 -> 29 -> 14 ; linear in = 10*14*14

_VMEM = pl.BlockSpec(memory_space=pltpu.MemorySpace.VMEM)


# --------------------------------- fused kernel ---------------------------------
def _fused_kernel(x_ref, b1_ref, bias1_ref, s1_ref,
                  b2_ref, bias2_ref, s2_ref, wl_ref, blin_ref, o_ref):
    # x_ref     (64, 192)      rows on sublanes, lanes = [channel | width] flattened
    # b1_ref    (3, 192, 620)  conv1 band matrices (per kh)
    # bias1_ref (1, 620)
    # s1_ref    (2, 31, 62)    even/odd row-selection matrices for pool1
    # b2_ref    (3, 619, 290)  conv2 band matrices (stride-2 pooled lane layout folded in)
    # bias2_ref (1, 290)
    # s2_ref    (2, 14, 29)    even/odd row-selection matrices for pool2
    # wl_ref    (14, 289, 10)  linear weights, pre-permuted per pooled row
    # blin_ref  (1, 10)
    # o_ref     (1, 10)
    H1 = x_ref.shape[0]          # 64
    Ho1 = H1 - 2                 # 62
    K2 = b2_ref.shape[1]         # 619
    Hp1 = s1_ref.shape[1]        # 31
    Ho2 = Hp1 - 2                # 29
    Hp2 = s2_ref.shape[1]        # 14
    L2 = wl_ref.shape[1]         # 289

    x = x_ref[...]

    # ---- conv1 + bias + ReLU : 3 band matmuls, (62, 620) lane-dense output ----
    c1 = jnp.dot(x[0:Ho1], b1_ref[0], preferred_element_type=jnp.float32)
    c1 = c1 + jnp.dot(x[1:Ho1 + 1], b1_ref[1], preferred_element_type=jnp.float32)
    c1 = c1 + jnp.dot(x[2:Ho1 + 2], b1_ref[2], preferred_element_type=jnp.float32)
    a1 = jnp.maximum(c1 + bias1_ref[...], 0.0)

    # ---- pool1: row pairs via selection matmuls, column pairs via shifted max ----
    rm1 = jnp.maximum(
        jnp.dot(s1_ref[0], a1, preferred_element_type=jnp.float32),
        jnp.dot(s1_ref[1], a1, preferred_element_type=jnp.float32))     # (31, 620)
    cm1 = jnp.maximum(rm1[:, 0:K2], rm1[:, 1:K2 + 1])                   # (31, 619)

    # ---- conv2 + bias + ReLU : 3 band matmuls, (29, 290) output ----
    c2 = jnp.dot(cm1[0:Ho2], b2_ref[0], preferred_element_type=jnp.float32)
    c2 = c2 + jnp.dot(cm1[1:Ho2 + 1], b2_ref[1], preferred_element_type=jnp.float32)
    c2 = c2 + jnp.dot(cm1[2:Ho2 + 2], b2_ref[2], preferred_element_type=jnp.float32)
    a2 = jnp.maximum(c2 + bias2_ref[...], 0.0)

    # ---- pool2 ----
    rm2 = jnp.maximum(
        jnp.dot(s2_ref[0], a2, preferred_element_type=jnp.float32),
        jnp.dot(s2_ref[1], a2, preferred_element_type=jnp.float32))     # (14, 290)
    cm2 = jnp.maximum(rm2[:, 0:L2], rm2[:, 1:L2 + 1])                   # (14, 289)

    # ---- flatten + linear: weights pre-permuted to the pooled lane layout ----
    y = blin_ref[...]                                                   # (1, 10)
    for h in range(Hp2):                                                # static unroll (14)
        y = y + jnp.dot(cm2[h:h + 1, :], wl_ref[h],
                        preferred_element_type=jnp.float32)
    o_ref[...] = y


# ------------------------- init-time weight repacking ---------------------------
def _make_band(wconv, w_in, w_out, stride):
    """B[kh, ci*w_in + u, co*w_out + w] = wconv[co, ci, kh, kw] iff u == stride*(w+kw)."""
    _, cin, kh_n, kw_n = wconv.shape
    u = jnp.arange(w_in)
    w = jnp.arange(w_out)
    kw = jnp.arange(kw_n)
    sel = (u[None, :, None] == stride * (w[None, None, :] + kw[:, None, None]))
    sel = sel.astype(jnp.float32)                          # (kw, w_in, w_out)
    band = jnp.einsum('ochk,kuw->hcuow', wconv, sel)       # (kh, ci, u, co, w)
    cout = wconv.shape[0]
    return band.reshape(kh_n, cin * w_in, cout * w_out)


def _make_rowsel(n_out, n_in):
    i = jnp.arange(n_out)[:, None]
    j = jnp.arange(n_in)[None, :]
    even = (j == 2 * i).astype(jnp.float32)
    odd = (j == 2 * i + 1).astype(jnp.float32)
    return jnp.stack([even, odd])                          # (2, n_out, n_in)


def prepare_fused_params(params):
    """One-time repack of torch-layout weights (specific to 'conv/pool/conv/pool')."""
    kinds = [k for k, _ in params]
    assert kinds == ["conv", "pool", "conv", "pool", "linear"], STRUCT_STR
    w1, b1 = params[0][1]
    w2, b2 = params[2][1]
    wl, bl = params[4][1]

    H = 64
    C1 = w1.shape[0]                       # 10
    C2 = w2.shape[0]                       # 10
    Ho1, Hp1 = H - 2, (H - 2) // 2         # 62, 31
    Ho2, Hp2 = Hp1 - 2, (Hp1 - 2) // 2     # 29, 14

    band1 = _make_band(w1, H, Ho1, stride=1)                       # (3, 192, 620)
    bias1_row = jnp.repeat(b1, Ho1)[None, :]                       # (1, 620)
    sel1 = _make_rowsel(Hp1, Ho1)                                  # (2, 31, 62)

    # conv2 reads the un-compacted pooled map: channel blocks of width Ho1 with
    # valid samples at even offsets (stride 2); K truncated by 1 because the
    # column-pair max drops the last lane.  Truncated row is all-zero anyway.
    band2 = _make_band(w2, Ho1, Ho2, stride=2)[:, :C1 * Ho1 - 1, :]  # (3, 619, 290)
    bias2_row = jnp.repeat(b2, Ho2)[None, :]                       # (1, 290)
    sel2 = _make_rowsel(Hp2, Ho2)                                  # (2, 14, 29)

    # Linear: fold the torch flatten order (c*196 + h*14 + w) and the stride-2
    # pooled lane layout (lane = c*Ho2 + 2*w) into per-row weight slabs.
    wl4 = wl.reshape(wl.shape[0], C2, Hp2, Hp2)                    # (o, c, h, w)
    L2 = C2 * Ho2 - 1                                              # 289
    l = jnp.arange(L2)
    c = jnp.arange(C2)
    w = jnp.arange(Hp2)
    selL = (l[:, None, None] == (Ho2 * c[None, :, None] + 2 * w[None, None, :]))
    selL = selL.astype(jnp.float32)                                # (289, 10, 14)
    WL = jnp.einsum('ochw,lcw->hlo', wl4, selL)                    # (14, 289, 10)
    blin_row = bl[None, :]                                         # (1, 10)

    return dict(band1=band1, bias1=bias1_row, sel1=sel1,
                band2=band2, bias2=bias2_row, sel2=sel2,
                wlin=WL, blin=blin_row)


# ---------------------------- model construct / forward -------------------------
def build_params(key, struct_str):
    struct = struct_str.split("/")
    params = []
    size, in_c = 64, 3
    for name in struct:
        if name == "conv":
            key, kw, kb = jax.random.split(key, 3)
            bound = 1.0 / float(jnp.sqrt(in_c * 9.0))
            w = jax.random.uniform(kw, (10, in_c, 3, 3), jnp.float32, -bound, bound)
            b = jax.random.uniform(kb, (10,), jnp.float32, -bound, bound)
            params.append(("conv", (w, b)))
            in_c = 10
            size -= 2
        elif name == "pool":
            params.append(("pool", None))
            size //= 2
        else:
            raise ValueError("Invalid layer name.")
    key, kw, kb = jax.random.split(key, 3)
    in_f = 10 * size * size
    bound = 1.0 / float(jnp.sqrt(float(in_f)))
    wl = jax.random.uniform(kw, (10, in_f), jnp.float32, -bound, bound)
    bl = jax.random.uniform(kb, (10,), jnp.float32, -bound, bound)
    params.append(("linear", (wl, bl)))
    return params


def model_forward(x_nchw, fused):
    # NCHW (batch=1) -> rows on sublanes, (channel, width) flattened on lanes.
    x = jnp.transpose(x_nchw[0].astype(jnp.float32), (1, 0, 2))    # (H, C, W)
    x = x.reshape(x.shape[0], -1)                                  # (64, 192)
    out = pl.pallas_call(
        _fused_kernel,
        out_shape=jax.ShapeDtypeStruct((1, fused["blin"].shape[1]), jnp.float32),
        in_specs=[_VMEM] * 9,
        out_specs=_VMEM,
    )(x, fused["band1"], fused["bias1"], fused["sel1"],
      fused["band2"], fused["bias2"], fused["sel2"],
      fused["wlin"], fused["blin"])
    return out[0]                                                  # (10,)


def reference_forward(x_nchw, params):
    x = x_nchw.astype(jnp.float32)
    for kind, p in params:
        if kind == "conv":
            w, b = p
            x = lax.conv_general_dilated(
                x, w, (1, 1), "VALID",
                dimension_numbers=("NCHW", "OIHW", "NCHW"),
                precision=lax.Precision.HIGHEST)
            x = jnp.maximum(x + b.reshape(1, -1, 1, 1), 0.0)
        elif kind == "pool":
            x = lax.reduce_window(x, -jnp.inf, lax.max,
                                  (1, 1, 2, 2), (1, 1, 2, 2), "VALID")
        else:
            w, b = p
            x = jnp.dot(x.reshape(-1), jnp.transpose(w),
                        precision=lax.Precision.HIGHEST) + b
    return x


if __name__ == "__main__":
    key = jax.random.PRNGKey(0)
    k_in, k_par = jax.random.split(key)
    x = jax.random.normal(k_in, (1, 3, 64, 64), jnp.float32)
    params = build_params(k_par, STRUCT_STR)

    fused = prepare_fused_params(params)          # init-time repack (hoisted out of forward)
    fwd = jax.jit(model_forward)

    out = jax.block_until_ready(fwd(x, fused))
    ref = reference_forward(x, params)

    assert out.shape == (10,)
    if bool(jnp.allclose(out, ref, atol=1e-2, rtol=1e-2)):
        print("KERNEL_OK")
    else:
        raise SystemExit(f"mismatch:\n{out}\n{ref}")
</pallas_src>

<mosaic_0001>
module attributes {stable_mosaic.version = 11 : i64} {
  func.func @_fused_kernel(%arg0: memref<64x192xf32, #tpu.memory_space<vmem>>, %arg1: memref<3x192x620xf32, #tpu.memory_space<vmem>>, %arg2: memref<1x620xf32, #tpu.memory_space<vmem>>, %arg3: memref<2x31x62xf32, #tpu.memory_space<vmem>>, %arg4: memref<3x619x290xf32, #tpu.memory_space<vmem>>, %arg5: memref<1x290xf32, #tpu.memory_space<vmem>>, %arg6: memref<2x14x29xf32, #tpu.memory_space<vmem>>, %arg7: memref<14x289x10xf32, #tpu.memory_space<vmem>>, %arg8: memref<1x10xf32, #tpu.memory_space<vmem>>, %arg9: memref<1x10xf32, #tpu.memory_space<vmem>>) attributes {dimension_semantics = [], scalar_prefetch = 0 : i64, scratch_operands = 0 : i64, tpu.core_type = #tpu.core_type<tc>} {
    %c0 = arith.constant 0 : index
    %c0_0 = arith.constant 0 : index
    %0 = vector.load %arg0[%c0, %c0_0] : memref<64x192xf32, #tpu.memory_space<vmem>>, vector<64x192xf32>
    %1 = vector.extract_strided_slice %0 {offsets = [0, 0], sizes = [62, 192], strides = [1, 1]} : vector<64x192xf32> to vector<62x192xf32>
    %c0_1 = arith.constant 0 : index
    %c0_2 = arith.constant 0 : index
    %c0_3 = arith.constant 0 : index
    %2 = vector.load %arg1[%c0_1, %c0_2, %c0_3] : memref<3x192x620xf32, #tpu.memory_space<vmem>>, vector<1x192x620xf32>
    %3 = vector.shape_cast %2 : vector<1x192x620xf32> to vector<192x620xf32>
    %cst = arith.constant dense<0.000000e+00> : vector<62x620xf32>
    %4 = tpu.matmul %1, %3, %cst {dimension_numbers = #tpu.dot_dimension_numbers<[1], [0], [0], [1], [0, 0, 1, 1], [], []>} : vector<62x192xf32>, vector<192x620xf32>, vector<62x620xf32> -> vector<62x620xf32>
    %5 = vector.extract_strided_slice %0 {offsets = [1, 0], sizes = [62, 192], strides = [1, 1]} : vector<64x192xf32> to vector<62x192xf32>
    %c1 = arith.constant 1 : index
    %c0_4 = arith.constant 0 : index
    %c0_5 = arith.constant 0 : index
    %6 = vector.load %arg1[%c1, %c0_4, %c0_5] : memref<3x192x620xf32, #tpu.memory_space<vmem>>, vector<1x192x620xf32>
    %7 = vector.shape_cast %6 : vector<1x192x620xf32> to vector<192x620xf32>
    %cst_6 = arith.constant dense<0.000000e+00> : vector<62x620xf32>
    %8 = tpu.matmul %5, %7, %cst_6 {dimension_numbers = #tpu.dot_dimension_numbers<[1], [0], [0], [1], [0, 0, 1, 1], [], []>} : vector<62x192xf32>, vector<192x620xf32>, vector<62x620xf32> -> vector<62x620xf32>
    %9 = arith.addf %4, %8 : vector<62x620xf32>
    %10 = vector.extract_strided_slice %0 {offsets = [2, 0], sizes = [62, 192], strides = [1, 1]} : vector<64x192xf32> to vector<62x192xf32>
    %c2 = arith.constant 2 : index
    %c0_7 = arith.constant 0 : index
    %c0_8 = arith.constant 0 : index
    %11 = vector.load %arg1[%c2, %c0_7, %c0_8] : memref<3x192x620xf32, #tpu.memory_space<vmem>>, vector<1x192x620xf32>
    %12 = vector.shape_cast %11 : vector<1x192x620xf32> to vector<192x620xf32>
    %cst_9 = arith.constant dense<0.000000e+00> : vector<62x620xf32>
    %13 = tpu.matmul %10, %12, %cst_9 {dimension_numbers = #tpu.dot_dimension_numbers<[1], [0], [0], [1], [0, 0, 1, 1], [], []>} : vector<62x192xf32>, vector<192x620xf32>, vector<62x620xf32> -> vector<62x620xf32>
    %14 = arith.addf %9, %13 : vector<62x620xf32>
    %c0_10 = arith.constant 0 : index
    %c0_11 = arith.constant 0 : index
    %15 = vector.load %arg2[%c0_10, %c0_11] : memref<1x620xf32, #tpu.memory_space<vmem>>, vector<1x620xf32>
    %16 = vector.broadcast %15 : vector<1x620xf32> to vector<62x620xf32>
    %17 = arith.addf %14, %16 : vector<62x620xf32>
    %cst_12 = arith.constant 0.000000e+00 : f32
    %18 = vector.broadcast %cst_12 : f32 to vector<62x620xf32>
    %19 = arith.maximumf %17, %18 : vector<62x620xf32>
    %c0_13 = arith.constant 0 : index
    %c0_14 = arith.constant 0 : index
    %c0_15 = arith.constant 0 : index
    %20 = vector.load %arg3[%c0_13, %c0_14, %c0_15] : memref<2x31x62xf32, #tpu.memory_space<vmem>>, vector<1x31x62xf32>
    %21 = vector.shape_cast %20 : vector<1x31x62xf32> to vector<31x62xf32>
    %cst_16 = arith.constant dense<0.000000e+00> : vector<31x620xf32>
    %22 = tpu.matmul %21, %19, %cst_16 {dimension_numbers = #tpu.dot_dimension_numbers<[1], [0], [0], [1], [0, 0, 1, 1], [], []>} : vector<31x62xf32>, vector<62x620xf32>, vector<31x620xf32> -> vector<31x620xf32>
    %c1_17 = arith.constant 1 : index
    %c0_18 = arith.constant 0 : index
    %c0_19 = arith.constant 0 : index
    %23 = vector.load %arg3[%c1_17, %c0_18, %c0_19] : memref<2x31x62xf32, #tpu.memory_space<vmem>>, vector<1x31x62xf32>
    %24 = vector.shape_cast %23 : vector<1x31x62xf32> to vector<31x62xf32>
    %cst_20 = arith.constant dense<0.000000e+00> : vector<31x620xf32>
    %25 = tpu.matmul %24, %19, %cst_20 {dimension_numbers = #tpu.dot_dimension_numbers<[1], [0], [0], [1], [0, 0, 1, 1], [], []>} : vector<31x62xf32>, vector<62x620xf32>, vector<31x620xf32> -> vector<31x620xf32>
    %26 = arith.maximumf %22, %25 : vector<31x620xf32>
    %27 = vector.extract_strided_slice %26 {offsets = [0, 0], sizes = [31, 619], strides = [1, 1]} : vector<31x620xf32> to vector<31x619xf32>
    %28 = vector.extract_strided_slice %26 {offsets = [0, 1], sizes = [31, 619], strides = [1, 1]} : vector<31x620xf32> to vector<31x619xf32>
    %29 = arith.maximumf %27, %28 : vector<31x619xf32>
    %30 = vector.extract_strided_slice %29 {offsets = [0, 0], sizes = [29, 619], strides = [1, 1]} : vector<31x619xf32> to vector<29x619xf32>
    %c0_21 = arith.constant 0 : index
    %c0_22 = arith.constant 0 : index
    %c0_23 = arith.constant 0 : index
    %31 = vector.load %arg4[%c0_21, %c0_22, %c0_23] : memref<3x619x290xf32, #tpu.memory_space<vmem>>, vector<1x619x290xf32>
    %32 = vector.shape_cast %31 : vector<1x619x290xf32> to vector<619x290xf32>
    %cst_24 = arith.constant dense<0.000000e+00> : vector<29x290xf32>
    %33 = tpu.matmul %30, %32, %cst_24 {dimension_numbers = #tpu.dot_dimension_numbers<[1], [0], [0], [1], [0, 0, 1, 1], [], []>} : vector<29x619xf32>, vector<619x290xf32>, vector<29x290xf32> -> vector<29x290xf32>
    %34 = vector.extract_strided_slice %29 {offsets = [1, 0], sizes = [29, 619], strides = [1, 1]} : vector<31x619xf32> to vector<29x619xf32>
    %c1_25 = arith.constant 1 : index
    %c0_26 = arith.constant 0 : index
    %c0_27 = arith.constant 0 : index
    %35 = vector.load %arg4[%c1_25, %c0_26, %c0_27] : memref<3x619x290xf32, #tpu.memory_space<vmem>>, vector<1x619x290xf32>
    %36 = vector.shape_cast %35 : vector<1x619x290xf32> to vector<619x290xf32>
    %cst_28 = arith.constant dense<0.000000e+00> : vector<29x290xf32>
    %37 = tpu.matmul %34, %36, %cst_28 {dimension_numbers = #tpu.dot_dimension_numbers<[1], [0], [0], [1], [0, 0, 1, 1], [], []>} : vector<29x619xf32>, vector<619x290xf32>, vector<29x290xf32> -> vector<29x290xf32>
    %38 = arith.addf %33, %37 : vector<29x290xf32>
    %39 = vector.extract_strided_slice %29 {offsets = [2, 0], sizes = [29, 619], strides = [1, 1]} : vector<31x619xf32> to vector<29x619xf32>
    %c2_29 = arith.constant 2 : index
    %c0_30 = arith.constant 0 : index
    %c0_31 = arith.constant 0 : index
    %40 = vector.load %arg4[%c2_29, %c0_30, %c0_31] : memref<3x619x290xf32, #tpu.memory_space<vmem>>, vector<1x619x290xf32>
    %41 = vector.shape_cast %40 : vector<1x619x290xf32> to vector<619x290xf32>
    %cst_32 = arith.constant dense<0.000000e+00> : vector<29x290xf32>
    %42 = tpu.matmul %39, %41, %cst_32 {dimension_numbers = #tpu.dot_dimension_numbers<[1], [0], [0], [1], [0, 0, 1, 1], [], []>} : vector<29x619xf32>, vector<619x290xf32>, vector<29x290xf32> -> vector<29x290xf32>
    %43 = arith.addf %38, %42 : vector<29x290xf32>
    %c0_33 = arith.constant 0 : index
    %c0_34 = arith.constant 0 : index
    %44 = vector.load %arg5[%c0_33, %c0_34] : memref<1x290xf32, #tpu.memory_space<vmem>>, vector<1x290xf32>
    %45 = vector.broadcast %44 : vector<1x290xf32> to vector<29x290xf32>
    %46 = arith.addf %43, %45 : vector<29x290xf32>
    %cst_35 = arith.constant 0.000000e+00 : f32
    %47 = vector.broadcast %cst_35 : f32 to vector<29x290xf32>
    %48 = arith.maximumf %46, %47 : vector<29x290xf32>
    %c0_36 = arith.constant 0 : index
    %c0_37 = arith.constant 0 : index
    %c0_38 = arith.constant 0 : index
    %49 = vector.load %arg6[%c0_36, %c0_37, %c0_38] : memref<2x14x29xf32, #tpu.memory_space<vmem>>, vector<1x14x29xf32>
    %50 = vector.shape_cast %49 : vector<1x14x29xf32> to vector<14x29xf32>
    %cst_39 = arith.constant dense<0.000000e+00> : vector<14x290xf32>
    %51 = tpu.matmul %50, %48, %cst_39 {dimension_numbers = #tpu.dot_dimension_numbers<[1], [0], [0], [1], [0, 0, 1, 1], [], []>} : vector<14x29xf32>, vector<29x290xf32>, vector<14x290xf32> -> vector<14x290xf32>
    %c1_40 = arith.constant 1 : index
    %c0_41 = arith.constant 0 : index
    %c0_42 = arith.constant 0 : index
    %52 = vector.load %arg6[%c1_40, %c0_41, %c0_42] : memref<2x14x29xf32, #tpu.memory_space<vmem>>, vector<1x14x29xf32>
    %53 = vector.shape_cast %52 : vector<1x14x29xf32> to vector<14x29xf32>
    %cst_43 = arith.constant dense<0.000000e+00> : vector<14x290xf32>
    %54 = tpu.matmul %53, %48, %cst_43 {dimension_numbers = #tpu.dot_dimension_numbers<[1], [0], [0], [1], [0, 0, 1, 1], [], []>} : vector<14x29xf32>, vector<29x290xf32>, vector<14x290xf32> -> vector<14x290xf32>
    %55 = arith.maximumf %51, %54 : vector<14x290xf32>
    %56 = vector.extract_strided_slice %55 {offsets = [0, 0], sizes = [14, 289], strides = [1, 1]} : vector<14x290xf32> to vector<14x289xf32>
    %57 = vector.extract_strided_slice %55 {offsets = [0, 1], sizes = [14, 289], strides = [1, 1]} : vector<14x290xf32> to vector<14x289xf32>
    %58 = arith.maximumf %56, %57 : vector<14x289xf32>
    %c0_44 = arith.constant 0 : index
    %c0_45 = arith.constant 0 : index
    %59 = vector.load %arg8[%c0_44, %c0_45] : memref<1x10xf32, #tpu.memory_space<vmem>>, vector<1x10xf32>
    %60 = vector.extract_strided_slice %58 {offsets = [0, 0], sizes = [1, 289], strides = [1, 1]} : vector<14x289xf32> to vector<1x289xf32>
    %c0_46 = arith.constant 0 : index
    %c0_47 = arith.constant 0 : index
    %c0_48 = arith.constant 0 : index
    %61 = vector.load %arg7[%c0_46, %c0_47, %c0_48] : memref<14x289x10xf32, #tpu.memory_space<vmem>>, vector<1x289x10xf32>
    %62 = vector.shape_cast %61 : vector<1x289x10xf32> to vector<289x10xf32>
    %cst_49 = arith.constant dense<0.000000e+00> : vector<1x10xf32>
    %63 = tpu.matmul %60, %62, %cst_49 {dimension_numbers = #tpu.dot_dimension_numbers<[1], [0], [0], [1], [0, 0, 1, 1], [], []>} : vector<1x289xf32>, vector<289x10xf32>, vector<1x10xf32> -> vector<1x10xf32>
    %64 = arith.addf %59, %63 : vector<1x10xf32>
    %65 = vector.extract_strided_slice %58 {offsets = [1, 0], sizes = [1, 289], strides = [1, 1]} : vector<14x289xf32> to vector<1x289xf32>
    %c1_50 = arith.constant 1 : index
    %c0_51 = arith.constant 0 : index
    %c0_52 = arith.constant 0 : index
    %66 = vector.load %arg7[%c1_50, %c0_51, %c0_52] : memref<14x289x10xf32, #tpu.memory_space<vmem>>, vector<1x289x10xf32>
    %67 = vector.shape_cast %66 : vector<1x289x10xf32> to vector<289x10xf32>
    %cst_53 = arith.constant dense<0.000000e+00> : vector<1x10xf32>
    %68 = tpu.matmul %65, %67, %cst_53 {dimension_numbers = #tpu.dot_dimension_numbers<[1], [0], [0], [1], [0, 0, 1, 1], [], []>} : vector<1x289xf32>, vector<289x10xf32>, vector<1x10xf32> -> vector<1x10xf32>
    %69 = arith.addf %64, %68 : vector<1x10xf32>
    %70 = vector.extract_strided_slice %58 {offsets = [2, 0], sizes = [1, 289], strides = [1, 1]} : vector<14x289xf32> to vector<1x289xf32>
    %c2_54 = arith.constant 2 : index
    %c0_55 = arith.constant 0 : index
    %c0_56 = arith.constant 0 : index
    %71 = vector.load %arg7[%c2_54, %c0_55, %c0_56] : memref<14x289x10xf32, #tpu.memory_space<vmem>>, vector<1x289x10xf32>
    %72 = vector.shape_cast %71 : vector<1x289x10xf32> to vector<289x10xf32>
    %cst_57 = arith.constant dense<0.000000e+00> : vector<1x10xf32>
    %73 = tpu.matmul %70, %72, %cst_57 {dimension_numbers = #tpu.dot_dimension_numbers<[1], [0], [0], [1], [0, 0, 1, 1], [], []>} : vector<1x289xf32>, vector<289x10xf32>, vector<1x10xf32> -> vector<1x10xf32>
    %74 = arith.addf %69, %73 : vector<1x10xf32>
    %75 = vector.extract_strided_slice %58 {offsets = [3, 0], sizes = [1, 289], strides = [1, 1]} : vector<14x289xf32> to vector<1x289xf32>
    %c3 = arith.constant 3 : index
    %c0_58 = arith.constant 0 : index
    %c0_59 = arith.constant 0 : index
    %76 = vector.load %arg7[%c3, %c0_58, %c0_59] : memref<14x289x10xf32, #tpu.memory_space<vmem>>, vector<1x289x10xf32>
    %77 = vector.shape_cast %76 : vector<1x289x10xf32> to vector<289x10xf32>
    %cst_60 = arith.constant dense<0.000000e+00> : vector<1x10xf32>
    %78 = tpu.matmul %75, %77, %cst_60 {dimension_numbers = #tpu.dot_dimension_numbers<[1], [0], [0], [1], [0, 0, 1, 1], [], []>} : vector<1x289xf32>, vector<289x10xf32>, vector<1x10xf32> -> vector<1x10xf32>
    %79 = arith.addf %74, %78 : vector<1x10xf32>
    %80 = vector.extract_strided_slice %58 {offsets = [4, 0], sizes = [1, 289], strides = [1, 1]} : vector<14x289xf32> to vector<1x289xf32>
    %c4 = arith.constant 4 : index
    %c0_61 = arith.constant 0 : index
    %c0_62 = arith.constant 0 : index
    %81 = vector.load %arg7[%c4, %c0_61, %c0_62] : memref<14x289x10xf32, #tpu.memory_space<vmem>>, vector<1x289x10xf32>
    %82 = vector.shape_cast %81 : vector<1x289x10xf32> to vector<289x10xf32>
    %cst_63 = arith.constant dense<0.000000e+00> : vector<1x10xf32>
    %83 = tpu.matmul %80, %82, %cst_63 {dimension_numbers = #tpu.dot_dimension_numbers<[1], [0], [0], [1], [0, 0, 1, 1], [], []>} : vector<1x289xf32>, vector<289x10xf32>, vector<1x10xf32> -> vector<1x10xf32>
    %84 = arith.addf %79, %83 : vector<1x10xf32>
    %85 = vector.extract_strided_slice %58 {offsets = [5, 0], sizes = [1, 289], strides = [1, 1]} : vector<14x289xf32> to vector<1x289xf32>
    %c5 = arith.constant 5 : index
    %c0_64 = arith.constant 0 : index
    %c0_65 = arith.constant 0 : index
    %86 = vector.load %arg7[%c5, %c0_64, %c0_65] : memref<14x289x10xf32, #tpu.memory_space<vmem>>, vector<1x289x10xf32>
    %87 = vector.shape_cast %86 : vector<1x289x10xf32> to vector<289x10xf32>
    %cst_66 = arith.constant dense<0.000000e+00> : vector<1x10xf32>
    %88 = tpu.matmul %85, %87, %cst_66 {dimension_numbers = #tpu.dot_dimension_numbers<[1], [0], [0], [1], [0, 0, 1, 1], [], []>} : vector<1x289xf32>, vector<289x10xf32>, vector<1x10xf32> -> vector<1x10xf32>
    %89 = arith.addf %84, %88 : vector<1x10xf32>
    %90 = vector.extract_strided_slice %58 {offsets = [6, 0], sizes = [1, 289], strides = [1, 1]} : vector<14x289xf32> to vector<1x289xf32>
    %c6 = arith.constant 6 : index
    %c0_67 = arith.constant 0 : index
    %c0_68 = arith.constant 0 : index
    %91 = vector.load %arg7[%c6, %c0_67, %c0_68] : memref<14x289x10xf32, #tpu.memory_space<vmem>>, vector<1x289x10xf32>
    %92 = vector.shape_cast %91 : vector<1x289x10xf32> to vector<289x10xf32>
    %cst_69 = arith.constant dense<0.000000e+00> : vector<1x10xf32>
    %93 = tpu.matmul %90, %92, %cst_69 {dimension_numbers = #tpu.dot_dimension_numbers<[1], [0], [0], [1], [0, 0, 1, 1], [], []>} : vector<1x289xf32>, vector<289x10xf32>, vector<1x10xf32> -> vector<1x10xf32>
    %94 = arith.addf %89, %93 : vector<1x10xf32>
    %95 = vector.extract_strided_slice %58 {offsets = [7, 0], sizes = [1, 289], strides = [1, 1]} : vector<14x289xf32> to vector<1x289xf32>
    %c7 = arith.constant 7 : index
    %c0_70 = arith.constant 0 : index
    %c0_71 = arith.constant 0 : index
    %96 = vector.load %arg7[%c7, %c0_70, %c0_71] : memref<14x289x10xf32, #tpu.memory_space<vmem>>, vector<1x289x10xf32>
    %97 = vector.shape_cast %96 : vector<1x289x10xf32> to vector<289x10xf32>
    %cst_72 = arith.constant dense<0.000000e+00> : vector<1x10xf32>
    %98 = tpu.matmul %95, %97, %cst_72 {dimension_numbers = #tpu.dot_dimension_numbers<[1], [0], [0], [1], [0, 0, 1, 1], [], []>} : vector<1x289xf32>, vector<289x10xf32>, vector<1x10xf32> -> vector<1x10xf32>
    %99 = arith.addf %94, %98 : vector<1x10xf32>
    %100 = vector.extract_strided_slice %58 {offsets = [8, 0], sizes = [1, 289], strides = [1, 1]} : vector<14x289xf32> to vector<1x289xf32>
    %c8 = arith.constant 8 : index
    %c0_73 = arith.constant 0 : index
    %c0_74 = arith.constant 0 : index
    %101 = vector.load %arg7[%c8, %c0_73, %c0_74] : memref<14x289x10xf32, #tpu.memory_space<vmem>>, vector<1x289x10xf32>
    %102 = vector.shape_cast %101 : vector<1x289x10xf32> to vector<289x10xf32>
    %cst_75 = arith.constant dense<0.000000e+00> : vector<1x10xf32>
    %103 = tpu.matmul %100, %102, %cst_75 {dimension_numbers = #tpu.dot_dimension_numbers<[1], [0], [0], [1], [0, 0, 1, 1], [], []>} : vector<1x289xf32>, vector<289x10xf32>, vector<1x10xf32> -> vector<1x10xf32>
    %104 = arith.addf %99, %103 : vector<1x10xf32>
    %105 = vector.extract_strided_slice %58 {offsets = [9, 0], sizes = [1, 289], strides = [1, 1]} : vector<14x289xf32> to vector<1x289xf32>
    %c9 = arith.constant 9 : index
    %c0_76 = arith.constant 0 : index
    %c0_77 = arith.constant 0 : index
    %106 = vector.load %arg7[%c9, %c0_76, %c0_77] : memref<14x289x10xf32, #tpu.memory_space<vmem>>, vector<1x289x10xf32>
    %107 = vector.shape_cast %106 : vector<1x289x10xf32> to vector<289x10xf32>
    %cst_78 = arith.constant dense<0.000000e+00> : vector<1x10xf32>
    %108 = tpu.matmul %105, %107, %cst_78 {dimension_numbers = #tpu.dot_dimension_numbers<[1], [0], [0], [1], [0, 0, 1, 1], [], []>} : vector<1x289xf32>, vector<289x10xf32>, vector<1x10xf32> -> vector<1x10xf32>
    %109 = arith.addf %104, %108 : vector<1x10xf32>
    %110 = vector.extract_strided_slice %58 {offsets = [10, 0], sizes = [1, 289], strides = [1, 1]} : vector<14x289xf32> to vector<1x289xf32>
    %c10 = arith.constant 10 : index
    %c0_79 = arith.constant 0 : index
    %c0_80 = arith.constant 0 : index
    %111 = vector.load %arg7[%c10, %c0_79, %c0_80] : memref<14x289x10xf32, #tpu.memory_space<vmem>>, vector<1x289x10xf32>
    %112 = vector.shape_cast %111 : vector<1x289x10xf32> to vector<289x10xf32>
    %cst_81 = arith.constant dense<0.000000e+00> : vector<1x10xf32>
    %113 = tpu.matmul %110, %112, %cst_81 {dimension_numbers = #tpu.dot_dimension_numbers<[1], [0], [0], [1], [0, 0, 1, 1], [], []>} : vector<1x289xf32>, vector<289x10xf32>, vector<1x10xf32> -> vector<1x10xf32>
    %114 = arith.addf %109, %113 : vector<1x10xf32>
    %115 = vector.extract_strided_slice %58 {offsets = [11, 0], sizes = [1, 289], strides = [1, 1]} : vector<14x289xf32> to vector<1x289xf32>
    %c11 = arith.constant 11 : index
    %c0_82 = arith.constant 0 : index
    %c0_83 = arith.constant 0 : index
    %116 = vector.load %arg7[%c11, %c0_82, %c0_83] : memref<14x289x10xf32, #tpu.memory_space<vmem>>, vector<1x289x10xf32>
    %117 = vector.shape_cast %116 : vector<1x289x10xf32> to vector<289x10xf32>
    %cst_84 = arith.constant dense<0.000000e+00> : vector<1x10xf32>
    %118 = tpu.matmul %115, %117, %cst_84 {dimension_numbers = #tpu.dot_dimension_numbers<[1], [0], [0], [1], [0, 0, 1, 1], [], []>} : vector<1x289xf32>, vector<289x10xf32>, vector<1x10xf32> -> vector<1x10xf32>
    %119 = arith.addf %114, %118 : vector<1x10xf32>
    %120 = vector.extract_strided_slice %58 {offsets = [12, 0], sizes = [1, 289], strides = [1, 1]} : vector<14x289xf32> to vector<1x289xf32>
    %c12 = arith.constant 12 : index
    %c0_85 = arith.constant 0 : index
    %c0_86 = arith.constant 0 : index
    %121 = vector.load %arg7[%c12, %c0_85, %c0_86] : memref<14x289x10xf32, #tpu.memory_space<vmem>>, vector<1x289x10xf32>
    %122 = vector.shape_cast %121 : vector<1x289x10xf32> to vector<289x10xf32>
    %cst_87 = arith.constant dense<0.000000e+00> : vector<1x10xf32>
    %123 = tpu.matmul %120, %122, %cst_87 {dimension_numbers = #tpu.dot_dimension_numbers<[1], [0], [0], [1], [0, 0, 1, 1], [], []>} : vector<1x289xf32>, vector<289x10xf32>, vector<1x10xf32> -> vector<1x10xf32>
    %124 = arith.addf %119, %123 : vector<1x10xf32>
    %125 = vector.extract_strided_slice %58 {offsets = [13, 0], sizes = [1, 289], strides = [1, 1]} : vector<14x289xf32> to vector<1x289xf32>
    %c13 = arith.constant 13 : index
    %c0_88 = arith.constant 0 : index
    %c0_89 = arith.constant 0 : index
    %126 = vector.load %arg7[%c13, %c0_88, %c0_89] : memref<14x289x10xf32, #tpu.memory_space<vmem>>, vector<1x289x10xf32>
    %127 = vector.shape_cast %126 : vector<1x289x10xf32> to vector<289x10xf32>
    %cst_90 = arith.constant dense<0.000000e+00> : vector<1x10xf32>
    %128 = tpu.matmul %125, %127, %cst_90 {dimension_numbers = #tpu.dot_dimension_numbers<[1], [0], [0], [1], [0, 0, 1, 1], [], []>} : vector<1x289xf32>, vector<289x10xf32>, vector<1x10xf32> -> vector<1x10xf32>
    %129 = arith.addf %124, %128 : vector<1x10xf32>
    %c0_91 = arith.constant 0 : index
    %c0_92 = arith.constant 0 : index
    %130 = vector.load %arg9[%c0_91, %c0_92] : memref<1x10xf32, #tpu.memory_space<vmem>>, vector<1x10xf32>
    tpu.vector_store %arg9[%c0_91, %c0_92], %129 {strides = array<i32>} : memref<1x10xf32, #tpu.memory_space<vmem>>, vector<1x10xf32>,
    return
  }
}

</mosaic_0001>

<llo_original>
// kernel: model_forward.1
$region0: #{model_forward.1}
  #allocation0 [shape = 'u32[]', space=smem, size = 0x4, offset = 0x4, fixed_abs, tag = 'smem constant byte address 0x4 - core index']
  #allocation1 [shape = 'u32[72,128]{1,0:T(1,128)}', space=vmem, size = 0x9000, scoped, tag = 'internal scratch']
  %s0 = inlined_call_operand.vmem [shape: f32[64,192], index: 0, kind: input, shape index: {}]
  %s1 = inlined_call_operand.vmem [shape: f32[3,192,620], index: 1, kind: input, shape index: {}]
  %s2 = inlined_call_operand.vmem [shape: f32[1,620], index: 2, kind: input, shape index: {}]
  %s3 = inlined_call_operand.vmem [shape: f32[2,31,62], index: 3, kind: input, shape index: {}]
  %s4 = inlined_call_operand.vmem [shape: f32[3,619,290], index: 4, kind: input, shape index: {}]
  %s5 = inlined_call_operand.vmem [shape: f32[1,290], index: 5, kind: input, shape index: {}]
  %s6 = inlined_call_operand.vmem [shape: f32[2,14,29], index: 6, kind: input, shape index: {}]
  %s7 = inlined_call_operand.vmem [shape: f32[14,289,10], index: 7, kind: input, shape index: {}]
  %s8 = inlined_call_operand.vmem [shape: f32[1,10], index: 8, kind: input, shape index: {}]
  %s9 = inlined_call_operand.hbm [shape: f32[1,10], index: 9, kind: output, shape index: {}]
  %s10 = sld [smem:[#allocation0]]
  $region46: #{model_forward.1} parent=0
    _
  %s12 = ssub.s32 1, %s10
  %s13 = scalar_select 0, %s12, %s10
  $region1: #{model_forward.1} parent=0
    #allocation2 [shape = 'u8[512]{0}', space=vmem, size = 0x400, scoped, tag = 'output window, operand 0, single buffered']
    #allocation3 [shape = 's32[1]{0}', space=sflag, size = 0x4, scoped, tag = 'scoped memory for model_forward.1']
    %14 = vsyncpa [#allocation3], 0
    // Predicated region
    $region2: #{model_forward.1} parent=1 // pred_check
      _
    $region3: #{model_forward.1} parent=1 // pred_check_branch
      %16 = sbr.rel (0) target = $region5
    $region4: #{model_forward.1} parent=1 // pred_region
      _
    $region5: #{model_forward.1} parent=1 // pred_fallthru
      _
    // Predicated region
    $region6: #{model_forward.1} parent=1 // pred_check
      _
    $region7: #{model_forward.1} parent=1 // pred_check_branch
      %18 = sbr.rel (0) target = $region9
    $region8: #{model_forward.1} parent=1 // pred_region
      _
    $region9: #{model_forward.1} parent=1 // pred_fallthru
      _
    // Predicated region
    $region10: #{model_forward.1} parent=1 // pred_check
      _
    $region11: #{model_forward.1} parent=1 // pred_check_branch
      %20 = sbr.rel (0) target = $region13
    $region12: #{model_forward.1} parent=1 // pred_region
      _
    $region13: #{model_forward.1} parent=1 // pred_fallthru
      _
    // Predicated region
    $region14: #{model_forward.1} parent=1 // pred_check
      _
    $region15: #{model_forward.1} parent=1 // pred_check_branch
      %22 = sbr.rel (0) target = $region17
    $region16: #{model_forward.1} parent=1 // pred_region
      _
    $region17: #{model_forward.1} parent=1 // pred_fallthru
      _
    // Predicated region
    $region18: #{model_forward.1} parent=1 // pred_check
      _
    $region19: #{model_forward.1} parent=1 // pred_check_branch
      %24 = sbr.rel (0) target = $region21
    $region20: #{model_forward.1} parent=1 // pred_region
      _
    $region21: #{model_forward.1} parent=1 // pred_fallthru
      _
    // Predicated region
    $region22: #{model_forward.1} parent=1 // pred_check
      _
    $region23: #{model_forward.1} parent=1 // pred_check_branch
      %26 = sbr.rel (0) target = $region25
    $region24: #{model_forward.1} parent=1 // pred_region
      _
    $region25: #{model_forward.1} parent=1 // pred_fallthru
      _
    // Predicated region
    $region26: #{model_forward.1} parent=1 // pred_check
      _
    $region27: #{model_forward.1} parent=1 // pred_check_branch
      %28 = sbr.rel (0) target = $region29
    $region28: #{model_forward.1} parent=1 // pred_region
      _
    $region29: #{model_forward.1} parent=1 // pred_fallthru
      _
    // Predicated region
    $region30: #{model_forward.1} parent=1 // pred_check
      _
    $region31: #{model_forward.1} parent=1 // pred_check_branch
      %30 = sbr.rel (0) target = $region33
    $region32: #{model_forward.1} parent=1 // pred_region
      _
    $region33: #{model_forward.1} parent=1 // pred_fallthru
      _
    // Predicated region
    $region34: #{model_forward.1} parent=1 // pred_check
      _
    $region35: #{model_forward.1} parent=1 // pred_check_branch
      %32 = sbr.rel (0) target = $region37
    $region36: #{model_forward.1} parent=1 // pred_region
      _
    $region37: #{model_forward.1} parent=1 // pred_fallthru
      _
    %v33 = vld [vmem:[%s0] sm:$0xff]
    %v34 = vld [vmem:[%s0 + $0x8] sm:$0xff]
    %v35 = vld [vmem:[%s0 + $0x10] sm:$0xff]
    %v36 = vld [vmem:[%s0 + $0x18] sm:$0xff]
    %v37 = vld [vmem:[%s0 + $0x20] sm:$0xff]
    %v38 = vld [vmem:[%s0 + $0x28] sm:$0xff]
    %v39 = vld [vmem:[%s0 + $0x30] sm:$0xff]
    %v40 = vld [vmem:[%s0 + $0x38] sm:$0xff]
    %v41 = vld [vmem:[%s0 + $0x40] sm:$0xff]
    %v42 = vld [vmem:[%s0 + $0x48] sm:$0xff]
    %v43 = vld [vmem:[%s0 + $0x50] sm:$0xff]
    %v44 = vld [vmem:[%s0 + $0x58] sm:$0xff]
    %v45 = vld [vmem:[%s0 + $0x60] sm:$0xff]
    %v46 = vld [vmem:[%s0 + $0x68] sm:$0xff]
    %v47 = vld [vmem:[%s0 + $0x70] sm:$0xff]
    %v48 = vld [vmem:[%s0 + $0x78] sm:$0xff]
    %v49 = vld [vmem:[%s1] sm:$0xff]
    %v50 = vld [vmem:[%s1 + $0x8] sm:$0xff]
    %v51 = vld [vmem:[%s1 + $0x10] sm:$0xff]
    %v52 = vld [vmem:[%s1 + $0x18] sm:$0xff]
    %v53 = vld [vmem:[%s1 + $0x20] sm:$0xff]
    %v54 = vld [vmem:[%s1 + $0x28] sm:$0xff]
    %v55 = vld [vmem:[%s1 + $0x30] sm:$0xff]
    %v56 = vld [vmem:[%s1 + $0x38] sm:$0xff]
    %v57 = vld [vmem:[%s1 + $0x40] sm:$0xff]
    %v58 = vld [vmem:[%s1 + $0x48] sm:$0xff]
    %v59 = vld [vmem:[%s1 + $0x50] sm:$0xff]
    %v60 = vld [vmem:[%s1 + $0x58] sm:$0xff]
    %v61 = vld [vmem:[%s1 + $0x60] sm:$0xff]
    %v62 = vld [vmem:[%s1 + $0x68] sm:$0xff]
    %v63 = vld [vmem:[%s1 + $0x70] sm:$0xff]
    %v64 = vld [vmem:[%s1 + $0x78] sm:$0xff]
    %v65 = vld [vmem:[%s1 + $0x80] sm:$0xff]
    %v66 = vld [vmem:[%s1 + $0x88] sm:$0xff]
    %v67 = vld [vmem:[%s1 + $0x90] sm:$0xff]
    %v68 = vld [vmem:[%s1 + $0x98] sm:$0xff]
    %v69 = vld [vmem:[%s1 + $0xa0] sm:$0xff]
    %v70 = vld [vmem:[%s1 + $0xa8] sm:$0xff]
    %v71 = vld [vmem:[%s1 + $0xb0] sm:$0xff]
    %v72 = vld [vmem:[%s1 + $0xb8] sm:$0xff]
    %v73 = vld [vmem:[%s1 + $0xc0] sm:$0xff]
    %v74 = vld [vmem:[%s1 + $0xc8] sm:$0xff]
    %v75 = vld [vmem:[%s1 + $0xd0] sm:$0xff]
    %v76 = vld [vmem:[%s1 + $0xd8] sm:$0xff]
    %v77 = vld [vmem:[%s1 + $0xe0] sm:$0xff]
    %v78 = vld [vmem:[%s1 + $0xe8] sm:$0xff]
    %v79 = vld [vmem:[%s1 + $0xf0] sm:$0xff]
    %v80 = vld [vmem:[%s1 + $0xf8] sm:$0xff]
    %v81 = vld [vmem:[%s1 + $0x100] sm:$0xff]
    %v82 = vld [vmem:[%s1 + $0x108] sm:$0xff]
    %v83 = vld [vmem:[%s1 + $0x110] sm:$0xff]
    %v84 = vld [vmem:[%s1 + $0x118] sm:$0xff]
    %v85 = vld [vmem:[%s1 + $0x120] sm:$0xff]
    %v86 = vld [vmem:[%s1 + $0x128] sm:$0xff]
    %v87 = vld [vmem:[%s1 + $0x130] sm:$0xff]
    %v88 = vld [vmem:[%s1 + $0x138] sm:$0xff]
    %v89 = vld [vmem:[%s1 + $0x140] sm:$0xff]
    %v90 = vld [vmem:[%s1 + $0x148] sm:$0xff]
    %v91 = vld [vmem:[%s1 + $0x150] sm:$0xff]
    %v92 = vld [vmem:[%s1 + $0x158] sm:$0xff]
    %v93 = vld [vmem:[%s1 + $0x160] sm:$0xff]
    %v94 = vld [vmem:[%s1 + $0x168] sm:$0xff]
    %v95 = vld [vmem:[%s1 + $0x170] sm:$0xff]
    %v96 = vld [vmem:[%s1 + $0x178] sm:$0xff]
    %v97 = vld [vmem:[%s1 + $0x180] sm:$0xff]
    %v98 = vld [vmem:[%s1 + $0x188] sm:$0xff]
    %v99 = vld [vmem:[%s1 + $0x190] sm:$0xff]
    %v100 = vld [vmem:[%s1 + $0x198] sm:$0xff]
    %v101 = vld [vmem:[%s1 + $0x1a0] sm:$0xff]
    %v102 = vld [vmem:[%s1 + $0x1a8] sm:$0xff]
    %v103 = vld [vmem:[%s1 + $0x1b0] sm:$0xff]
    %v104 = vld [vmem:[%s1 + $0x1b8] sm:$0xff]
    %v105 = vld [vmem:[%s1 + $0x1c0] sm:$0xff]
    %v106 = vld [vmem:[%s1 + $0x1c8] sm:$0xff]
    %v107 = vld [vmem:[%s1 + $0x1d0] sm:$0xff]
    %v108 = vld [vmem:[%s1 + $0x1d8] sm:$0xff]
    %v109 = vld [vmem:[%s1 + $0x1e0] sm:$0xff]
    %v110 = vld [vmem:[%s1 + $0x1e8] sm:$0xff]
    %v111 = vld [vmem:[%s1 + $0x1f0] sm:$0xff]
    %v112 = vld [vmem:[%s1 + $0x1f8] sm:$0xff]
    %v113 = vld [vmem:[%s1 + $0x200] sm:$0xff]
    %v114 = vld [vmem:[%s1 + $0x208] sm:$0xff]
    %v115 = vld [vmem:[%s1 + $0x210] sm:$0xff]
    %v116 = vld [vmem:[%s1 + $0x218] sm:$0xff]
    %v117 = vld [vmem:[%s1 + $0x220] sm:$0xff]
    %v118 = vld [vmem:[%s1 + $0x228] sm:$0xff]
    %v119 = vld [vmem:[%s1 + $0x230] sm:$0xff]
    %v120 = vld [vmem:[%s1 + $0x238] sm:$0xff]
    %v121 = vld [vmem:[%s1 + $0x240] sm:$0xff]
    %v122 = vld [vmem:[%s1 + $0x248] sm:$0xff]
    %v123 = vld [vmem:[%s1 + $0x250] sm:$0xff]
    %v124 = vld [vmem:[%s1 + $0x258] sm:$0xff]
    %v125 = vld [vmem:[%s1 + $0x260] sm:$0xff]
    %v126 = vld [vmem:[%s1 + $0x268] sm:$0xff]
    %v127 = vld [vmem:[%s1 + $0x270] sm:$0xff]
    %v128 = vld [vmem:[%s1 + $0x278] sm:$0xff]
    %v129 = vld [vmem:[%s1 + $0x280] sm:$0xff]
    %v130 = vld [vmem:[%s1 + $0x288] sm:$0xff]
    %v131 = vld [vmem:[%s1 + $0x290] sm:$0xff]
    %v132 = vld [vmem:[%s1 + $0x298] sm:$0xff]
    %v133 = vld [vmem:[%s1 + $0x2a0] sm:$0xff]
    %v134 = vld [vmem:[%s1 + $0x2a8] sm:$0xff]
    %v135 = vld [vmem:[%s1 + $0x2b0] sm:$0xff]
    %v136 = vld [vmem:[%s1 + $0x2b8] sm:$0xff]
    %v137 = vld [vmem:[%s1 + $0x2c0] sm:$0xff]
    %v138 = vld [vmem:[%s1 + $0x2c8] sm:$0xff]
    %v139 = vld [vmem:[%s1 + $0x2d0] sm:$0xff]
    %v140 = vld [vmem:[%s1 + $0x2d8] sm:$0xff]
    %v141 = vld [vmem:[%s1 + $0x2e0] sm:$0xff]
    %v142 = vld [vmem:[%s1 + $0x2e8] sm:$0xff]
    %v143 = vld [vmem:[%s1 + $0x2f0] sm:$0xff]
    %v144 = vld [vmem:[%s1 + $0x2f8] sm:$0xff]
    %v145 = vld [vmem:[%s1 + $0x300] sm:$0xff]
    %v146 = vld [vmem:[%s1 + $0x308] sm:$0xff]
    %v147 = vld [vmem:[%s1 + $0x310] sm:$0xff]
    %v148 = vld [vmem:[%s1 + $0x318] sm:$0xff]
    %v149 = vld [vmem:[%s1 + $0x320] sm:$0xff]
    %v150 = vld [vmem:[%s1 + $0x328] sm:$0xff]
    %v151 = vld [vmem:[%s1 + $0x330] sm:$0xff]
    %v152 = vld [vmem:[%s1 + $0x338] sm:$0xff]
    %v153 = vld [vmem:[%s1 + $0x340] sm:$0xff]
    %v154 = vld [vmem:[%s1 + $0x348] sm:$0xff]
    %v155 = vld [vmem:[%s1 + $0x350] sm:$0xff]
    %v156 = vld [vmem:[%s1 + $0x358] sm:$0xff]
    %v157 = vld [vmem:[%s1 + $0x360] sm:$0xff]
    %v158 = vld [vmem:[%s1 + $0x368] sm:$0xff]
    %v159 = vld [vmem:[%s1 + $0x370] sm:$0xff]
    %v160 = vld [vmem:[%s1 + $0x378] sm:$0xff]
    %v161 = vld [vmem:[%s1 + $0x380] sm:$0xff]
    %v162 = vld [vmem:[%s1 + $0x388] sm:$0xff]
    %v163 = vld [vmem:[%s1 + $0x390] sm:$0xff]
    %v164 = vld [vmem:[%s1 + $0x398] sm:$0xff]
    %v165 = vld [vmem:[%s1 + $0x3a0] sm:$0xff]
    %v166 = vld [vmem:[%s1 + $0x3a8] sm:$0xff]
    %v167 = vld [vmem:[%s1 + $0x3b0] sm:$0xff]
    %v168 = vld [vmem:[%s1 + $0x3b8] sm:$0xff]
    %s169 = scalar_lea.vmem %s1, 960
    %v170 = vld [vmem:[%s169] sm:$0xff]
    %v171 = vld [vmem:[%s169 + $0x8] sm:$0xff]
    %v172 = vld [vmem:[%s169 + $0x10] sm:$0xff]
    %v173 = vld [vmem:[%s169 + $0x18] sm:$0xff]
    %v174 = vld [vmem:[%s169 + $0x20] sm:$0xff]
    %v175 = vld [vmem:[%s169 + $0x28] sm:$0xff]
    %v176 = vld [vmem:[%s169 + $0x30] sm:$0xff]
    %v177 = vld [vmem:[%s169 + $0x38] sm:$0xff]
    %v178 = vld [vmem:[%s169 + $0x40] sm:$0xff]
    %v179 = vld [vmem:[%s169 + $0x48] sm:$0xff]
    %v180 = vld [vmem:[%s169 + $0x50] sm:$0xff]
    %v181 = vld [vmem:[%s169 + $0x58] sm:$0xff]
    %v182 = vld [vmem:[%s169 + $0x60] sm:$0xff]
    %v183 = vld [vmem:[%s169 + $0x68] sm:$0xff]
    %v184 = vld [vmem:[%s169 + $0x70] sm:$0xff]
    %v185 = vld [vmem:[%s169 + $0x78] sm:$0xff]
    %v186 = vld [vmem:[%s169 + $0x80] sm:$0xff]
    %v187 = vld [vmem:[%s169 + $0x88] sm:$0xff]
    %v188 = vld [vmem:[%s169 + $0x90] sm:$0xff]
    %v189 = vld [vmem:[%s169 + $0x98] sm:$0xff]
    %v190 = vld [vmem:[%s169 + $0xa0] sm:$0xff]
    %v191 = vld [vmem:[%s169 + $0xa8] sm:$0xff]
    %v192 = vld [vmem:[%s169 + $0xb0] sm:$0xff]
    %v193 = vld [vmem:[%s169 + $0xb8] sm:$0xff]
    %v194 = vld [vmem:[%s169 + $0xc0] sm:$0xff]
    %v195 = vld [vmem:[%s169 + $0xc8] sm:$0xff]
    %v196 = vld [vmem:[%s169 + $0xd0] sm:$0xff]
    %v197 = vld [vmem:[%s169 + $0xd8] sm:$0xff]
    %v198 = vld [vmem:[%s169 + $0xe0] sm:$0xff]
    %v199 = vld [vmem:[%s169 + $0xe8] sm:$0xff]
    %v200 = vld [vmem:[%s169 + $0xf0] sm:$0xff]
    %v201 = vld [vmem:[%s169 + $0xf8] sm:$0xff]
    %v202 = vld [vmem:[%s169 + $0x100] sm:$0xff]
    %v203 = vld [vmem:[%s169 + $0x108] sm:$0xff]
    %v204 = vld [vmem:[%s169 + $0x110] sm:$0xff]
    %v205 = vld [vmem:[%s169 + $0x118] sm:$0xff]
    %v206 = vld [vmem:[%s169 + $0x120] sm:$0xff]
    %v207 = vld [vmem:[%s169 + $0x128] sm:$0xff]
    %v208 = vld [vmem:[%s169 + $0x130] sm:$0xff]
    %v209 = vld [vmem:[%s169 + $0x138] sm:$0xff]
    %v210 = vld [vmem:[%s169 + $0x140] sm:$0xff]
    %v211 = vld [vmem:[%s169 + $0x148] sm:$0xff]
    %v212 = vld [vmem:[%s169 + $0x150] sm:$0xff]
    %v213 = vld [vmem:[%s169 + $0x158] sm:$0xff]
    %v214 = vld [vmem:[%s169 + $0x160] sm:$0xff]
    %v215 = vld [vmem:[%s169 + $0x168] sm:$0xff]
    %v216 = vld [vmem:[%s169 + $0x170] sm:$0xff]
    %v217 = vld [vmem:[%s169 + $0x178] sm:$0xff]
    %v218 = vld [vmem:[%s169 + $0x180] sm:$0xff]
    %v219 = vld [vmem:[%s169 + $0x188] sm:$0xff]
    %v220 = vld [vmem:[%s169 + $0x190] sm:$0xff]
    %v221 = vld [vmem:[%s169 + $0x198] sm:$0xff]
    %v222 = vld [vmem:[%s169 + $0x1a0] sm:$0xff]
    %v223 = vld [vmem:[%s169 + $0x1a8] sm:$0xff]
    %v224 = vld [vmem:[%s169 + $0x1b0] sm:$0xff]
    %v225 = vld [vmem:[%s169 + $0x1b8] sm:$0xff]
    %v226 = vld [vmem:[%s169 + $0x1c0] sm:$0xff]
    %v227 = vld [vmem:[%s169 + $0x1c8] sm:$0xff]
    %v228 = vld [vmem:[%s169 + $0x1d0] sm:$0xff]
    %v229 = vld [vmem:[%s169 + $0x1d8] sm:$0xff]
    %v230 = vld [vmem:[%s169 + $0x1e0] sm:$0xff]
    %v231 = vld [vmem:[%s169 + $0x1e8] sm:$0xff]
    %v232 = vld [vmem:[%s169 + $0x1f0] sm:$0xff]
    %v233 = vld [vmem:[%s169 + $0x1f8] sm:$0xff]
    %v234 = vld [vmem:[%s169 + $0x200] sm:$0xff]
    %v235 = vld [vmem:[%s169 + $0x208] sm:$0xff]
    %v236 = vld [vmem:[%s169 + $0x210] sm:$0xff]
    %v237 = vld [vmem:[%s169 + $0x218] sm:$0xff]
    %v238 = vld [vmem:[%s169 + $0x220] sm:$0xff]
    %v239 = vld [vmem:[%s169 + $0x228] sm:$0xff]
    %v240 = vld [vmem:[%s169 + $0x230] sm:$0xff]
    %v241 = vld [vmem:[%s169 + $0x238] sm:$0xff]
    %v242 = vld [vmem:[%s169 + $0x240] sm:$0xff]
    %v243 = vld [vmem:[%s169 + $0x248] sm:$0xff]
    %v244 = vld [vmem:[%s169 + $0x250] sm:$0xff]
    %v245 = vld [vmem:[%s169 + $0x258] sm:$0xff]
    %v246 = vld [vmem:[%s169 + $0x260] sm:$0xff]
    %v247 = vld [vmem:[%s169 + $0x268] sm:$0xff]
    %v248 = vld [vmem:[%s169 + $0x270] sm:$0xff]
    %v249 = vld [vmem:[%s169 + $0x278] sm:$0xff]
    %v250 = vld [vmem:[%s169 + $0x280] sm:$0xff]
    %v251 = vld [vmem:[%s169 + $0x288] sm:$0xff]
    %v252 = vld [vmem:[%s169 + $0x290] sm:$0xff]
    %v253 = vld [vmem:[%s169 + $0x298] sm:$0xff]
    %v254 = vld [vmem:[%s169 + $0x2a0] sm:$0xff]
    %v255 = vld [vmem:[%s169 + $0x2a8] sm:$0xff]
    %v256 = vld [vmem:[%s169 + $0x2b0] sm:$0xff]
    %v257 = vld [vmem:[%s169 + $0x2b8] sm:$0xff]
    %v258 = vld [vmem:[%s169 + $0x2c0] sm:$0xff]
    %v259 = vld [vmem:[%s169 + $0x2c8] sm:$0xff]
    %v260 = vld [vmem:[%s169 + $0x2d0] sm:$0xff]
    %v261 = vld [vmem:[%s169 + $0x2d8] sm:$0xff]
    %v262 = vld [vmem:[%s169 + $0x2e0] sm:$0xff]
    %v263 = vld [vmem:[%s169 + $0x2e8] sm:$0xff]
    %v264 = vld [vmem:[%s169 + $0x2f0] sm:$0xff]
    %v265 = vld [vmem:[%s169 + $0x2f8] sm:$0xff]
    %v266 = vld [vmem:[%s169 + $0x300] sm:$0xff]
    %v267 = vld [vmem:[%s169 + $0x308] sm:$0xff]
    %v268 = vld [vmem:[%s169 + $0x310] sm:$0xff]
    %v269 = vld [vmem:[%s169 + $0x318] sm:$0xff]
    %v270 = vld [vmem:[%s169 + $0x320] sm:$0xff]
    %v271 = vld [vmem:[%s169 + $0x328] sm:$0xff]
    %v272 = vld [vmem:[%s169 + $0x330] sm:$0xff]
    %v273 = vld [vmem:[%s169 + $0x338] sm:$0xff]
    %v274 = vld [vmem:[%s169 + $0x340] sm:$0xff]
    %v275 = vld [vmem:[%s169 + $0x348] sm:$0xff]
    %v276 = vld [vmem:[%s169 + $0x350] sm:$0xff]
    %v277 = vld [vmem:[%s169 + $0x358] sm:$0xff]
    %v278 = vld [vmem:[%s169 + $0x360] sm:$0xff]
    %v279 = vld [vmem:[%s169 + $0x368] sm:$0xff]
    %v280 = vld [vmem:[%s169 + $0x370] sm:$0xff]
    %v281 = vld [vmem:[%s169 + $0x378] sm:$0xff]
    %v282 = vld [vmem:[%s169 + $0x380] sm:$0xff]
    %v283 = vld [vmem:[%s169 + $0x388] sm:$0xff]
    %v284 = vld [vmem:[%s169 + $0x390] sm:$0xff]
    %v285 = vld [vmem:[%s169 + $0x398] sm:$0xff]
    %v286 = vld [vmem:[%s169 + $0x3a0] sm:$0xff]
    %v287 = vld [vmem:[%s169 + $0x3a8] sm:$0xff]
    %v288 = vld [vmem:[%s169 + $0x3b0] sm:$0xff]
    %v289 = vld [vmem:[%s169 + $0x3b8] sm:$0xff]
    %vm306 = vcmask 1046528
    %v307 = vrot.slane %v33, 1
    %v308 = vrot.slane %v35, 1
    %v309 = vsel %vm306, %v307, %v308
    %v310 = vrot.slane %v34, 1
    %v311 = vrot.slane %v36, 1
    %v312 = vsel %vm306, %v310, %v311
    %v313 = vrot.slane %v37, 1
    %v314 = vsel %vm306, %v308, %v313
    %v315 = vrot.slane %v38, 1
    %v316 = vsel %vm306, %v311, %v315
    %v317 = vrot.slane %v39, 1
    %v318 = vsel %vm306, %v313, %v317
    %v319 = vrot.slane %v40, 1
    %v320 = vsel %vm306, %v315, %v319
    %v321 = vrot.slane %v41, 1
    %v322 = vsel %vm306, %v317, %v321
    %v323 = vrot.slane %v42, 1
    %v324 = vsel %vm306, %v319, %v323
    %v325 = vrot.slane %v43, 1
    %v326 = vsel %vm306, %v321, %v325
    %v327 = vrot.slane %v44, 1
    %v328 = vsel %vm306, %v323, %v327
    %v329 = vrot.slane %v45, 1
    %v330 = vsel %vm306, %v325, %v329
    %v331 = vrot.slane %v46, 1
    %v332 = vsel %vm306, %v327, %v331
    %v333 = vrot.slane %v47, 1
    %v334 = vsel %vm306, %v329, %v333
    %v335 = vrot.slane %v48, 1
    %v336 = vsel %vm306, %v331, %v335
    %vm345 = vcmask 523264
    %v346 = vsel %vm345, %v312, 0
    %v348 = vsel %vm345, %v316, 0
    %v350 = vsel %vm345, %v320, 0
    %v352 = vsel %vm345, %v324, 0
    %v354 = vsel %vm345, %v328, 0
    %v356 = vsel %vm345, %v332, 0
    %v358 = vsel %vm345, %v336, 0
    %v360 = vsel %vm345, %v335, 0
    %362 = vmatpush.msra.mxu0 %v245
    %363 = vmatpush.msra.mxu0 %v240
    %364 = vmatpush.msra.mxu0 %v235
    %365 = vmatpush.msra.mxu0 %v230
    %366 = vmatpush.msra.mxu0 %v225
    %367 = vmatpush.msra.mxu0 %v220
    %368 = vmatpush.msra.mxu0 %v215
    %369 = vmatpush.msra.mxu0 %v210
    %370 = vmatpush.msra.mxu0 %v205
    %371 = vmatpush.msra.mxu0 %v200
    %372 = vmatpush.msra.mxu0 %v195
    %373 = vmatpush.msra.mxu0 %v190
    %374 = vmatpush.msra.mxu0 %v185
    %375 = vmatpush.msra.mxu0 %v180
    %376 = vmatpush.msra.mxu0 %v175
    %377 = vmatpush.msra.mxu0 %v170
    %378 = vmatmul.f32.gmra.mxu0 %v309
    %v379 = vpop.f32.mrf.mxu0
    %v380 = vadd.f32 0.0, %v379
    %381 = vmatmul.f32.gmra.mxu0 %v314
    %v382 = vpop.f32.mrf.mxu0
    %v383 = vadd.f32 0.0, %v382
    %384 = vmatmul.f32.gmra.mxu0 %v318
    %v385 = vpop.f32.mrf.mxu0
    %v386 = vadd.f32 0.0, %v385
    %387 = vmatmul.f32.gmra.mxu0 %v322
    %v388 = vpop.f32.mrf.mxu0
    %v389 = vadd.f32 0.0, %v388
    %390 = vmatmul.f32.gmra.mxu0 %v326
    %v391 = vpop.f32.mrf.mxu0
    %v392 = vadd.f32 0.0, %v391
    %393 = vmatmul.f32.gmra.mxu0 %v330
    %v394 = vpop.f32.mrf.mxu0
    %v395 = vadd.f32 0.0, %v394
    %396 = vmatmul.f32.gmra.mxu0 %v334
    %v397 = vpop.f32.mrf.mxu0
    %v398 = vadd.f32 0.0, %v397
    %399 = vmatmul.f32.gmra.mxu0 %v333
    %v400 = vpop.f32.mrf.mxu0
    %v401 = vadd.f32 0.0, %v400
    %402 = vdwg.mxu0
    %403 = vmatpush.msra.mxu0 0.0
    %404 = vmatpush.msra.mxu0 0.0
    %405 = vmatpush.msra.mxu0 0.0
    %406 = vmatpush.msra.mxu0 0.0
    %407 = vmatpush.msra.mxu0 0.0
    %408 = vmatpush.msra.mxu0 0.0
    %409 = vmatpush.msra.mxu0 0.0
    %410 = vmatpush.msra.mxu0 0.0
    %411 = vmatpush.msra.mxu0 %v285
    %412 = vmatpush.msra.mxu0 %v280
    %413 = vmatpush.msra.mxu0 %v275
    %414 = vmatpush.msra.mxu0 %v270
    %415 = vmatpush.msra.mxu0 %v265
    %416 = vmatpush.msra.mxu0 %v260
    %417 = vmatpush.msra.mxu0 %v255
    %418 = vmatpush.msra.mxu0 %v250
    %419 = vmatmul.f32.gmra.mxu0 %v346
    %v420 = vpop.f32.mrf.mxu0
    %v421 = vadd.f32 %v380, %v420
    %422 = vmatmul.f32.gmra.mxu0 %v348
    %v423 = vpop.f32.mrf.mxu0
    %v424 = vadd.f32 %v383, %v423
    %425 = vmatmul.f32.gmra.mxu0 %v350
    %v426 = vpop.f32.mrf.mxu0
    %v427 = vadd.f32 %v386, %v426
    %428 = vmatmul.f32.gmra.mxu0 %v352
    %v429 = vpop.f32.mrf.mxu0
    %v430 = vadd.f32 %v389, %v429
    %431 = vmatmul.f32.gmra.mxu0 %v354
    %v432 = vpop.f32.mrf.mxu0
    %v433 = vadd.f32 %v392, %v432
    %434 = vmatmul.f32.gmra.mxu0 %v356
    %v435 = vpop.f32.mrf.mxu0
    %v436 = vadd.f32 %v395, %v435
    %437 = vmatmul.f32.gmra.mxu0 %v358
    %v438 = vpop.f32.mrf.mxu0
    %v439 = vadd.f32 %v398, %v438
    %440 = vmatmul.f32.gmra.mxu0 %v360
    %v441 = vpop.f32.mrf.mxu0
    %v442 = vadd.f32 %v401, %v441
    %443 = vdwg.mxu0
    %444 = vmatpush.msra.mxu0 %v246
    %445 = vmatpush.msra.mxu0 %v241
    %446 = vmatpush.msra.mxu0 %v236
    %447 = vmatpush.msra.mxu0 %v231
    %448 = vmatpush.msra.mxu0 %v226
    %449 = vmatpush.msra.mxu0 %v221
    %450 = vmatpush.msra.mxu0 %v216
    %451 = vmatpush.msra.mxu0 %v211
    %452 = vmatpush.msra.mxu0 %v206
    %453 = vmatpush.msra.mxu0 %v201
    %454 = vmatpush.msra.mxu0 %v196
    %455 = vmatpush.msra.mxu0 %v191
    %456 = vmatpush.msra.mxu0 %v186
    %457 = vmatpush.msra.mxu0 %v181
    %458 = vmatpush.msra.mxu0 %v176
    %459 = vmatpush.msra.mxu0 %v171
    %460 = vmatmul.f32.gmra.mxu0 %v309
    %v461 = vpop.f32.mrf.mxu0
    %v462 = vadd.f32 0.0, %v461
    %463 = vmatmul.f32.gmra.mxu0 %v314
    %v464 = vpop.f32.mrf.mxu0
    %v465 = vadd.f32 0.0, %v464
    %466 = vmatmul.f32.gmra.mxu0 %v318
    %v467 = vpop.f32.mrf.mxu0
    %v468 = vadd.f32 0.0, %v467
    %469 = vmatmul.f32.gmra.mxu0 %v322
    %v470 = vpop.f32.mrf.mxu0
    %v471 = vadd.f32 0.0, %v470
    %472 = vmatmul.f32.gmra.mxu0 %v326
    %v473 = vpop.f32.mrf.mxu0
    %v474 = vadd.f32 0.0, %v473
    %475 = vmatmul.f32.gmra.mxu0 %v330
    %v476 = vpop.f32.mrf.mxu0
    %v477 = vadd.f32 0.0, %v476
    %478 = vmatmul.f32.gmra.mxu0 %v334
    %v479 = vpop.f32.mrf.mxu0
    %v480 = vadd.f32 0.0, %v479
    %481 = vmatmul.f32.gmra.mxu0 %v333
    %v482 = vpop.f32.mrf.mxu0
    %v483 = vadd.f32 0.0, %v482
    %484 = vdwg.mxu0
    %485 = vmatpush.msra.mxu0 0.0
    %486 = vmatpush.msra.mxu0 0.0
    %487 = vmatpush.msra.mxu0 0.0
    %488 = vmatpush.msra.mxu0 0.0
    %489 = vmatpush.msra.mxu0 0.0
    %490 = vmatpush.msra.mxu0 0.0
    %491 = vmatpush.msra.mxu0 0.0
    %492 = vmatpush.msra.mxu0 0.0
    %493 = vmatpush.msra.mxu0 %v286
    %494 = vmatpush.msra.mxu0 %v281
    %495 = vmatpush.msra.mxu0 %v276
    %496 = vmatpush.msra.mxu0 %v271
    %497 = vmatpush.msra.mxu0 %v266
    %498 = vmatpush.msra.mxu0 %v261
    %499 = vmatpush.msra.mxu0 %v256
    %500 = vmatpush.msra.mxu0 %v251
    %501 = vmatmul.f32.gmra.mxu0 %v346
    %v502 = vpop.f32.mrf.mxu0
    %v503 = vadd.f32 %v462, %v502
    %504 = vmatmul.f32.gmra.mxu0 %v348
    %v505 = vpop.f32.mrf.mxu0
    %v506 = vadd.f32 %v465, %v505
    %507 = vmatmul.f32.gmra.mxu0 %v350
    %v508 = vpop.f32.mrf.mxu0
    %v509 = vadd.f32 %v468, %v508
    %510 = vmatmul.f32.gmra.mxu0 %v352
    %v511 = vpop.f32.mrf.mxu0
    %v512 = vadd.f32 %v471, %v511
    %513 = vmatmul.f32.gmra.mxu0 %v354
    %v514 = vpop.f32.mrf.mxu0
    %v515 = vadd.f32 %v474, %v514
    %516 = vmatmul.f32.gmra.mxu0 %v356
    %v517 = vpop.f32.mrf.mxu0
    %v518 = vadd.f32 %v477, %v517
    %519 = vmatmul.f32.gmra.mxu0 %v358
    %v520 = vpop.f32.mrf.mxu0
    %v521 = vadd.f32 %v480, %v520
    %522 = vmatmul.f32.gmra.mxu0 %v360
    %v523 = vpop.f32.mrf.mxu0
    %v524 = vadd.f32 %v483, %v523
    %525 = vdwg.mxu0
    %526 = vmatpush.msra.mxu0 %v247
    %527 = vmatpush.msra.mxu0 %v242
    %528 = vmatpush.msra.mxu0 %v237
    %529 = vmatpush.msra.mxu0 %v232
    %530 = vmatpush.msra.mxu0 %v227
    %531 = vmatpush.msra.mxu0 %v222
    %532 = vmatpush.msra.mxu0 %v217
    %533 = vmatpush.msra.mxu0 %v212
    %534 = vmatpush.msra.mxu0 %v207
    %535 = vmatpush.msra.mxu0 %v202
    %536 = vmatpush.msra.mxu0 %v197
    %537 = vmatpush.msra.mxu0 %v192
    %538 = vmatpush.msra.mxu0 %v187
    %539 = vmatpush.msra.mxu0 %v182
    %540 = vmatpush.msra.mxu0 %v177
    %541 = vmatpush.msra.mxu0 %v172
    %542 = vmatmul.f32.gmra.mxu0 %v309
    %v543 = vpop.f32.mrf.mxu0
    %v544 = vadd.f32 0.0, %v543
    %545 = vmatmul.f32.gmra.mxu0 %v314
    %v546 = vpop.f32.mrf.mxu0
    %v547 = vadd.f32 0.0, %v546
    %548 = vmatmul.f32.gmra.mxu0 %v318
    %v549 = vpop.f32.mrf.mxu0
    %v550 = vadd.f32 0.0, %v549
    %551 = vmatmul.f32.gmra.mxu0 %v322
    %v552 = vpop.f32.mrf.mxu0
    %v553 = vadd.f32 0.0, %v552
    %554 = vmatmul.f32.gmra.mxu0 %v326
    %v555 = vpop.f32.mrf.mxu0
    %v556 = vadd.f32 0.0, %v555
    %557 = vmatmul.f32.gmra.mxu0 %v330
    %v558 = vpop.f32.mrf.mxu0
    %v559 = vadd.f32 0.0, %v558
    %560 = vmatmul.f32.gmra.mxu0 %v334
    %v561 = vpop.f32.mrf.mxu0
    %v562 = vadd.f32 0.0, %v561
    %563 = vmatmul.f32.gmra.mxu0 %v333
    %v564 = vpop.f32.mrf.mxu0
    %v565 = vadd.f32 0.0, %v564
    %566 = vdwg.mxu0
    %567 = vmatpush.msra.mxu0 0.0
    %568 = vmatpush.msra.mxu0 0.0
    %569 = vmatpush.msra.mxu0 0.0
    %570 = vmatpush.msra.mxu0 0.0
    %571 = vmatpush.msra.mxu0 0.0
    %572 = vmatpush.msra.mxu0 0.0
    %573 = vmatpush.msra.mxu0 0.0
    %574 = vmatpush.msra.mxu0 0.0
    %575 = vmatpush.msra.mxu0 %v287
    %576 = vmatpush.msra.mxu0 %v282
    %577 = vmatpush.msra.mxu0 %v277
    %578 = vmatpush.msra.mxu0 %v272
    %579 = vmatpush.msra.mxu0 %v267
    %580 = vmatpush.msra.mxu0 %v262
    %581 = vmatpush.msra.mxu0 %v257
    %582 = vmatpush.msra.mxu0 %v252
    %583 = vmatmul.f32.gmra.mxu0 %v346
    %v584 = vpop.f32.mrf.mxu0
    %v585 = vadd.f32 %v544, %v584
    %586 = vmatmul.f32.gmra.mxu0 %v348
    %v587 = vpop.f32.mrf.mxu0
    %v588 = vadd.f32 %v547, %v587
    %589 = vmatmul.f32.gmra.mxu0 %v350
    %v590 = vpop.f32.mrf.mxu0
    %v591 = vadd.f32 %v550, %v590
    %592 = vmatmul.f32.gmra.mxu0 %v352
    %v593 = vpop.f32.mrf.mxu0
    %v594 = vadd.f32 %v553, %v593
    %595 = vmatmul.f32.gmra.mxu0 %v354
    %v596 = vpop.f32.mrf.mxu0
    %v597 = vadd.f32 %v556, %v596
    %598 = vmatmul.f32.gmra.mxu0 %v356
    %v599 = vpop.f32.mrf.mxu0
    %v600 = vadd.f32 %v559, %v599
    %601 = vmatmul.f32.gmra.mxu0 %v358
    %v602 = vpop.f32.mrf.mxu0
    %v603 = vadd.f32 %v562, %v602
    %604 = vmatmul.f32.gmra.mxu0 %v360
    %v605 = vpop.f32.mrf.mxu0
    %v606 = vadd.f32 %v565, %v605
    %607 = vdwg.mxu0
    %608 = vmatpush.msra.mxu0 %v248
    %609 = vmatpush.msra.mxu0 %v243
    %610 = vmatpush.msra.mxu0 %v238
    %611 = vmatpush.msra.mxu0 %v233
    %612 = vmatpush.msra.mxu0 %v228
    %613 = vmatpush.msra.mxu0 %v223
    %614 = vmatpush.msra.mxu0 %v218
    %615 = vmatpush.msra.mxu0 %v213
    %616 = vmatpush.msra.mxu0 %v208
    %617 = vmatpush.msra.mxu0 %v203
    %618 = vmatpush.msra.mxu0 %v198
    %619 = vmatpush.msra.mxu0 %v193
    %620 = vmatpush.msra.mxu0 %v188
    %621 = vmatpush.msra.mxu0 %v183
    %622 = vmatpush.msra.mxu0 %v178
    %623 = vmatpush.msra.mxu0 %v173
    %624 = vmatmul.f32.gmra.mxu0 %v309
    %v625 = vpop.f32.mrf.mxu0
    %v626 = vadd.f32 0.0, %v625
    %627 = vmatmul.f32.gmra.mxu0 %v314
    %v628 = vpop.f32.mrf.mxu0
    %v629 = vadd.f32 0.0, %v628
    %630 = vmatmul.f32.gmra.mxu0 %v318
    %v631 = vpop.f32.mrf.mxu0
    %v632 = vadd.f32 0.0, %v631
    %633 = vmatmul.f32.gmra.mxu0 %v322
    %v634 = vpop.f32.mrf.mxu0
    %v635 = vadd.f32 0.0, %v634
    %636 = vmatmul.f32.gmra.mxu0 %v326
    %v637 = vpop.f32.mrf.mxu0
    %v638 = vadd.f32 0.0, %v637
    %639 = vmatmul.f32.gmra.mxu0 %v330
    %v640 = vpop.f32.mrf.mxu0
    %v641 = vadd.f32 0.0, %v640
    %642 = vmatmul.f32.gmra.mxu0 %v334
    %v643 = vpop.f32.mrf.mxu0
    %v644 = vadd.f32 0.0, %v643
    %645 = vmatmul.f32.gmra.mxu0 %v333
    %v646 = vpop.f32.mrf.mxu0
    %v647 = vadd.f32 0.0, %v646
    %648 = vdwg.mxu0
    %649 = vmatpush.msra.mxu0 0.0
    %650 = vmatpush.msra.mxu0 0.0
    %651 = vmatpush.msra.mxu0 0.0
    %652 = vmatpush.msra.mxu0 0.0
    %653 = vmatpush.msra.mxu0 0.0
    %654 = vmatpush.msra.mxu0 0.0
    %655 = vmatpush.msra.mxu0 0.0
    %656 = vmatpush.msra.mxu0 0.0
    %657 = vmatpush.msra.mxu0 %v288
    %658 = vmatpush.msra.mxu0 %v283
    %659 = vmatpush.msra.mxu0 %v278
    %660 = vmatpush.msra.mxu0 %v273
    %661 = vmatpush.msra.mxu0 %v268
    %662 = vmatpush.msra.mxu0 %v263
    %663 = vmatpush.msra.mxu0 %v258
    %664 = vmatpush.msra.mxu0 %v253
    %665 = vmatmul.f32.gmra.mxu0 %v346
    %v666 = vpop.f32.mrf.mxu0
    %v667 = vadd.f32 %v626, %v666
    %668 = vmatmul.f32.gmra.mxu0 %v348
    %v669 = vpop.f32.mrf.mxu0
    %v670 = vadd.f32 %v629, %v669
    %671 = vmatmul.f32.gmra.mxu0 %v350
    %v672 = vpop.f32.mrf.mxu0
    %v673 = vadd.f32 %v632, %v672
    %674 = vmatmul.f32.gmra.mxu0 %v352
    %v675 = vpop.f32.mrf.mxu0
    %v676 = vadd.f32 %v635, %v675
    %677 = vmatmul.f32.gmra.mxu0 %v354
    %v678 = vpop.f32.mrf.mxu0
    %v679 = vadd.f32 %v638, %v678
    %680 = vmatmul.f32.gmra.mxu0 %v356
    %v681 = vpop.f32.mrf.mxu0
    %v682 = vadd.f32 %v641, %v681
    %683 = vmatmul.f32.gmra.mxu0 %v358
    %v684 = vpop.f32.mrf.mxu0
    %v685 = vadd.f32 %v644, %v684
    %686 = vmatmul.f32.gmra.mxu0 %v360
    %v687 = vpop.f32.mrf.mxu0
    %v688 = vadd.f32 %v647, %v687
    %689 = vdwg.mxu0
    %690 = vmatpush.msra.mxu0 %v249
    %691 = vmatpush.msra.mxu0 %v244
    %692 = vmatpush.msra.mxu0 %v239
    %693 = vmatpush.msra.mxu0 %v234
    %694 = vmatpush.msra.mxu0 %v229
    %695 = vmatpush.msra.mxu0 %v224
    %696 = vmatpush.msra.mxu0 %v219
    %697 = vmatpush.msra.mxu0 %v214
    %698 = vmatpush.msra.mxu0 %v209
    %699 = vmatpush.msra.mxu0 %v204
    %700 = vmatpush.msra.mxu0 %v199
    %701 = vmatpush.msra.mxu0 %v194
    %702 = vmatpush.msra.mxu0 %v189
    %703 = vmatpush.msra.mxu0 %v184
    %704 = vmatpush.msra.mxu0 %v179
    %705 = vmatpush.msra.mxu0 %v174
    %706 = vmatmul.f32.gmra.mxu0 %v309
    %v707 = vpop.f32.mrf.mxu0
    %v708 = vadd.f32 0.0, %v707
    %709 = vmatmul.f32.gmra.mxu0 %v314
    %v710 = vpop.f32.mrf.mxu0
    %v711 = vadd.f32 0.0, %v710
    %712 = vmatmul.f32.gmra.mxu0 %v318
    %v713 = vpop.f32.mrf.mxu0
    %v714 = vadd.f32 0.0, %v713
    %715 = vmatmul.f32.gmra.mxu0 %v322
    %v716 = vpop.f32.mrf.mxu0
    %v717 = vadd.f32 0.0, %v716
    %718 = vmatmul.f32.gmra.mxu0 %v326
    %v719 = vpop.f32.mrf.mxu0
    %v720 = vadd.f32 0.0, %v719
    %721 = vmatmul.f32.gmra.mxu0 %v330
    %v722 = vpop.f32.mrf.mxu0
    %v723 = vadd.f32 0.0, %v722
    %724 = vmatmul.f32.gmra.mxu0 %v334
    %v725 = vpop.f32.mrf.mxu0
    %v726 = vadd.f32 0.0, %v725
    %727 = vmatmul.f32.gmra.mxu0 %v333
    %v728 = vpop.f32.mrf.mxu0
    %v729 = vadd.f32 0.0, %v728
    %730 = vdwg.mxu0
    %731 = vmatpush.msra.mxu0 0.0
    %732 = vmatpush.msra.mxu0 0.0
    %733 = vmatpush.msra.mxu0 0.0
    %734 = vmatpush.msra.mxu0 0.0
    %735 = vmatpush.msra.mxu0 0.0
    %736 = vmatpush.msra.mxu0 0.0
    %737 = vmatpush.msra.mxu0 0.0
    %738 = vmatpush.msra.mxu0 0.0
    %739 = vmatpush.msra.mxu0 %v289
    %740 = vmatpush.msra.mxu0 %v284
    %741 = vmatpush.msra.mxu0 %v279
    %742 = vmatpush.msra.mxu0 %v274
    %743 = vmatpush.msra.mxu0 %v269
    %744 = vmatpush.msra.mxu0 %v264
    %745 = vmatpush.msra.mxu0 %v259
    %746 = vmatpush.msra.mxu0 %v254
    %747 = vmatmul.f32.gmra.mxu0 %v346
    %v748 = vpop.f32.mrf.mxu0
    %v749 = vadd.f32 %v708, %v748
    %750 = vmatmul.f32.gmra.mxu0 %v348
    %v751 = vpop.f32.mrf.mxu0
    %v752 = vadd.f32 %v711, %v751
    %753 = vmatmul.f32.gmra.mxu0 %v350
    %v754 = vpop.f32.mrf.mxu0
    %v755 = vadd.f32 %v714, %v754
    %756 = vmatmul.f32.gmra.mxu0 %v352
    %v757 = vpop.f32.mrf.mxu0
    %v758 = vadd.f32 %v717, %v757
    %759 = vmatmul.f32.gmra.mxu0 %v354
    %v760 = vpop.f32.mrf.mxu0
    %v761 = vadd.f32 %v720, %v760
    %762 = vmatmul.f32.gmra.mxu0 %v356
    %v763 = vpop.f32.mrf.mxu0
    %v764 = vadd.f32 %v723, %v763
    %765 = vmatmul.f32.gmra.mxu0 %v358
    %v766 = vpop.f32.mrf.mxu0
    %v767 = vadd.f32 %v726, %v766
    %768 = vmatmul.f32.gmra.mxu0 %v360
    %v769 = vpop.f32.mrf.mxu0
    %v770 = vadd.f32 %v729, %v769
    %771 = vdwg.mxu0
    %v772 = vsel %vm345, %v34, 0
    %v774 = vsel %vm345, %v36, 0
    %v776 = vsel %vm345, %v38, 0
    %v778 = vsel %vm345, %v40, 0
    %v780 = vsel %vm345, %v42, 0
    %v782 = vsel %vm345, %v44, 0
    %v784 = vsel %vm345, %v46, 0
    %v786 = vsel %vm345, %v48, 0
    %788 = vmatpush.msra.mxu0 %v124
    %789 = vmatpush.msra.mxu0 %v119
    %790 = vmatpush.msra.mxu0 %v114
    %791 = vmatpush.msra.mxu0 %v109
    %792 = vmatpush.msra.mxu0 %v104
    %793 = vmatpush.msra.mxu0 %v99
    %794 = vmatpush.msra.mxu0 %v94
    %795 = vmatpush.msra.mxu0 %v89
    %796 = vmatpush.msra.mxu0 %v84
    %797 = vmatpush.msra.mxu0 %v79
    %798 = vmatpush.msra.mxu0 %v74
    %799 = vmatpush.msra.mxu0 %v69
    %800 = vmatpush.msra.mxu0 %v64
    %801 = vmatpush.msra.mxu0 %v59
    %802 = vmatpush.msra.mxu0 %v54
    %803 = vmatpush.msra.mxu0 %v49
    %804 = vmatmul.f32.gmra.mxu0 %v33
    %v805 = vpop.f32.mrf.mxu0
    %v806 = vadd.f32 %v421, %v805
    %807 = vmatmul.f32.gmra.mxu0 %v35
    %v808 = vpop.f32.mrf.mxu0
    %v809 = vadd.f32 %v424, %v808
    %810 = vmatmul.f32.gmra.mxu0 %v37
    %v811 = vpop.f32.mrf.mxu0
    %v812 = vadd.f32 %v427, %v811
    %813 = vmatmul.f32.gmra.mxu0 %v39
    %v814 = vpop.f32.mrf.mxu0
    %v815 = vadd.f32 %v430, %v814
    %816 = vmatmul.f32.gmra.mxu0 %v41
    %v817 = vpop.f32.mrf.mxu0
    %v818 = vadd.f32 %v433, %v817
    %819 = vmatmul.f32.gmra.mxu0 %v43
    %v820 = vpop.f32.mrf.mxu0
    %v821 = vadd.f32 %v436, %v820
    %822 = vmatmul.f32.gmra.mxu0 %v45
    %v823 = vpop.f32.mrf.mxu0
    %v824 = vadd.f32 %v439, %v823
    %825 = vmatmul.f32.gmra.mxu0 %v47
    %v826 = vpop.f32.mrf.mxu0
    %v827 = vadd.f32 %v442, %v826
    %828 = vdwg.mxu0
    %829 = vmatpush.msra.mxu0 0.0
    %830 = vmatpush.msra.mxu0 0.0
    %831 = vmatpush.msra.mxu0 0.0
    %832 = vmatpush.msra.mxu0 0.0
    %833 = vmatpush.msra.mxu0 0.0
    %834 = vmatpush.msra.mxu0 0.0
    %835 = vmatpush.msra.mxu0 0.0
    %836 = vmatpush.msra.mxu0 0.0
    %837 = vmatpush.msra.mxu0 %v164
    %838 = vmatpush.msra.mxu0 %v159
    %839 = vmatpush.msra.mxu0 %v154
    %840 = vmatpush.msra.mxu0 %v149
    %841 = vmatpush.msra.mxu0 %v144
    %842 = vmatpush.msra.mxu0 %v139
    %843 = vmatpush.msra.mxu0 %v134
    %844 = vmatpush.msra.mxu0 %v129
    %845 = vmatmul.f32.gmra.mxu0 %v772
    %v846 = vpop.f32.mrf.mxu0
    %v847 = vadd.f32 %v806, %v846
    %848 = vmatmul.f32.gmra.mxu0 %v774
    %v849 = vpop.f32.mrf.mxu0
    %v850 = vadd.f32 %v809, %v849
    %851 = vmatmul.f32.gmra.mxu0 %v776
    %v852 = vpop.f32.mrf.mxu0
    %v853 = vadd.f32 %v812, %v852
    %854 = vmatmul.f32.gmra.mxu0 %v778
    %v855 = vpop.f32.mrf.mxu0
    %v856 = vadd.f32 %v815, %v855
    %857 = vmatmul.f32.gmra.mxu0 %v780
    %v858 = vpop.f32.mrf.mxu0
    %v859 = vadd.f32 %v818, %v858
    %860 = vmatmul.f32.gmra.mxu0 %v782
    %v861 = vpop.f32.mrf.mxu0
    %v862 = vadd.f32 %v821, %v861
    %863 = vmatmul.f32.gmra.mxu0 %v784
    %v864 = vpop.f32.mrf.mxu0
    %v865 = vadd.f32 %v824, %v864
    %866 = vmatmul.f32.gmra.mxu0 %v786
    %v867 = vpop.f32.mrf.mxu0
    %v868 = vadd.f32 %v827, %v867
    %869 = vdwg.mxu0
    %870 = vmatpush.msra.mxu0 %v125
    %871 = vmatpush.msra.mxu0 %v120
    %872 = vmatpush.msra.mxu0 %v115
    %873 = vmatpush.msra.mxu0 %v110
    %874 = vmatpush.msra.mxu0 %v105
    %875 = vmatpush.msra.mxu0 %v100
    %876 = vmatpush.msra.mxu0 %v95
    %877 = vmatpush.msra.mxu0 %v90
    %878 = vmatpush.msra.mxu0 %v85
    %879 = vmatpush.msra.mxu0 %v80
    %880 = vmatpush.msra.mxu0 %v75
    %881 = vmatpush.msra.mxu0 %v70
    %882 = vmatpush.msra.mxu0 %v65
    %883 = vmatpush.msra.mxu0 %v60
    %884 = vmatpush.msra.mxu0 %v55
    %885 = vmatpush.msra.mxu0 %v50
    %886 = vmatmul.f32.gmra.mxu0 %v33
    %v887 = vpop.f32.mrf.mxu0
    %v888 = vadd.f32 %v503, %v887
    %889 = vmatmul.f32.gmra.mxu0 %v35
    %v890 = vpop.f32.mrf.mxu0
    %v891 = vadd.f32 %v506, %v890
    %892 = vmatmul.f32.gmra.mxu0 %v37
    %v893 = vpop.f32.mrf.mxu0
    %v894 = vadd.f32 %v509, %v893
    %895 = vmatmul.f32.gmra.mxu0 %v39
    %v896 = vpop.f32.mrf.mxu0
    %v897 = vadd.f32 %v512, %v896
    %898 = vmatmul.f32.gmra.mxu0 %v41
    %v899 = vpop.f32.mrf.mxu0
    %v900 = vadd.f32 %v515, %v899
    %901 = vmatmul.f32.gmra.mxu0 %v43
    %v902 = vpop.f32.mrf.mxu0
    %v903 = vadd.f32 %v518, %v902
    %904 = vmatmul.f32.gmra.mxu0 %v45
    %v905 = vpop.f32.mrf.mxu0
    %v906 = vadd.f32 %v521, %v905
    %907 = vmatmul.f32.gmra.mxu0 %v47
    %v908 = vpop.f32.mrf.mxu0
    %v909 = vadd.f32 %v524, %v908
    %910 = vdwg.mxu0
    %911 = vmatpush.msra.mxu0 0.0
    %912 = vmatpush.msra.mxu0 0.0
    %913 = vmatpush.msra.mxu0 0.0
    %914 = vmatpush.msra.mxu0 0.0
    %915 = vmatpush.msra.mxu0 0.0
    %916 = vmatpush.msra.mxu0 0.0
    %917 = vmatpush.msra.mxu0 0.0
    %918 = vmatpush.msra.mxu0 0.0
    %919 = vmatpush.msra.mxu0 %v165
    %920 = vmatpush.msra.mxu0 %v160
    %921 = vmatpush.msra.mxu0 %v155
    %922 = vmatpush.msra.mxu0 %v150
    %923 = vmatpush.msra.mxu0 %v145
    %924 = vmatpush.msra.mxu0 %v140
    %925 = vmatpush.msra.mxu0 %v135
    %926 = vmatpush.msra.mxu0 %v130
    %927 = vmatmul.f32.gmra.mxu0 %v772
    %v928 = vpop.f32.mrf.mxu0
    %v929 = vadd.f32 %v888, %v928
    %930 = vmatmul.f32.gmra.mxu0 %v774
    %v931 = vpop.f32.mrf.mxu0
    %v932 = vadd.f32 %v891, %v931
    %933 = vmatmul.f32.gmra.mxu0 %v776
    %v934 = vpop.f32.mrf.mxu0
    %v935 = vadd.f32 %v894, %v934
    %936 = vmatmul.f32.gmra.mxu0 %v778
    %v937 = vpop.f32.mrf.mxu0
    %v938 = vadd.f32 %v897, %v937
    %939 = vmatmul.f32.gmra.mxu0 %v780
    %v940 = vpop.f32.mrf.mxu0
    %v941 = vadd.f32 %v900, %v940
    %942 = vmatmul.f32.gmra.mxu0 %v782
    %v943 = vpop.f32.mrf.mxu0
    %v944 = vadd.f32 %v903, %v943
    %945 = vmatmul.f32.gmra.mxu0 %v784
    %v946 = vpop.f32.mrf.mxu0
    %v947 = vadd.f32 %v906, %v946
    %948 = vmatmul.f32.gmra.mxu0 %v786
    %v949 = vpop.f32.mrf.mxu0
    %v950 = vadd.f32 %v909, %v949
    %951 = vdwg.mxu0
    %952 = vmatpush.msra.mxu0 %v126
    %953 = vmatpush.msra.mxu0 %v121
    %954 = vmatpush.msra.mxu0 %v116
    %955 = vmatpush.msra.mxu0 %v111
    %956 = vmatpush.msra.mxu0 %v106
    %957 = vmatpush.msra.mxu0 %v101
    %958 = vmatpush.msra.mxu0 %v96
    %959 = vmatpush.msra.mxu0 %v91
    %960 = vmatpush.msra.mxu0 %v86
    %961 = vmatpush.msra.mxu0 %v81
    %962 = vmatpush.msra.mxu0 %v76
    %963 = vmatpush.msra.mxu0 %v71
    %964 = vmatpush.msra.mxu0 %v66
    %965 = vmatpush.msra.mxu0 %v61
    %966 = vmatpush.msra.mxu0 %v56
    %967 = vmatpush.msra.mxu0 %v51
    %968 = vmatmul.f32.gmra.mxu0 %v33
    %v969 = vpop.f32.mrf.mxu0
    %v970 = vadd.f32 %v585, %v969
    %971 = vmatmul.f32.gmra.mxu0 %v35
    %v972 = vpop.f32.mrf.mxu0
    %v973 = vadd.f32 %v588, %v972
    %974 = vmatmul.f32.gmra.mxu0 %v37
    %v975 = vpop.f32.mrf.mxu0
    %v976 = vadd.f32 %v591, %v975
    %977 = vmatmul.f32.gmra.mxu0 %v39
    %v978 = vpop.f32.mrf.mxu0
    %v979 = vadd.f32 %v594, %v978
    %980 = vmatmul.f32.gmra.mxu0 %v41
    %v981 = vpop.f32.mrf.mxu0
    %v982 = vadd.f32 %v597, %v981
    %983 = vmatmul.f32.gmra.mxu0 %v43
    %v984 = vpop.f32.mrf.mxu0
    %v985 = vadd.f32 %v600, %v984
    %986 = vmatmul.f32.gmra.mxu0 %v45
    %v987 = vpop.f32.mrf.mxu0
    %v988 = vadd.f32 %v603, %v987
    %989 = vmatmul.f32.gmra.mxu0 %v47
    %v990 = vpop.f32.mrf.mxu0
    %v991 = vadd.f32 %v606, %v990
    %992 = vdwg.mxu0
    %993 = vmatpush.msra.mxu0 0.0
    %994 = vmatpush.msra.mxu0 0.0
    %995 = vmatpush.msra.mxu0 0.0
    %996 = vmatpush.msra.mxu0 0.0
    %997 = vmatpush.msra.mxu0 0.0
    %998 = vmatpush.msra.mxu0 0.0
    %999 = vmatpush.msra.mxu0 0.0
    %1000 = vmatpush.msra.mxu0 0.0
    %1001 = vmatpush.msra.mxu0 %v166
    %1002 = vmatpush.msra.mxu0 %v161
    %1003 = vmatpush.msra.mxu0 %v156
    %1004 = vmatpush.msra.mxu0 %v151
    %1005 = vmatpush.msra.mxu0 %v146
    %1006 = vmatpush.msra.mxu0 %v141
    %1007 = vmatpush.msra.mxu0 %v136
    %1008 = vmatpush.msra.mxu0 %v131
    %1009 = vmatmul.f32.gmra.mxu0 %v772
    %v1010 = vpop.f32.mrf.mxu0
    %v1011 = vadd.f32 %v970, %v1010
    %1012 = vmatmul.f32.gmra.mxu0 %v774
    %v1013 = vpop.f32.mrf.mxu0
    %v1014 = vadd.f32 %v973, %v1013
    %1015 = vmatmul.f32.gmra.mxu0 %v776
    %v1016 = vpop.f32.mrf.mxu0
    %v1017 = vadd.f32 %v976, %v1016
    %1018 = vmatmul.f32.gmra.mxu0 %v778
    %v1019 = vpop.f32.mrf.mxu0
    %v1020 = vadd.f32 %v979, %v1019
    %1021 = vmatmul.f32.gmra.mxu0 %v780
    %v1022 = vpop.f32.mrf.mxu0
    %v1023 = vadd.f32 %v982, %v1022
    %1024 = vmatmul.f32.gmra.mxu0 %v782
    %v1025 = vpop.f32.mrf.mxu0
    %v1026 = vadd.f32 %v985, %v1025
    %1027 = vmatmul.f32.gmra.mxu0 %v784
    %v1028 = vpop.f32.mrf.mxu0
    %v1029 = vadd.f32 %v988, %v1028
    %1030 = vmatmul.f32.gmra.mxu0 %v786
    %v1031 = vpop.f32.mrf.mxu0
    %v1032 = vadd.f32 %v991, %v1031
    %1033 = vdwg.mxu0
    %1034 = vmatpush.msra.mxu0 %v127
    %1035 = vmatpush.msra.mxu0 %v122
    %1036 = vmatpush.msra.mxu0 %v117
    %1037 = vmatpush.msra.mxu0 %v112
    %1038 = vmatpush.msra.mxu0 %v107
    %1039 = vmatpush.msra.mxu0 %v102
    %1040 = vmatpush.msra.mxu0 %v97
    %1041 = vmatpush.msra.mxu0 %v92
    %1042 = vmatpush.msra.mxu0 %v87
    %1043 = vmatpush.msra.mxu0 %v82
    %1044 = vmatpush.msra.mxu0 %v77
    %1045 = vmatpush.msra.mxu0 %v72
    %1046 = vmatpush.msra.mxu0 %v67
    %1047 = vmatpush.msra.mxu0 %v62
    %1048 = vmatpush.msra.mxu0 %v57
    %1049 = vmatpush.msra.mxu0 %v52
    %1050 = vmatmul.f32.gmra.mxu0 %v33
    %v1051 = vpop.f32.mrf.mxu0
    %v1052 = vadd.f32 %v667, %v1051
    %1053 = vmatmul.f32.gmra.mxu0 %v35
    %v1054 = vpop.f32.mrf.mxu0
    %v1055 = vadd.f32 %v670, %v1054
    %1056 = vmatmul.f32.gmra.mxu0 %v37
    %v1057 = vpop.f32.mrf.mxu0
    %v1058 = vadd.f32 %v673, %v1057
    %1059 = vmatmul.f32.gmra.mxu0 %v39
    %v1060 = vpop.f32.mrf.mxu0
    %v1061 = vadd.f32 %v676, %v1060
    %1062 = vmatmul.f32.gmra.mxu0 %v41
    %v1063 = vpop.f32.mrf.mxu0
    %v1064 = vadd.f32 %v679, %v1063
    %1065 = vmatmul.f32.gmra.mxu0 %v43
    %v1066 = vpop.f32.mrf.mxu0
    %v1067 = vadd.f32 %v682, %v1066
    %1068 = vmatmul.f32.gmra.mxu0 %v45
    %v1069 = vpop.f32.mrf.mxu0
    %v1070 = vadd.f32 %v685, %v1069
    %1071 = vmatmul.f32.gmra.mxu0 %v47
    %v1072 = vpop.f32.mrf.mxu0
    %v1073 = vadd.f32 %v688, %v1072
    %1074 = vdwg.mxu0
    %1075 = vmatpush.msra.mxu0 0.0
    %1076 = vmatpush.msra.mxu0 0.0
    %1077 = vmatpush.msra.mxu0 0.0
    %1078 = vmatpush.msra.mxu0 0.0
    %1079 = vmatpush.msra.mxu0 0.0
    %1080 = vmatpush.msra.mxu0 0.0
    %1081 = vmatpush.msra.mxu0 0.0
    %1082 = vmatpush.msra.mxu0 0.0
    %1083 = vmatpush.msra.mxu0 %v167
    %1084 = vmatpush.msra.mxu0 %v162
    %1085 = vmatpush.msra.mxu0 %v157
    %1086 = vmatpush.msra.mxu0 %v152
    %1087 = vmatpush.msra.mxu0 %v147
    %1088 = vmatpush.msra.mxu0 %v142
    %1089 = vmatpush.msra.mxu0 %v137
    %1090 = vmatpush.msra.mxu0 %v132
    %1091 = vmatmul.f32.gmra.mxu0 %v772
    %v1092 = vpop.f32.mrf.mxu0
    %v1093 = vadd.f32 %v1052, %v1092
    %1094 = vmatmul.f32.gmra.mxu0 %v774
    %v1095 = vpop.f32.mrf.mxu0
    %v1096 = vadd.f32 %v1055, %v1095
    %1097 = vmatmul.f32.gmra.mxu0 %v776
    %v1098 = vpop.f32.mrf.mxu0
    %v1099 = vadd.f32 %v1058, %v1098
    %1100 = vmatmul.f32.gmra.mxu0 %v778
    %v1101 = vpop.f32.mrf.mxu0
    %v1102 = vadd.f32 %v1061, %v1101
    %1103 = vmatmul.f32.gmra.mxu0 %v780
    %v1104 = vpop.f32.mrf.mxu0
    %v1105 = vadd.f32 %v1064, %v1104
    %1106 = vmatmul.f32.gmra.mxu0 %v782
    %v1107 = vpop.f32.mrf.mxu0
    %v1108 = vadd.f32 %v1067, %v1107
    %1109 = vmatmul.f32.gmra.mxu0 %v784
    %v1110 = vpop.f32.mrf.mxu0
    %v1111 = vadd.f32 %v1070, %v1110
    %1112 = vmatmul.f32.gmra.mxu0 %v786
    %v1113 = vpop.f32.mrf.mxu0
    %v1114 = vadd.f32 %v1073, %v1113
    %1115 = vdwg.mxu0
    %1116 = vmatpush.msra.mxu0 %v128
    %1117 = vmatpush.msra.mxu0 %v123
    %1118 = vmatpush.msra.mxu0 %v118
    %1119 = vmatpush.msra.mxu0 %v113
    %1120 = vmatpush.msra.mxu0 %v108
    %1121 = vmatpush.msra.mxu0 %v103
    %1122 = vmatpush.msra.mxu0 %v98
    %1123 = vmatpush.msra.mxu0 %v93
    %1124 = vmatpush.msra.mxu0 %v88
    %1125 = vmatpush.msra.mxu0 %v83
    %1126 = vmatpush.msra.mxu0 %v78
    %1127 = vmatpush.msra.mxu0 %v73
    %1128 = vmatpush.msra.mxu0 %v68
    %1129 = vmatpush.msra.mxu0 %v63
    %1130 = vmatpush.msra.mxu0 %v58
    %1131 = vmatpush.msra.mxu0 %v53
    %1132 = vmatmul.f32.gmra.mxu0 %v33
    %v1133 = vpop.f32.mrf.mxu0
    %v1134 = vadd.f32 %v749, %v1133
    %1135 = vmatmul.f32.gmra.mxu0 %v35
    %v1136 = vpop.f32.mrf.mxu0
    %v1137 = vadd.f32 %v752, %v1136
    %1138 = vmatmul.f32.gmra.mxu0 %v37
    %v1139 = vpop.f32.mrf.mxu0
    %v1140 = vadd.f32 %v755, %v1139
    %1141 = vmatmul.f32.gmra.mxu0 %v39
    %v1142 = vpop.f32.mrf.mxu0
    %v1143 = vadd.f32 %v758, %v1142
    %1144 = vmatmul.f32.gmra.mxu0 %v41
    %v1145 = vpop.f32.mrf.mxu0
    %v1146 = vadd.f32 %v761, %v1145
    %1147 = vmatmul.f32.gmra.mxu0 %v43
    %v1148 = vpop.f32.mrf.mxu0
    %v1149 = vadd.f32 %v764, %v1148
    %1150 = vmatmul.f32.gmra.mxu0 %v45
    %v1151 = vpop.f32.mrf.mxu0
    %v1152 = vadd.f32 %v767, %v1151
    %1153 = vmatmul.f32.gmra.mxu0 %v47
    %v1154 = vpop.f32.mrf.mxu0
    %v1155 = vadd.f32 %v770, %v1154
    %1156 = vdwg.mxu0
    %1157 = vmatpush.msra.mxu0 0.0
    %1158 = vmatpush.msra.mxu0 0.0
    %1159 = vmatpush.msra.mxu0 0.0
    %1160 = vmatpush.msra.mxu0 0.0
    %1161 = vmatpush.msra.mxu0 0.0
    %1162 = vmatpush.msra.mxu0 0.0
    %1163 = vmatpush.msra.mxu0 0.0
    %1164 = vmatpush.msra.mxu0 0.0
    %1165 = vmatpush.msra.mxu0 %v168
    %1166 = vmatpush.msra.mxu0 %v163
    %1167 = vmatpush.msra.mxu0 %v158
    %1168 = vmatpush.msra.mxu0 %v153
    %1169 = vmatpush.msra.mxu0 %v148
    %1170 = vmatpush.msra.mxu0 %v143
    %1171 = vmatpush.msra.mxu0 %v138
    %1172 = vmatpush.msra.mxu0 %v133
    %1173 = vmatmul.f32.gmra.mxu0 %v772
    %v1174 = vpop.f32.mrf.mxu0
    %v1175 = vadd.f32 %v1134, %v1174
    %1176 = vmatmul.f32.gmra.mxu0 %v774
    %v1177 = vpop.f32.mrf.mxu0
    %v1178 = vadd.f32 %v1137, %v1177
    %1179 = vmatmul.f32.gmra.mxu0 %v776
    %v1180 = vpop.f32.mrf.mxu0
    %v1181 = vadd.f32 %v1140, %v1180
    %1182 = vmatmul.f32.gmra.mxu0 %v778
    %v1183 = vpop.f32.mrf.mxu0
    %v1184 = vadd.f32 %v1143, %v1183
    %1185 = vmatmul.f32.gmra.mxu0 %v780
    %v1186 = vpop.f32.mrf.mxu0
    %v1187 = vadd.f32 %v1146, %v1186
    %1188 = vmatmul.f32.gmra.mxu0 %v782
    %v1189 = vpop.f32.mrf.mxu0
    %v1190 = vadd.f32 %v1149, %v1189
    %1191 = vmatmul.f32.gmra.mxu0 %v784
    %v1192 = vpop.f32.mrf.mxu0
    %v1193 = vadd.f32 %v1152, %v1192
    %1194 = vmatmul.f32.gmra.mxu0 %v786
    %v1195 = vpop.f32.mrf.mxu0
    %v1196 = vadd.f32 %v1155, %v1195
    %1197 = vdwg.mxu0
    %s1198 = scalar_lea.vmem %s1, 1920
    %v1199 = vld [vmem:[%s1198] sm:$0xff]
    %v1200 = vld [vmem:[%s1198 + $0x8] sm:$0xff]
    %v1201 = vld [vmem:[%s1198 + $0x10] sm:$0xff]
    %v1202 = vld [vmem:[%s1198 + $0x18] sm:$0xff]
    %v1203 = vld [vmem:[%s1198 + $0x20] sm:$0xff]
    %v1204 = vld [vmem:[%s1198 + $0x28] sm:$0xff]
    %v1205 = vld [vmem:[%s1198 + $0x30] sm:$0xff]
    %v1206 = vld [vmem:[%s1198 + $0x38] sm:$0xff]
    %v1207 = vld [vmem:[%s1198 + $0x40] sm:$0xff]
    %v1208 = vld [vmem:[%s1198 + $0x48] sm:$0xff]
    %v1209 = vld [vmem:[%s1198 + $0x50] sm:$0xff]
    %v1210 = vld [vmem:[%s1198 + $0x58] sm:$0xff]
    %v1211 = vld [vmem:[%s1198 + $0x60] sm:$0xff]
    %v1212 = vld [vmem:[%s1198 + $0x68] sm:$0xff]
    %v1213 = vld [vmem:[%s1198 + $0x70] sm:$0xff]
    %v1214 = vld [vmem:[%s1198 + $0x78] sm:$0xff]
    %v1215 = vld [vmem:[%s1198 + $0x80] sm:$0xff]
    %v1216 = vld [vmem:[%s1198 + $0x88] sm:$0xff]
    %v1217 = vld [vmem:[%s1198 + $0x90] sm:$0xff]
    %v1218 = vld [vmem:[%s1198 + $0x98] sm:$0xff]
    %v1219 = vld [vmem:[%s1198 + $0xa0] sm:$0xff]
    %v1220 = vld [vmem:[%s1198 + $0xa8] sm:$0xff]
    %v1221 = vld [vmem:[%s1198 + $0xb0] sm:$0xff]
    %v1222 = vld [vmem:[%s1198 + $0xb8] sm:$0xff]
    %v1223 = vld [vmem:[%s1198 + $0xc0] sm:$0xff]
    %v1224 = vld [vmem:[%s1198 + $0xc8] sm:$0xff]
    %v1225 = vld [vmem:[%s1198 + $0xd0] sm:$0xff]
    %v1226 = vld [vmem:[%s1198 + $0xd8] sm:$0xff]
    %v1227 = vld [vmem:[%s1198 + $0xe0] sm:$0xff]
    %v1228 = vld [vmem:[%s1198 + $0xe8] sm:$0xff]
    %v1229 = vld [vmem:[%s1198 + $0xf0] sm:$0xff]
    %v1230 = vld [vmem:[%s1198 + $0xf8] sm:$0xff]
    %v1231 = vld [vmem:[%s1198 + $0x100] sm:$0xff]
    %v1232 = vld [vmem:[%s1198 + $0x108] sm:$0xff]
    %v1233 = vld [vmem:[%s1198 + $0x110] sm:$0xff]
    %v1234 = vld [vmem:[%s1198 + $0x118] sm:$0xff]
    %v1235 = vld [vmem:[%s1198 + $0x120] sm:$0xff]
    %v1236 = vld [vmem:[%s1198 + $0x128] sm:$0xff]
    %v1237 = vld [vmem:[%s1198 + $0x130] sm:$0xff]
    %v1238 = vld [vmem:[%s1198 + $0x138] sm:$0xff]
    %v1239 = vld [vmem:[%s1198 + $0x140] sm:$0xff]
    %v1240 = vld [vmem:[%s1198 + $0x148] sm:$0xff]
    %v1241 = vld [vmem:[%s1198 + $0x150] sm:$0xff]
    %v1242 = vld [vmem:[%s1198 + $0x158] sm:$0xff]
    %v1243 = vld [vmem:[%s1198 + $0x160] sm:$0xff]
    %v1244 = vld [vmem:[%s1198 + $0x168] sm:$0xff]
    %v1245 = vld [vmem:[%s1198 + $0x170] sm:$0xff]
    %v1246 = vld [vmem:[%s1198 + $0x178] sm:$0xff]
    %v1247 = vld [vmem:[%s1198 + $0x180] sm:$0xff]
    %v1248 = vld [vmem:[%s1198 + $0x188] sm:$0xff]
    %v1249 = vld [vmem:[%s1198 + $0x190] sm:$0xff]
    %v1250 = vld [vmem:[%s1198 + $0x198] sm:$0xff]
    %v1251 = vld [vmem:[%s1198 + $0x1a0] sm:$0xff]
    %v1252 = vld [vmem:[%s1198 + $0x1a8] sm:$0xff]
    %v1253 = vld [vmem:[%s1198 + $0x1b0] sm:$0xff]
    %v1254 = vld [vmem:[%s1198 + $0x1b8] sm:$0xff]
    %v1255 = vld [vmem:[%s1198 + $0x1c0] sm:$0xff]
    %v1256 = vld [vmem:[%s1198 + $0x1c8] sm:$0xff]
    %v1257 = vld [vmem:[%s1198 + $0x1d0] sm:$0xff]
    %v1258 = vld [vmem:[%s1198 + $0x1d8] sm:$0xff]
    %v1259 = vld [vmem:[%s1198 + $0x1e0] sm:$0xff]
    %v1260 = vld [vmem:[%s1198 + $0x1e8] sm:$0xff]
    %v1261 = vld [vmem:[%s1198 + $0x1f0] sm:$0xff]
    %v1262 = vld [vmem:[%s1198 + $0x1f8] sm:$0xff]
    %v1263 = vld [vmem:[%s1198 + $0x200] sm:$0xff]
    %v1264 = vld [vmem:[%s1198 + $0x208] sm:$0xff]
    %v1265 = vld [vmem:[%s1198 + $0x210] sm:$0xff]
    %v1266 = vld [vmem:[%s1198 + $0x218] sm:$0xff]
    %v1267 = vld [vmem:[%s1198 + $0x220] sm:$0xff]
    %v1268 = vld [vmem:[%s1198 + $0x228] sm:$0xff]
    %v1269 = vld [vmem:[%s1198 + $0x230] sm:$0xff]
    %v1270 = vld [vmem:[%s1198 + $0x238] sm:$0xff]
    %v1271 = vld [vmem:[%s1198 + $0x240] sm:$0xff]
    %v1272 = vld [vmem:[%s1198 + $0x248] sm:$0xff]
    %v1273 = vld [vmem:[%s1198 + $0x250] sm:$0xff]
    %v1274 = vld [vmem:[%s1198 + $0x258] sm:$0xff]
    %v1275 = vld [vmem:[%s1198 + $0x260] sm:$0xff]
    %v1276 = vld [vmem:[%s1198 + $0x268] sm:$0xff]
    %v1277 = vld [vmem:[%s1198 + $0x270] sm:$0xff]
    %v1278 = vld [vmem:[%s1198 + $0x278] sm:$0xff]
    %v1279 = vld [vmem:[%s1198 + $0x280] sm:$0xff]
    %v1280 = vld [vmem:[%s1198 + $0x288] sm:$0xff]
    %v1281 = vld [vmem:[%s1198 + $0x290] sm:$0xff]
    %v1282 = vld [vmem:[%s1198 + $0x298] sm:$0xff]
    %v1283 = vld [vmem:[%s1198 + $0x2a0] sm:$0xff]
    %v1284 = vld [vmem:[%s1198 + $0x2a8] sm:$0xff]
    %v1285 = vld [vmem:[%s1198 + $0x2b0] sm:$0xff]
    %v1286 = vld [vmem:[%s1198 + $0x2b8] sm:$0xff]
    %v1287 = vld [vmem:[%s1198 + $0x2c0] sm:$0xff]
    %v1288 = vld [vmem:[%s1198 + $0x2c8] sm:$0xff]
    %v1289 = vld [vmem:[%s1198 + $0x2d0] sm:$0xff]
    %v1290 = vld [vmem:[%s1198 + $0x2d8] sm:$0xff]
    %v1291 = vld [vmem:[%s1198 + $0x2e0] sm:$0xff]
    %v1292 = vld [vmem:[%s1198 + $0x2e8] sm:$0xff]
    %v1293 = vld [vmem:[%s1198 + $0x2f0] sm:$0xff]
    %v1294 = vld [vmem:[%s1198 + $0x2f8] sm:$0xff]
    %v1295 = vld [vmem:[%s1198 + $0x300] sm:$0xff]
    %v1296 = vld [vmem:[%s1198 + $0x308] sm:$0xff]
    %v1297 = vld [vmem:[%s1198 + $0x310] sm:$0xff]
    %v1298 = vld [vmem:[%s1198 + $0x318] sm:$0xff]
    %v1299 = vld [vmem:[%s1198 + $0x320] sm:$0xff]
    %v1300 = vld [vmem:[%s1198 + $0x328] sm:$0xff]
    %v1301 = vld [vmem:[%s1198 + $0x330] sm:$0xff]
    %v1302 = vld [vmem:[%s1198 + $0x338] sm:$0xff]
    %v1303 = vld [vmem:[%s1198 + $0x340] sm:$0xff]
    %v1304 = vld [vmem:[%s1198 + $0x348] sm:$0xff]
    %v1305 = vld [vmem:[%s1198 + $0x350] sm:$0xff]
    %v1306 = vld [vmem:[%s1198 + $0x358] sm:$0xff]
    %v1307 = vld [vmem:[%s1198 + $0x360] sm:$0xff]
    %v1308 = vld [vmem:[%s1198 + $0x368] sm:$0xff]
    %v1309 = vld [vmem:[%s1198 + $0x370] sm:$0xff]
    %v1310 = vld [vmem:[%s1198 + $0x378] sm:$0xff]
    %v1311 = vld [vmem:[%s1198 + $0x380] sm:$0xff]
    %v1312 = vld [vmem:[%s1198 + $0x388] sm:$0xff]
    %v1313 = vld [vmem:[%s1198 + $0x390] sm:$0xff]
    %v1314 = vld [vmem:[%s1198 + $0x398] sm:$0xff]
    %v1315 = vld [vmem:[%s1198 + $0x3a0] sm:$0xff]
    %v1316 = vld [vmem:[%s1198 + $0x3a8] sm:$0xff]
    %v1317 = vld [vmem:[%s1198 + $0x3b0] sm:$0xff]
    %v1318 = vld [vmem:[%s1198 + $0x3b8] sm:$0xff]
    %vm1319 = vcmask 1045504
    %v1320 = vrot.slane %v33, 2
    %v1321 = vrot.slane %v35, 2
    %v1322 = vsel %vm1319, %v1320, %v1321
    %v1323 = vrot.slane %v34, 2
    %v1324 = vrot.slane %v36, 2
    %v1325 = vsel %vm1319, %v1323, %v1324
    %v1326 = vrot.slane %v37, 2
    %v1327 = vsel %vm1319, %v1321, %v1326
    %v1328 = vrot.slane %v38, 2
    %v1329 = vsel %vm1319, %v1324, %v1328
    %v1330 = vrot.slane %v39, 2
    %v1331 = vsel %vm1319, %v1326, %v1330
    %v1332 = vrot.slane %v40, 2
    %v1333 = vsel %vm1319, %v1328, %v1332
    %v1334 = vrot.slane %v41, 2
    %v1335 = vsel %vm1319, %v1330, %v1334
    %v1336 = vrot.slane %v42, 2
    %v1337 = vsel %vm1319, %v1332, %v1336
    %v1338 = vrot.slane %v43, 2
    %v1339 = vsel %vm1319, %v1334, %v1338
    %v1340 = vrot.slane %v44, 2
    %v1341 = vsel %vm1319, %v1336, %v1340
    %v1342 = vrot.slane %v45, 2
    %v1343 = vsel %vm1319, %v1338, %v1342
    %v1344 = vrot.slane %v46, 2
    %v1345 = vsel %vm1319, %v1340, %v1344
    %v1346 = vrot.slane %v47, 2
    %v1347 = vsel %vm1319, %v1342, %v1346
    %v1348 = vrot.slane %v48, 2
    %v1349 = vsel %vm1319, %v1344, %v1348
    %v1358 = vsel %vm345, %v1325, 0
    %v1360 = vsel %vm345, %v1329, 0
    %v1362 = vsel %vm345, %v1333, 0
    %v1364 = vsel %vm345, %v1337, 0
    %v1366 = vsel %vm345, %v1341, 0
    %v1368 = vsel %vm345, %v1345, 0
    %v1370 = vsel %vm345, %v1349, 0
    %v1372 = vsel %vm345, %v1348, 0
    %1374 = vmatpush.msra.mxu0 %v1274
    %1375 = vmatpush.msra.mxu0 %v1269
    %1376 = vmatpush.msra.mxu0 %v1264
    %1377 = vmatpush.msra.mxu0 %v1259
    %1378 = vmatpush.msra.mxu0 %v1254
    %1379 = vmatpush.msra.mxu0 %v1249
    %1380 = vmatpush.msra.mxu0 %v1244
    %1381 = vmatpush.msra.mxu0 %v1239
    %1382 = vmatpush.msra.mxu0 %v1234
    %1383 = vmatpush.msra.mxu0 %v1229
    %1384 = vmatpush.msra.mxu0 %v1224
    %1385 = vmatpush.msra.mxu0 %v1219
    %1386 = vmatpush.msra.mxu0 %v1214
    %1387 = vmatpush.msra.mxu0 %v1209
    %1388 = vmatpush.msra.mxu0 %v1204
    %1389 = vmatpush.msra.mxu0 %v1199
    %1390 = vmatmul.f32.gmra.mxu0 %v1322
    %v1391 = vpop.f32.mrf.mxu0
    %v1392 = vadd.f32 0.0, %v1391
    %1393 = vmatmul.f32.gmra.mxu0 %v1327
    %v1394 = vpop.f32.mrf.mxu0
    %v1395 = vadd.f32 0.0, %v1394
    %1396 = vmatmul.f32.gmra.mxu0 %v1331
    %v1397 = vpop.f32.mrf.mxu0
    %v1398 = vadd.f32 0.0, %v1397
    %1399 = vmatmul.f32.gmra.mxu0 %v1335
    %v1400 = vpop.f32.mrf.mxu0
    %v1401 = vadd.f32 0.0, %v1400
    %1402 = vmatmul.f32.gmra.mxu0 %v1339
    %v1403 = vpop.f32.mrf.mxu0
    %v1404 = vadd.f32 0.0, %v1403
    %1405 = vmatmul.f32.gmra.mxu0 %v1343
    %v1406 = vpop.f32.mrf.mxu0
    %v1407 = vadd.f32 0.0, %v1406
    %1408 = vmatmul.f32.gmra.mxu0 %v1347
    %v1409 = vpop.f32.mrf.mxu0
    %v1410 = vadd.f32 0.0, %v1409
    %1411 = vmatmul.f32.gmra.mxu0 %v1346
    %v1412 = vpop.f32.mrf.mxu0
    %v1413 = vadd.f32 0.0, %v1412
    %1414 = vdwg.mxu0
    %1415 = vmatpush.msra.mxu0 0.0
    %1416 = vmatpush.msra.mxu0 0.0
    %1417 = vmatpush.msra.mxu0 0.0
    %1418 = vmatpush.msra.mxu0 0.0
    %1419 = vmatpush.msra.mxu0 0.0
    %1420 = vmatpush.msra.mxu0 0.0
    %1421 = vmatpush.msra.mxu0 0.0
    %1422 = vmatpush.msra.mxu0 0.0
    %1423 = vmatpush.msra.mxu0 %v1314
    %1424 = vmatpush.msra.mxu0 %v1309
    %1425 = vmatpush.msra.mxu0 %v1304
    %1426 = vmatpush.msra.mxu0 %v1299
    %1427 = vmatpush.msra.mxu0 %v1294
    %1428 = vmatpush.msra.mxu0 %v1289
    %1429 = vmatpush.msra.mxu0 %v1284
    %1430 = vmatpush.msra.mxu0 %v1279
    %1431 = vmatmul.f32.gmra.mxu0 %v1358
    %v1432 = vpop.f32.mrf.mxu0
    %v1433 = vadd.f32 %v1392, %v1432
    %1434 = vmatmul.f32.gmra.mxu0 %v1360
    %v1435 = vpop.f32.mrf.mxu0
    %v1436 = vadd.f32 %v1395, %v1435
    %1437 = vmatmul.f32.gmra.mxu0 %v1362
    %v1438 = vpop.f32.mrf.mxu0
    %v1439 = vadd.f32 %v1398, %v1438
    %1440 = vmatmul.f32.gmra.mxu0 %v1364
    %v1441 = vpop.f32.mrf.mxu0
    %v1442 = vadd.f32 %v1401, %v1441
    %1443 = vmatmul.f32.gmra.mxu0 %v1366
    %v1444 = vpop.f32.mrf.mxu0
    %v1445 = vadd.f32 %v1404, %v1444
    %1446 = vmatmul.f32.gmra.mxu0 %v1368
    %v1447 = vpop.f32.mrf.mxu0
    %v1448 = vadd.f32 %v1407, %v1447
    %1449 = vmatmul.f32.gmra.mxu0 %v1370
    %v1450 = vpop.f32.mrf.mxu0
    %v1451 = vadd.f32 %v1410, %v1450
    %1452 = vmatmul.f32.gmra.mxu0 %v1372
    %v1453 = vpop.f32.mrf.mxu0
    %v1454 = vadd.f32 %v1413, %v1453
    %1455 = vdwg.mxu0
    %1456 = vmatpush.msra.mxu0 %v1275
    %1457 = vmatpush.msra.mxu0 %v1270
    %1458 = vmatpush.msra.mxu0 %v1265
    %1459 = vmatpush.msra.mxu0 %v1260
    %1460 = vmatpush.msra.mxu0 %v1255
    %1461 = vmatpush.msra.mxu0 %v1250
    %1462 = vmatpush.msra.mxu0 %v1245
    %1463 = vmatpush.msra.mxu0 %v1240
    %1464 = vmatpush.msra.mxu0 %v1235
    %1465 = vmatpush.msra.mxu0 %v1230
    %1466 = vmatpush.msra.mxu0 %v1225
    %1467 = vmatpush.msra.mxu0 %v1220
    %1468 = vmatpush.msra.mxu0 %v1215
    %1469 = vmatpush.msra.mxu0 %v1210
    %1470 = vmatpush.msra.mxu0 %v1205
    %1471 = vmatpush.msra.mxu0 %v1200
    %1472 = vmatmul.f32.gmra.mxu0 %v1322
    %v1473 = vpop.f32.mrf.mxu0
    %v1474 = vadd.f32 0.0, %v1473
    %1475 = vmatmul.f32.gmra.mxu0 %v1327
    %v1476 = vpop.f32.mrf.mxu0
    %v1477 = vadd.f32 0.0, %v1476
    %1478 = vmatmul.f32.gmra.mxu0 %v1331
    %v1479 = vpop.f32.mrf.mxu0
    %v1480 = vadd.f32 0.0, %v1479
    %1481 = vmatmul.f32.gmra.mxu0 %v1335
    %v1482 = vpop.f32.mrf.mxu0
    %v1483 = vadd.f32 0.0, %v1482
    %1484 = vmatmul.f32.gmra.mxu0 %v1339
    %v1485 = vpop.f32.mrf.mxu0
    %v1486 = vadd.f32 0.0, %v1485
    %1487 = vmatmul.f32.gmra.mxu0 %v1343
    %v1488 = vpop.f32.mrf.mxu0
    %v1489 = vadd.f32 0.0, %v1488
    %1490 = vmatmul.f32.gmra.mxu0 %v1347
    %v1491 = vpop.f32.mrf.mxu0
    %v1492 = vadd.f32 0.0, %v1491
    %1493 = vmatmul.f32.gmra.mxu0 %v1346
    %v1494 = vpop.f32.mrf.mxu0
    %v1495 = vadd.f32 0.0, %v1494
    %1496 = vdwg.mxu0
    %1497 = vmatpush.msra.mxu0 0.0
    %1498 = vmatpush.msra.mxu0 0.0
    %1499 = vmatpush.msra.mxu0 0.0
    %1500 = vmatpush.msra.mxu0 0.0
    %1501 = vmatpush.msra.mxu0 0.0
    %1502 = vmatpush.msra.mxu0 0.0
    %1503 = vmatpush.msra.mxu0 0.0
    %1504 = vmatpush.msra.mxu0 0.0
    %1505 = vmatpush.msra.mxu0 %v1315
    %1506 = vmatpush.msra.mxu0 %v1310
    %1507 = vmatpush.msra.mxu0 %v1305
    %1508 = vmatpush.msra.mxu0 %v1300
    %1509 = vmatpush.msra.mxu0 %v1295
    %1510 = vmatpush.msra.mxu0 %v1290
    %1511 = vmatpush.msra.mxu0 %v1285
    %1512 = vmatpush.msra.mxu0 %v1280
    %1513 = vmatmul.f32.gmra.mxu0 %v1358
    %v1514 = vpop.f32.mrf.mxu0
    %v1515 = vadd.f32 %v1474, %v1514
    %1516 = vmatmul.f32.gmra.mxu0 %v1360
    %v1517 = vpop.f32.mrf.mxu0
    %v1518 = vadd.f32 %v1477, %v1517
    %1519 = vmatmul.f32.gmra.mxu0 %v1362
    %v1520 = vpop.f32.mrf.mxu0
    %v1521 = vadd.f32 %v1480, %v1520
    %1522 = vmatmul.f32.gmra.mxu0 %v1364
    %v1523 = vpop.f32.mrf.mxu0
    %v1524 = vadd.f32 %v1483, %v1523
    %1525 = vmatmul.f32.gmra.mxu0 %v1366
    %v1526 = vpop.f32.mrf.mxu0
    %v1527 = vadd.f32 %v1486, %v1526
    %1528 = vmatmul.f32.gmra.mxu0 %v1368
    %v1529 = vpop.f32.mrf.mxu0
    %v1530 = vadd.f32 %v1489, %v1529
    %1531 = vmatmul.f32.gmra.mxu0 %v1370
    %v1532 = vpop.f32.mrf.mxu0
    %v1533 = vadd.f32 %v1492, %v1532
    %1534 = vmatmul.f32.gmra.mxu0 %v1372
    %v1535 = vpop.f32.mrf.mxu0
    %v1536 = vadd.f32 %v1495, %v1535
    %1537 = vdwg.mxu0
    %1538 = vmatpush.msra.mxu0 %v1276
    %1539 = vmatpush.msra.mxu0 %v1271
    %1540 = vmatpush.msra.mxu0 %v1266
    %1541 = vmatpush.msra.mxu0 %v1261
    %1542 = vmatpush.msra.mxu0 %v1256
    %1543 = vmatpush.msra.mxu0 %v1251
    %1544 = vmatpush.msra.mxu0 %v1246
    %1545 = vmatpush.msra.mxu0 %v1241
    %1546 = vmatpush.msra.mxu0 %v1236
    %1547 = vmatpush.msra.mxu0 %v1231
    %1548 = vmatpush.msra.mxu0 %v1226
    %1549 = vmatpush.msra.mxu0 %v1221
    %1550 = vmatpush.msra.mxu0 %v1216
    %1551 = vmatpush.msra.mxu0 %v1211
    %1552 = vmatpush.msra.mxu0 %v1206
    %1553 = vmatpush.msra.mxu0 %v1201
    %1554 = vmatmul.f32.gmra.mxu0 %v1322
    %v1555 = vpop.f32.mrf.mxu0
    %v1556 = vadd.f32 0.0, %v1555
    %1557 = vmatmul.f32.gmra.mxu0 %v1327
    %v1558 = vpop.f32.mrf.mxu0
    %v1559 = vadd.f32 0.0, %v1558
    %1560 = vmatmul.f32.gmra.mxu0 %v1331
    %v1561 = vpop.f32.mrf.mxu0
    %v1562 = vadd.f32 0.0, %v1561
    %1563 = vmatmul.f32.gmra.mxu0 %v1335
    %v1564 = vpop.f32.mrf.mxu0
    %v1565 = vadd.f32 0.0, %v1564
    %1566 = vmatmul.f32.gmra.mxu0 %v1339
    %v1567 = vpop.f32.mrf.mxu0
    %v1568 = vadd.f32 0.0, %v1567
    %1569 = vmatmul.f32.gmra.mxu0 %v1343
    %v1570 = vpop.f32.mrf.mxu0
    %v1571 = vadd.f32 0.0, %v1570
    %1572 = vmatmul.f32.gmra.mxu0 %v1347
    %v1573 = vpop.f32.mrf.mxu0
    %v1574 = vadd.f32 0.0, %v1573
    %1575 = vmatmul.f32.gmra.mxu0 %v1346
    %v1576 = vpop.f32.mrf.mxu0
    %v1577 = vadd.f32 0.0, %v1576
    %1578 = vdwg.mxu0
    %1579 = vmatpush.msra.mxu0 0.0
    %1580 = vmatpush.msra.mxu0 0.0
    %1581 = vmatpush.msra.mxu0 0.0
    %1582 = vmatpush.msra.mxu0 0.0
    %1583 = vmatpush.msra.mxu0 0.0
    %1584 = vmatpush.msra.mxu0 0.0
    %1585 = vmatpush.msra.mxu0 0.0
    %1586 = vmatpush.msra.mxu0 0.0
    %1587 = vmatpush.msra.mxu0 %v1316
    %1588 = vmatpush.msra.mxu0 %v1311
    %1589 = vmatpush.msra.mxu0 %v1306
    %1590 = vmatpush.msra.mxu0 %v1301
    %1591 = vmatpush.msra.mxu0 %v1296
    %1592 = vmatpush.msra.mxu0 %v1291
    %1593 = vmatpush.msra.mxu0 %v1286
    %1594 = vmatpush.msra.mxu0 %v1281
    %1595 = vmatmul.f32.gmra.mxu0 %v1358
    %v1596 = vpop.f32.mrf.mxu0
    %v1597 = vadd.f32 %v1556, %v1596
    %1598 = vmatmul.f32.gmra.mxu0 %v1360
    %v1599 = vpop.f32.mrf.mxu0
    %v1600 = vadd.f32 %v1559, %v1599
    %1601 = vmatmul.f32.gmra.mxu0 %v1362
    %v1602 = vpop.f32.mrf.mxu0
    %v1603 = vadd.f32 %v1562, %v1602
    %1604 = vmatmul.f32.gmra.mxu0 %v1364
    %v1605 = vpop.f32.mrf.mxu0
    %v1606 = vadd.f32 %v1565, %v1605
    %1607 = vmatmul.f32.gmra.mxu0 %v1366
    %v1608 = vpop.f32.mrf.mxu0
    %v1609 = vadd.f32 %v1568, %v1608
    %1610 = vmatmul.f32.gmra.mxu0 %v1368
    %v1611 = vpop.f32.mrf.mxu0
    %v1612 = vadd.f32 %v1571, %v1611
    %1613 = vmatmul.f32.gmra.mxu0 %v1370
    %v1614 = vpop.f32.mrf.mxu0
    %v1615 = vadd.f32 %v1574, %v1614
    %1616 = vmatmul.f32.gmra.mxu0 %v1372
    %v1617 = vpop.f32.mrf.mxu0
    %v1618 = vadd.f32 %v1577, %v1617
    %1619 = vdwg.mxu0
    %1620 = vmatpush.msra.mxu0 %v1277
    %1621 = vmatpush.msra.mxu0 %v1272
    %1622 = vmatpush.msra.mxu0 %v1267
    %1623 = vmatpush.msra.mxu0 %v1262
    %1624 = vmatpush.msra.mxu0 %v1257
    %1625 = vmatpush.msra.mxu0 %v1252
    %1626 = vmatpush.msra.mxu0 %v1247
    %1627 = vmatpush.msra.mxu0 %v1242
    %1628 = vmatpush.msra.mxu0 %v1237
    %1629 = vmatpush.msra.mxu0 %v1232
    %1630 = vmatpush.msra.mxu0 %v1227
    %1631 = vmatpush.msra.mxu0 %v1222
    %1632 = vmatpush.msra.mxu0 %v1217
    %1633 = vmatpush.msra.mxu0 %v1212
    %1634 = vmatpush.msra.mxu0 %v1207
    %1635 = vmatpush.msra.mxu0 %v1202
    %1636 = vmatmul.f32.gmra.mxu0 %v1322
    %v1637 = vpop.f32.mrf.mxu0
    %v1638 = vadd.f32 0.0, %v1637
    %1639 = vmatmul.f32.gmra.mxu0 %v1327
    %v1640 = vpop.f32.mrf.mxu0
    %v1641 = vadd.f32 0.0, %v1640
    %1642 = vmatmul.f32.gmra.mxu0 %v1331
    %v1643 = vpop.f32.mrf.mxu0
    %v1644 = vadd.f32 0.0, %v1643
    %1645 = vmatmul.f32.gmra.mxu0 %v1335
    %v1646 = vpop.f32.mrf.mxu0
    %v1647 = vadd.f32 0.0, %v1646
    %1648 = vmatmul.f32.gmra.mxu0 %v1339
    %v1649 = vpop.f32.mrf.mxu0
    %v1650 = vadd.f32 0.0, %v1649
    %1651 = vmatmul.f32.gmra.mxu0 %v1343
    %v1652 = vpop.f32.mrf.mxu0
    %v1653 = vadd.f32 0.0, %v1652
    %1654 = vmatmul.f32.gmra.mxu0 %v1347
    %v1655 = vpop.f32.mrf.mxu0
    %v1656 = vadd.f32 0.0, %v1655
    %1657 = vmatmul.f32.gmra.mxu0 %v1346
    %v1658 = vpop.f32.mrf.mxu0
    %v1659 = vadd.f32 0.0, %v1658
    %1660 = vdwg.mxu0
    %1661 = vmatpush.msra.mxu0 0.0
    %1662 = vmatpush.msra.mxu0 0.0
    %1663 = vmatpush.msra.mxu0 0.0
    %1664 = vmatpush.msra.mxu0 0.0
    %1665 = vmatpush.msra.mxu0 0.0
    %1666 = vmatpush.msra.mxu0 0.0
    %1667 = vmatpush.msra.mxu0 0.0
    %1668 = vmatpush.msra.mxu0 0.0
    %1669 = vmatpush.msra.mxu0 %v1317
    %1670 = vmatpush.msra.mxu0 %v1312
    %1671 = vmatpush.msra.mxu0 %v1307
    %1672 = vmatpush.msra.mxu0 %v1302
    %1673 = vmatpush.msra.mxu0 %v1297
    %1674 = vmatpush.msra.mxu0 %v1292
    %1675 = vmatpush.msra.mxu0 %v1287
    %1676 = vmatpush.msra.mxu0 %v1282
    %1677 = vmatmul.f32.gmra.mxu0 %v1358
    %v1678 = vpop.f32.mrf.mxu0
    %v1679 = vadd.f32 %v1638, %v1678
    %1680 = vmatmul.f32.gmra.mxu0 %v1360
    %v1681 = vpop.f32.mrf.mxu0
    %v1682 = vadd.f32 %v1641, %v1681
    %1683 = vmatmul.f32.gmra.mxu0 %v1362
    %v1684 = vpop.f32.mrf.mxu0
    %v1685 = vadd.f32 %v1644, %v1684
    %1686 = vmatmul.f32.gmra.mxu0 %v1364
    %v1687 = vpop.f32.mrf.mxu0
    %v1688 = vadd.f32 %v1647, %v1687
    %1689 = vmatmul.f32.gmra.mxu0 %v1366
    %v1690 = vpop.f32.mrf.mxu0
    %v1691 = vadd.f32 %v1650, %v1690
    %1692 = vmatmul.f32.gmra.mxu0 %v1368
    %v1693 = vpop.f32.mrf.mxu0
    %v1694 = vadd.f32 %v1653, %v1693
    %1695 = vmatmul.f32.gmra.mxu0 %v1370
    %v1696 = vpop.f32.mrf.mxu0
    %v1697 = vadd.f32 %v1656, %v1696
    %1698 = vmatmul.f32.gmra.mxu0 %v1372
    %v1699 = vpop.f32.mrf.mxu0
    %v1700 = vadd.f32 %v1659, %v1699
    %1701 = vdwg.mxu0
    %1702 = vmatpush.msra.mxu0 %v1278
    %1703 = vmatpush.msra.mxu0 %v1273
    %1704 = vmatpush.msra.mxu0 %v1268
    %1705 = vmatpush.msra.mxu0 %v1263
    %1706 = vmatpush.msra.mxu0 %v1258
    %1707 = vmatpush.msra.mxu0 %v1253
    %1708 = vmatpush.msra.mxu0 %v1248
    %1709 = vmatpush.msra.mxu0 %v1243
    %1710 = vmatpush.msra.mxu0 %v1238
    %1711 = vmatpush.msra.mxu0 %v1233
    %1712 = vmatpush.msra.mxu0 %v1228
    %1713 = vmatpush.msra.mxu0 %v1223
    %1714 = vmatpush.msra.mxu0 %v1218
    %1715 = vmatpush.msra.mxu0 %v1213
    %1716 = vmatpush.msra.mxu0 %v1208
    %1717 = vmatpush.msra.mxu0 %v1203
    %1718 = vmatmul.f32.gmra.mxu0 %v1322
    %v1719 = vpop.f32.mrf.mxu0
    %v1720 = vadd.f32 0.0, %v1719
    %1721 = vmatmul.f32.gmra.mxu0 %v1327
    %v1722 = vpop.f32.mrf.mxu0
    %v1723 = vadd.f32 0.0, %v1722
    %1724 = vmatmul.f32.gmra.mxu0 %v1331
    %v1725 = vpop.f32.mrf.mxu0
    %v1726 = vadd.f32 0.0, %v1725
    %1727 = vmatmul.f32.gmra.mxu0 %v1335
    %v1728 = vpop.f32.mrf.mxu0
    %v1729 = vadd.f32 0.0, %v1728
    %1730 = vmatmul.f32.gmra.mxu0 %v1339
    %v1731 = vpop.f32.mrf.mxu0
    %v1732 = vadd.f32 0.0, %v1731
    %1733 = vmatmul.f32.gmra.mxu0 %v1343
    %v1734 = vpop.f32.mrf.mxu0
    %v1735 = vadd.f32 0.0, %v1734
    %1736 = vmatmul.f32.gmra.mxu0 %v1347
    %v1737 = vpop.f32.mrf.mxu0
    %v1738 = vadd.f32 0.0, %v1737
    %1739 = vmatmul.f32.gmra.mxu0 %v1346
    %v1740 = vpop.f32.mrf.mxu0
    %v1741 = vadd.f32 0.0, %v1740
    %1742 = vdwg.mxu0
    %1743 = vmatpush.msra.mxu0 0.0
    %1744 = vmatpush.msra.mxu0 0.0
    %1745 = vmatpush.msra.mxu0 0.0
    %1746 = vmatpush.msra.mxu0 0.0
    %1747 = vmatpush.msra.mxu0 0.0
    %1748 = vmatpush.msra.mxu0 0.0
    %1749 = vmatpush.msra.mxu0 0.0
    %1750 = vmatpush.msra.mxu0 0.0
    %1751 = vmatpush.msra.mxu0 %v1318
    %1752 = vmatpush.msra.mxu0 %v1313
    %1753 = vmatpush.msra.mxu0 %v1308
    %1754 = vmatpush.msra.mxu0 %v1303
    %1755 = vmatpush.msra.mxu0 %v1298
    %1756 = vmatpush.msra.mxu0 %v1293
    %1757 = vmatpush.msra.mxu0 %v1288
    %1758 = vmatpush.msra.mxu0 %v1283
    %1759 = vmatmul.f32.gmra.mxu0 %v1358
    %v1760 = vpop.f32.mrf.mxu0
    %v1761 = vadd.f32 %v1720, %v1760
    %1762 = vmatmul.f32.gmra.mxu0 %v1360
    %v1763 = vpop.f32.mrf.mxu0
    %v1764 = vadd.f32 %v1723, %v1763
    %1765 = vmatmul.f32.gmra.mxu0 %v1362
    %v1766 = vpop.f32.mrf.mxu0
    %v1767 = vadd.f32 %v1726, %v1766
    %1768 = vmatmul.f32.gmra.mxu0 %v1364
    %v1769 = vpop.f32.mrf.mxu0
    %v1770 = vadd.f32 %v1729, %v1769
    %1771 = vmatmul.f32.gmra.mxu0 %v1366
    %v1772 = vpop.f32.mrf.mxu0
    %v1773 = vadd.f32 %v1732, %v1772
    %1774 = vmatmul.f32.gmra.mxu0 %v1368
    %v1775 = vpop.f32.mrf.mxu0
    %v1776 = vadd.f32 %v1735, %v1775
    %1777 = vmatmul.f32.gmra.mxu0 %v1370
    %v1778 = vpop.f32.mrf.mxu0
    %v1779 = vadd.f32 %v1738, %v1778
    %1780 = vmatmul.f32.gmra.mxu0 %v1372
    %v1781 = vpop.f32.mrf.mxu0
    %v1782 = vadd.f32 %v1741, %v1781
    %1783 = vdwg.mxu0
    %v1784 = vadd.f32 %v847, %v1433
    %v1785 = vadd.f32 %v929, %v1515
    %v1786 = vadd.f32 %v1011, %v1597
    %v1787 = vadd.f32 %v1093, %v1679
    %v1788 = vadd.f32 %v1175, %v1761
    %v1789 = vadd.f32 %v850, %v1436
    %v1790 = vadd.f32 %v932, %v1518
    %v1791 = vadd.f32 %v1014, %v1600
    %v1792 = vadd.f32 %v1096, %v1682
    %v1793 = vadd.f32 %v1178, %v1764
    %v1794 = vadd.f32 %v853, %v1439
    %v1795 = vadd.f32 %v935, %v1521
    %v1796 = vadd.f32 %v1017, %v1603
    %v1797 = vadd.f32 %v1099, %v1685
    %v1798 = vadd.f32 %v1181, %v1767
    %v1799 = vadd.f32 %v856, %v1442
    %v1800 = vadd.f32 %v938, %v1524
    %v1801 = vadd.f32 %v1020, %v1606
    %v1802 = vadd.f32 %v1102, %v1688
    %v1803 = vadd.f32 %v1184, %v1770
    %v1804 = vadd.f32 %v859, %v1445
    %v1805 = vadd.f32 %v941, %v1527
    %v1806 = vadd.f32 %v1023, %v1609
    %v1807 = vadd.f32 %v1105, %v1691
    %v1808 = vadd.f32 %v1187, %v1773
    %v1809 = vadd.f32 %v862, %v1448
    %v1810 = vadd.f32 %v944, %v1530
    %v1811 = vadd.f32 %v1026, %v1612
    %v1812 = vadd.f32 %v1108, %v1694
    %v1813 = vadd.f32 %v1190, %v1776
    %v1814 = vadd.f32 %v865, %v1451
    %v1815 = vadd.f32 %v947, %v1533
    %v1816 = vadd.f32 %v1029, %v1615
    %v1817 = vadd.f32 %v1111, %v1697
    %v1818 = vadd.f32 %v1193, %v1779
    %v1819 = vadd.f32 %v868, %v1454
    %v1820 = vadd.f32 %v950, %v1536
    %v1821 = vadd.f32 %v1032, %v1618
    %v1822 = vadd.f32 %v1114, %v1700
    %v1823 = vadd.f32 %v1196, %v1782
    %v1824 = vld [vmem:[%s2] sm:$0x1f]
    %v1826 = vperm.slane %v1824, 0
    %v1827 = vperm.slane %v1824, 1
    %v1828 = vperm.slane %v1824, 2
    %v1829 = vperm.slane %v1824, 3
    %v1830 = vperm.slane %v1824, 4
    %v1836 = vadd.f32 %v1784, %v1826
    %v1837 = vadd.f32 %v1785, %v1827
    %v1838 = vadd.f32 %v1786, %v1828
    %v1839 = vadd.f32 %v1787, %v1829
    %v1840 = vadd.f32 %v1788, %v1830
    %v1841 = vadd.f32 %v1789, %v1826
    %v1842 = vadd.f32 %v1790, %v1827
    %v1843 = vadd.f32 %v1791, %v1828
    %v1844 = vadd.f32 %v1792, %v1829
    %v1845 = vadd.f32 %v1793, %v1830
    %v1846 = vadd.f32 %v1794, %v1826
    %v1847 = vadd.f32 %v1795, %v1827
    %v1848 = vadd.f32 %v1796, %v1828
    %v1849 = vadd.f32 %v1797, %v1829
    %v1850 = vadd.f32 %v1798, %v1830
    %v1851 = vadd.f32 %v1799, %v1826
    %v1852 = vadd.f32 %v1800, %v1827
    %v1853 = vadd.f32 %v1801, %v1828
    %v1854 = vadd.f32 %v1802, %v1829
    %v1855 = vadd.f32 %v1803, %v1830
    %v1856 = vadd.f32 %v1804, %v1826
    %v1857 = vadd.f32 %v1805, %v1827
    %v1858 = vadd.f32 %v1806, %v1828
    %v1859 = vadd.f32 %v1807, %v1829
    %v1860 = vadd.f32 %v1808, %v1830
    %v1861 = vadd.f32 %v1809, %v1826
    %v1862 = vadd.f32 %v1810, %v1827
    %v1863 = vadd.f32 %v1811, %v1828
    %v1864 = vadd.f32 %v1812, %v1829
    %v1865 = vadd.f32 %v1813, %v1830
    %v1866 = vadd.f32 %v1814, %v1826
    %v1867 = vadd.f32 %v1815, %v1827
    %v1868 = vadd.f32 %v1816, %v1828
    %v1869 = vadd.f32 %v1817, %v1829
    %v1870 = vadd.f32 %v1818, %v1830
    %v1871 = vadd.f32 %v1819, %v1826
    %v1872 = vadd.f32 %v1820, %v1827
    %v1873 = vadd.f32 %v1821, %v1828
    %v1874 = vadd.f32 %v1822, %v1829
    %v1875 = vadd.f32 %v1823, %v1830
    %v1876 = vmax.f32 %v1836, 0.0
    %v1877 = vmax.f32 %v1837, 0.0
    %v1878 = vmax.f32 %v1838, 0.0
    %v1879 = vmax.f32 %v1839, 0.0
    %v1880 = vmax.f32 %v1840, 0.0
    %v1881 = vmax.f32 %v1841, 0.0
    %v1882 = vmax.f32 %v1842, 0.0
    %v1883 = vmax.f32 %v1843, 0.0
    %v1884 = vmax.f32 %v1844, 0.0
    %v1885 = vmax.f32 %v1845, 0.0
    %v1886 = vmax.f32 %v1846, 0.0
    %v1887 = vmax.f32 %v1847, 0.0
    %v1888 = vmax.f32 %v1848, 0.0
    %v1889 = vmax.f32 %v1849, 0.0
    %v1890 = vmax.f32 %v1850, 0.0
    %v1891 = vmax.f32 %v1851, 0.0
    %v1892 = vmax.f32 %v1852, 0.0
    %v1893 = vmax.f32 %v1853, 0.0
    %v1894 = vmax.f32 %v1854, 0.0
    %v1895 = vmax.f32 %v1855, 0.0
    %v1896 = vmax.f32 %v1856, 0.0
    %v1897 = vmax.f32 %v1857, 0.0
    %v1898 = vmax.f32 %v1858, 0.0
    %v1899 = vmax.f32 %v1859, 0.0
    %v1900 = vmax.f32 %v1860, 0.0
    %v1901 = vmax.f32 %v1861, 0.0
    %v1902 = vmax.f32 %v1862, 0.0
    %v1903 = vmax.f32 %v1863, 0.0
    %v1904 = vmax.f32 %v1864, 0.0
    %v1905 = vmax.f32 %v1865, 0.0
    %v1906 = vmax.f32 %v1866, 0.0
    %v1907 = vmax.f32 %v1867, 0.0
    %v1908 = vmax.f32 %v1868, 0.0
    %v1909 = vmax.f32 %v1869, 0.0
    %v1910 = vmax.f32 %v1870, 0.0
    %v1911 = vmax.f32 %v1871, 0.0
    %v1912 = vmax.f32 %v1872, 0.0
    %v1913 = vmax.f32 %v1873, 0.0
    %v1914 = vmax.f32 %v1874, 0.0
    %v1915 = vmax.f32 %v1875, 0.0
    %v1916 = vld [vmem:[%s3] sm:$0xff]
    %v1917 = vld [vmem:[%s3 + $0x8] sm:$0xff]
    %v1918 = vld [vmem:[%s3 + $0x10] sm:$0xff]
    %v1919 = vld [vmem:[%s3 + $0x18] sm:$0x7f]
    %vm1920 = vcmask 506880
    %v1922 = vsel %vm1920, %v1916, 0
    %v1925 = vsel %vm1920, %v1917, 0
    %v1928 = vsel %vm1920, %v1918, 0
    %v1931 = vsel %vm1920, %v1919, 0
    %v1934 = vsel %vm1319, %v1911, 0
    %v1937 = vsel %vm1319, %v1912, 0
    %v1940 = vsel %vm1319, %v1913, 0
    %v1943 = vsel %vm1319, %v1914, 0
    %v1946 = vsel %vm1319, %v1915, 0
    %1948 = vmatpush.msra.mxu0 0.0
    %1949 = vmatpush.msra.mxu0 0.0
    %1950 = vmatpush.msra.mxu0 0.0
    %1951 = vmatpush.msra.mxu0 0.0
    %1952 = vmatpush.msra.mxu0 0.0
    %1953 = vmatpush.msra.mxu0 0.0
    %1954 = vmatpush.msra.mxu0 0.0
    %1955 = vmatpush.msra.mxu0 0.0
    %1956 = vmatpush.msra.mxu0 %v1934
    %1957 = vmatpush.msra.mxu0 %v1906
    %1958 = vmatpush.msra.mxu0 %v1901
    %1959 = vmatpush.msra.mxu0 %v1896
    %1960 = vmatpush.msra.mxu0 %v1891
    %1961 = vmatpush.msra.mxu0 %v1886
    %1962 = vmatpush.msra.mxu0 %v1881
    %1963 = vmatpush.msra.mxu0 %v1876
    %1964 = vmatmul.f32.gmra.mxu0 %v1922
    %v1965 = vpop.f32.mrf.mxu0
    %v1966 = vadd.f32 0.0, %v1965
    %1967 = vmatmul.f32.gmra.mxu0 %v1925
    %v1968 = vpop.f32.mrf.mxu0
    %v1969 = vadd.f32 0.0, %v1968
    %1970 = vmatmul.f32.gmra.mxu0 %v1928
    %v1971 = vpop.f32.mrf.mxu0
    %v1972 = vadd.f32 0.0, %v1971
    %1973 = vmatmul.f32.gmra.mxu0 %v1931
    %v1974 = vpop.f32.mrf.mxu0
    %v1975 = vadd.f32 0.0, %v1974
    %1976 = vdwg.mxu0
    %1977 = vmatpush.msra.mxu0 0.0
    %1978 = vmatpush.msra.mxu0 0.0
    %1979 = vmatpush.msra.mxu0 0.0
    %1980 = vmatpush.msra.mxu0 0.0
    %1981 = vmatpush.msra.mxu0 0.0
    %1982 = vmatpush.msra.mxu0 0.0
    %1983 = vmatpush.msra.mxu0 0.0
    %1984 = vmatpush.msra.mxu0 0.0
    %1985 = vmatpush.msra.mxu0 %v1937
    %1986 = vmatpush.msra.mxu0 %v1907
    %1987 = vmatpush.msra.mxu0 %v1902
    %1988 = vmatpush.msra.mxu0 %v1897
    %1989 = vmatpush.msra.mxu0 %v1892
    %1990 = vmatpush.msra.mxu0 %v1887
    %1991 = vmatpush.msra.mxu0 %v1882
    %1992 = vmatpush.msra.mxu0 %v1877
    %1993 = vmatmul.f32.gmra.mxu0 %v1922
    %v1994 = vpop.f32.mrf.mxu0
    %v1995 = vadd.f32 0.0, %v1994
    %1996 = vmatmul.f32.gmra.mxu0 %v1925
    %v1997 = vpop.f32.mrf.mxu0
    %v1998 = vadd.f32 0.0, %v1997
    %1999 = vmatmul.f32.gmra.mxu0 %v1928
    %v2000 = vpop.f32.mrf.mxu0
    %v2001 = vadd.f32 0.0, %v2000
    %2002 = vmatmul.f32.gmra.mxu0 %v1931
    %v2003 = vpop.f32.mrf.mxu0
    %v2004 = vadd.f32 0.0, %v2003
    %2005 = vdwg.mxu0
    %2006 = vmatpush.msra.mxu0 0.0
    %2007 = vmatpush.msra.mxu0 0.0
    %2008 = vmatpush.msra.mxu0 0.0
    %2009 = vmatpush.msra.mxu0 0.0
    %2010 = vmatpush.msra.mxu0 0.0
    %2011 = vmatpush.msra.mxu0 0.0
    %2012 = vmatpush.msra.mxu0 0.0
    %2013 = vmatpush.msra.mxu0 0.0
    %2014 = vmatpush.msra.mxu0 %v1940
    %2015 = vmatpush.msra.mxu0 %v1908
    %2016 = vmatpush.msra.mxu0 %v1903
    %2017 = vmatpush.msra.mxu0 %v1898
    %2018 = vmatpush.msra.mxu0 %v1893
    %2019 = vmatpush.msra.mxu0 %v1888
    %2020 = vmatpush.msra.mxu0 %v1883
    %2021 = vmatpush.msra.mxu0 %v1878
    %2022 = vmatmul.f32.gmra.mxu0 %v1922
    %v2023 = vpop.f32.mrf.mxu0
    %v2024 = vadd.f32 0.0, %v2023
    %2025 = vmatmul.f32.gmra.mxu0 %v1925
    %v2026 = vpop.f32.mrf.mxu0
    %v2027 = vadd.f32 0.0, %v2026
    %2028 = vmatmul.f32.gmra.mxu0 %v1928
    %v2029 = vpop.f32.mrf.mxu0
    %v2030 = vadd.f32 0.0, %v2029
    %2031 = vmatmul.f32.gmra.mxu0 %v1931
    %v2032 = vpop.f32.mrf.mxu0
    %v2033 = vadd.f32 0.0, %v2032
    %2034 = vdwg.mxu0
    %2035 = vmatpush.msra.mxu0 0.0
    %2036 = vmatpush.msra.mxu0 0.0
    %2037 = vmatpush.msra.mxu0 0.0
    %2038 = vmatpush.msra.mxu0 0.0
    %2039 = vmatpush.msra.mxu0 0.0
    %2040 = vmatpush.msra.mxu0 0.0
    %2041 = vmatpush.msra.mxu0 0.0
    %2042 = vmatpush.msra.mxu0 0.0
    %2043 = vmatpush.msra.mxu0 %v1943
    %2044 = vmatpush.msra.mxu0 %v1909
    %2045 = vmatpush.msra.mxu0 %v1904
    %2046 = vmatpush.msra.mxu0 %v1899
    %2047 = vmatpush.msra.mxu0 %v1894
    %2048 = vmatpush.msra.mxu0 %v1889
    %2049 = vmatpush.msra.mxu0 %v1884
    %2050 = vmatpush.msra.mxu0 %v1879
    %2051 = vmatmul.f32.gmra.mxu0 %v1922
    %v2052 = vpop.f32.mrf.mxu0
    %v2053 = vadd.f32 0.0, %v2052
    %2054 = vmatmul.f32.gmra.mxu0 %v1925
    %v2055 = vpop.f32.mrf.mxu0
    %v2056 = vadd.f32 0.0, %v2055
    %2057 = vmatmul.f32.gmra.mxu0 %v1928
    %v2058 = vpop.f32.mrf.mxu0
    %v2059 = vadd.f32 0.0, %v2058
    %2060 = vmatmul.f32.gmra.mxu0 %v1931
    %v2061 = vpop.f32.mrf.mxu0
    %v2062 = vadd.f32 0.0, %v2061
    %2063 = vdwg.mxu0
    %2064 = vmatpush.msra.mxu0 0.0
    %2065 = vmatpush.msra.mxu0 0.0
    %2066 = vmatpush.msra.mxu0 0.0
    %2067 = vmatpush.msra.mxu0 0.0
    %2068 = vmatpush.msra.mxu0 0.0
    %2069 = vmatpush.msra.mxu0 0.0
    %2070 = vmatpush.msra.mxu0 0.0
    %2071 = vmatpush.msra.mxu0 0.0
    %2072 = vmatpush.msra.mxu0 %v1946
    %2073 = vmatpush.msra.mxu0 %v1910
    %2074 = vmatpush.msra.mxu0 %v1905
    %2075 = vmatpush.msra.mxu0 %v1900
    %2076 = vmatpush.msra.mxu0 %v1895
    %2077 = vmatpush.msra.mxu0 %v1890
    %2078 = vmatpush.msra.mxu0 %v1885
    %2079 = vmatpush.msra.mxu0 %v1880
    %2080 = vmatmul.f32.gmra.mxu0 %v1922
    %v2081 = vpop.f32.mrf.mxu0
    %v2082 = vadd.f32 0.0, %v2081
    %2083 = vmatmul.f32.gmra.mxu0 %v1925
    %v2084 = vpop.f32.mrf.mxu0
    %v2085 = vadd.f32 0.0, %v2084
    %2086 = vmatmul.f32.gmra.mxu0 %v1928
    %v2087 = vpop.f32.mrf.mxu0
    %v2088 = vadd.f32 0.0, %v2087
    %2089 = vmatmul.f32.gmra.mxu0 %v1931
    %v2090 = vpop.f32.mrf.mxu0
    %v2091 = vadd.f32 0.0, %v2090
    %2092 = vdwg.mxu0
    %s2093 = scalar_lea.vmem %s3, 32
    %v2094 = vld [vmem:[%s2093] sm:$0xff]
    %v2095 = vld [vmem:[%s2093 + $0x8] sm:$0xff]
    %v2096 = vld [vmem:[%s2093 + $0x10] sm:$0xff]
    %v2097 = vld [vmem:[%s2093 + $0x18] sm:$0x7f]
    %v2099 = vsel %vm1920, %v2094, 0
    %v2102 = vsel %vm1920, %v2095, 0
    %v2105 = vsel %vm1920, %v2096, 0
    %v2108 = vsel %vm1920, %v2097, 0
    %2110 = vmatpush.msra.mxu0 0.0
    %2111 = vmatpush.msra.mxu0 0.0
    %2112 = vmatpush.msra.mxu0 0.0
    %2113 = vmatpush.msra.mxu0 0.0
    %2114 = vmatpush.msra.mxu0 0.0
    %2115 = vmatpush.msra.mxu0 0.0
    %2116 = vmatpush.msra.mxu0 0.0
    %2117 = vmatpush.msra.mxu0 0.0
    %2118 = vmatpush.msra.mxu0 %v1934
    %2119 = vmatpush.msra.mxu0 %v1906
    %2120 = vmatpush.msra.mxu0 %v1901
    %2121 = vmatpush.msra.mxu0 %v1896
    %2122 = vmatpush.msra.mxu0 %v1891
    %2123 = vmatpush.msra.mxu0 %v1886
    %2124 = vmatpush.msra.mxu0 %v1881
    %2125 = vmatpush.msra.mxu0 %v1876
    %2126 = vmatmul.f32.gmra.mxu0 %v2099
    %v2127 = vpop.f32.mrf.mxu0
    %v2128 = vadd.f32 0.0, %v2127
    %2129 = vmatmul.f32.gmra.mxu0 %v2102
    %v2130 = vpop.f32.mrf.mxu0
    %v2131 = vadd.f32 0.0, %v2130
    %2132 = vmatmul.f32.gmra.mxu0 %v2105
    %v2133 = vpop.f32.mrf.mxu0
    %v2134 = vadd.f32 0.0, %v2133
    %2135 = vmatmul.f32.gmra.mxu0 %v2108
    %v2136 = vpop.f32.mrf.mxu0
    %v2137 = vadd.f32 0.0, %v2136
    %2138 = vdwg.mxu0
    %2139 = vmatpush.msra.mxu0 0.0
    %2140 = vmatpush.msra.mxu0 0.0
    %2141 = vmatpush.msra.mxu0 0.0
    %2142 = vmatpush.msra.mxu0 0.0
    %2143 = vmatpush.msra.mxu0 0.0
    %2144 = vmatpush.msra.mxu0 0.0
    %2145 = vmatpush.msra.mxu0 0.0
    %2146 = vmatpush.msra.mxu0 0.0
    %2147 = vmatpush.msra.mxu0 %v1937
    %2148 = vmatpush.msra.mxu0 %v1907
    %2149 = vmatpush.msra.mxu0 %v1902
    %2150 = vmatpush.msra.mxu0 %v1897
    %2151 = vmatpush.msra.mxu0 %v1892
    %2152 = vmatpush.msra.mxu0 %v1887
    %2153 = vmatpush.msra.mxu0 %v1882
    %2154 = vmatpush.msra.mxu0 %v1877
    %2155 = vmatmul.f32.gmra.mxu0 %v2099
    %v2156 = vpop.f32.mrf.mxu0
    %v2157 = vadd.f32 0.0, %v2156
    %2158 = vmatmul.f32.gmra.mxu0 %v2102
    %v2159 = vpop.f32.mrf.mxu0
    %v2160 = vadd.f32 0.0, %v2159
    %2161 = vmatmul.f32.gmra.mxu0 %v2105
    %v2162 = vpop.f32.mrf.mxu0
    %v2163 = vadd.f32 0.0, %v2162
    %2164 = vmatmul.f32.gmra.mxu0 %v2108
    %v2165 = vpop.f32.mrf.mxu0
    %v2166 = vadd.f32 0.0, %v2165
    %2167 = vdwg.mxu0
    %2168 = vmatpush.msra.mxu0 0.0
    %2169 = vmatpush.msra.mxu0 0.0
    %2170 = vmatpush.msra.mxu0 0.0
    %2171 = vmatpush.msra.mxu0 0.0
    %2172 = vmatpush.msra.mxu0 0.0
    %2173 = vmatpush.msra.mxu0 0.0
    %2174 = vmatpush.msra.mxu0 0.0
    %2175 = vmatpush.msra.mxu0 0.0
    %2176 = vmatpush.msra.mxu0 %v1940
    %2177 = vmatpush.msra.mxu0 %v1908
    %2178 = vmatpush.msra.mxu0 %v1903
    %2179 = vmatpush.msra.mxu0 %v1898
    %2180 = vmatpush.msra.mxu0 %v1893
    %2181 = vmatpush.msra.mxu0 %v1888
    %2182 = vmatpush.msra.mxu0 %v1883
    %2183 = vmatpush.msra.mxu0 %v1878
    %2184 = vmatmul.f32.gmra.mxu0 %v2099
    %v2185 = vpop.f32.mrf.mxu0
    %v2186 = vadd.f32 0.0, %v2185
    %2187 = vmatmul.f32.gmra.mxu0 %v2102
    %v2188 = vpop.f32.mrf.mxu0
    %v2189 = vadd.f32 0.0, %v2188
    %2190 = vmatmul.f32.gmra.mxu0 %v2105
    %v2191 = vpop.f32.mrf.mxu0
    %v2192 = vadd.f32 0.0, %v2191
    %2193 = vmatmul.f32.gmra.mxu0 %v2108
    %v2194 = vpop.f32.mrf.mxu0
    %v2195 = vadd.f32 0.0, %v2194
    %2196 = vdwg.mxu0
    %2197 = vmatpush.msra.mxu0 0.0
    %2198 = vmatpush.msra.mxu0 0.0
    %2199 = vmatpush.msra.mxu0 0.0
    %2200 = vmatpush.msra.mxu0 0.0
    %2201 = vmatpush.msra.mxu0 0.0
    %2202 = vmatpush.msra.mxu0 0.0
    %2203 = vmatpush.msra.mxu0 0.0
    %2204 = vmatpush.msra.mxu0 0.0
    %2205 = vmatpush.msra.mxu0 %v1943
    %2206 = vmatpush.msra.mxu0 %v1909
    %2207 = vmatpush.msra.mxu0 %v1904
    %2208 = vmatpush.msra.mxu0 %v1899
    %2209 = vmatpush.msra.mxu0 %v1894
    %2210 = vmatpush.msra.mxu0 %v1889
    %2211 = vmatpush.msra.mxu0 %v1884
    %2212 = vmatpush.msra.mxu0 %v1879
    %2213 = vmatmul.f32.gmra.mxu0 %v2099
    %v2214 = vpop.f32.mrf.mxu0
    %v2215 = vadd.f32 0.0, %v2214
    %2216 = vmatmul.f32.gmra.mxu0 %v2102
    %v2217 = vpop.f32.mrf.mxu0
    %v2218 = vadd.f32 0.0, %v2217
    %2219 = vmatmul.f32.gmra.mxu0 %v2105
    %v2220 = vpop.f32.mrf.mxu0
    %v2221 = vadd.f32 0.0, %v2220
    %2222 = vmatmul.f32.gmra.mxu0 %v2108
    %v2223 = vpop.f32.mrf.mxu0
    %v2224 = vadd.f32 0.0, %v2223
    %2225 = vdwg.mxu0
    %2226 = vmatpush.msra.mxu0 0.0
    %2227 = vmatpush.msra.mxu0 0.0
    %2228 = vmatpush.msra.mxu0 0.0
    %2229 = vmatpush.msra.mxu0 0.0
    %2230 = vmatpush.msra.mxu0 0.0
    %2231 = vmatpush.msra.mxu0 0.0
    %2232 = vmatpush.msra.mxu0 0.0
    %2233 = vmatpush.msra.mxu0 0.0
    %2234 = vmatpush.msra.mxu0 %v1946
    %2235 = vmatpush.msra.mxu0 %v1910
    %2236 = vmatpush.msra.mxu0 %v1905
    %2237 = vmatpush.msra.mxu0 %v1900
    %2238 = vmatpush.msra.mxu0 %v1895
    %2239 = vmatpush.msra.mxu0 %v1890
    %2240 = vmatpush.msra.mxu0 %v1885
    %2241 = vmatpush.msra.mxu0 %v1880
    %2242 = vmatmul.f32.gmra.mxu0 %v2099
    %v2243 = vpop.f32.mrf.mxu0
    %v2244 = vadd.f32 0.0, %v2243
    %2245 = vmatmul.f32.gmra.mxu0 %v2102
    %v2246 = vpop.f32.mrf.mxu0
    %v2247 = vadd.f32 0.0, %v2246
    %2248 = vmatmul.f32.gmra.mxu0 %v2105
    %v2249 = vpop.f32.mrf.mxu0
    %v2250 = vadd.f32 0.0, %v2249
    %2251 = vmatmul.f32.gmra.mxu0 %v2108
    %v2252 = vpop.f32.mrf.mxu0
    %v2253 = vadd.f32 0.0, %v2252
    %2254 = vdwg.mxu0
    %v2255 = vmax.f32 %v1966, %v2128
    %v2256 = vmax.f32 %v1995, %v2157
    %v2257 = vmax.f32 %v2024, %v2186
    %v2258 = vmax.f32 %v2053, %v2215
    %v2259 = vmax.f32 %v2082, %v2244
    %v2260 = vmax.f32 %v1969, %v2131
    %v2261 = vmax.f32 %v1998, %v2160
    %v2262 = vmax.f32 %v2027, %v2189
    %v2263 = vmax.f32 %v2056, %v2218
    %v2264 = vmax.f32 %v2085, %v2247
    %v2265 = vmax.f32 %v1972, %v2134
    %v2266 = vmax.f32 %v2001, %v2163
    %v2267 = vmax.f32 %v2030, %v2192
    %v2268 = vmax.f32 %v2059, %v2221
    %v2269 = vmax.f32 %v2088, %v2250
    %v2270 = vmax.f32 %v1975, %v2137
    %v2271 = vmax.f32 %v2004, %v2166
    %v2272 = vmax.f32 %v2033, %v2195
    %v2273 = vmax.f32 %v2062, %v2224
    %v2274 = vmax.f32 %v2091, %v2253
    %2295 = vrot.lane.b32.xlu0 %v2255, 127
    %v2296 = vpop.permute.xlu0 %2295
    %2297 = vrot.lane.b32.xlu0 %v2256, 127
    %v2298 = vpop.permute.xlu0 %2297
    %2299 = vrot.lane.b32.xlu0 %v2257, 127
    %v2300 = vpop.permute.xlu0 %2299
    %2301 = vrot.lane.b32.xlu0 %v2258, 127
    %v2302 = vpop.permute.xlu0 %2301
    %2303 = vrot.lane.b32.xlu0 %v2259, 127
    %v2304 = vpop.permute.xlu0 %2303
    %2305 = vrot.lane.b32.xlu0 %v2260, 127
    %v2306 = vpop.permute.xlu0 %2305
    %2307 = vrot.lane.b32.xlu0 %v2261, 127
    %v2308 = vpop.permute.xlu0 %2307
    %2309 = vrot.lane.b32.xlu0 %v2262, 127
    %v2310 = vpop.permute.xlu0 %2309
    %2311 = vrot.lane.b32.xlu0 %v2263, 127
    %v2312 = vpop.permute.xlu0 %2311
    %2313 = vrot.lane.b32.xlu0 %v2264, 127
    %v2314 = vpop.permute.xlu0 %2313
    %2315 = vrot.lane.b32.xlu0 %v2265, 127
    %v2316 = vpop.permute.xlu0 %2315
    %2317 = vrot.lane.b32.xlu0 %v2266, 127
    %v2318 = vpop.permute.xlu0 %2317
    %2319 = vrot.lane.b32.xlu0 %v2267, 127
    %v2320 = vpop.permute.xlu0 %2319
    %2321 = vrot.lane.b32.xlu0 %v2268, 127
    %v2322 = vpop.permute.xlu0 %2321
    %2323 = vrot.lane.b32.xlu0 %v2269, 127
    %v2324 = vpop.permute.xlu0 %2323
    %2325 = vrot.lane.b32.xlu0 %v2270, 127
    %v2326 = vpop.permute.xlu0 %2325
    %2327 = vrot.lane.b32.xlu0 %v2271, 127
    %v2328 = vpop.permute.xlu0 %2327
    %2329 = vrot.lane.b32.xlu0 %v2272, 127
    %v2330 = vpop.permute.xlu0 %2329
    %2331 = vrot.lane.b32.xlu0 %v2273, 127
    %v2332 = vpop.permute.xlu0 %2331
    %2333 = vrot.lane.b32.xlu0 %v2274, 127
    %v2334 = vpop.permute.xlu0 %2333
    %vm2335 = vcmask 1039360
    %v2336 = vsel %vm2335, %v2296, %v2298
    %v2337 = vsel %vm2335, %v2298, %v2300
    %v2338 = vsel %vm2335, %v2300, %v2302
    %v2339 = vsel %vm2335, %v2302, %v2304
    %v2340 = vsel %vm2335, %v2306, %v2308
    %v2341 = vsel %vm2335, %v2308, %v2310
    %v2342 = vsel %vm2335, %v2310, %v2312
    %v2343 = vsel %vm2335, %v2312, %v2314
    %v2344 = vsel %vm2335, %v2316, %v2318
    %v2345 = vsel %vm2335, %v2318, %v2320
    %v2346 = vsel %vm2335, %v2320, %v2322
    %v2347 = vsel %vm2335, %v2322, %v2324
    %v2348 = vsel %vm2335, %v2326, %v2328
    %v2349 = vsel %vm2335, %v2328, %v2330
    %v2350 = vsel %vm2335, %v2330, %v2332
    %v2351 = vsel %vm2335, %v2332, %v2334
    %v2372 = vmax.f32 %v2255, %v2336
    %v2373 = vmax.f32 %v2256, %v2337
    %v2374 = vmax.f32 %v2257, %v2338
    %v2375 = vmax.f32 %v2258, %v2339
    %v2376 = vmax.f32 %v2259, %v2304
    %v2377 = vmax.f32 %v2260, %v2340
    %v2378 = vmax.f32 %v2261, %v2341
    %v2379 = vmax.f32 %v2262, %v2342
    %v2380 = vmax.f32 %v2263, %v2343
    %v2381 = vmax.f32 %v2264, %v2314
    %v2382 = vmax.f32 %v2265, %v2344
    %v2383 = vmax.f32 %v2266, %v2345
    %v2384 = vmax.f32 %v2267, %v2346
    %v2385 = vmax.f32 %v2268, %v2347
    %v2386 = vmax.f32 %v2269, %v2324
    %v2387 = vmax.f32 %v2270, %v2348
    %v2388 = vmax.f32 %v2271, %v2349
    %v2389 = vmax.f32 %v2272, %v2350
    %v2390 = vmax.f32 %v2273, %v2351
    %v2391 = vmax.f32 %v2274, %v2334
    %v2392 = vld [vmem:[%s4] sm:$0xff]
    %v2393 = vld [vmem:[%s4 + $0x8] sm:$0xff]
    %v2394 = vld [vmem:[%s4 + $0x10] sm:$0xff]
    %v2395 = vld [vmem:[%s4 + $0x18] sm:$0xff]
    %v2396 = vld [vmem:[%s4 + $0x20] sm:$0xff]
    %v2397 = vld [vmem:[%s4 + $0x28] sm:$0xff]
    %v2398 = vld [vmem:[%s4 + $0x30] sm:$0xff]
    %v2399 = vld [vmem:[%s4 + $0x38] sm:$0xff]
    %v2400 = vld [vmem:[%s4 + $0x40] sm:$0xff]
    %v2401 = vld [vmem:[%s4 + $0x48] sm:$0xff]
    %v2402 = vld [vmem:[%s4 + $0x50] sm:$0xff]
    %v2403 = vld [vmem:[%s4 + $0x58] sm:$0xff]
    %v2404 = vld [vmem:[%s4 + $0x60] sm:$0xff]
    %v2405 = vld [vmem:[%s4 + $0x68] sm:$0xff]
    %v2406 = vld [vmem:[%s4 + $0x70] sm:$0xff]
    %v2407 = vld [vmem:[%s4 + $0x78] sm:$0xff]
    %v2408 = vld [vmem:[%s4 + $0x80] sm:$0xff]
    %v2409 = vld [vmem:[%s4 + $0x88] sm:$0xff]
    %v2410 = vld [vmem:[%s4 + $0x90] sm:$0xff]
    %v2411 = vld [vmem:[%s4 + $0x98] sm:$0xff]
    %v2412 = vld [vmem:[%s4 + $0xa0] sm:$0xff]
    %v2413 = vld [vmem:[%s4 + $0xa8] sm:$0xff]
    %v2414 = vld [vmem:[%s4 + $0xb0] sm:$0xff]
    %v2415 = vld [vmem:[%s4 + $0xb8] sm:$0xff]
    %v2416 = vld [vmem:[%s4 + $0xc0] sm:$0xff]
    %v2417 = vld [vmem:[%s4 + $0xc8] sm:$0xff]
    %v2418 = vld [vmem:[%s4 + $0xd0] sm:$0xff]
    %v2419 = vld [vmem:[%s4 + $0xd8] sm:$0xff]
    %v2420 = vld [vmem:[%s4 + $0xe0] sm:$0xff]
    %v2421 = vld [vmem:[%s4 + $0xe8] sm:$0xff]
    %v2422 = vld [vmem:[%s4 + $0xf0] sm:$0xff]
    %v2423 = vld [vmem:[%s4 + $0xf8] sm:$0xff]
    %v2424 = vld [vmem:[%s4 + $0x100] sm:$0xff]
    %v2425 = vld [vmem:[%s4 + $0x108] sm:$0xff]
    %v2426 = vld [vmem:[%s4 + $0x110] sm:$0xff]
    %v2427 = vld [vmem:[%s4 + $0x118] sm:$0xff]
    %v2428 = vld [vmem:[%s4 + $0x120] sm:$0xff]
    %v2429 = vld [vmem:[%s4 + $0x128] sm:$0xff]
    %v2430 = vld [vmem:[%s4 + $0x130] sm:$0xff]
    %v2431 = vld [vmem:[%s4 + $0x138] sm:$0xff]
    %v2432 = vld [vmem:[%s4 + $0x140] sm:$0xff]
    %v2433 = vld [vmem:[%s4 + $0x148] sm:$0xff]
    %v2434 = vld [vmem:[%s4 + $0x150] sm:$0xff]
    %v2435 = vld [vmem:[%s4 + $0x158] sm:$0xff]
    %v2436 = vld [vmem:[%s4 + $0x160] sm:$0xff]
    %v2437 = vld [vmem:[%s4 + $0x168] sm:$0xff]
    %v2438 = vld [vmem:[%s4 + $0x170] sm:$0xff]
    %v2439 = vld [vmem:[%s4 + $0x178] sm:$0xff]
    %v2440 = vld [vmem:[%s4 + $0x180] sm:$0xff]
    %v2441 = vld [vmem:[%s4 + $0x188] sm:$0xff]
    %v2442 = vld [vmem:[%s4 + $0x190] sm:$0xff]
    %v2443 = vld [vmem:[%s4 + $0x198] sm:$0xff]
    %v2444 = vld [vmem:[%s4 + $0x1a0] sm:$0xff]
    %v2445 = vld [vmem:[%s4 + $0x1a8] sm:$0xff]
    %v2446 = vld [vmem:[%s4 + $0x1b0] sm:$0xff]
    %v2447 = vld [vmem:[%s4 + $0x1b8] sm:$0xff]
    %v2448 = vld [vmem:[%s4 + $0x1c0] sm:$0xff]
    %v2449 = vld [vmem:[%s4 + $0x1c8] sm:$0xff]
    %v2450 = vld [vmem:[%s4 + $0x1d0] sm:$0xff]
    %v2451 = vld [vmem:[%s4 + $0x1d8] sm:$0xff]
    %v2452 = vld [vmem:[%s4 + $0x1e0] sm:$0xff]
    %v2453 = vld [vmem:[%s4 + $0x1e8] sm:$0xff]
    %v2454 = vld [vmem:[%s4 + $0x1f0] sm:$0xff]
    %v2455 = vld [vmem:[%s4 + $0x1f8] sm:$0xff]
    %v2456 = vld [vmem:[%s4 + $0x200] sm:$0xff]
    %v2457 = vld [vmem:[%s4 + $0x208] sm:$0xff]
    %v2458 = vld [vmem:[%s4 + $0x210] sm:$0xff]
    %v2459 = vld [vmem:[%s4 + $0x218] sm:$0xff]
    %v2460 = vld [vmem:[%s4 + $0x220] sm:$0xff]
    %v2461 = vld [vmem:[%s4 + $0x228] sm:$0xff]
    %v2462 = vld [vmem:[%s4 + $0x230] sm:$0xff]
    %v2463 = vld [vmem:[%s4 + $0x238] sm:$0xff]
    %v2464 = vld [vmem:[%s4 + $0x240] sm:$0xff]
    %v2465 = vld [vmem:[%s4 + $0x248] sm:$0xff]
    %v2466 = vld [vmem:[%s4 + $0x250] sm:$0xff]
    %v2467 = vld [vmem:[%s4 + $0x258] sm:$0xff]
    %v2468 = vld [vmem:[%s4 + $0x260] sm:$0xff]
    %v2469 = vld [vmem:[%s4 + $0x268] sm:$0xff]
    %v2470 = vld [vmem:[%s4 + $0x270] sm:$0xff]
    %v2471 = vld [vmem:[%s4 + $0x278] sm:$0xff]
    %v2472 = vld [vmem:[%s4 + $0x280] sm:$0xff]
    %v2473 = vld [vmem:[%s4 + $0x288] sm:$0xff]
    %v2474 = vld [vmem:[%s4 + $0x290] sm:$0xff]
    %v2475 = vld [vmem:[%s4 + $0x298] sm:$0xff]
    %v2476 = vld [vmem:[%s4 + $0x2a0] sm:$0xff]
    %v2477 = vld [vmem:[%s4 + $0x2a8] sm:$0xff]
    %v2478 = vld [vmem:[%s4 + $0x2b0] sm:$0xff]
    %v2479 = vld [vmem:[%s4 + $0x2b8] sm:$0xff]
    %v2480 = vld [vmem:[%s4 + $0x2c0] sm:$0xff]
    %v2481 = vld [vmem:[%s4 + $0x2c8] sm:$0xff]
    %v2482 = vld [vmem:[%s4 + $0x2d0] sm:$0xff]
    %v2483 = vld [vmem:[%s4 + $0x2d8] sm:$0xff]
    %v2484 = vld [vmem:[%s4 + $0x2e0] sm:$0xff]
    %v2485 = vld [vmem:[%s4 + $0x2e8] sm:$0xff]
    %v2486 = vld [vmem:[%s4 + $0x2f0] sm:$0xff]
    %v2487 = vld [vmem:[%s4 + $0x2f8] sm:$0xff]
    %v2488 = vld [vmem:[%s4 + $0x300] sm:$0xff]
    %v2489 = vld [vmem:[%s4 + $0x308] sm:$0xff]
    %v2490 = vld [vmem:[%s4 + $0x310] sm:$0xff]
    %v2491 = vld [vmem:[%s4 + $0x318] sm:$0xff]
    %v2492 = vld [vmem:[%s4 + $0x320] sm:$0xff]
    %v2493 = vld [vmem:[%s4 + $0x328] sm:$0xff]
    %v2494 = vld [vmem:[%s4 + $0x330] sm:$0xff]
    %v2495 = vld [vmem:[%s4 + $0x338] sm:$0xff]
    %v2496 = vld [vmem:[%s4 + $0x340] sm:$0xff]
    %v2497 = vld [vmem:[%s4 + $0x348] sm:$0xff]
    %v2498 = vld [vmem:[%s4 + $0x350] sm:$0xff]
    %v2499 = vld [vmem:[%s4 + $0x358] sm:$0xff]
    %v2500 = vld [vmem:[%s4 + $0x360] sm:$0xff]
    %v2501 = vld [vmem:[%s4 + $0x368] sm:$0xff]
    %v2502 = vld [vmem:[%s4 + $0x370] sm:$0xff]
    %v2503 = vld [vmem:[%s4 + $0x378] sm:$0xff]
    %v2504 = vld [vmem:[%s4 + $0x380] sm:$0xff]
    %v2505 = vld [vmem:[%s4 + $0x388] sm:$0xff]
    %v2506 = vld [vmem:[%s4 + $0x390] sm:$0xff]
    %v2507 = vld [vmem:[%s4 + $0x398] sm:$0xff]
    %v2508 = vld [vmem:[%s4 + $0x3a0] sm:$0xff]
    %v2509 = vld [vmem:[%s4 + $0x3a8] sm:$0xff]
    %v2510 = vld [vmem:[%s4 + $0x3b0] sm:$0xff]
    %v2511 = vld [vmem:[%s4 + $0x3b8] sm:$0xff]
    %v2512 = vld [vmem:[%s4 + $0x3c0] sm:$0xff]
    %v2513 = vld [vmem:[%s4 + $0x3c8] sm:$0xff]
    %v2514 = vld [vmem:[%s4 + $0x3d0] sm:$0xff]
    %v2515 = vld [vmem:[%s4 + $0x3d8] sm:$0xff]
    %v2516 = vld [vmem:[%s4 + $0x3e0] sm:$0xff]
    %v2517 = vld [vmem:[%s4 + $0x3e8] sm:$0xff]
    %v2518 = vld [vmem:[%s4 + $0x3f0] sm:$0xff]
    %v2519 = vld [vmem:[%s4 + $0x3f8] sm:$0xff]
    %v2520 = vld [vmem:[%s4 + $0x400] sm:$0xff]
    %v2521 = vld [vmem:[%s4 + $0x408] sm:$0xff]
    %v2522 = vld [vmem:[%s4 + $0x410] sm:$0xff]
    %v2523 = vld [vmem:[%s4 + $0x418] sm:$0xff]
    %v2524 = vld [vmem:[%s4 + $0x420] sm:$0xff]
    %v2525 = vld [vmem:[%s4 + $0x428] sm:$0xff]
    %v2526 = vld [vmem:[%s4 + $0x430] sm:$0xff]
    %v2527 = vld [vmem:[%s4 + $0x438] sm:$0xff]
    %v2528 = vld [vmem:[%s4 + $0x440] sm:$0xff]
    %v2529 = vld [vmem:[%s4 + $0x448] sm:$0xff]
    %v2530 = vld [vmem:[%s4 + $0x450] sm:$0xff]
    %v2531 = vld [vmem:[%s4 + $0x458] sm:$0xff]
    %v2532 = vld [vmem:[%s4 + $0x460] sm:$0xff]
    %v2533 = vld [vmem:[%s4 + $0x468] sm:$0xff]
    %v2534 = vld [vmem:[%s4 + $0x470] sm:$0xff]
    %v2535 = vld [vmem:[%s4 + $0x478] sm:$0xff]
    %v2536 = vld [vmem:[%s4 + $0x480] sm:$0xff]
    %v2537 = vld [vmem:[%s4 + $0x488] sm:$0xff]
    %v2538 = vld [vmem:[%s4 + $0x490] sm:$0xff]
    %v2539 = vld [vmem:[%s4 + $0x498] sm:$0xff]
    %v2540 = vld [vmem:[%s4 + $0x4a0] sm:$0xff]
    %v2541 = vld [vmem:[%s4 + $0x4a8] sm:$0xff]
    %v2542 = vld [vmem:[%s4 + $0x4b0] sm:$0xff]
    %v2543 = vld [vmem:[%s4 + $0x4b8] sm:$0xff]
    %v2544 = vld [vmem:[%s4 + $0x4c0] sm:$0xff]
    %v2545 = vld [vmem:[%s4 + $0x4c8] sm:$0xff]
    %v2546 = vld [vmem:[%s4 + $0x4d0] sm:$0xff]
    %v2547 = vld [vmem:[%s4 + $0x4d8] sm:$0xff]
    %v2548 = vld [vmem:[%s4 + $0x4e0] sm:$0xff]
    %v2549 = vld [vmem:[%s4 + $0x4e8] sm:$0xff]
    %v2550 = vld [vmem:[%s4 + $0x4f0] sm:$0xff]
    %v2551 = vld [vmem:[%s4 + $0x4f8] sm:$0xff]
    %v2552 = vld [vmem:[%s4 + $0x500] sm:$0xff]
    %v2553 = vld [vmem:[%s4 + $0x508] sm:$0xff]
    %v2554 = vld [vmem:[%s4 + $0x510] sm:$0xff]
    %v2555 = vld [vmem:[%s4 + $0x518] sm:$0xff]
    %v2556 = vld [vmem:[%s4 + $0x520] sm:$0xff]
    %v2557 = vld [vmem:[%s4 + $0x528] sm:$0xff]
    %v2558 = vld [vmem:[%s4 + $0x530] sm:$0xff]
    %v2559 = vld [vmem:[%s4 + $0x538] sm:$0xff]
    %v2560 = vld [vmem:[%s4 + $0x540] sm:$0xff]
    %v2561 = vld [vmem:[%s4 + $0x548] sm:$0xff]
    %v2562 = vld [vmem:[%s4 + $0x550] sm:$0xff]
    %v2563 = vld [vmem:[%s4 + $0x558] sm:$0xff]
    %v2564 = vld [vmem:[%s4 + $0x560] sm:$0xff]
    %v2565 = vld [vmem:[%s4 + $0x568] sm:$0xff]
    %v2566 = vld [vmem:[%s4 + $0x570] sm:$0xff]
    %v2567 = vld [vmem:[%s4 + $0x578] sm:$0xff]
    %v2568 = vld [vmem:[%s4 + $0x580] sm:$0xff]
    %v2569 = vld [vmem:[%s4 + $0x588] sm:$0xff]
    %v2570 = vld [vmem:[%s4 + $0x590] sm:$0xff]
    %v2571 = vld [vmem:[%s4 + $0x598] sm:$0xff]
    %v2572 = vld [vmem:[%s4 + $0x5a0] sm:$0xff]
    %v2573 = vld [vmem:[%s4 + $0x5a8] sm:$0xff]
    %v2574 = vld [vmem:[%s4 + $0x5b0] sm:$0xff]
    %v2575 = vld [vmem:[%s4 + $0x5b8] sm:$0xff]
    %v2576 = vld [vmem:[%s4 + $0x5c0] sm:$0xff]
    %v2577 = vld [vmem:[%s4 + $0x5c8] sm:$0xff]
    %v2578 = vld [vmem:[%s4 + $0x5d0] sm:$0xff]
    %v2579 = vld [vmem:[%s4 + $0x5d8] sm:$0xff]
    %v2580 = vld [vmem:[%s4 + $0x5e0] sm:$0xff]
    %v2581 = vld [vmem:[%s4 + $0x5e8] sm:$0xff]
    %v2582 = vld [vmem:[%s4 + $0x5f0] sm:$0xff]
    %v2583 = vld [vmem:[%s4 + $0x5f8] sm:$0xff]
    %v2584 = vld [vmem:[%s4 + $0x600] sm:$0xff]
    %v2585 = vld [vmem:[%s4 + $0x608] sm:$0xff]
    %v2586 = vld [vmem:[%s4 + $0x610] sm:$0xff]
    %v2587 = vld [vmem:[%s4 + $0x618] sm:$0xff]
    %v2588 = vld [vmem:[%s4 + $0x620] sm:$0xff]
    %v2589 = vld [vmem:[%s4 + $0x628] sm:$0xff]
    %v2590 = vld [vmem:[%s4 + $0x630] sm:$0xff]
    %v2591 = vld [vmem:[%s4 + $0x638] sm:$0xff]
    %v2592 = vld [vmem:[%s4 + $0x640] sm:$0xff]
    %v2593 = vld [vmem:[%s4 + $0x648] sm:$0xff]
    %v2594 = vld [vmem:[%s4 + $0x650] sm:$0xff]
    %v2595 = vld [vmem:[%s4 + $0x658] sm:$0xff]
    %v2596 = vld [vmem:[%s4 + $0x660] sm:$0xff]
    %v2597 = vld [vmem:[%s4 + $0x668] sm:$0xff]
    %v2598 = vld [vmem:[%s4 + $0x670] sm:$0xff]
    %v2599 = vld [vmem:[%s4 + $0x678] sm:$0xff]
    %v2600 = vld [vmem:[%s4 + $0x680] sm:$0xff]
    %v2601 = vld [vmem:[%s4 + $0x688] sm:$0xff]
    %v2602 = vld [vmem:[%s4 + $0x690] sm:$0xff]
    %v2603 = vld [vmem:[%s4 + $0x698] sm:$0xff]
    %v2604 = vld [vmem:[%s4 + $0x6a0] sm:$0xff]
    %v2605 = vld [vmem:[%s4 + $0x6a8] sm:$0xff]
    %v2606 = vld [vmem:[%s4 + $0x6b0] sm:$0xff]
    %v2607 = vld [vmem:[%s4 + $0x6b8] sm:$0xff]
    %v2608 = vld [vmem:[%s4 + $0x6c0] sm:$0xff]
    %v2609 = vld [vmem:[%s4 + $0x6c8] sm:$0xff]
    %v2610 = vld [vmem:[%s4 + $0x6d0] sm:$0xff]
    %v2611 = vld [vmem:[%s4 + $0x6d8] sm:$0xff]
    %v2612 = vld [vmem:[%s4 + $0x6e0] sm:$0xff]
    %v2613 = vld [vmem:[%s4 + $0x6e8] sm:$0xff]
    %v2614 = vld [vmem:[%s4 + $0x6f0] sm:$0xff]
    %v2615 = vld [vmem:[%s4 + $0x6f8] sm:$0xff]
    %v2616 = vld [vmem:[%s4 + $0x700] sm:$0xff]
    %v2617 = vld [vmem:[%s4 + $0x708] sm:$0xff]
    %v2618 = vld [vmem:[%s4 + $0x710] sm:$0xff]
    %v2619 = vld [vmem:[%s4 + $0x718] sm:$0xff]
    %v2620 = vld [vmem:[%s4 + $0x720] sm:$0xff]
    %v2621 = vld [vmem:[%s4 + $0x728] sm:$0xff]
    %v2622 = vld [vmem:[%s4 + $0x730] sm:$0xff]
    %v2623 = vld [vmem:[%s4 + $0x738] sm:$0x7]
    %v2624 = vld [vmem:[%s4 + $0x740] sm:$0x7]
    %v2625 = vld [vmem:[%s4 + $0x748] sm:$0x7]
    %s2626 = scalar_lea.vmem %s4, 1872
    %v2627 = vld [vmem:[%s2626] sm:$0xff]
    %v2628 = vld [vmem:[%s2626 + $0x8] sm:$0xff]
    %v2629 = vld [vmem:[%s2626 + $0x10] sm:$0xff]
    %v2630 = vld [vmem:[%s2626 + $0x18] sm:$0xff]
    %v2631 = vld [vmem:[%s2626 + $0x20] sm:$0xff]
    %v2632 = vld [vmem:[%s2626 + $0x28] sm:$0xff]
    %v2633 = vld [vmem:[%s2626 + $0x30] sm:$0xff]
    %v2634 = vld [vmem:[%s2626 + $0x38] sm:$0xff]
    %v2635 = vld [vmem:[%s2626 + $0x40] sm:$0xff]
    %v2636 = vld [vmem:[%s2626 + $0x48] sm:$0xff]
    %v2637 = vld [vmem:[%s2626 + $0x50] sm:$0xff]
    %v2638 = vld [vmem:[%s2626 + $0x58] sm:$0xff]
    %v2639 = vld [vmem:[%s2626 + $0x60] sm:$0xff]
    %v2640 = vld [vmem:[%s2626 + $0x68] sm:$0xff]
    %v2641 = vld [vmem:[%s2626 + $0x70] sm:$0xff]
    %v2642 = vld [vmem:[%s2626 + $0x78] sm:$0xff]
    %v2643 = vld [vmem:[%s2626 + $0x80] sm:$0xff]
    %v2644 = vld [vmem:[%s2626 + $0x88] sm:$0xff]
    %v2645 = vld [vmem:[%s2626 + $0x90] sm:$0xff]
    %v2646 = vld [vmem:[%s2626 + $0x98] sm:$0xff]
    %v2647 = vld [vmem:[%s2626 + $0xa0] sm:$0xff]
    %v2648 = vld [vmem:[%s2626 + $0xa8] sm:$0xff]
    %v2649 = vld [vmem:[%s2626 + $0xb0] sm:$0xff]
    %v2650 = vld [vmem:[%s2626 + $0xb8] sm:$0xff]
    %v2651 = vld [vmem:[%s2626 + $0xc0] sm:$0xff]
    %v2652 = vld [vmem:[%s2626 + $0xc8] sm:$0xff]
    %v2653 = vld [vmem:[%s2626 + $0xd0] sm:$0xff]
    %v2654 = vld [vmem:[%s2626 + $0xd8] sm:$0xff]
    %v2655 = vld [vmem:[%s2626 + $0xe0] sm:$0xff]
    %v2656 = vld [vmem:[%s2626 + $0xe8] sm:$0xff]
    %v2657 = vld [vmem:[%s2626 + $0xf0] sm:$0xff]
    %v2658 = vld [vmem:[%s2626 + $0xf8] sm:$0xff]
    %v2659 = vld [vmem:[%s2626 + $0x100] sm:$0xff]
    %v2660 = vld [vmem:[%s2626 + $0x108] sm:$0xff]
    %v2661 = vld [vmem:[%s2626 + $0x110] sm:$0xff]
    %v2662 = vld [vmem:[%s2626 + $0x118] sm:$0xff]
    %v2663 = vld [vmem:[%s2626 + $0x120] sm:$0xff]
    %v2664 = vld [vmem:[%s2626 + $0x128] sm:$0xff]
    %v2665 = vld [vmem:[%s2626 + $0x130] sm:$0xff]
    %v2666 = vld [vmem:[%s2626 + $0x138] sm:$0xff]
    %v2667 = vld [vmem:[%s2626 + $0x140] sm:$0xff]
    %v2668 = vld [vmem:[%s2626 + $0x148] sm:$0xff]
    %v2669 = vld [vmem:[%s2626 + $0x150] sm:$0xff]
    %v2670 = vld [vmem:[%s2626 + $0x158] sm:$0xff]
    %v2671 = vld [vmem:[%s2626 + $0x160] sm:$0xff]
    %v2672 = vld [vmem:[%s2626 + $0x168] sm:$0xff]
    %v2673 = vld [vmem:[%s2626 + $0x170] sm:$0xff]
    %v2674 = vld [vmem:[%s2626 + $0x178] sm:$0xff]
    %v2675 = vld [vmem:[%s2626 + $0x180] sm:$0xff]
    %v2676 = vld [vmem:[%s2626 + $0x188] sm:$0xff]
    %v2677 = vld [vmem:[%s2626 + $0x190] sm:$0xff]
    %v2678 = vld [vmem:[%s2626 + $0x198] sm:$0xff]
    %v2679 = vld [vmem:[%s2626 + $0x1a0] sm:$0xff]
    %v2680 = vld [vmem:[%s2626 + $0x1a8] sm:$0xff]
    %v2681 = vld [vmem:[%s2626 + $0x1b0] sm:$0xff]
    %v2682 = vld [vmem:[%s2626 + $0x1b8] sm:$0xff]
    %v2683 = vld [vmem:[%s2626 + $0x1c0] sm:$0xff]
    %v2684 = vld [vmem:[%s2626 + $0x1c8] sm:$0xff]
    %v2685 = vld [vmem:[%s2626 + $0x1d0] sm:$0xff]
    %v2686 = vld [vmem:[%s2626 + $0x1d8] sm:$0xff]
    %v2687 = vld [vmem:[%s2626 + $0x1e0] sm:$0xff]
    %v2688 = vld [vmem:[%s2626 + $0x1e8] sm:$0xff]
    %v2689 = vld [vmem:[%s2626 + $0x1f0] sm:$0xff]
    %v2690 = vld [vmem:[%s2626 + $0x1f8] sm:$0xff]
    %v2691 = vld [vmem:[%s2626 + $0x200] sm:$0xff]
    %v2692 = vld [vmem:[%s2626 + $0x208] sm:$0xff]
    %v2693 = vld [vmem:[%s2626 + $0x210] sm:$0xff]
    %v2694 = vld [vmem:[%s2626 + $0x218] sm:$0xff]
    %v2695 = vld [vmem:[%s2626 + $0x220] sm:$0xff]
    %v2696 = vld [vmem:[%s2626 + $0x228] sm:$0xff]
    %v2697 = vld [vmem:[%s2626 + $0x230] sm:$0xff]
    %v2698 = vld [vmem:[%s2626 + $0x238] sm:$0xff]
    %v2699 = vld [vmem:[%s2626 + $0x240] sm:$0xff]
    %v2700 = vld [vmem:[%s2626 + $0x248] sm:$0xff]
    %v2701 = vld [vmem:[%s2626 + $0x250] sm:$0xff]
    %v2702 = vld [vmem:[%s2626 + $0x258] sm:$0xff]
    %v2703 = vld [vmem:[%s2626 + $0x260] sm:$0xff]
    %v2704 = vld [vmem:[%s2626 + $0x268] sm:$0xff]
    %v2705 = vld [vmem:[%s2626 + $0x270] sm:$0xff]
    %v2706 = vld [vmem:[%s2626 + $0x278] sm:$0xff]
    %v2707 = vld [vmem:[%s2626 + $0x280] sm:$0xff]
    %v2708 = vld [vmem:[%s2626 + $0x288] sm:$0xff]
    %v2709 = vld [vmem:[%s2626 + $0x290] sm:$0xff]
    %v2710 = vld [vmem:[%s2626 + $0x298] sm:$0xff]
    %v2711 = vld [vmem:[%s2626 + $0x2a0] sm:$0xff]
    %v2712 = vld [vmem:[%s2626 + $0x2a8] sm:$0xff]
    %v2713 = vld [vmem:[%s2626 + $0x2b0] sm:$0xff]
    %v2714 = vld [vmem:[%s2626 + $0x2b8] sm:$0xff]
    %v2715 = vld [vmem:[%s2626 + $0x2c0] sm:$0xff]
    %v2716 = vld [vmem:[%s2626 + $0x2c8] sm:$0xff]
    %v2717 = vld [vmem:[%s2626 + $0x2d0] sm:$0xff]
    %v2718 = vld [vmem:[%s2626 + $0x2d8] sm:$0xff]
    %v2719 = vld [vmem:[%s2626 + $0x2e0] sm:$0xff]
    %v2720 = vld [vmem:[%s2626 + $0x2e8] sm:$0xff]
    %v2721 = vld [vmem:[%s2626 + $0x2f0] sm:$0xff]
    %v2722 = vld [vmem:[%s2626 + $0x2f8] sm:$0xff]
    %v2723 = vld [vmem:[%s2626 + $0x300] sm:$0xff]
    %v2724 = vld [vmem:[%s2626 + $0x308] sm:$0xff]
    %v2725 = vld [vmem:[%s2626 + $0x310] sm:$0xff]
    %v2726 = vld [vmem:[%s2626 + $0x318] sm:$0xff]
    %v2727 = vld [vmem:[%s2626 + $0x320] sm:$0xff]
    %v2728 = vld [vmem:[%s2626 + $0x328] sm:$0xff]
    %v2729 = vld [vmem:[%s2626 + $0x330] sm:$0xff]
    %v2730 = vld [vmem:[%s2626 + $0x338] sm:$0xff]
    %v2731 = vld [vmem:[%s2626 + $0x340] sm:$0xff]
    %v2732 = vld [vmem:[%s2626 + $0x348] sm:$0xff]
    %v2733 = vld [vmem:[%s2626 + $0x350] sm:$0xff]
    %v2734 = vld [vmem:[%s2626 + $0x358] sm:$0xff]
    %v2735 = vld [vmem:[%s2626 + $0x360] sm:$0xff]
    %v2736 = vld [vmem:[%s2626 + $0x368] sm:$0xff]
    %v2737 = vld [vmem:[%s2626 + $0x370] sm:$0xff]
    %v2738 = vld [vmem:[%s2626 + $0x378] sm:$0xff]
    %v2739 = vld [vmem:[%s2626 + $0x380] sm:$0xff]
    %v2740 = vld [vmem:[%s2626 + $0x388] sm:$0xff]
    %v2741 = vld [vmem:[%s2626 + $0x390] sm:$0xff]
    %v2742 = vld [vmem:[%s2626 + $0x398] sm:$0xff]
    %v2743 = vld [vmem:[%s2626 + $0x3a0] sm:$0xff]
    %v2744 = vld [vmem:[%s2626 + $0x3a8] sm:$0xff]
    %v2745 = vld [vmem:[%s2626 + $0x3b0] sm:$0xff]
    %v2746 = vld [vmem:[%s2626 + $0x3b8] sm:$0xff]
    %v2747 = vld [vmem:[%s2626 + $0x3c0] sm:$0xff]
    %v2748 = vld [vmem:[%s2626 + $0x3c8] sm:$0xff]
    %v2749 = vld [vmem:[%s2626 + $0x3d0] sm:$0xff]
    %v2750 = vld [vmem:[%s2626 + $0x3d8] sm:$0xff]
    %v2751 = vld [vmem:[%s2626 + $0x3e0] sm:$0xff]
    %v2752 = vld [vmem:[%s2626 + $0x3e8] sm:$0xff]
    %v2753 = vld [vmem:[%s2626 + $0x3f0] sm:$0xff]
    %v2754 = vld [vmem:[%s2626 + $0x3f8] sm:$0xff]
    %v2755 = vld [vmem:[%s2626 + $0x400] sm:$0xff]
    %v2756 = vld [vmem:[%s2626 + $0x408] sm:$0xff]
    %v2757 = vld [vmem:[%s2626 + $0x410] sm:$0xff]
    %v2758 = vld [vmem:[%s2626 + $0x418] sm:$0xff]
    %v2759 = vld [vmem:[%s2626 + $0x420] sm:$0xff]
    %v2760 = vld [vmem:[%s2626 + $0x428] sm:$0xff]
    %v2761 = vld [vmem:[%s2626 + $0x430] sm:$0xff]
    %v2762 = vld [vmem:[%s2626 + $0x438] sm:$0xff]
    %v2763 = vld [vmem:[%s2626 + $0x440] sm:$0xff]
    %v2764 = vld [vmem:[%s2626 + $0x448] sm:$0xff]
    %v2765 = vld [vmem:[%s2626 + $0x450] sm:$0xff]
    %v2766 = vld [vmem:[%s2626 + $0x458] sm:$0xff]
    %v2767 = vld [vmem:[%s2626 + $0x460] sm:$0xff]
    %v2768 = vld [vmem:[%s2626 + $0x468] sm:$0xff]
    %v2769 = vld [vmem:[%s2626 + $0x470] sm:$0xff]
    %v2770 = vld [vmem:[%s2626 + $0x478] sm:$0xff]
    %v2771 = vld [vmem:[%s2626 + $0x480] sm:$0xff]
    %v2772 = vld [vmem:[%s2626 + $0x488] sm:$0xff]
    %v2773 = vld [vmem:[%s2626 + $0x490] sm:$0xff]
    %v2774 = vld [vmem:[%s2626 + $0x498] sm:$0xff]
    %v2775 = vld [vmem:[%s2626 + $0x4a0] sm:$0xff]
    %v2776 = vld [vmem:[%s2626 + $0x4a8] sm:$0xff]
    %v2777 = vld [vmem:[%s2626 + $0x4b0] sm:$0xff]
    %v2778 = vld [vmem:[%s2626 + $0x4b8] sm:$0xff]
    %v2779 = vld [vmem:[%s2626 + $0x4c0] sm:$0xff]
    %v2780 = vld [vmem:[%s2626 + $0x4c8] sm:$0xff]
    %v2781 = vld [vmem:[%s2626 + $0x4d0] sm:$0xff]
    %v2782 = vld [vmem:[%s2626 + $0x4d8] sm:$0xff]
    %v2783 = vld [vmem:[%s2626 + $0x4e0] sm:$0xff]
    %v2784 = vld [vmem:[%s2626 + $0x4e8] sm:$0xff]
    %v2785 = vld [vmem:[%s2626 + $0x4f0] sm:$0xff]
    %v2786 = vld [vmem:[%s2626 + $0x4f8] sm:$0xff]
    %v2787 = vld [vmem:[%s2626 + $0x500] sm:$0xff]
    %v2788 = vld [vmem:[%s2626 + $0x508] sm:$0xff]
    %v2789 = vld [vmem:[%s2626 + $0x510] sm:$0xff]
    %v2790 = vld [vmem:[%s2626 + $0x518] sm:$0xff]
    %v2791 = vld [vmem:[%s2626 + $0x520] sm:$0xff]
    %v2792 = vld [vmem:[%s2626 + $0x528] sm:$0xff]
    %v2793 = vld [vmem:[%s2626 + $0x530] sm:$0xff]
    %v2794 = vld [vmem:[%s2626 + $0x538] sm:$0xff]
    %v2795 = vld [vmem:[%s2626 + $0x540] sm:$0xff]
    %v2796 = vld [vmem:[%s2626 + $0x548] sm:$0xff]
    %v2797 = vld [vmem:[%s2626 + $0x550] sm:$0xff]
    %v2798 = vld [vmem:[%s2626 + $0x558] sm:$0xff]
    %v2799 = vld [vmem:[%s2626 + $0x560] sm:$0xff]
    %v2800 = vld [vmem:[%s2626 + $0x568] sm:$0xff]
    %v2801 = vld [vmem:[%s2626 + $0x570] sm:$0xff]
    %v2802 = vld [vmem:[%s2626 + $0x578] sm:$0xff]
    %v2803 = vld [vmem:[%s2626 + $0x580] sm:$0xff]
    %v2804 = vld [vmem:[%s2626 + $0x588] sm:$0xff]
    %v2805 = vld [vmem:[%s2626 + $0x590] sm:$0xff]
    %v2806 = vld [vmem:[%s2626 + $0x598] sm:$0xff]
    %v2807 = vld [vmem:[%s2626 + $0x5a0] sm:$0xff]
    %v2808 = vld [vmem:[%s2626 + $0x5a8] sm:$0xff]
    %v2809 = vld [vmem:[%s2626 + $0x5b0] sm:$0xff]
    %v2810 = vld [vmem:[%s2626 + $0x5b8] sm:$0xff]
    %v2811 = vld [vmem:[%s2626 + $0x5c0] sm:$0xff]
    %v2812 = vld [vmem:[%s2626 + $0x5c8] sm:$0xff]
    %v2813 = vld [vmem:[%s2626 + $0x5d0] sm:$0xff]
    %v2814 = vld [vmem:[%s2626 + $0x5d8] sm:$0xff]
    %v2815 = vld [vmem:[%s2626 + $0x5e0] sm:$0xff]
    %v2816 = vld [vmem:[%s2626 + $0x5e8] sm:$0xff]
    %v2817 = vld [vmem:[%s2626 + $0x5f0] sm:$0xff]
    %v2818 = vld [vmem:[%s2626 + $0x5f8] sm:$0xff]
    %v2819 = vld [vmem:[%s2626 + $0x600] sm:$0xff]
    %v2820 = vld [vmem:[%s2626 + $0x608] sm:$0xff]
    %v2821 = vld [vmem:[%s2626 + $0x610] sm:$0xff]
    %v2822 = vld [vmem:[%s2626 + $0x618] sm:$0xff]
    %v2823 = vld [vmem:[%s2626 + $0x620] sm:$0xff]
    %v2824 = vld [vmem:[%s2626 + $0x628] sm:$0xff]
    %v2825 = vld [vmem:[%s2626 + $0x630] sm:$0xff]
    %v2826 = vld [vmem:[%s2626 + $0x638] sm:$0xff]
    %v2827 = vld [vmem:[%s2626 + $0x640] sm:$0xff]
    %v2828 = vld [vmem:[%s2626 + $0x648] sm:$0xff]
    %v2829 = vld [vmem:[%s2626 + $0x650] sm:$0xff]
    %v2830 = vld [vmem:[%s2626 + $0x658] sm:$0xff]
    %v2831 = vld [vmem:[%s2626 + $0x660] sm:$0xff]
    %v2832 = vld [vmem:[%s2626 + $0x668] sm:$0xff]
    %v2833 = vld [vmem:[%s2626 + $0x670] sm:$0xff]
    %v2834 = vld [vmem:[%s2626 + $0x678] sm:$0xff]
    %v2835 = vld [vmem:[%s2626 + $0x680] sm:$0xff]
    %v2836 = vld [vmem:[%s2626 + $0x688] sm:$0xff]
    %v2837 = vld [vmem:[%s2626 + $0x690] sm:$0xff]
    %v2838 = vld [vmem:[%s2626 + $0x698] sm:$0xff]
    %v2839 = vld [vmem:[%s2626 + $0x6a0] sm:$0xff]
    %v2840 = vld [vmem:[%s2626 + $0x6a8] sm:$0xff]
    %v2841 = vld [vmem:[%s2626 + $0x6b0] sm:$0xff]
    %v2842 = vld [vmem:[%s2626 + $0x6b8] sm:$0xff]
    %v2843 = vld [vmem:[%s2626 + $0x6c0] sm:$0xff]
    %v2844 = vld [vmem:[%s2626 + $0x6c8] sm:$0xff]
    %v2845 = vld [vmem:[%s2626 + $0x6d0] sm:$0xff]
    %v2846 = vld [vmem:[%s2626 + $0x6d8] sm:$0xff]
    %v2847 = vld [vmem:[%s2626 + $0x6e0] sm:$0xff]
    %v2848 = vld [vmem:[%s2626 + $0x6e8] sm:$0xff]
    %v2849 = vld [vmem:[%s2626 + $0x6f0] sm:$0xff]
    %v2850 = vld [vmem:[%s2626 + $0x6f8] sm:$0xff]
    %v2851 = vld [vmem:[%s2626 + $0x700] sm:$0xff]
    %v2852 = vld [vmem:[%s2626 + $0x708] sm:$0xff]
    %v2853 = vld [vmem:[%s2626 + $0x710] sm:$0xff]
    %v2854 = vld [vmem:[%s2626 + $0x718] sm:$0xff]
    %v2855 = vld [vmem:[%s2626 + $0x720] sm:$0xff]
    %v2856 = vld [vmem:[%s2626 + $0x728] sm:$0xff]
    %v2857 = vld [vmem:[%s2626 + $0x730] sm:$0xff]
    %v2858 = vld [vmem:[%s2626 + $0x738] sm:$0x7]
    %v2859 = vld [vmem:[%s2626 + $0x740] sm:$0x7]
    %v2860 = vld [vmem:[%s2626 + $0x748] sm:$0x7]
    %v2881 = vrot.slane %v2372, 1
    %v2882 = vrot.slane %v2377, 1
    %v2883 = vsel %vm306, %v2881, %v2882
    %v2884 = vrot.slane %v2373, 1
    %v2885 = vrot.slane %v2378, 1
    %v2886 = vsel %vm306, %v2884, %v2885
    %v2887 = vrot.slane %v2374, 1
    %v2888 = vrot.slane %v2379, 1
    %v2889 = vsel %vm306, %v2887, %v2888
    %v2890 = vrot.slane %v2375, 1
    %v2891 = vrot.slane %v2380, 1
    %v2892 = vsel %vm306, %v2890, %v2891
    %v2893 = vrot.slane %v2376, 1
    %v2894 = vrot.slane %v2381, 1
    %v2895 = vsel %vm306, %v2893, %v2894
    %v2896 = vrot.slane %v2382, 1
    %v2897 = vsel %vm306, %v2882, %v2896
    %v2898 = vrot.slane %v2383, 1
    %v2899 = vsel %vm306, %v2885, %v2898
    %v2900 = vrot.slane %v2384, 1
    %v2901 = vsel %vm306, %v2888, %v2900
    %v2902 = vrot.slane %v2385, 1
    %v2903 = vsel %vm306, %v2891, %v2902
    %v2904 = vrot.slane %v2386, 1
    %v2905 = vsel %vm306, %v2894, %v2904
    %v2906 = vrot.slane %v2387, 1
    %v2907 = vsel %vm306, %v2896, %v2906
    %v2908 = vrot.slane %v2388, 1
    %v2909 = vsel %vm306, %v2898, %v2908
    %v2910 = vrot.slane %v2389, 1
    %v2911 = vsel %vm306, %v2900, %v2910
    %v2912 = vrot.slane %v2390, 1
    %v2913 = vsel %vm306, %v2902, %v2912
    %v2914 = vrot.slane %v2391, 1
    %v2915 = vsel %vm306, %v2904, %v2914
    %vm2932 = vcmask 875520
    %v2933 = vsel %vm2932, %v2895, 0
    %v2935 = vsel %vm2932, %v2905, 0
    %v2937 = vsel %vm2932, %v2915, 0
    %v2939 = vsel %vm2932, %v2914, 0
    %vm2941 = vcmask 1042432
    %v2943 = vsel %vm2941, %v2858, 0
    %v2946 = vsel %vm2941, %v2859, 0
    %v2949 = vsel %vm2941, %v2860, 0
    %2951 = vmatpush.msra.mxu0 %v2672
    %2952 = vmatpush.msra.mxu0 %v2669
    %2953 = vmatpush.msra.mxu0 %v2666
    %2954 = vmatpush.msra.mxu0 %v2663
    %2955 = vmatpush.msra.mxu0 %v2660
    %2956 = vmatpush.msra.mxu0 %v2657
    %2957 = vmatpush.msra.mxu0 %v2654
    %2958 = vmatpush.msra.mxu0 %v2651
    %2959 = vmatpush.msra.mxu0 %v2648
    %2960 = vmatpush.msra.mxu0 %v2645
    %2961 = vmatpush.msra.mxu0 %v2642
    %2962 = vmatpush.msra.mxu0 %v2639
    %2963 = vmatpush.msra.mxu0 %v2636
    %2964 = vmatpush.msra.mxu0 %v2633
    %2965 = vmatpush.msra.mxu0 %v2630
    %2966 = vmatpush.msra.mxu0 %v2627
    %2967 = vmatmul.f32.gmra.mxu0 %v2883
    %v2968 = vpop.f32.mrf.mxu0
    %v2969 = vadd.f32 0.0, %v2968
    %2970 = vmatmul.f32.gmra.mxu0 %v2897
    %v2971 = vpop.f32.mrf.mxu0
    %v2972 = vadd.f32 0.0, %v2971
    %2973 = vmatmul.f32.gmra.mxu0 %v2907
    %v2974 = vpop.f32.mrf.mxu0
    %v2975 = vadd.f32 0.0, %v2974
    %2976 = vmatmul.f32.gmra.mxu0 %v2906
    %v2977 = vpop.f32.mrf.mxu0
    %v2978 = vadd.f32 0.0, %v2977
    %2979 = vdwg.mxu0
    %2980 = vmatpush.msra.mxu0 %v2720
    %2981 = vmatpush.msra.mxu0 %v2717
    %2982 = vmatpush.msra.mxu0 %v2714
    %2983 = vmatpush.msra.mxu0 %v2711
    %2984 = vmatpush.msra.mxu0 %v2708
    %2985 = vmatpush.msra.mxu0 %v2705
    %2986 = vmatpush.msra.mxu0 %v2702
    %2987 = vmatpush.msra.mxu0 %v2699
    %2988 = vmatpush.msra.mxu0 %v2696
    %2989 = vmatpush.msra.mxu0 %v2693
    %2990 = vmatpush.msra.mxu0 %v2690
    %2991 = vmatpush.msra.mxu0 %v2687
    %2992 = vmatpush.msra.mxu0 %v2684
    %2993 = vmatpush.msra.mxu0 %v2681
    %2994 = vmatpush.msra.mxu0 %v2678
    %2995 = vmatpush.msra.mxu0 %v2675
    %2996 = vmatmul.f32.gmra.mxu0 %v2886
    %v2997 = vpop.f32.mrf.mxu0
    %v2998 = vadd.f32 %v2969, %v2997
    %2999 = vmatmul.f32.gmra.mxu0 %v2899
    %v3000 = vpop.f32.mrf.mxu0
    %v3001 = vadd.f32 %v2972, %v3000
    %3002 = vmatmul.f32.gmra.mxu0 %v2909
    %v3003 = vpop.f32.mrf.mxu0
    %v3004 = vadd.f32 %v2975, %v3003
    %3005 = vmatmul.f32.gmra.mxu0 %v2908
    %v3006 = vpop.f32.mrf.mxu0
    %v3007 = vadd.f32 %v2978, %v3006
    %3008 = vdwg.mxu0
    %3009 = vmatpush.msra.mxu0 %v2768
    %3010 = vmatpush.msra.mxu0 %v2765
    %3011 = vmatpush.msra.mxu0 %v2762
    %3012 = vmatpush.msra.mxu0 %v2759
    %3013 = vmatpush.msra.mxu0 %v2756
    %3014 = vmatpush.msra.mxu0 %v2753
    %3015 = vmatpush.msra.mxu0 %v2750
    %3016 = vmatpush.msra.mxu0 %v2747
    %3017 = vmatpush.msra.mxu0 %v2744
    %3018 = vmatpush.msra.mxu0 %v2741
    %3019 = vmatpush.msra.mxu0 %v2738
    %3020 = vmatpush.msra.mxu0 %v2735
    %3021 = vmatpush.msra.mxu0 %v2732
    %3022 = vmatpush.msra.mxu0 %v2729
    %3023 = vmatpush.msra.mxu0 %v2726
    %3024 = vmatpush.msra.mxu0 %v2723
    %3025 = vmatmul.f32.gmra.mxu0 %v2889
    %v3026 = vpop.f32.mrf.mxu0
    %v3027 = vadd.f32 %v2998, %v3026
    %3028 = vmatmul.f32.gmra.mxu0 %v2901
    %v3029 = vpop.f32.mrf.mxu0
    %v3030 = vadd.f32 %v3001, %v3029
    %3031 = vmatmul.f32.gmra.mxu0 %v2911
    %v3032 = vpop.f32.mrf.mxu0
    %v3033 = vadd.f32 %v3004, %v3032
    %3034 = vmatmul.f32.gmra.mxu0 %v2910
    %v3035 = vpop.f32.mrf.mxu0
    %v3036 = vadd.f32 %v3007, %v3035
    %3037 = vdwg.mxu0
    %3038 = vmatpush.msra.mxu0 %v2816
    %3039 = vmatpush.msra.mxu0 %v2813
    %3040 = vmatpush.msra.mxu0 %v2810
    %3041 = vmatpush.msra.mxu0 %v2807
    %3042 = vmatpush.msra.mxu0 %v2804
    %3043 = vmatpush.msra.mxu0 %v2801
    %3044 = vmatpush.msra.mxu0 %v2798
    %3045 = vmatpush.msra.mxu0 %v2795
    %3046 = vmatpush.msra.mxu0 %v2792
    %3047 = vmatpush.msra.mxu0 %v2789
    %3048 = vmatpush.msra.mxu0 %v2786
    %3049 = vmatpush.msra.mxu0 %v2783
    %3050 = vmatpush.msra.mxu0 %v2780
    %3051 = vmatpush.msra.mxu0 %v2777
    %3052 = vmatpush.msra.mxu0 %v2774
    %3053 = vmatpush.msra.mxu0 %v2771
    %3054 = vmatmul.f32.gmra.mxu0 %v2892
    %v3055 = vpop.f32.mrf.mxu0
    %v3056 = vadd.f32 %v3027, %v3055
    %3057 = vmatmul.f32.gmra.mxu0 %v2903
    %v3058 = vpop.f32.mrf.mxu0
    %v3059 = vadd.f32 %v3030, %v3058
    %3060 = vmatmul.f32.gmra.mxu0 %v2913
    %v3061 = vpop.f32.mrf.mxu0
    %v3062 = vadd.f32 %v3033, %v3061
    %3063 = vmatmul.f32.gmra.mxu0 %v2912
    %v3064 = vpop.f32.mrf.mxu0
    %v3065 = vadd.f32 %v3036, %v3064
    %3066 = vdwg.mxu0
    %3067 = vmatpush.msra.mxu0 0.0
    %3068 = vmatpush.msra.mxu0 0.0
    %3069 = vmatpush.msra.mxu0 %v2943
    %3070 = vmatpush.msra.mxu0 %v2855
    %3071 = vmatpush.msra.mxu0 %v2852
    %3072 = vmatpush.msra.mxu0 %v2849
    %3073 = vmatpush.msra.mxu0 %v2846
    %3074 = vmatpush.msra.mxu0 %v2843
    %3075 = vmatpush.msra.mxu0 %v2840
    %3076 = vmatpush.msra.mxu0 %v2837
    %3077 = vmatpush.msra.mxu0 %v2834
    %3078 = vmatpush.msra.mxu0 %v2831
    %3079 = vmatpush.msra.mxu0 %v2828
    %3080 = vmatpush.msra.mxu0 %v2825
    %3081 = vmatpush.msra.mxu0 %v2822
    %3082 = vmatpush.msra.mxu0 %v2819
    %3083 = vmatmul.f32.gmra.mxu0 %v2933
    %v3084 = vpop.f32.mrf.mxu0
    %v3085 = vadd.f32 %v3056, %v3084
    %3086 = vmatmul.f32.gmra.mxu0 %v2935
    %v3087 = vpop.f32.mrf.mxu0
    %v3088 = vadd.f32 %v3059, %v3087
    %3089 = vmatmul.f32.gmra.mxu0 %v2937
    %v3090 = vpop.f32.mrf.mxu0
    %v3091 = vadd.f32 %v3062, %v3090
    %3092 = vmatmul.f32.gmra.mxu0 %v2939
    %v3093 = vpop.f32.mrf.mxu0
    %v3094 = vadd.f32 %v3065, %v3093
    %3095 = vdwg.mxu0
    %3096 = vmatpush.msra.mxu0 %v2673
    %3097 = vmatpush.msra.mxu0 %v2670
    %3098 = vmatpush.msra.mxu0 %v2667
    %3099 = vmatpush.msra.mxu0 %v2664
    %3100 = vmatpush.msra.mxu0 %v2661
    %3101 = vmatpush.msra.mxu0 %v2658
    %3102 = vmatpush.msra.mxu0 %v2655
    %3103 = vmatpush.msra.mxu0 %v2652
    %3104 = vmatpush.msra.mxu0 %v2649
    %3105 = vmatpush.msra.mxu0 %v2646
    %3106 = vmatpush.msra.mxu0 %v2643
    %3107 = vmatpush.msra.mxu0 %v2640
    %3108 = vmatpush.msra.mxu0 %v2637
    %3109 = vmatpush.msra.mxu0 %v2634
    %3110 = vmatpush.msra.mxu0 %v2631
    %3111 = vmatpush.msra.mxu0 %v2628
    %3112 = vmatmul.f32.gmra.mxu0 %v2883
    %v3113 = vpop.f32.mrf.mxu0
    %v3114 = vadd.f32 0.0, %v3113
    %3115 = vmatmul.f32.gmra.mxu0 %v2897
    %v3116 = vpop.f32.mrf.mxu0
    %v3117 = vadd.f32 0.0, %v3116
    %3118 = vmatmul.f32.gmra.mxu0 %v2907
    %v3119 = vpop.f32.mrf.mxu0
    %v3120 = vadd.f32 0.0, %v3119
    %3121 = vmatmul.f32.gmra.mxu0 %v2906
    %v3122 = vpop.f32.mrf.mxu0
    %v3123 = vadd.f32 0.0, %v3122
    %3124 = vdwg.mxu0
    %3125 = vmatpush.msra.mxu0 %v2721
    %3126 = vmatpush.msra.mxu0 %v2718
    %3127 = vmatpush.msra.mxu0 %v2715
    %3128 = vmatpush.msra.mxu0 %v2712
    %3129 = vmatpush.msra.mxu0 %v2709
    %3130 = vmatpush.msra.mxu0 %v2706
    %3131 = vmatpush.msra.mxu0 %v2703
    %3132 = vmatpush.msra.mxu0 %v2700
    %3133 = vmatpush.msra.mxu0 %v2697
    %3134 = vmatpush.msra.mxu0 %v2694
    %3135 = vmatpush.msra.mxu0 %v2691
    %3136 = vmatpush.msra.mxu0 %v2688
    %3137 = vmatpush.msra.mxu0 %v2685
    %3138 = vmatpush.msra.mxu0 %v2682
    %3139 = vmatpush.msra.mxu0 %v2679
    %3140 = vmatpush.msra.mxu0 %v2676
    %3141 = vmatmul.f32.gmra.mxu0 %v2886
    %v3142 = vpop.f32.mrf.mxu0
    %v3143 = vadd.f32 %v3114, %v3142
    %3144 = vmatmul.f32.gmra.mxu0 %v2899
    %v3145 = vpop.f32.mrf.mxu0
    %v3146 = vadd.f32 %v3117, %v3145
    %3147 = vmatmul.f32.gmra.mxu0 %v2909
    %v3148 = vpop.f32.mrf.mxu0
    %v3149 = vadd.f32 %v3120, %v3148
    %3150 = vmatmul.f32.gmra.mxu0 %v2908
    %v3151 = vpop.f32.mrf.mxu0
    %v3152 = vadd.f32 %v3123, %v3151
    %3153 = vdwg.mxu0
    %3154 = vmatpush.msra.mxu0 %v2769
    %3155 = vmatpush.msra.mxu0 %v2766
    %3156 = vmatpush.msra.mxu0 %v2763
    %3157 = vmatpush.msra.mxu0 %v2760
    %3158 = vmatpush.msra.mxu0 %v2757
    %3159 = vmatpush.msra.mxu0 %v2754
    %3160 = vmatpush.msra.mxu0 %v2751
    %3161 = vmatpush.msra.mxu0 %v2748
    %3162 = vmatpush.msra.mxu0 %v2745
    %3163 = vmatpush.msra.mxu0 %v2742
    %3164 = vmatpush.msra.mxu0 %v2739
    %3165 = vmatpush.msra.mxu0 %v2736
    %3166 = vmatpush.msra.mxu0 %v2733
    %3167 = vmatpush.msra.mxu0 %v2730
    %3168 = vmatpush.msra.mxu0 %v2727
    %3169 = vmatpush.msra.mxu0 %v2724
    %3170 = vmatmul.f32.gmra.mxu0 %v2889
    %v3171 = vpop.f32.mrf.mxu0
    %v3172 = vadd.f32 %v3143, %v3171
    %3173 = vmatmul.f32.gmra.mxu0 %v2901
    %v3174 = vpop.f32.mrf.mxu0
    %v3175 = vadd.f32 %v3146, %v3174
    %3176 = vmatmul.f32.gmra.mxu0 %v2911
    %v3177 = vpop.f32.mrf.mxu0
    %v3178 = vadd.f32 %v3149, %v3177
    %3179 = vmatmul.f32.gmra.mxu0 %v2910
    %v3180 = vpop.f32.mrf.mxu0
    %v3181 = vadd.f32 %v3152, %v3180
    %3182 = vdwg.mxu0
    %3183 = vmatpush.msra.mxu0 %v2817
    %3184 = vmatpush.msra.mxu0 %v2814
    %3185 = vmatpush.msra.mxu0 %v2811
    %3186 = vmatpush.msra.mxu0 %v2808
    %3187 = vmatpush.msra.mxu0 %v2805
    %3188 = vmatpush.msra.mxu0 %v2802
    %3189 = vmatpush.msra.mxu0 %v2799
    %3190 = vmatpush.msra.mxu0 %v2796
    %3191 = vmatpush.msra.mxu0 %v2793
    %3192 = vmatpush.msra.mxu0 %v2790
    %3193 = vmatpush.msra.mxu0 %v2787
    %3194 = vmatpush.msra.mxu0 %v2784
    %3195 = vmatpush.msra.mxu0 %v2781
    %3196 = vmatpush.msra.mxu0 %v2778
    %3197 = vmatpush.msra.mxu0 %v2775
    %3198 = vmatpush.msra.mxu0 %v2772
    %3199 = vmatmul.f32.gmra.mxu0 %v2892
    %v3200 = vpop.f32.mrf.mxu0
    %v3201 = vadd.f32 %v3172, %v3200
    %3202 = vmatmul.f32.gmra.mxu0 %v2903
    %v3203 = vpop.f32.mrf.mxu0
    %v3204 = vadd.f32 %v3175, %v3203
    %3205 = vmatmul.f32.gmra.mxu0 %v2913
    %v3206 = vpop.f32.mrf.mxu0
    %v3207 = vadd.f32 %v3178, %v3206
    %3208 = vmatmul.f32.gmra.mxu0 %v2912
    %v3209 = vpop.f32.mrf.mxu0
    %v3210 = vadd.f32 %v3181, %v3209
    %3211 = vdwg.mxu0
    %3212 = vmatpush.msra.mxu0 0.0
    %3213 = vmatpush.msra.mxu0 0.0
    %3214 = vmatpush.msra.mxu0 %v2946
    %3215 = vmatpush.msra.mxu0 %v2856
    %3216 = vmatpush.msra.mxu0 %v2853
    %3217 = vmatpush.msra.mxu0 %v2850
    %3218 = vmatpush.msra.mxu0 %v2847
    %3219 = vmatpush.msra.mxu0 %v2844
    %3220 = vmatpush.msra.mxu0 %v2841
    %3221 = vmatpush.msra.mxu0 %v2838
    %3222 = vmatpush.msra.mxu0 %v2835
    %3223 = vmatpush.msra.mxu0 %v2832
    %3224 = vmatpush.msra.mxu0 %v2829
    %3225 = vmatpush.msra.mxu0 %v2826
    %3226 = vmatpush.msra.mxu0 %v2823
    %3227 = vmatpush.msra.mxu0 %v2820
    %3228 = vmatmul.f32.gmra.mxu0 %v2933
    %v3229 = vpop.f32.mrf.mxu0
    %v3230 = vadd.f32 %v3201, %v3229
    %3231 = vmatmul.f32.gmra.mxu0 %v2935
    %v3232 = vpop.f32.mrf.mxu0
    %v3233 = vadd.f32 %v3204, %v3232
    %3234 = vmatmul.f32.gmra.mxu0 %v2937
    %v3235 = vpop.f32.mrf.mxu0
    %v3236 = vadd.f32 %v3207, %v3235
    %3237 = vmatmul.f32.gmra.mxu0 %v2939
    %v3238 = vpop.f32.mrf.mxu0
    %v3239 = vadd.f32 %v3210, %v3238
    %3240 = vdwg.mxu0
    %3241 = vmatpush.msra.mxu0 %v2674
    %3242 = vmatpush.msra.mxu0 %v2671
    %3243 = vmatpush.msra.mxu0 %v2668
    %3244 = vmatpush.msra.mxu0 %v2665
    %3245 = vmatpush.msra.mxu0 %v2662
    %3246 = vmatpush.msra.mxu0 %v2659
    %3247 = vmatpush.msra.mxu0 %v2656
    %3248 = vmatpush.msra.mxu0 %v2653
    %3249 = vmatpush.msra.mxu0 %v2650
    %3250 = vmatpush.msra.mxu0 %v2647
    %3251 = vmatpush.msra.mxu0 %v2644
    %3252 = vmatpush.msra.mxu0 %v2641
    %3253 = vmatpush.msra.mxu0 %v2638
    %3254 = vmatpush.msra.mxu0 %v2635
    %3255 = vmatpush.msra.mxu0 %v2632
    %3256 = vmatpush.msra.mxu0 %v2629
    %3257 = vmatmul.f32.gmra.mxu0 %v2883
    %v3258 = vpop.f32.mrf.mxu0
    %v3259 = vadd.f32 0.0, %v3258
    %3260 = vmatmul.f32.gmra.mxu0 %v2897
    %v3261 = vpop.f32.mrf.mxu0
    %v3262 = vadd.f32 0.0, %v3261
    %3263 = vmatmul.f32.gmra.mxu0 %v2907
    %v3264 = vpop.f32.mrf.mxu0
    %v3265 = vadd.f32 0.0, %v3264
    %3266 = vmatmul.f32.gmra.mxu0 %v2906
    %v3267 = vpop.f32.mrf.mxu0
    %v3268 = vadd.f32 0.0, %v3267
    %3269 = vdwg.mxu0
    %3270 = vmatpush.msra.mxu0 %v2722
    %3271 = vmatpush.msra.mxu0 %v2719
    %3272 = vmatpush.msra.mxu0 %v2716
    %3273 = vmatpush.msra.mxu0 %v2713
    %3274 = vmatpush.msra.mxu0 %v2710
    %3275 = vmatpush.msra.mxu0 %v2707
    %3276 = vmatpush.msra.mxu0 %v2704
    %3277 = vmatpush.msra.mxu0 %v2701
    %3278 = vmatpush.msra.mxu0 %v2698
    %3279 = vmatpush.msra.mxu0 %v2695
    %3280 = vmatpush.msra.mxu0 %v2692
    %3281 = vmatpush.msra.mxu0 %v2689
    %3282 = vmatpush.msra.mxu0 %v2686
    %3283 = vmatpush.msra.mxu0 %v2683
    %3284 = vmatpush.msra.mxu0 %v2680
    %3285 = vmatpush.msra.mxu0 %v2677
    %3286 = vmatmul.f32.gmra.mxu0 %v2886
    %v3287 = vpop.f32.mrf.mxu0
    %v3288 = vadd.f32 %v3259, %v3287
    %3289 = vmatmul.f32.gmra.mxu0 %v2899
    %v3290 = vpop.f32.mrf.mxu0
    %v3291 = vadd.f32 %v3262, %v3290
    %3292 = vmatmul.f32.gmra.mxu0 %v2909
    %v3293 = vpop.f32.mrf.mxu0
    %v3294 = vadd.f32 %v3265, %v3293
    %3295 = vmatmul.f32.gmra.mxu0 %v2908
    %v3296 = vpop.f32.mrf.mxu0
    %v3297 = vadd.f32 %v3268, %v3296
    %3298 = vdwg.mxu0
    %3299 = vmatpush.msra.mxu0 %v2770
    %3300 = vmatpush.msra.mxu0 %v2767
    %3301 = vmatpush.msra.mxu0 %v2764
    %3302 = vmatpush.msra.mxu0 %v2761
    %3303 = vmatpush.msra.mxu0 %v2758
    %3304 = vmatpush.msra.mxu0 %v2755
    %3305 = vmatpush.msra.mxu0 %v2752
    %3306 = vmatpush.msra.mxu0 %v2749
    %3307 = vmatpush.msra.mxu0 %v2746
    %3308 = vmatpush.msra.mxu0 %v2743
    %3309 = vmatpush.msra.mxu0 %v2740
    %3310 = vmatpush.msra.mxu0 %v2737
    %3311 = vmatpush.msra.mxu0 %v2734
    %3312 = vmatpush.msra.mxu0 %v2731
    %3313 = vmatpush.msra.mxu0 %v2728
    %3314 = vmatpush.msra.mxu0 %v2725
    %3315 = vmatmul.f32.gmra.mxu0 %v2889
    %v3316 = vpop.f32.mrf.mxu0
    %v3317 = vadd.f32 %v3288, %v3316
    %3318 = vmatmul.f32.gmra.mxu0 %v2901
    %v3319 = vpop.f32.mrf.mxu0
    %v3320 = vadd.f32 %v3291, %v3319
    %3321 = vmatmul.f32.gmra.mxu0 %v2911
    %v3322 = vpop.f32.mrf.mxu0
    %v3323 = vadd.f32 %v3294, %v3322
    %3324 = vmatmul.f32.gmra.mxu0 %v2910
    %v3325 = vpop.f32.mrf.mxu0
    %v3326 = vadd.f32 %v3297, %v3325
    %3327 = vdwg.mxu0
    %3328 = vmatpush.msra.mxu0 %v2818
    %3329 = vmatpush.msra.mxu0 %v2815
    %3330 = vmatpush.msra.mxu0 %v2812
    %3331 = vmatpush.msra.mxu0 %v2809
    %3332 = vmatpush.msra.mxu0 %v2806
    %3333 = vmatpush.msra.mxu0 %v2803
    %3334 = vmatpush.msra.mxu0 %v2800
    %3335 = vmatpush.msra.mxu0 %v2797
    %3336 = vmatpush.msra.mxu0 %v2794
    %3337 = vmatpush.msra.mxu0 %v2791
    %3338 = vmatpush.msra.mxu0 %v2788
    %3339 = vmatpush.msra.mxu0 %v2785
    %3340 = vmatpush.msra.mxu0 %v2782
    %3341 = vmatpush.msra.mxu0 %v2779
    %3342 = vmatpush.msra.mxu0 %v2776
    %3343 = vmatpush.msra.mxu0 %v2773
    %3344 = vmatmul.f32.gmra.mxu0 %v2892
    %v3345 = vpop.f32.mrf.mxu0
    %v3346 = vadd.f32 %v3317, %v3345
    %3347 = vmatmul.f32.gmra.mxu0 %v2903
    %v3348 = vpop.f32.mrf.mxu0
    %v3349 = vadd.f32 %v3320, %v3348
    %3350 = vmatmul.f32.gmra.mxu0 %v2913
    %v3351 = vpop.f32.mrf.mxu0
    %v3352 = vadd.f32 %v3323, %v3351
    %3353 = vmatmul.f32.gmra.mxu0 %v2912
    %v3354 = vpop.f32.mrf.mxu0
    %v3355 = vadd.f32 %v3326, %v3354
    %3356 = vdwg.mxu0
    %3357 = vmatpush.msra.mxu0 0.0
    %3358 = vmatpush.msra.mxu0 0.0
    %3359 = vmatpush.msra.mxu0 %v2949
    %3360 = vmatpush.msra.mxu0 %v2857
    %3361 = vmatpush.msra.mxu0 %v2854
    %3362 = vmatpush.msra.mxu0 %v2851
    %3363 = vmatpush.msra.mxu0 %v2848
    %3364 = vmatpush.msra.mxu0 %v2845
    %3365 = vmatpush.msra.mxu0 %v2842
    %3366 = vmatpush.msra.mxu0 %v2839
    %3367 = vmatpush.msra.mxu0 %v2836
    %3368 = vmatpush.msra.mxu0 %v2833
    %3369 = vmatpush.msra.mxu0 %v2830
    %3370 = vmatpush.msra.mxu0 %v2827
    %3371 = vmatpush.msra.mxu0 %v2824
    %3372 = vmatpush.msra.mxu0 %v2821
    %3373 = vmatmul.f32.gmra.mxu0 %v2933
    %v3374 = vpop.f32.mrf.mxu0
    %v3375 = vadd.f32 %v3346, %v3374
    %3376 = vmatmul.f32.gmra.mxu0 %v2935
    %v3377 = vpop.f32.mrf.mxu0
    %v3378 = vadd.f32 %v3349, %v3377
    %3379 = vmatmul.f32.gmra.mxu0 %v2937
    %v3380 = vpop.f32.mrf.mxu0
    %v3381 = vadd.f32 %v3352, %v3380
    %3382 = vmatmul.f32.gmra.mxu0 %v2939
    %v3383 = vpop.f32.mrf.mxu0
    %v3384 = vadd.f32 %v3355, %v3383
    %3385 = vdwg.mxu0
    %v3386 = vsel %vm2932, %v2376, 0
    %v3388 = vsel %vm2932, %v2381, 0
    %v3390 = vsel %vm2932, %v2386, 0
    %v3392 = vsel %vm2932, %v2391, 0
    %v3395 = vsel %vm2941, %v2623, 0
    %v3398 = vsel %vm2941, %v2624, 0
    %v3401 = vsel %vm2941, %v2625, 0
    %3403 = vmatpush.msra.mxu0 %v2437
    %3404 = vmatpush.msra.mxu0 %v2434
    %3405 = vmatpush.msra.mxu0 %v2431
    %3406 = vmatpush.msra.mxu0 %v2428
    %3407 = vmatpush.msra.mxu0 %v2425
    %3408 = vmatpush.msra.mxu0 %v2422
    %3409 = vmatpush.msra.mxu0 %v2419
    %3410 = vmatpush.msra.mxu0 %v2416
    %3411 = vmatpush.msra.mxu0 %v2413
    %3412 = vmatpush.msra.mxu0 %v2410
    %3413 = vmatpush.msra.mxu0 %v2407
    %3414 = vmatpush.msra.mxu0 %v2404
    %3415 = vmatpush.msra.mxu0 %v2401
    %3416 = vmatpush.msra.mxu0 %v2398
    %3417 = vmatpush.msra.mxu0 %v2395
    %3418 = vmatpush.msra.mxu0 %v2392
    %3419 = vmatmul.f32.gmra.mxu0 %v2372
    %v3420 = vpop.f32.mrf.mxu0
    %v3421 = vadd.f32 %v3085, %v3420
    %3422 = vmatmul.f32.gmra.mxu0 %v2377
    %v3423 = vpop.f32.mrf.mxu0
    %v3424 = vadd.f32 %v3088, %v3423
    %3425 = vmatmul.f32.gmra.mxu0 %v2382
    %v3426 = vpop.f32.mrf.mxu0
    %v3427 = vadd.f32 %v3091, %v3426
    %3428 = vmatmul.f32.gmra.mxu0 %v2387
    %v3429 = vpop.f32.mrf.mxu0
    %v3430 = vadd.f32 %v3094, %v3429
    %3431 = vdwg.mxu0
    %3432 = vmatpush.msra.mxu0 %v2485
    %3433 = vmatpush.msra.mxu0 %v2482
    %3434 = vmatpush.msra.mxu0 %v2479
    %3435 = vmatpush.msra.mxu0 %v2476
    %3436 = vmatpush.msra.mxu0 %v2473
    %3437 = vmatpush.msra.mxu0 %v2470
    %3438 = vmatpush.msra.mxu0 %v2467
    %3439 = vmatpush.msra.mxu0 %v2464
    %3440 = vmatpush.msra.mxu0 %v2461
    %3441 = vmatpush.msra.mxu0 %v2458
    %3442 = vmatpush.msra.mxu0 %v2455
    %3443 = vmatpush.msra.mxu0 %v2452
    %3444 = vmatpush.msra.mxu0 %v2449
    %3445 = vmatpush.msra.mxu0 %v2446
    %3446 = vmatpush.msra.mxu0 %v2443
    %3447 = vmatpush.msra.mxu0 %v2440
    %3448 = vmatmul.f32.gmra.mxu0 %v2373
    %v3449 = vpop.f32.mrf.mxu0
    %v3450 = vadd.f32 %v3421, %v3449
    %3451 = vmatmul.f32.gmra.mxu0 %v2378
    %v3452 = vpop.f32.mrf.mxu0
    %v3453 = vadd.f32 %v3424, %v3452
    %3454 = vmatmul.f32.gmra.mxu0 %v2383
    %v3455 = vpop.f32.mrf.mxu0
    %v3456 = vadd.f32 %v3427, %v3455
    %3457 = vmatmul.f32.gmra.mxu0 %v2388
    %v3458 = vpop.f32.mrf.mxu0
    %v3459 = vadd.f32 %v3430, %v3458
    %3460 = vdwg.mxu0
    %3461 = vmatpush.msra.mxu0 %v2533
    %3462 = vmatpush.msra.mxu0 %v2530
    %3463 = vmatpush.msra.mxu0 %v2527
    %3464 = vmatpush.msra.mxu0 %v2524
    %3465 = vmatpush.msra.mxu0 %v2521
    %3466 = vmatpush.msra.mxu0 %v2518
    %3467 = vmatpush.msra.mxu0 %v2515
    %3468 = vmatpush.msra.mxu0 %v2512
    %3469 = vmatpush.msra.mxu0 %v2509
    %3470 = vmatpush.msra.mxu0 %v2506
    %3471 = vmatpush.msra.mxu0 %v2503
    %3472 = vmatpush.msra.mxu0 %v2500
    %3473 = vmatpush.msra.mxu0 %v2497
    %3474 = vmatpush.msra.mxu0 %v2494
    %3475 = vmatpush.msra.mxu0 %v2491
    %3476 = vmatpush.msra.mxu0 %v2488
    %3477 = vmatmul.f32.gmra.mxu0 %v2374
    %v3478 = vpop.f32.mrf.mxu0
    %v3479 = vadd.f32 %v3450, %v3478
    %3480 = vmatmul.f32.gmra.mxu0 %v2379
    %v3481 = vpop.f32.mrf.mxu0
    %v3482 = vadd.f32 %v3453, %v3481
    %3483 = vmatmul.f32.gmra.mxu0 %v2384
    %v3484 = vpop.f32.mrf.mxu0
    %v3485 = vadd.f32 %v3456, %v3484
    %3486 = vmatmul.f32.gmra.mxu0 %v2389
    %v3487 = vpop.f32.mrf.mxu0
    %v3488 = vadd.f32 %v3459, %v3487
    %3489 = vdwg.mxu0
    %3490 = vmatpush.msra.mxu0 %v2581
    %3491 = vmatpush.msra.mxu0 %v2578
    %3492 = vmatpush.msra.mxu0 %v2575
    %3493 = vmatpush.msra.mxu0 %v2572
    %3494 = vmatpush.msra.mxu0 %v2569
    %3495 = vmatpush.msra.mxu0 %v2566
    %3496 = vmatpush.msra.mxu0 %v2563
    %3497 = vmatpush.msra.mxu0 %v2560
    %3498 = vmatpush.msra.mxu0 %v2557
    %3499 = vmatpush.msra.mxu0 %v2554
    %3500 = vmatpush.msra.mxu0 %v2551
    %3501 = vmatpush.msra.mxu0 %v2548
    %3502 = vmatpush.msra.mxu0 %v2545
    %3503 = vmatpush.msra.mxu0 %v2542
    %3504 = vmatpush.msra.mxu0 %v2539
    %3505 = vmatpush.msra.mxu0 %v2536
    %3506 = vmatmul.f32.gmra.mxu0 %v2375
    %v3507 = vpop.f32.mrf.mxu0
    %v3508 = vadd.f32 %v3479, %v3507
    %3509 = vmatmul.f32.gmra.mxu0 %v2380
    %v3510 = vpop.f32.mrf.mxu0
    %v3511 = vadd.f32 %v3482, %v3510
    %3512 = vmatmul.f32.gmra.mxu0 %v2385
    %v3513 = vpop.f32.mrf.mxu0
    %v3514 = vadd.f32 %v3485, %v3513
    %3515 = vmatmul.f32.gmra.mxu0 %v2390
    %v3516 = vpop.f32.mrf.mxu0
    %v3517 = vadd.f32 %v3488, %v3516
    %3518 = vdwg.mxu0
    %3519 = vmatpush.msra.mxu0 0.0
    %3520 = vmatpush.msra.mxu0 0.0
    %3521 = vmatpush.msra.mxu0 %v3395
    %3522 = vmatpush.msra.mxu0 %v2620
    %3523 = vmatpush.msra.mxu0 %v2617
    %3524 = vmatpush.msra.mxu0 %v2614
    %3525 = vmatpush.msra.mxu0 %v2611
    %3526 = vmatpush.msra.mxu0 %v2608
    %3527 = vmatpush.msra.mxu0 %v2605
    %3528 = vmatpush.msra.mxu0 %v2602
    %3529 = vmatpush.msra.mxu0 %v2599
    %3530 = vmatpush.msra.mxu0 %v2596
    %3531 = vmatpush.msra.mxu0 %v2593
    %3532 = vmatpush.msra.mxu0 %v2590
    %3533 = vmatpush.msra.mxu0 %v2587
    %3534 = vmatpush.msra.mxu0 %v2584
    %3535 = vmatmul.f32.gmra.mxu0 %v3386
    %v3536 = vpop.f32.mrf.mxu0
    %v3537 = vadd.f32 %v3508, %v3536
    %3538 = vmatmul.f32.gmra.mxu0 %v3388
    %v3539 = vpop.f32.mrf.mxu0
    %v3540 = vadd.f32 %v3511, %v3539
    %3541 = vmatmul.f32.gmra.mxu0 %v3390
    %v3542 = vpop.f32.mrf.mxu0
    %v3543 = vadd.f32 %v3514, %v3542
    %3544 = vmatmul.f32.gmra.mxu0 %v3392
    %v3545 = vpop.f32.mrf.mxu0
    %v3546 = vadd.f32 %v3517, %v3545
    %3547 = vdwg.mxu0
    %3548 = vmatpush.msra.mxu0 %v2438
    %3549 = vmatpush.msra.mxu0 %v2435
    %3550 = vmatpush.msra.mxu0 %v2432
    %3551 = vmatpush.msra.mxu0 %v2429
    %3552 = vmatpush.msra.mxu0 %v2426
    %3553 = vmatpush.msra.mxu0 %v2423
    %3554 = vmatpush.msra.mxu0 %v2420
    %3555 = vmatpush.msra.mxu0 %v2417
    %3556 = vmatpush.msra.mxu0 %v2414
    %3557 = vmatpush.msra.mxu0 %v2411
    %3558 = vmatpush.msra.mxu0 %v2408
    %3559 = vmatpush.msra.mxu0 %v2405
    %3560 = vmatpush.msra.mxu0 %v2402
    %3561 = vmatpush.msra.mxu0 %v2399
    %3562 = vmatpush.msra.mxu0 %v2396
    %3563 = vmatpush.msra.mxu0 %v2393
    %3564 = vmatmul.f32.gmra.mxu0 %v2372
    %v3565 = vpop.f32.mrf.mxu0
    %v3566 = vadd.f32 %v3230, %v3565
    %3567 = vmatmul.f32.gmra.mxu0 %v2377
    %v3568 = vpop.f32.mrf.mxu0
    %v3569 = vadd.f32 %v3233, %v3568
    %3570 = vmatmul.f32.gmra.mxu0 %v2382
    %v3571 = vpop.f32.mrf.mxu0
    %v3572 = vadd.f32 %v3236, %v3571
    %3573 = vmatmul.f32.gmra.mxu0 %v2387
    %v3574 = vpop.f32.mrf.mxu0
    %v3575 = vadd.f32 %v3239, %v3574
    %3576 = vdwg.mxu0
    %3577 = vmatpush.msra.mxu0 %v2486
    %3578 = vmatpush.msra.mxu0 %v2483
    %3579 = vmatpush.msra.mxu0 %v2480
    %3580 = vmatpush.msra.mxu0 %v2477
    %3581 = vmatpush.msra.mxu0 %v2474
    %3582 = vmatpush.msra.mxu0 %v2471
    %3583 = vmatpush.msra.mxu0 %v2468
    %3584 = vmatpush.msra.mxu0 %v2465
    %3585 = vmatpush.msra.mxu0 %v2462
    %3586 = vmatpush.msra.mxu0 %v2459
    %3587 = vmatpush.msra.mxu0 %v2456
    %3588 = vmatpush.msra.mxu0 %v2453
    %3589 = vmatpush.msra.mxu0 %v2450
    %3590 = vmatpush.msra.mxu0 %v2447
    %3591 = vmatpush.msra.mxu0 %v2444
    %3592 = vmatpush.msra.mxu0 %v2441
    %3593 = vmatmul.f32.gmra.mxu0 %v2373
    %v3594 = vpop.f32.mrf.mxu0
    %v3595 = vadd.f32 %v3566, %v3594
    %3596 = vmatmul.f32.gmra.mxu0 %v2378
    %v3597 = vpop.f32.mrf.mxu0
    %v3598 = vadd.f32 %v3569, %v3597
    %3599 = vmatmul.f32.gmra.mxu0 %v2383
    %v3600 = vpop.f32.mrf.mxu0
    %v3601 = vadd.f32 %v3572, %v3600
    %3602 = vmatmul.f32.gmra.mxu0 %v2388
    %v3603 = vpop.f32.mrf.mxu0
    %v3604 = vadd.f32 %v3575, %v3603
    %3605 = vdwg.mxu0
    %3606 = vmatpush.msra.mxu0 %v2534
    %3607 = vmatpush.msra.mxu0 %v2531
    %3608 = vmatpush.msra.mxu0 %v2528
    %3609 = vmatpush.msra.mxu0 %v2525
    %3610 = vmatpush.msra.mxu0 %v2522
    %3611 = vmatpush.msra.mxu0 %v2519
    %3612 = vmatpush.msra.mxu0 %v2516
    %3613 = vmatpush.msra.mxu0 %v2513
    %3614 = vmatpush.msra.mxu0 %v2510
    %3615 = vmatpush.msra.mxu0 %v2507
    %3616 = vmatpush.msra.mxu0 %v2504
    %3617 = vmatpush.msra.mxu0 %v2501
    %3618 = vmatpush.msra.mxu0 %v2498
    %3619 = vmatpush.msra.mxu0 %v2495
    %3620 = vmatpush.msra.mxu0 %v2492
    %3621 = vmatpush.msra.mxu0 %v2489
    %3622 = vmatmul.f32.gmra.mxu0 %v2374
    %v3623 = vpop.f32.mrf.mxu0
    %v3624 = vadd.f32 %v3595, %v3623
    %3625 = vmatmul.f32.gmra.mxu0 %v2379
    %v3626 = vpop.f32.mrf.mxu0
    %v3627 = vadd.f32 %v3598, %v3626
    %3628 = vmatmul.f32.gmra.mxu0 %v2384
    %v3629 = vpop.f32.mrf.mxu0
    %v3630 = vadd.f32 %v3601, %v3629
    %3631 = vmatmul.f32.gmra.mxu0 %v2389
    %v3632 = vpop.f32.mrf.mxu0
    %v3633 = vadd.f32 %v3604, %v3632
    %3634 = vdwg.mxu0
    %3635 = vmatpush.msra.mxu0 %v2582
    %3636 = vmatpush.msra.mxu0 %v2579
    %3637 = vmatpush.msra.mxu0 %v2576
    %3638 = vmatpush.msra.mxu0 %v2573
    %3639 = vmatpush.msra.mxu0 %v2570
    %3640 = vmatpush.msra.mxu0 %v2567
    %3641 = vmatpush.msra.mxu0 %v2564
    %3642 = vmatpush.msra.mxu0 %v2561
    %3643 = vmatpush.msra.mxu0 %v2558
    %3644 = vmatpush.msra.mxu0 %v2555
    %3645 = vmatpush.msra.mxu0 %v2552
    %3646 = vmatpush.msra.mxu0 %v2549
    %3647 = vmatpush.msra.mxu0 %v2546
    %3648 = vmatpush.msra.mxu0 %v2543
    %3649 = vmatpush.msra.mxu0 %v2540
    %3650 = vmatpush.msra.mxu0 %v2537
    %3651 = vmatmul.f32.gmra.mxu0 %v2375
    %v3652 = vpop.f32.mrf.mxu0
    %v3653 = vadd.f32 %v3624, %v3652
    %3654 = vmatmul.f32.gmra.mxu0 %v2380
    %v3655 = vpop.f32.mrf.mxu0
    %v3656 = vadd.f32 %v3627, %v3655
    %3657 = vmatmul.f32.gmra.mxu0 %v2385
    %v3658 = vpop.f32.mrf.mxu0
    %v3659 = vadd.f32 %v3630, %v3658
    %3660 = vmatmul.f32.gmra.mxu0 %v2390
    %v3661 = vpop.f32.mrf.mxu0
    %v3662 = vadd.f32 %v3633, %v3661
    %3663 = vdwg.mxu0
    %3664 = vmatpush.msra.mxu0 0.0
    %3665 = vmatpush.msra.mxu0 0.0
    %3666 = vmatpush.msra.mxu0 %v3398
    %3667 = vmatpush.msra.mxu0 %v2621
    %3668 = vmatpush.msra.mxu0 %v2618
    %3669 = vmatpush.msra.mxu0 %v2615
    %3670 = vmatpush.msra.mxu0 %v2612
    %3671 = vmatpush.msra.mxu0 %v2609
    %3672 = vmatpush.msra.mxu0 %v2606
    %3673 = vmatpush.msra.mxu0 %v2603
    %3674 = vmatpush.msra.mxu0 %v2600
    %3675 = vmatpush.msra.mxu0 %v2597
    %3676 = vmatpush.msra.mxu0 %v2594
    %3677 = vmatpush.msra.mxu0 %v2591
    %3678 = vmatpush.msra.mxu0 %v2588
    %3679 = vmatpush.msra.mxu0 %v2585
    %3680 = vmatmul.f32.gmra.mxu0 %v3386
    %v3681 = vpop.f32.mrf.mxu0
    %v3682 = vadd.f32 %v3653, %v3681
    %3683 = vmatmul.f32.gmra.mxu0 %v3388
    %v3684 = vpop.f32.mrf.mxu0
    %v3685 = vadd.f32 %v3656, %v3684
    %3686 = vmatmul.f32.gmra.mxu0 %v3390
    %v3687 = vpop.f32.mrf.mxu0
    %v3688 = vadd.f32 %v3659, %v3687
    %3689 = vmatmul.f32.gmra.mxu0 %v3392
    %v3690 = vpop.f32.mrf.mxu0
    %v3691 = vadd.f32 %v3662, %v3690
    %3692 = vdwg.mxu0
    %3693 = vmatpush.msra.mxu0 %v2439
    %3694 = vmatpush.msra.mxu0 %v2436
    %3695 = vmatpush.msra.mxu0 %v2433
    %3696 = vmatpush.msra.mxu0 %v2430
    %3697 = vmatpush.msra.mxu0 %v2427
    %3698 = vmatpush.msra.mxu0 %v2424
    %3699 = vmatpush.msra.mxu0 %v2421
    %3700 = vmatpush.msra.mxu0 %v2418
    %3701 = vmatpush.msra.mxu0 %v2415
    %3702 = vmatpush.msra.mxu0 %v2412
    %3703 = vmatpush.msra.mxu0 %v2409
    %3704 = vmatpush.msra.mxu0 %v2406
    %3705 = vmatpush.msra.mxu0 %v2403
    %3706 = vmatpush.msra.mxu0 %v2400
    %3707 = vmatpush.msra.mxu0 %v2397
    %3708 = vmatpush.msra.mxu0 %v2394
    %3709 = vmatmul.f32.gmra.mxu0 %v2372
    %v3710 = vpop.f32.mrf.mxu0
    %v3711 = vadd.f32 %v3375, %v3710
    %3712 = vmatmul.f32.gmra.mxu0 %v2377
    %v3713 = vpop.f32.mrf.mxu0
    %v3714 = vadd.f32 %v3378, %v3713
    %3715 = vmatmul.f32.gmra.mxu0 %v2382
    %v3716 = vpop.f32.mrf.mxu0
    %v3717 = vadd.f32 %v3381, %v3716
    %3718 = vmatmul.f32.gmra.mxu0 %v2387
    %v3719 = vpop.f32.mrf.mxu0
    %v3720 = vadd.f32 %v3384, %v3719
    %3721 = vdwg.mxu0
    %3722 = vmatpush.msra.mxu0 %v2487
    %3723 = vmatpush.msra.mxu0 %v2484
    %3724 = vmatpush.msra.mxu0 %v2481
    %3725 = vmatpush.msra.mxu0 %v2478
    %3726 = vmatpush.msra.mxu0 %v2475
    %3727 = vmatpush.msra.mxu0 %v2472
    %3728 = vmatpush.msra.mxu0 %v2469
    %3729 = vmatpush.msra.mxu0 %v2466
    %3730 = vmatpush.msra.mxu0 %v2463
    %3731 = vmatpush.msra.mxu0 %v2460
    %3732 = vmatpush.msra.mxu0 %v2457
    %3733 = vmatpush.msra.mxu0 %v2454
    %3734 = vmatpush.msra.mxu0 %v2451
    %3735 = vmatpush.msra.mxu0 %v2448
    %3736 = vmatpush.msra.mxu0 %v2445
    %3737 = vmatpush.msra.mxu0 %v2442
    %3738 = vmatmul.f32.gmra.mxu0 %v2373
    %v3739 = vpop.f32.mrf.mxu0
    %v3740 = vadd.f32 %v3711, %v3739
    %3741 = vmatmul.f32.gmra.mxu0 %v2378
    %v3742 = vpop.f32.mrf.mxu0
    %v3743 = vadd.f32 %v3714, %v3742
    %3744 = vmatmul.f32.gmra.mxu0 %v2383
    %v3745 = vpop.f32.mrf.mxu0
    %v3746 = vadd.f32 %v3717, %v3745
    %3747 = vmatmul.f32.gmra.mxu0 %v2388
    %v3748 = vpop.f32.mrf.mxu0
    %v3749 = vadd.f32 %v3720, %v3748
    %3750 = vdwg.mxu0
    %3751 = vmatpush.msra.mxu0 %v2535
    %3752 = vmatpush.msra.mxu0 %v2532
    %3753 = vmatpush.msra.mxu0 %v2529
    %3754 = vmatpush.msra.mxu0 %v2526
    %3755 = vmatpush.msra.mxu0 %v2523
    %3756 = vmatpush.msra.mxu0 %v2520
    %3757 = vmatpush.msra.mxu0 %v2517
    %3758 = vmatpush.msra.mxu0 %v2514
    %3759 = vmatpush.msra.mxu0 %v2511
    %3760 = vmatpush.msra.mxu0 %v2508
    %3761 = vmatpush.msra.mxu0 %v2505
    %3762 = vmatpush.msra.mxu0 %v2502
    %3763 = vmatpush.msra.mxu0 %v2499
    %3764 = vmatpush.msra.mxu0 %v2496
    %3765 = vmatpush.msra.mxu0 %v2493
    %3766 = vmatpush.msra.mxu0 %v2490
    %3767 = vmatmul.f32.gmra.mxu0 %v2374
    %v3768 = vpop.f32.mrf.mxu0
    %v3769 = vadd.f32 %v3740, %v3768
    %3770 = vmatmul.f32.gmra.mxu0 %v2379
    %v3771 = vpop.f32.mrf.mxu0
    %v3772 = vadd.f32 %v3743, %v3771
    %3773 = vmatmul.f32.gmra.mxu0 %v2384
    %v3774 = vpop.f32.mrf.mxu0
    %v3775 = vadd.f32 %v3746, %v3774
    %3776 = vmatmul.f32.gmra.mxu0 %v2389
    %v3777 = vpop.f32.mrf.mxu0
    %v3778 = vadd.f32 %v3749, %v3777
    %3779 = vdwg.mxu0
    %3780 = vmatpush.msra.mxu0 %v2583
    %3781 = vmatpush.msra.mxu0 %v2580
    %3782 = vmatpush.msra.mxu0 %v2577
    %3783 = vmatpush.msra.mxu0 %v2574
    %3784 = vmatpush.msra.mxu0 %v2571
    %3785 = vmatpush.msra.mxu0 %v2568
    %3786 = vmatpush.msra.mxu0 %v2565
    %3787 = vmatpush.msra.mxu0 %v2562
    %3788 = vmatpush.msra.mxu0 %v2559
    %3789 = vmatpush.msra.mxu0 %v2556
    %3790 = vmatpush.msra.mxu0 %v2553
    %3791 = vmatpush.msra.mxu0 %v2550
    %3792 = vmatpush.msra.mxu0 %v2547
    %3793 = vmatpush.msra.mxu0 %v2544
    %3794 = vmatpush.msra.mxu0 %v2541
    %3795 = vmatpush.msra.mxu0 %v2538
    %3796 = vmatmul.f32.gmra.mxu0 %v2375
    %v3797 = vpop.f32.mrf.mxu0
    %v3798 = vadd.f32 %v3769, %v3797
    %3799 = vmatmul.f32.gmra.mxu0 %v2380
    %v3800 = vpop.f32.mrf.mxu0
    %v3801 = vadd.f32 %v3772, %v3800
    %3802 = vmatmul.f32.gmra.mxu0 %v2385
    %v3803 = vpop.f32.mrf.mxu0
    %v3804 = vadd.f32 %v3775, %v3803
    %3805 = vmatmul.f32.gmra.mxu0 %v2390
    %v3806 = vpop.f32.mrf.mxu0
    %v3807 = vadd.f32 %v3778, %v3806
    %3808 = vdwg.mxu0
    %3809 = vmatpush.msra.mxu0 0.0
    %3810 = vmatpush.msra.mxu0 0.0
    %3811 = vmatpush.msra.mxu0 %v3401
    %3812 = vmatpush.msra.mxu0 %v2622
    %3813 = vmatpush.msra.mxu0 %v2619
    %3814 = vmatpush.msra.mxu0 %v2616
    %3815 = vmatpush.msra.mxu0 %v2613
    %3816 = vmatpush.msra.mxu0 %v2610
    %3817 = vmatpush.msra.mxu0 %v2607
    %3818 = vmatpush.msra.mxu0 %v2604
    %3819 = vmatpush.msra.mxu0 %v2601
    %3820 = vmatpush.msra.mxu0 %v2598
    %3821 = vmatpush.msra.mxu0 %v2595
    %3822 = vmatpush.msra.mxu0 %v2592
    %3823 = vmatpush.msra.mxu0 %v2589
    %3824 = vmatpush.msra.mxu0 %v2586
    %3825 = vmatmul.f32.gmra.mxu0 %v3386
    %v3826 = vpop.f32.mrf.mxu0
    %v3827 = vadd.f32 %v3798, %v3826
    %3828 = vmatmul.f32.gmra.mxu0 %v3388
    %v3829 = vpop.f32.mrf.mxu0
    %v3830 = vadd.f32 %v3801, %v3829
    %3831 = vmatmul.f32.gmra.mxu0 %v3390
    %v3832 = vpop.f32.mrf.mxu0
    %v3833 = vadd.f32 %v3804, %v3832
    %3834 = vmatmul.f32.gmra.mxu0 %v3392
    %v3835 = vpop.f32.mrf.mxu0
    %v3836 = vadd.f32 %v3807, %v3835
    %3837 = vdwg.mxu0
    %s3838 = scalar_lea.vmem %s4, 3744
    %v3839 = vld [vmem:[%s3838] sm:$0xff]
    %v3840 = vld [vmem:[%s3838 + $0x8] sm:$0xff]
    %v3841 = vld [vmem:[%s3838 + $0x10] sm:$0xff]
    %v3842 = vld [vmem:[%s3838 + $0x18] sm:$0xff]
    %v3843 = vld [vmem:[%s3838 + $0x20] sm:$0xff]
    %v3844 = vld [vmem:[%s3838 + $0x28] sm:$0xff]
    %v3845 = vld [vmem:[%s3838 + $0x30] sm:$0xff]
    %v3846 = vld [vmem:[%s3838 + $0x38] sm:$0xff]
    %v3847 = vld [vmem:[%s3838 + $0x40] sm:$0xff]
    %v3848 = vld [vmem:[%s3838 + $0x48] sm:$0xff]
    %v3849 = vld [vmem:[%s3838 + $0x50] sm:$0xff]
    %v3850 = vld [vmem:[%s3838 + $0x58] sm:$0xff]
    %v3851 = vld [vmem:[%s3838 + $0x60] sm:$0xff]
    %v3852 = vld [vmem:[%s3838 + $0x68] sm:$0xff]
    %v3853 = vld [vmem:[%s3838 + $0x70] sm:$0xff]
    %v3854 = vld [vmem:[%s3838 + $0x78] sm:$0xff]
    %v3855 = vld [vmem:[%s3838 + $0x80] sm:$0xff]
    %v3856 = vld [vmem:[%s3838 + $0x88] sm:$0xff]
    %v3857 = vld [vmem:[%s3838 + $0x90] sm:$0xff]
    %v3858 = vld [vmem:[%s3838 + $0x98] sm:$0xff]
    %v3859 = vld [vmem:[%s3838 + $0xa0] sm:$0xff]
    %v3860 = vld [vmem:[%s3838 + $0xa8] sm:$0xff]
    %v3861 = vld [vmem:[%s3838 + $0xb0] sm:$0xff]
    %v3862 = vld [vmem:[%s3838 + $0xb8] sm:$0xff]
    %v3863 = vld [vmem:[%s3838 + $0xc0] sm:$0xff]
    %v3864 = vld [vmem:[%s3838 + $0xc8] sm:$0xff]
    %v3865 = vld [vmem:[%s3838 + $0xd0] sm:$0xff]
    %v3866 = vld [vmem:[%s3838 + $0xd8] sm:$0xff]
    %v3867 = vld [vmem:[%s3838 + $0xe0] sm:$0xff]
    %v3868 = vld [vmem:[%s3838 + $0xe8] sm:$0xff]
    %v3869 = vld [vmem:[%s3838 + $0xf0] sm:$0xff]
    %v3870 = vld [vmem:[%s3838 + $0xf8] sm:$0xff]
    %v3871 = vld [vmem:[%s3838 + $0x100] sm:$0xff]
    %v3872 = vld [vmem:[%s3838 + $0x108] sm:$0xff]
    %v3873 = vld [vmem:[%s3838 + $0x110] sm:$0xff]
    %v3874 = vld [vmem:[%s3838 + $0x118] sm:$0xff]
    %v3875 = vld [vmem:[%s3838 + $0x120] sm:$0xff]
    %v3876 = vld [vmem:[%s3838 + $0x128] sm:$0xff]
    %v3877 = vld [vmem:[%s3838 + $0x130] sm:$0xff]
    %v3878 = vld [vmem:[%s3838 + $0x138] sm:$0xff]
    %v3879 = vld [vmem:[%s3838 + $0x140] sm:$0xff]
    %v3880 = vld [vmem:[%s3838 + $0x148] sm:$0xff]
    %v3881 = vld [vmem:[%s3838 + $0x150] sm:$0xff]
    %v3882 = vld [vmem:[%s3838 + $0x158] sm:$0xff]
    %v3883 = vld [vmem:[%s3838 + $0x160] sm:$0xff]
    %v3884 = vld [vmem:[%s3838 + $0x168] sm:$0xff]
    %v3885 = vld [vmem:[%s3838 + $0x170] sm:$0xff]
    %v3886 = vld [vmem:[%s3838 + $0x178] sm:$0xff]
    %v3887 = vld [vmem:[%s3838 + $0x180] sm:$0xff]
    %v3888 = vld [vmem:[%s3838 + $0x188] sm:$0xff]
    %v3889 = vld [vmem:[%s3838 + $0x190] sm:$0xff]
    %v3890 = vld [vmem:[%s3838 + $0x198] sm:$0xff]
    %v3891 = vld [vmem:[%s3838 + $0x1a0] sm:$0xff]
    %v3892 = vld [vmem:[%s3838 + $0x1a8] sm:$0xff]
    %v3893 = vld [vmem:[%s3838 + $0x1b0] sm:$0xff]
    %v3894 = vld [vmem:[%s3838 + $0x1b8] sm:$0xff]
    %v3895 = vld [vmem:[%s3838 + $0x1c0] sm:$0xff]
    %v3896 = vld [vmem:[%s3838 + $0x1c8] sm:$0xff]
    %v3897 = vld [vmem:[%s3838 + $0x1d0] sm:$0xff]
    %v3898 = vld [vmem:[%s3838 + $0x1d8] sm:$0xff]
    %v3899 = vld [vmem:[%s3838 + $0x1e0] sm:$0xff]
    %v3900 = vld [vmem:[%s3838 + $0x1e8] sm:$0xff]
    %v3901 = vld [vmem:[%s3838 + $0x1f0] sm:$0xff]
    %v3902 = vld [vmem:[%s3838 + $0x1f8] sm:$0xff]
    %v3903 = vld [vmem:[%s3838 + $0x200] sm:$0xff]
    %v3904 = vld [vmem:[%s3838 + $0x208] sm:$0xff]
    %v3905 = vld [vmem:[%s3838 + $0x210] sm:$0xff]
    %v3906 = vld [vmem:[%s3838 + $0x218] sm:$0xff]
    %v3907 = vld [vmem:[%s3838 + $0x220] sm:$0xff]
    %v3908 = vld [vmem:[%s3838 + $0x228] sm:$0xff]
    %v3909 = vld [vmem:[%s3838 + $0x230] sm:$0xff]
    %v3910 = vld [vmem:[%s3838 + $0x238] sm:$0xff]
    %v3911 = vld [vmem:[%s3838 + $0x240] sm:$0xff]
    %v3912 = vld [vmem:[%s3838 + $0x248] sm:$0xff]
    %v3913 = vld [vmem:[%s3838 + $0x250] sm:$0xff]
    %v3914 = vld [vmem:[%s3838 + $0x258] sm:$0xff]
    %v3915 = vld [vmem:[%s3838 + $0x260] sm:$0xff]
    %v3916 = vld [vmem:[%s3838 + $0x268] sm:$0xff]
    %v3917 = vld [vmem:[%s3838 + $0x270] sm:$0xff]
    %v3918 = vld [vmem:[%s3838 + $0x278] sm:$0xff]
    %v3919 = vld [vmem:[%s3838 + $0x280] sm:$0xff]
    %v3920 = vld [vmem:[%s3838 + $0x288] sm:$0xff]
    %v3921 = vld [vmem:[%s3838 + $0x290] sm:$0xff]
    %v3922 = vld [vmem:[%s3838 + $0x298] sm:$0xff]
    %v3923 = vld [vmem:[%s3838 + $0x2a0] sm:$0xff]
    %v3924 = vld [vmem:[%s3838 + $0x2a8] sm:$0xff]
    %v3925 = vld [vmem:[%s3838 + $0x2b0] sm:$0xff]
    %v3926 = vld [vmem:[%s3838 + $0x2b8] sm:$0xff]
    %v3927 = vld [vmem:[%s3838 + $0x2c0] sm:$0xff]
    %v3928 = vld [vmem:[%s3838 + $0x2c8] sm:$0xff]
    %v3929 = vld [vmem:[%s3838 + $0x2d0] sm:$0xff]
    %v3930 = vld [vmem:[%s3838 + $0x2d8] sm:$0xff]
    %v3931 = vld [vmem:[%s3838 + $0x2e0] sm:$0xff]
    %v3932 = vld [vmem:[%s3838 + $0x2e8] sm:$0xff]
    %v3933 = vld [vmem:[%s3838 + $0x2f0] sm:$0xff]
    %v3934 = vld [vmem:[%s3838 + $0x2f8] sm:$0xff]
    %v3935 = vld [vmem:[%s3838 + $0x300] sm:$0xff]
    %v3936 = vld [vmem:[%s3838 + $0x308] sm:$0xff]
    %v3937 = vld [vmem:[%s3838 + $0x310] sm:$0xff]
    %v3938 = vld [vmem:[%s3838 + $0x318] sm:$0xff]
    %v3939 = vld [vmem:[%s3838 + $0x320] sm:$0xff]
    %v3940 = vld [vmem:[%s3838 + $0x328] sm:$0xff]
    %v3941 = vld [vmem:[%s3838 + $0x330] sm:$0xff]
    %v3942 = vld [vmem:[%s3838 + $0x338] sm:$0xff]
    %v3943 = vld [vmem:[%s3838 + $0x340] sm:$0xff]
    %v3944 = vld [vmem:[%s3838 + $0x348] sm:$0xff]
    %v3945 = vld [vmem:[%s3838 + $0x350] sm:$0xff]
    %v3946 = vld [vmem:[%s3838 + $0x358] sm:$0xff]
    %v3947 = vld [vmem:[%s3838 + $0x360] sm:$0xff]
    %v3948 = vld [vmem:[%s3838 + $0x368] sm:$0xff]
    %v3949 = vld [vmem:[%s3838 + $0x370] sm:$0xff]
    %v3950 = vld [vmem:[%s3838 + $0x378] sm:$0xff]
    %v3951 = vld [vmem:[%s3838 + $0x380] sm:$0xff]
    %v3952 = vld [vmem:[%s3838 + $0x388] sm:$0xff]
    %v3953 = vld [vmem:[%s3838 + $0x390] sm:$0xff]
    %v3954 = vld [vmem:[%s3838 + $0x398] sm:$0xff]
    %v3955 = vld [vmem:[%s3838 + $0x3a0] sm:$0xff]
    %v3956 = vld [vmem:[%s3838 + $0x3a8] sm:$0xff]
    %v3957 = vld [vmem:[%s3838 + $0x3b0] sm:$0xff]
    %v3958 = vld [vmem:[%s3838 + $0x3b8] sm:$0xff]
    %v3959 = vld [vmem:[%s3838 + $0x3c0] sm:$0xff]
    %v3960 = vld [vmem:[%s3838 + $0x3c8] sm:$0xff]
    %v3961 = vld [vmem:[%s3838 + $0x3d0] sm:$0xff]
    %v3962 = vld [vmem:[%s3838 + $0x3d8] sm:$0xff]
    %v3963 = vld [vmem:[%s3838 + $0x3e0] sm:$0xff]
    %v3964 = vld [vmem:[%s3838 + $0x3e8] sm:$0xff]
    %v3965 = vld [vmem:[%s3838 + $0x3f0] sm:$0xff]
    %v3966 = vld [vmem:[%s3838 + $0x3f8] sm:$0xff]
    %v3967 = vld [vmem:[%s3838 + $0x400] sm:$0xff]
    %v3968 = vld [vmem:[%s3838 + $0x408] sm:$0xff]
    %v3969 = vld [vmem:[%s3838 + $0x410] sm:$0xff]
    %v3970 = vld [vmem:[%s3838 + $0x418] sm:$0xff]
    %v3971 = vld [vmem:[%s3838 + $0x420] sm:$0xff]
    %v3972 = vld [vmem:[%s3838 + $0x428] sm:$0xff]
    %v3973 = vld [vmem:[%s3838 + $0x430] sm:$0xff]
    %v3974 = vld [vmem:[%s3838 + $0x438] sm:$0xff]
    %v3975 = vld [vmem:[%s3838 + $0x440] sm:$0xff]
    %v3976 = vld [vmem:[%s3838 + $0x448] sm:$0xff]
    %v3977 = vld [vmem:[%s3838 + $0x450] sm:$0xff]
    %v3978 = vld [vmem:[%s3838 + $0x458] sm:$0xff]
    %v3979 = vld [vmem:[%s3838 + $0x460] sm:$0xff]
    %v3980 = vld [vmem:[%s3838 + $0x468] sm:$0xff]
    %v3981 = vld [vmem:[%s3838 + $0x470] sm:$0xff]
    %v3982 = vld [vmem:[%s3838 + $0x478] sm:$0xff]
    %v3983 = vld [vmem:[%s3838 + $0x480] sm:$0xff]
    %v3984 = vld [vmem:[%s3838 + $0x488] sm:$0xff]
    %v3985 = vld [vmem:[%s3838 + $0x490] sm:$0xff]
    %v3986 = vld [vmem:[%s3838 + $0x498] sm:$0xff]
    %v3987 = vld [vmem:[%s3838 + $0x4a0] sm:$0xff]
    %v3988 = vld [vmem:[%s3838 + $0x4a8] sm:$0xff]
    %v3989 = vld [vmem:[%s3838 + $0x4b0] sm:$0xff]
    %v3990 = vld [vmem:[%s3838 + $0x4b8] sm:$0xff]
    %v3991 = vld [vmem:[%s3838 + $0x4c0] sm:$0xff]
    %v3992 = vld [vmem:[%s3838 + $0x4c8] sm:$0xff]
    %v3993 = vld [vmem:[%s3838 + $0x4d0] sm:$0xff]
    %v3994 = vld [vmem:[%s3838 + $0x4d8] sm:$0xff]
    %v3995 = vld [vmem:[%s3838 + $0x4e0] sm:$0xff]
    %v3996 = vld [vmem:[%s3838 + $0x4e8] sm:$0xff]
    %v3997 = vld [vmem:[%s3838 + $0x4f0] sm:$0xff]
    %v3998 = vld [vmem:[%s3838 + $0x4f8] sm:$0xff]
    %v3999 = vld [vmem:[%s3838 + $0x500] sm:$0xff]
    %v4000 = vld [vmem:[%s3838 + $0x508] sm:$0xff]
    %v4001 = vld [vmem:[%s3838 + $0x510] sm:$0xff]
    %v4002 = vld [vmem:[%s3838 + $0x518] sm:$0xff]
    %v4003 = vld [vmem:[%s3838 + $0x520] sm:$0xff]
    %v4004 = vld [vmem:[%s3838 + $0x528] sm:$0xff]
    %v4005 = vld [vmem:[%s3838 + $0x530] sm:$0xff]
    %v4006 = vld [vmem:[%s3838 + $0x538] sm:$0xff]
    %v4007 = vld [vmem:[%s3838 + $0x540] sm:$0xff]
    %v4008 = vld [vmem:[%s3838 + $0x548] sm:$0xff]
    %v4009 = vld [vmem:[%s3838 + $0x550] sm:$0xff]
    %v4010 = vld [vmem:[%s3838 + $0x558] sm:$0xff]
    %v4011 = vld [vmem:[%s3838 + $0x560] sm:$0xff]
    %v4012 = vld [vmem:[%s3838 + $0x568] sm:$0xff]
    %v4013 = vld [vmem:[%s3838 + $0x570] sm:$0xff]
    %v4014 = vld [vmem:[%s3838 + $0x578] sm:$0xff]
    %v4015 = vld [vmem:[%s3838 + $0x580] sm:$0xff]
    %v4016 = vld [vmem:[%s3838 + $0x588] sm:$0xff]
    %v4017 = vld [vmem:[%s3838 + $0x590] sm:$0xff]
    %v4018 = vld [vmem:[%s3838 + $0x598] sm:$0xff]
    %v4019 = vld [vmem:[%s3838 + $0x5a0] sm:$0xff]
    %v4020 = vld [vmem:[%s3838 + $0x5a8] sm:$0xff]
    %v4021 = vld [vmem:[%s3838 + $0x5b0] sm:$0xff]
    %v4022 = vld [vmem:[%s3838 + $0x5b8] sm:$0xff]
    %v4023 = vld [vmem:[%s3838 + $0x5c0] sm:$0xff]
    %v4024 = vld [vmem:[%s3838 + $0x5c8] sm:$0xff]
    %v4025 = vld [vmem:[%s3838 + $0x5d0] sm:$0xff]
    %v4026 = vld [vmem:[%s3838 + $0x5d8] sm:$0xff]
    %v4027 = vld [vmem:[%s3838 + $0x5e0] sm:$0xff]
    %v4028 = vld [vmem:[%s3838 + $0x5e8] sm:$0xff]
    %v4029 = vld [vmem:[%s3838 + $0x5f0] sm:$0xff]
    %v4030 = vld [vmem:[%s3838 + $0x5f8] sm:$0xff]
    %v4031 = vld [vmem:[%s3838 + $0x600] sm:$0xff]
    %v4032 = vld [vmem:[%s3838 + $0x608] sm:$0xff]
    %v4033 = vld [vmem:[%s3838 + $0x610] sm:$0xff]
    %v4034 = vld [vmem:[%s3838 + $0x618] sm:$0xff]
    %v4035 = vld [vmem:[%s3838 + $0x620] sm:$0xff]
    %v4036 = vld [vmem:[%s3838 + $0x628] sm:$0xff]
    %v4037 = vld [vmem:[%s3838 + $0x630] sm:$0xff]
    %v4038 = vld [vmem:[%s3838 + $0x638] sm:$0xff]
    %v4039 = vld [vmem:[%s3838 + $0x640] sm:$0xff]
    %v4040 = vld [vmem:[%s3838 + $0x648] sm:$0xff]
    %v4041 = vld [vmem:[%s3838 + $0x650] sm:$0xff]
    %v4042 = vld [vmem:[%s3838 + $0x658] sm:$0xff]
    %v4043 = vld [vmem:[%s3838 + $0x660] sm:$0xff]
    %v4044 = vld [vmem:[%s3838 + $0x668] sm:$0xff]
    %v4045 = vld [vmem:[%s3838 + $0x670] sm:$0xff]
    %v4046 = vld [vmem:[%s3838 + $0x678] sm:$0xff]
    %v4047 = vld [vmem:[%s3838 + $0x680] sm:$0xff]
    %v4048 = vld [vmem:[%s3838 + $0x688] sm:$0xff]
    %v4049 = vld [vmem:[%s3838 + $0x690] sm:$0xff]
    %v4050 = vld [vmem:[%s3838 + $0x698] sm:$0xff]
    %v4051 = vld [vmem:[%s3838 + $0x6a0] sm:$0xff]
    %v4052 = vld [vmem:[%s3838 + $0x6a8] sm:$0xff]
    %v4053 = vld [vmem:[%s3838 + $0x6b0] sm:$0xff]
    %v4054 = vld [vmem:[%s3838 + $0x6b8] sm:$0xff]
    %v4055 = vld [vmem:[%s3838 + $0x6c0] sm:$0xff]
    %v4056 = vld [vmem:[%s3838 + $0x6c8] sm:$0xff]
    %v4057 = vld [vmem:[%s3838 + $0x6d0] sm:$0xff]
    %v4058 = vld [vmem:[%s3838 + $0x6d8] sm:$0xff]
    %v4059 = vld [vmem:[%s3838 + $0x6e0] sm:$0xff]
    %v4060 = vld [vmem:[%s3838 + $0x6e8] sm:$0xff]
    %v4061 = vld [vmem:[%s3838 + $0x6f0] sm:$0xff]
    %v4062 = vld [vmem:[%s3838 + $0x6f8] sm:$0xff]
    %v4063 = vld [vmem:[%s3838 + $0x700] sm:$0xff]
    %v4064 = vld [vmem:[%s3838 + $0x708] sm:$0xff]
    %v4065 = vld [vmem:[%s3838 + $0x710] sm:$0xff]
    %v4066 = vld [vmem:[%s3838 + $0x718] sm:$0xff]
    %v4067 = vld [vmem:[%s3838 + $0x720] sm:$0xff]
    %v4068 = vld [vmem:[%s3838 + $0x728] sm:$0xff]
    %v4069 = vld [vmem:[%s3838 + $0x730] sm:$0xff]
    %v4070 = vld [vmem:[%s3838 + $0x738] sm:$0x7]
    %v4071 = vld [vmem:[%s3838 + $0x740] sm:$0x7]
    %v4072 = vld [vmem:[%s3838 + $0x748] sm:$0x7]
    %v4073 = vrot.slane %v2372, 2
    %v4074 = vrot.slane %v2377, 2
    %v4075 = vsel %vm1319, %v4073, %v4074
    %v4076 = vrot.slane %v2373, 2
    %v4077 = vrot.slane %v2378, 2
    %v4078 = vsel %vm1319, %v4076, %v4077
    %v4079 = vrot.slane %v2374, 2
    %v4080 = vrot.slane %v2379, 2
    %v4081 = vsel %vm1319, %v4079, %v4080
    %v4082 = vrot.slane %v2375, 2
    %v4083 = vrot.slane %v2380, 2
    %v4084 = vsel %vm1319, %v4082, %v4083
    %v4085 = vrot.slane %v2376, 2
    %v4086 = vrot.slane %v2381, 2
    %v4087 = vsel %vm1319, %v4085, %v4086
    %v4088 = vrot.slane %v2382, 2
    %v4089 = vsel %vm1319, %v4074, %v4088
    %v4090 = vrot.slane %v2383, 2
    %v4091 = vsel %vm1319, %v4077, %v4090
    %v4092 = vrot.slane %v2384, 2
    %v4093 = vsel %vm1319, %v4080, %v4092
    %v4094 = vrot.slane %v2385, 2
    %v4095 = vsel %vm1319, %v4083, %v4094
    %v4096 = vrot.slane %v2386, 2
    %v4097 = vsel %vm1319, %v4086, %v4096
    %v4098 = vrot.slane %v2387, 2
    %v4099 = vsel %vm1319, %v4088, %v4098
    %v4100 = vrot.slane %v2388, 2
    %v4101 = vsel %vm1319, %v4090, %v4100
    %v4102 = vrot.slane %v2389, 2
    %v4103 = vsel %vm1319, %v4092, %v4102
    %v4104 = vrot.slane %v2390, 2
    %v4105 = vsel %vm1319, %v4094, %v4104
    %v4106 = vrot.slane %v2391, 2
    %v4107 = vsel %vm1319, %v4096, %v4106
    %v4124 = vsel %vm2932, %v4087, 0
    %v4126 = vsel %vm2932, %v4097, 0
    %v4128 = vsel %vm2932, %v4107, 0
    %v4130 = vsel %vm2932, %v4106, 0
    %v4133 = vsel %vm2941, %v4070, 0
    %v4136 = vsel %vm2941, %v4071, 0
    %v4139 = vsel %vm2941, %v4072, 0
    %4141 = vmatpush.msra.mxu0 %v3884
    %4142 = vmatpush.msra.mxu0 %v3881
    %4143 = vmatpush.msra.mxu0 %v3878
    %4144 = vmatpush.msra.mxu0 %v3875
    %4145 = vmatpush.msra.mxu0 %v3872
    %4146 = vmatpush.msra.mxu0 %v3869
    %4147 = vmatpush.msra.mxu0 %v3866
    %4148 = vmatpush.msra.mxu0 %v3863
    %4149 = vmatpush.msra.mxu0 %v3860
    %4150 = vmatpush.msra.mxu0 %v3857
    %4151 = vmatpush.msra.mxu0 %v3854
    %4152 = vmatpush.msra.mxu0 %v3851
    %4153 = vmatpush.msra.mxu0 %v3848
    %4154 = vmatpush.msra.mxu0 %v3845
    %4155 = vmatpush.msra.mxu0 %v3842
    %4156 = vmatpush.msra.mxu0 %v3839
    %4157 = vmatmul.f32.gmra.mxu0 %v4075
    %v4158 = vpop.f32.mrf.mxu0
    %v4159 = vadd.f32 0.0, %v4158
    %4160 = vmatmul.f32.gmra.mxu0 %v4089
    %v4161 = vpop.f32.mrf.mxu0
    %v4162 = vadd.f32 0.0, %v4161
    %4163 = vmatmul.f32.gmra.mxu0 %v4099
    %v4164 = vpop.f32.mrf.mxu0
    %v4165 = vadd.f32 0.0, %v4164
    %4166 = vmatmul.f32.gmra.mxu0 %v4098
    %v4167 = vpop.f32.mrf.mxu0
    %v4168 = vadd.f32 0.0, %v4167
    %4169 = vdwg.mxu0
    %4170 = vmatpush.msra.mxu0 %v3932
    %4171 = vmatpush.msra.mxu0 %v3929
    %4172 = vmatpush.msra.mxu0 %v3926
    %4173 = vmatpush.msra.mxu0 %v3923
    %4174 = vmatpush.msra.mxu0 %v3920
    %4175 = vmatpush.msra.mxu0 %v3917
    %4176 = vmatpush.msra.mxu0 %v3914
    %4177 = vmatpush.msra.mxu0 %v3911
    %4178 = vmatpush.msra.mxu0 %v3908
    %4179 = vmatpush.msra.mxu0 %v3905
    %4180 = vmatpush.msra.mxu0 %v3902
    %4181 = vmatpush.msra.mxu0 %v3899
    %4182 = vmatpush.msra.mxu0 %v3896
    %4183 = vmatpush.msra.mxu0 %v3893
    %4184 = vmatpush.msra.mxu0 %v3890
    %4185 = vmatpush.msra.mxu0 %v3887
    %4186 = vmatmul.f32.gmra.mxu0 %v4078
    %v4187 = vpop.f32.mrf.mxu0
    %v4188 = vadd.f32 %v4159, %v4187
    %4189 = vmatmul.f32.gmra.mxu0 %v4091
    %v4190 = vpop.f32.mrf.mxu0
    %v4191 = vadd.f32 %v4162, %v4190
    %4192 = vmatmul.f32.gmra.mxu0 %v4101
    %v4193 = vpop.f32.mrf.mxu0
    %v4194 = vadd.f32 %v4165, %v4193
    %4195 = vmatmul.f32.gmra.mxu0 %v4100
    %v4196 = vpop.f32.mrf.mxu0
    %v4197 = vadd.f32 %v4168, %v4196
    %4198 = vdwg.mxu0
    %4199 = vmatpush.msra.mxu0 %v3980
    %4200 = vmatpush.msra.mxu0 %v3977
    %4201 = vmatpush.msra.mxu0 %v3974
    %4202 = vmatpush.msra.mxu0 %v3971
    %4203 = vmatpush.msra.mxu0 %v3968
    %4204 = vmatpush.msra.mxu0 %v3965
    %4205 = vmatpush.msra.mxu0 %v3962
    %4206 = vmatpush.msra.mxu0 %v3959
    %4207 = vmatpush.msra.mxu0 %v3956
    %4208 = vmatpush.msra.mxu0 %v3953
    %4209 = vmatpush.msra.mxu0 %v3950
    %4210 = vmatpush.msra.mxu0 %v3947
    %4211 = vmatpush.msra.mxu0 %v3944
    %4212 = vmatpush.msra.mxu0 %v3941
    %4213 = vmatpush.msra.mxu0 %v3938
    %4214 = vmatpush.msra.mxu0 %v3935
    %4215 = vmatmul.f32.gmra.mxu0 %v4081
    %v4216 = vpop.f32.mrf.mxu0
    %v4217 = vadd.f32 %v4188, %v4216
    %4218 = vmatmul.f32.gmra.mxu0 %v4093
    %v4219 = vpop.f32.mrf.mxu0
    %v4220 = vadd.f32 %v4191, %v4219
    %4221 = vmatmul.f32.gmra.mxu0 %v4103
    %v4222 = vpop.f32.mrf.mxu0
    %v4223 = vadd.f32 %v4194, %v4222
    %4224 = vmatmul.f32.gmra.mxu0 %v4102
    %v4225 = vpop.f32.mrf.mxu0
    %v4226 = vadd.f32 %v4197, %v4225
    %4227 = vdwg.mxu0
    %4228 = vmatpush.msra.mxu0 %v4028
    %4229 = vmatpush.msra.mxu0 %v4025
    %4230 = vmatpush.msra.mxu0 %v4022
    %4231 = vmatpush.msra.mxu0 %v4019
    %4232 = vmatpush.msra.mxu0 %v4016
    %4233 = vmatpush.msra.mxu0 %v4013
    %4234 = vmatpush.msra.mxu0 %v4010
    %4235 = vmatpush.msra.mxu0 %v4007
    %4236 = vmatpush.msra.mxu0 %v4004
    %4237 = vmatpush.msra.mxu0 %v4001
    %4238 = vmatpush.msra.mxu0 %v3998
    %4239 = vmatpush.msra.mxu0 %v3995
    %4240 = vmatpush.msra.mxu0 %v3992
    %4241 = vmatpush.msra.mxu0 %v3989
    %4242 = vmatpush.msra.mxu0 %v3986
    %4243 = vmatpush.msra.mxu0 %v3983
    %4244 = vmatmul.f32.gmra.mxu0 %v4084
    %v4245 = vpop.f32.mrf.mxu0
    %v4246 = vadd.f32 %v4217, %v4245
    %4247 = vmatmul.f32.gmra.mxu0 %v4095
    %v4248 = vpop.f32.mrf.mxu0
    %v4249 = vadd.f32 %v4220, %v4248
    %4250 = vmatmul.f32.gmra.mxu0 %v4105
    %v4251 = vpop.f32.mrf.mxu0
    %v4252 = vadd.f32 %v4223, %v4251
    %4253 = vmatmul.f32.gmra.mxu0 %v4104
    %v4254 = vpop.f32.mrf.mxu0
    %v4255 = vadd.f32 %v4226, %v4254
    %4256 = vdwg.mxu0
    %4257 = vmatpush.msra.mxu0 0.0
    %4258 = vmatpush.msra.mxu0 0.0
    %4259 = vmatpush.msra.mxu0 %v4133
    %4260 = vmatpush.msra.mxu0 %v4067
    %4261 = vmatpush.msra.mxu0 %v4064
    %4262 = vmatpush.msra.mxu0 %v4061
    %4263 = vmatpush.msra.mxu0 %v4058
    %4264 = vmatpush.msra.mxu0 %v4055
    %4265 = vmatpush.msra.mxu0 %v4052
    %4266 = vmatpush.msra.mxu0 %v4049
    %4267 = vmatpush.msra.mxu0 %v4046
    %4268 = vmatpush.msra.mxu0 %v4043
    %4269 = vmatpush.msra.mxu0 %v4040
    %4270 = vmatpush.msra.mxu0 %v4037
    %4271 = vmatpush.msra.mxu0 %v4034
    %4272 = vmatpush.msra.mxu0 %v4031
    %4273 = vmatmul.f32.gmra.mxu0 %v4124
    %v4274 = vpop.f32.mrf.mxu0
    %v4275 = vadd.f32 %v4246, %v4274
    %4276 = vmatmul.f32.gmra.mxu0 %v4126
    %v4277 = vpop.f32.mrf.mxu0
    %v4278 = vadd.f32 %v4249, %v4277
    %4279 = vmatmul.f32.gmra.mxu0 %v4128
    %v4280 = vpop.f32.mrf.mxu0
    %v4281 = vadd.f32 %v4252, %v4280
    %4282 = vmatmul.f32.gmra.mxu0 %v4130
    %v4283 = vpop.f32.mrf.mxu0
    %v4284 = vadd.f32 %v4255, %v4283
    %4285 = vdwg.mxu0
    %4286 = vmatpush.msra.mxu0 %v3885
    %4287 = vmatpush.msra.mxu0 %v3882
    %4288 = vmatpush.msra.mxu0 %v3879
    %4289 = vmatpush.msra.mxu0 %v3876
    %4290 = vmatpush.msra.mxu0 %v3873
    %4291 = vmatpush.msra.mxu0 %v3870
    %4292 = vmatpush.msra.mxu0 %v3867
    %4293 = vmatpush.msra.mxu0 %v3864
    %4294 = vmatpush.msra.mxu0 %v3861
    %4295 = vmatpush.msra.mxu0 %v3858
    %4296 = vmatpush.msra.mxu0 %v3855
    %4297 = vmatpush.msra.mxu0 %v3852
    %4298 = vmatpush.msra.mxu0 %v3849
    %4299 = vmatpush.msra.mxu0 %v3846
    %4300 = vmatpush.msra.mxu0 %v3843
    %4301 = vmatpush.msra.mxu0 %v3840
    %4302 = vmatmul.f32.gmra.mxu0 %v4075
    %v4303 = vpop.f32.mrf.mxu0
    %v4304 = vadd.f32 0.0, %v4303
    %4305 = vmatmul.f32.gmra.mxu0 %v4089
    %v4306 = vpop.f32.mrf.mxu0
    %v4307 = vadd.f32 0.0, %v4306
    %4308 = vmatmul.f32.gmra.mxu0 %v4099
    %v4309 = vpop.f32.mrf.mxu0
    %v4310 = vadd.f32 0.0, %v4309
    %4311 = vmatmul.f32.gmra.mxu0 %v4098
    %v4312 = vpop.f32.mrf.mxu0
    %v4313 = vadd.f32 0.0, %v4312
    %4314 = vdwg.mxu0
    %4315 = vmatpush.msra.mxu0 %v3933
    %4316 = vmatpush.msra.mxu0 %v3930
    %4317 = vmatpush.msra.mxu0 %v3927
    %4318 = vmatpush.msra.mxu0 %v3924
    %4319 = vmatpush.msra.mxu0 %v3921
    %4320 = vmatpush.msra.mxu0 %v3918
    %4321 = vmatpush.msra.mxu0 %v3915
    %4322 = vmatpush.msra.mxu0 %v3912
    %4323 = vmatpush.msra.mxu0 %v3909
    %4324 = vmatpush.msra.mxu0 %v3906
    %4325 = vmatpush.msra.mxu0 %v3903
    %4326 = vmatpush.msra.mxu0 %v3900
    %4327 = vmatpush.msra.mxu0 %v3897
    %4328 = vmatpush.msra.mxu0 %v3894
    %4329 = vmatpush.msra.mxu0 %v3891
    %4330 = vmatpush.msra.mxu0 %v3888
    %4331 = vmatmul.f32.gmra.mxu0 %v4078
    %v4332 = vpop.f32.mrf.mxu0
    %v4333 = vadd.f32 %v4304, %v4332
    %4334 = vmatmul.f32.gmra.mxu0 %v4091
    %v4335 = vpop.f32.mrf.mxu0
    %v4336 = vadd.f32 %v4307, %v4335
    %4337 = vmatmul.f32.gmra.mxu0 %v4101
    %v4338 = vpop.f32.mrf.mxu0
    %v4339 = vadd.f32 %v4310, %v4338
    %4340 = vmatmul.f32.gmra.mxu0 %v4100
    %v4341 = vpop.f32.mrf.mxu0
    %v4342 = vadd.f32 %v4313, %v4341
    %4343 = vdwg.mxu0
    %4344 = vmatpush.msra.mxu0 %v3981
    %4345 = vmatpush.msra.mxu0 %v3978
    %4346 = vmatpush.msra.mxu0 %v3975
    %4347 = vmatpush.msra.mxu0 %v3972
    %4348 = vmatpush.msra.mxu0 %v3969
    %4349 = vmatpush.msra.mxu0 %v3966
    %4350 = vmatpush.msra.mxu0 %v3963
    %4351 = vmatpush.msra.mxu0 %v3960
    %4352 = vmatpush.msra.mxu0 %v3957
    %4353 = vmatpush.msra.mxu0 %v3954
    %4354 = vmatpush.msra.mxu0 %v3951
    %4355 = vmatpush.msra.mxu0 %v3948
    %4356 = vmatpush.msra.mxu0 %v3945
    %4357 = vmatpush.msra.mxu0 %v3942
    %4358 = vmatpush.msra.mxu0 %v3939
    %4359 = vmatpush.msra.mxu0 %v3936
    %4360 = vmatmul.f32.gmra.mxu0 %v4081
    %v4361 = vpop.f32.mrf.mxu0
    %v4362 = vadd.f32 %v4333, %v4361
    %4363 = vmatmul.f32.gmra.mxu0 %v4093
    %v4364 = vpop.f32.mrf.mxu0
    %v4365 = vadd.f32 %v4336, %v4364
    %4366 = vmatmul.f32.gmra.mxu0 %v4103
    %v4367 = vpop.f32.mrf.mxu0
    %v4368 = vadd.f32 %v4339, %v4367
    %4369 = vmatmul.f32.gmra.mxu0 %v4102
    %v4370 = vpop.f32.mrf.mxu0
    %v4371 = vadd.f32 %v4342, %v4370
    %4372 = vdwg.mxu0
    %4373 = vmatpush.msra.mxu0 %v4029
    %4374 = vmatpush.msra.mxu0 %v4026
    %4375 = vmatpush.msra.mxu0 %v4023
    %4376 = vmatpush.msra.mxu0 %v4020
    %4377 = vmatpush.msra.mxu0 %v4017
    %4378 = vmatpush.msra.mxu0 %v4014
    %4379 = vmatpush.msra.mxu0 %v4011
    %4380 = vmatpush.msra.mxu0 %v4008
    %4381 = vmatpush.msra.mxu0 %v4005
    %4382 = vmatpush.msra.mxu0 %v4002
    %4383 = vmatpush.msra.mxu0 %v3999
    %4384 = vmatpush.msra.mxu0 %v3996
    %4385 = vmatpush.msra.mxu0 %v3993
    %4386 = vmatpush.msra.mxu0 %v3990
    %4387 = vmatpush.msra.mxu0 %v3987
    %4388 = vmatpush.msra.mxu0 %v3984
    %4389 = vmatmul.f32.gmra.mxu0 %v4084
    %v4390 = vpop.f32.mrf.mxu0
    %v4391 = vadd.f32 %v4362, %v4390
    %4392 = vmatmul.f32.gmra.mxu0 %v4095
    %v4393 = vpop.f32.mrf.mxu0
    %v4394 = vadd.f32 %v4365, %v4393
    %4395 = vmatmul.f32.gmra.mxu0 %v4105
    %v4396 = vpop.f32.mrf.mxu0
    %v4397 = vadd.f32 %v4368, %v4396
    %4398 = vmatmul.f32.gmra.mxu0 %v4104
    %v4399 = vpop.f32.mrf.mxu0
    %v4400 = vadd.f32 %v4371, %v4399
    %4401 = vdwg.mxu0
    %4402 = vmatpush.msra.mxu0 0.0
    %4403 = vmatpush.msra.mxu0 0.0
    %4404 = vmatpush.msra.mxu0 %v4136
    %4405 = vmatpush.msra.mxu0 %v4068
    %4406 = vmatpush.msra.mxu0 %v4065
    %4407 = vmatpush.msra.mxu0 %v4062
    %4408 = vmatpush.msra.mxu0 %v4059
    %4409 = vmatpush.msra.mxu0 %v4056
    %4410 = vmatpush.msra.mxu0 %v4053
    %4411 = vmatpush.msra.mxu0 %v4050
    %4412 = vmatpush.msra.mxu0 %v4047
    %4413 = vmatpush.msra.mxu0 %v4044
    %4414 = vmatpush.msra.mxu0 %v4041
    %4415 = vmatpush.msra.mxu0 %v4038
    %4416 = vmatpush.msra.mxu0 %v4035
    %4417 = vmatpush.msra.mxu0 %v4032
    %4418 = vmatmul.f32.gmra.mxu0 %v4124
    %v4419 = vpop.f32.mrf.mxu0
    %v4420 = vadd.f32 %v4391, %v4419
    %4421 = vmatmul.f32.gmra.mxu0 %v4126
    %v4422 = vpop.f32.mrf.mxu0
    %v4423 = vadd.f32 %v4394, %v4422
    %4424 = vmatmul.f32.gmra.mxu0 %v4128
    %v4425 = vpop.f32.mrf.mxu0
    %v4426 = vadd.f32 %v4397, %v4425
    %4427 = vmatmul.f32.gmra.mxu0 %v4130
    %v4428 = vpop.f32.mrf.mxu0
    %v4429 = vadd.f32 %v4400, %v4428
    %4430 = vdwg.mxu0
    %4431 = vmatpush.msra.mxu0 %v3886
    %4432 = vmatpush.msra.mxu0 %v3883
    %4433 = vmatpush.msra.mxu0 %v3880
    %4434 = vmatpush.msra.mxu0 %v3877
    %4435 = vmatpush.msra.mxu0 %v3874
    %4436 = vmatpush.msra.mxu0 %v3871
    %4437 = vmatpush.msra.mxu0 %v3868
    %4438 = vmatpush.msra.mxu0 %v3865
    %4439 = vmatpush.msra.mxu0 %v3862
    %4440 = vmatpush.msra.mxu0 %v3859
    %4441 = vmatpush.msra.mxu0 %v3856
    %4442 = vmatpush.msra.mxu0 %v3853
    %4443 = vmatpush.msra.mxu0 %v3850
    %4444 = vmatpush.msra.mxu0 %v3847
    %4445 = vmatpush.msra.mxu0 %v3844
    %4446 = vmatpush.msra.mxu0 %v3841
    %4447 = vmatmul.f32.gmra.mxu0 %v4075
    %v4448 = vpop.f32.mrf.mxu0
    %v4449 = vadd.f32 0.0, %v4448
    %4450 = vmatmul.f32.gmra.mxu0 %v4089
    %v4451 = vpop.f32.mrf.mxu0
    %v4452 = vadd.f32 0.0, %v4451
    %4453 = vmatmul.f32.gmra.mxu0 %v4099
    %v4454 = vpop.f32.mrf.mxu0
    %v4455 = vadd.f32 0.0, %v4454
    %4456 = vmatmul.f32.gmra.mxu0 %v4098
    %v4457 = vpop.f32.mrf.mxu0
    %v4458 = vadd.f32 0.0, %v4457
    %4459 = vdwg.mxu0
    %4460 = vmatpush.msra.mxu0 %v3934
    %4461 = vmatpush.msra.mxu0 %v3931
    %4462 = vmatpush.msra.mxu0 %v3928
    %4463 = vmatpush.msra.mxu0 %v3925
    %4464 = vmatpush.msra.mxu0 %v3922
    %4465 = vmatpush.msra.mxu0 %v3919
    %4466 = vmatpush.msra.mxu0 %v3916
    %4467 = vmatpush.msra.mxu0 %v3913
    %4468 = vmatpush.msra.mxu0 %v3910
    %4469 = vmatpush.msra.mxu0 %v3907
    %4470 = vmatpush.msra.mxu0 %v3904
    %4471 = vmatpush.msra.mxu0 %v3901
    %4472 = vmatpush.msra.mxu0 %v3898
    %4473 = vmatpush.msra.mxu0 %v3895
    %4474 = vmatpush.msra.mxu0 %v3892
    %4475 = vmatpush.msra.mxu0 %v3889
    %4476 = vmatmul.f32.gmra.mxu0 %v4078
    %v4477 = vpop.f32.mrf.mxu0
    %v4478 = vadd.f32 %v4449, %v4477
    %4479 = vmatmul.f32.gmra.mxu0 %v4091
    %v4480 = vpop.f32.mrf.mxu0
    %v4481 = vadd.f32 %v4452, %v4480
    %4482 = vmatmul.f32.gmra.mxu0 %v4101
    %v4483 = vpop.f32.mrf.mxu0
    %v4484 = vadd.f32 %v4455, %v4483
    %4485 = vmatmul.f32.gmra.mxu0 %v4100
    %v4486 = vpop.f32.mrf.mxu0
    %v4487 = vadd.f32 %v4458, %v4486
    %4488 = vdwg.mxu0
    %4489 = vmatpush.msra.mxu0 %v3982
    %4490 = vmatpush.msra.mxu0 %v3979
    %4491 = vmatpush.msra.mxu0 %v3976
    %4492 = vmatpush.msra.mxu0 %v3973
    %4493 = vmatpush.msra.mxu0 %v3970
    %4494 = vmatpush.msra.mxu0 %v3967
    %4495 = vmatpush.msra.mxu0 %v3964
    %4496 = vmatpush.msra.mxu0 %v3961
    %4497 = vmatpush.msra.mxu0 %v3958
    %4498 = vmatpush.msra.mxu0 %v3955
    %4499 = vmatpush.msra.mxu0 %v3952
    %4500 = vmatpush.msra.mxu0 %v3949
    %4501 = vmatpush.msra.mxu0 %v3946
    %4502 = vmatpush.msra.mxu0 %v3943
    %4503 = vmatpush.msra.mxu0 %v3940
    %4504 = vmatpush.msra.mxu0 %v3937
    %4505 = vmatmul.f32.gmra.mxu0 %v4081
    %v4506 = vpop.f32.mrf.mxu0
    %v4507 = vadd.f32 %v4478, %v4506
    %4508 = vmatmul.f32.gmra.mxu0 %v4093
    %v4509 = vpop.f32.mrf.mxu0
    %v4510 = vadd.f32 %v4481, %v4509
    %4511 = vmatmul.f32.gmra.mxu0 %v4103
    %v4512 = vpop.f32.mrf.mxu0
    %v4513 = vadd.f32 %v4484, %v4512
    %4514 = vmatmul.f32.gmra.mxu0 %v4102
    %v4515 = vpop.f32.mrf.mxu0
    %v4516 = vadd.f32 %v4487, %v4515
    %4517 = vdwg.mxu0
    %4518 = vmatpush.msra.mxu0 %v4030
    %4519 = vmatpush.msra.mxu0 %v4027
    %4520 = vmatpush.msra.mxu0 %v4024
    %4521 = vmatpush.msra.mxu0 %v4021
    %4522 = vmatpush.msra.mxu0 %v4018
    %4523 = vmatpush.msra.mxu0 %v4015
    %4524 = vmatpush.msra.mxu0 %v4012
    %4525 = vmatpush.msra.mxu0 %v4009
    %4526 = vmatpush.msra.mxu0 %v4006
    %4527 = vmatpush.msra.mxu0 %v4003
    %4528 = vmatpush.msra.mxu0 %v4000
    %4529 = vmatpush.msra.mxu0 %v3997
    %4530 = vmatpush.msra.mxu0 %v3994
    %4531 = vmatpush.msra.mxu0 %v3991
    %4532 = vmatpush.msra.mxu0 %v3988
    %4533 = vmatpush.msra.mxu0 %v3985
    %4534 = vmatmul.f32.gmra.mxu0 %v4084
    %v4535 = vpop.f32.mrf.mxu0
    %v4536 = vadd.f32 %v4507, %v4535
    %4537 = vmatmul.f32.gmra.mxu0 %v4095
    %v4538 = vpop.f32.mrf.mxu0
    %v4539 = vadd.f32 %v4510, %v4538
    %4540 = vmatmul.f32.gmra.mxu0 %v4105
    %v4541 = vpop.f32.mrf.mxu0
    %v4542 = vadd.f32 %v4513, %v4541
    %4543 = vmatmul.f32.gmra.mxu0 %v4104
    %v4544 = vpop.f32.mrf.mxu0
    %v4545 = vadd.f32 %v4516, %v4544
    %4546 = vdwg.mxu0
    %4547 = vmatpush.msra.mxu0 0.0
    %4548 = vmatpush.msra.mxu0 0.0
    %4549 = vmatpush.msra.mxu0 %v4139
    %4550 = vmatpush.msra.mxu0 %v4069
    %4551 = vmatpush.msra.mxu0 %v4066
    %4552 = vmatpush.msra.mxu0 %v4063
    %4553 = vmatpush.msra.mxu0 %v4060
    %4554 = vmatpush.msra.mxu0 %v4057
    %4555 = vmatpush.msra.mxu0 %v4054
    %4556 = vmatpush.msra.mxu0 %v4051
    %4557 = vmatpush.msra.mxu0 %v4048
    %4558 = vmatpush.msra.mxu0 %v4045
    %4559 = vmatpush.msra.mxu0 %v4042
    %4560 = vmatpush.msra.mxu0 %v4039
    %4561 = vmatpush.msra.mxu0 %v4036
    %4562 = vmatpush.msra.mxu0 %v4033
    %4563 = vmatmul.f32.gmra.mxu0 %v4124
    %v4564 = vpop.f32.mrf.mxu0
    %v4565 = vadd.f32 %v4536, %v4564
    %4566 = vmatmul.f32.gmra.mxu0 %v4126
    %v4567 = vpop.f32.mrf.mxu0
    %v4568 = vadd.f32 %v4539, %v4567
    %4569 = vmatmul.f32.gmra.mxu0 %v4128
    %v4570 = vpop.f32.mrf.mxu0
    %v4571 = vadd.f32 %v4542, %v4570
    %4572 = vmatmul.f32.gmra.mxu0 %v4130
    %v4573 = vpop.f32.mrf.mxu0
    %v4574 = vadd.f32 %v4545, %v4573
    %4575 = vdwg.mxu0
    %v4576 = vadd.f32 %v3537, %v4275
    %v4577 = vadd.f32 %v3682, %v4420
    %v4578 = vadd.f32 %v3827, %v4565
    %v4579 = vadd.f32 %v3540, %v4278
    %v4580 = vadd.f32 %v3685, %v4423
    %v4581 = vadd.f32 %v3830, %v4568
    %v4582 = vadd.f32 %v3543, %v4281
    %v4583 = vadd.f32 %v3688, %v4426
    %v4584 = vadd.f32 %v3833, %v4571
    %v4585 = vadd.f32 %v3546, %v4284
    %v4586 = vadd.f32 %v3691, %v4429
    %v4587 = vadd.f32 %v3836, %v4574
    %v4588 = vld [vmem:[%s5] sm:$0x7]
    %v4590 = vperm.slane %v4588, 0
    %v4591 = vperm.slane %v4588, 1
    %v4592 = vperm.slane %v4588, 2
    %v4596 = vadd.f32 %v4576, %v4590
    %v4597 = vadd.f32 %v4577, %v4591
    %v4598 = vadd.f32 %v4578, %v4592
    %v4599 = vadd.f32 %v4579, %v4590
    %v4600 = vadd.f32 %v4580, %v4591
    %v4601 = vadd.f32 %v4581, %v4592
    %v4602 = vadd.f32 %v4582, %v4590
    %v4603 = vadd.f32 %v4583, %v4591
    %v4604 = vadd.f32 %v4584, %v4592
    %v4605 = vadd.f32 %v4585, %v4590
    %v4606 = vadd.f32 %v4586, %v4591
    %v4607 = vadd.f32 %v4587, %v4592
    %v4608 = vmax.f32 %v4596, 0.0
    %v4609 = vmax.f32 %v4597, 0.0
    %v4610 = vmax.f32 %v4598, 0.0
    %v4611 = vmax.f32 %v4599, 0.0
    %v4612 = vmax.f32 %v4600, 0.0
    %v4613 = vmax.f32 %v4601, 0.0
    %v4614 = vmax.f32 %v4602, 0.0
    %v4615 = vmax.f32 %v4603, 0.0
    %v4616 = vmax.f32 %v4604, 0.0
    %v4617 = vmax.f32 %v4605, 0.0
    %v4618 = vmax.f32 %v4606, 0.0
    %v4619 = vmax.f32 %v4607, 0.0
    %v4620 = vld [vmem:[%s6] sm:$0xff]
    %v4621 = vld [vmem:[%s6 + $0x8] sm:$0x3f]
    %vm4622 = vcmask 236544
    %v4624 = vsel %vm4622, %v4620, 0
    %v4627 = vsel %vm4622, %v4621, 0
    %vm4629 = vcmask 1044480
    %v4631 = vsel %vm4629, %v4617, 0
    %v4634 = vsel %vm4629, %v4618, 0
    %v4637 = vsel %vm4629, %v4619, 0
    %4639 = vmatpush.msra.mxu0 0.0
    %4640 = vmatpush.msra.mxu0 0.0
    %4641 = vmatpush.msra.mxu0 0.0
    %4642 = vmatpush.msra.mxu0 0.0
    %4643 = vmatpush.msra.mxu0 0.0
    %4644 = vmatpush.msra.mxu0 0.0
    %4645 = vmatpush.msra.mxu0 0.0
    %4646 = vmatpush.msra.mxu0 0.0
    %4647 = vmatpush.msra.mxu0 0.0
    %4648 = vmatpush.msra.mxu0 0.0
    %4649 = vmatpush.msra.mxu0 0.0
    %4650 = vmatpush.msra.mxu0 0.0
    %4651 = vmatpush.msra.mxu0 %v4631
    %4652 = vmatpush.msra.mxu0 %v4614
    %4653 = vmatpush.msra.mxu0 %v4611
    %4654 = vmatpush.msra.mxu0 %v4608
    %4655 = vmatmul.f32.gmra.mxu0 %v4624
    %v4656 = vpop.f32.mrf.mxu0
    %v4657 = vadd.f32 0.0, %v4656
    %4658 = vmatmul.f32.gmra.mxu0 %v4627
    %v4659 = vpop.f32.mrf.mxu0
    %v4660 = vadd.f32 0.0, %v4659
    %4661 = vdwg.mxu0
    %4662 = vmatpush.msra.mxu0 0.0
    %4663 = vmatpush.msra.mxu0 0.0
    %4664 = vmatpush.msra.mxu0 0.0
    %4665 = vmatpush.msra.mxu0 0.0
    %4666 = vmatpush.msra.mxu0 0.0
    %4667 = vmatpush.msra.mxu0 0.0
    %4668 = vmatpush.msra.mxu0 0.0
    %4669 = vmatpush.msra.mxu0 0.0
    %4670 = vmatpush.msra.mxu0 0.0
    %4671 = vmatpush.msra.mxu0 0.0
    %4672 = vmatpush.msra.mxu0 0.0
    %4673 = vmatpush.msra.mxu0 0.0
    %4674 = vmatpush.msra.mxu0 %v4634
    %4675 = vmatpush.msra.mxu0 %v4615
    %4676 = vmatpush.msra.mxu0 %v4612
    %4677 = vmatpush.msra.mxu0 %v4609
    %4678 = vmatmul.f32.gmra.mxu0 %v4624
    %v4679 = vpop.f32.mrf.mxu0
    %v4680 = vadd.f32 0.0, %v4679
    %4681 = vmatmul.f32.gmra.mxu0 %v4627
    %v4682 = vpop.f32.mrf.mxu0
    %v4683 = vadd.f32 0.0, %v4682
    %4684 = vdwg.mxu0
    %4685 = vmatpush.msra.mxu0 0.0
    %4686 = vmatpush.msra.mxu0 0.0
    %4687 = vmatpush.msra.mxu0 0.0
    %4688 = vmatpush.msra.mxu0 0.0
    %4689 = vmatpush.msra.mxu0 0.0
    %4690 = vmatpush.msra.mxu0 0.0
    %4691 = vmatpush.msra.mxu0 0.0
    %4692 = vmatpush.msra.mxu0 0.0
    %4693 = vmatpush.msra.mxu0 0.0
    %4694 = vmatpush.msra.mxu0 0.0
    %4695 = vmatpush.msra.mxu0 0.0
    %4696 = vmatpush.msra.mxu0 0.0
    %4697 = vmatpush.msra.mxu0 %v4637
    %4698 = vmatpush.msra.mxu0 %v4616
    %4699 = vmatpush.msra.mxu0 %v4613
    %4700 = vmatpush.msra.mxu0 %v4610
    %4701 = vmatmul.f32.gmra.mxu0 %v4624
    %v4702 = vpop.f32.mrf.mxu0
    %v4703 = vadd.f32 0.0, %v4702
    %4704 = vmatmul.f32.gmra.mxu0 %v4627
    %v4705 = vpop.f32.mrf.mxu0
    %v4706 = vadd.f32 0.0, %v4705
    %4707 = vdwg.mxu0
    %s4708 = scalar_lea.vmem %s6, 16
    %v4709 = vld [vmem:[%s4708] sm:$0xff]
    %v4710 = vld [vmem:[%s4708 + $0x8] sm:$0x3f]
    %v4712 = vsel %vm4622, %v4709, 0
    %v4715 = vsel %vm4622, %v4710, 0
    %4717 = vmatpush.msra.mxu0 0.0
    %4718 = vmatpush.msra.mxu0 0.0
    %4719 = vmatpush.msra.mxu0 0.0
    %4720 = vmatpush.msra.mxu0 0.0
    %4721 = vmatpush.msra.mxu0 0.0
    %4722 = vmatpush.msra.mxu0 0.0
    %4723 = vmatpush.msra.mxu0 0.0
    %4724 = vmatpush.msra.mxu0 0.0
    %4725 = vmatpush.msra.mxu0 0.0
    %4726 = vmatpush.msra.mxu0 0.0
    %4727 = vmatpush.msra.mxu0 0.0
    %4728 = vmatpush.msra.mxu0 0.0
    %4729 = vmatpush.msra.mxu0 %v4631
    %4730 = vmatpush.msra.mxu0 %v4614
    %4731 = vmatpush.msra.mxu0 %v4611
    %4732 = vmatpush.msra.mxu0 %v4608
    %4733 = vmatmul.f32.gmra.mxu0 %v4712
    %v4734 = vpop.f32.mrf.mxu0
    %v4735 = vadd.f32 0.0, %v4734
    %4736 = vmatmul.f32.gmra.mxu0 %v4715
    %v4737 = vpop.f32.mrf.mxu0
    %v4738 = vadd.f32 0.0, %v4737
    %4739 = vdwg.mxu0
    %4740 = vmatpush.msra.mxu0 0.0
    %4741 = vmatpush.msra.mxu0 0.0
    %4742 = vmatpush.msra.mxu0 0.0
    %4743 = vmatpush.msra.mxu0 0.0
    %4744 = vmatpush.msra.mxu0 0.0
    %4745 = vmatpush.msra.mxu0 0.0
    %4746 = vmatpush.msra.mxu0 0.0
    %4747 = vmatpush.msra.mxu0 0.0
    %4748 = vmatpush.msra.mxu0 0.0
    %4749 = vmatpush.msra.mxu0 0.0
    %4750 = vmatpush.msra.mxu0 0.0
    %4751 = vmatpush.msra.mxu0 0.0
    %4752 = vmatpush.msra.mxu0 %v4634
    %4753 = vmatpush.msra.mxu0 %v4615
    %4754 = vmatpush.msra.mxu0 %v4612
    %4755 = vmatpush.msra.mxu0 %v4609
    %4756 = vmatmul.f32.gmra.mxu0 %v4712
    %v4757 = vpop.f32.mrf.mxu0
    %v4758 = vadd.f32 0.0, %v4757
    %4759 = vmatmul.f32.gmra.mxu0 %v4715
    %v4760 = vpop.f32.mrf.mxu0
    %v4761 = vadd.f32 0.0, %v4760
    %4762 = vdwg.mxu0
    %4763 = vmatpush.msra.mxu0 0.0
    %4764 = vmatpush.msra.mxu0 0.0
    %4765 = vmatpush.msra.mxu0 0.0
    %4766 = vmatpush.msra.mxu0 0.0
    %4767 = vmatpush.msra.mxu0 0.0
    %4768 = vmatpush.msra.mxu0 0.0
    %4769 = vmatpush.msra.mxu0 0.0
    %4770 = vmatpush.msra.mxu0 0.0
    %4771 = vmatpush.msra.mxu0 0.0
    %4772 = vmatpush.msra.mxu0 0.0
    %4773 = vmatpush.msra.mxu0 0.0
    %4774 = vmatpush.msra.mxu0 0.0
    %4775 = vmatpush.msra.mxu0 %v4637
    %4776 = vmatpush.msra.mxu0 %v4616
    %4777 = vmatpush.msra.mxu0 %v4613
    %4778 = vmatpush.msra.mxu0 %v4610
    %4779 = vmatmul.f32.gmra.mxu0 %v4712
    %v4780 = vpop.f32.mrf.mxu0
    %v4781 = vadd.f32 0.0, %v4780
    %4782 = vmatmul.f32.gmra.mxu0 %v4715
    %v4783 = vpop.f32.mrf.mxu0
    %v4784 = vadd.f32 0.0, %v4783
    %4785 = vdwg.mxu0
    %v4786 = vmax.f32 %v4657, %v4735
    %v4787 = vmax.f32 %v4680, %v4758
    %v4788 = vmax.f32 %v4703, %v4781
    %v4789 = vmax.f32 %v4660, %v4738
    %v4790 = vmax.f32 %v4683, %v4761
    %v4791 = vmax.f32 %v4706, %v4784
    %4798 = vrot.lane.b32.xlu0 %v4786, 127
    %v4799 = vpop.permute.xlu0 %4798
    %4800 = vrot.lane.b32.xlu0 %v4787, 127
    %v4801 = vpop.permute.xlu0 %4800
    %4802 = vrot.lane.b32.xlu0 %v4788, 127
    %v4803 = vpop.permute.xlu0 %4802
    %4804 = vrot.lane.b32.xlu0 %v4789, 127
    %v4805 = vpop.permute.xlu0 %4804
    %4806 = vrot.lane.b32.xlu0 %v4790, 127
    %v4807 = vpop.permute.xlu0 %4806
    %4808 = vrot.lane.b32.xlu0 %v4791, 127
    %v4809 = vpop.permute.xlu0 %4808
    %v4810 = vsel %vm2335, %v4799, %v4801
    %v4811 = vsel %vm2335, %v4801, %v4803
    %v4812 = vsel %vm2335, %v4805, %v4807
    %v4813 = vsel %vm2335, %v4807, %v4809
    %v4820 = vmax.f32 %v4786, %v4810
    %v4821 = vmax.f32 %v4787, %v4811
    %v4822 = vmax.f32 %v4788, %v4803
    %v4823 = vmax.f32 %v4789, %v4812
    %v4824 = vmax.f32 %v4790, %v4813
    %v4825 = vmax.f32 %v4791, %v4809
    %v4826 = vld [vmem:[%s8] sm:$0x1]
    %v4827 = vld [vmem:[%s7] sm:$0xff]
    %v4828 = vld [vmem:[%s7 + $0x8] sm:$0xff]
    %v4829 = vld [vmem:[%s7 + $0x10] sm:$0xff]
    %v4830 = vld [vmem:[%s7 + $0x18] sm:$0xff]
    %v4831 = vld [vmem:[%s7 + $0x20] sm:$0xff]
    %v4832 = vld [vmem:[%s7 + $0x28] sm:$0xff]
    %v4833 = vld [vmem:[%s7 + $0x30] sm:$0xff]
    %v4834 = vld [vmem:[%s7 + $0x38] sm:$0xff]
    %v4835 = vld [vmem:[%s7 + $0x40] sm:$0xff]
    %v4836 = vld [vmem:[%s7 + $0x48] sm:$0xff]
    %v4837 = vld [vmem:[%s7 + $0x50] sm:$0xff]
    %v4838 = vld [vmem:[%s7 + $0x58] sm:$0xff]
    %v4839 = vld [vmem:[%s7 + $0x60] sm:$0xff]
    %v4840 = vld [vmem:[%s7 + $0x68] sm:$0xff]
    %v4841 = vld [vmem:[%s7 + $0x70] sm:$0xff]
    %v4842 = vld [vmem:[%s7 + $0x78] sm:$0xff]
    %v4843 = vld [vmem:[%s7 + $0x80] sm:$0xff]
    %v4844 = vld [vmem:[%s7 + $0x88] sm:$0xff]
    %v4845 = vld [vmem:[%s7 + $0x90] sm:$0xff]
    %v4846 = vld [vmem:[%s7 + $0x98] sm:$0xff]
    %v4847 = vld [vmem:[%s7 + $0xa0] sm:$0xff]
    %v4848 = vld [vmem:[%s7 + $0xa8] sm:$0xff]
    %v4849 = vld [vmem:[%s7 + $0xb0] sm:$0xff]
    %v4850 = vld [vmem:[%s7 + $0xb8] sm:$0xff]
    %v4851 = vld [vmem:[%s7 + $0xc0] sm:$0xff]
    %v4852 = vld [vmem:[%s7 + $0xc8] sm:$0xff]
    %v4853 = vld [vmem:[%s7 + $0xd0] sm:$0xff]
    %v4854 = vld [vmem:[%s7 + $0xd8] sm:$0xff]
    %v4855 = vld [vmem:[%s7 + $0xe0] sm:$0xff]
    %v4856 = vld [vmem:[%s7 + $0xe8] sm:$0xff]
    %v4857 = vld [vmem:[%s7 + $0xf0] sm:$0xff]
    %v4858 = vld [vmem:[%s7 + $0xf8] sm:$0xff]
    %v4859 = vld [vmem:[%s7 + $0x100] sm:$0xff]
    %v4860 = vld [vmem:[%s7 + $0x108] sm:$0xff]
    %v4861 = vld [vmem:[%s7 + $0x110] sm:$0xff]
    %v4862 = vld [vmem:[%s7 + $0x118] sm:$0xff]
    %v4863 = vld [vmem:[%s7 + $0x120] sm:$0x1]
    %vm4864 = vcmask 269312
    %v4866 = vsel %vm4864, %v4822, 0
    %vm4868 = vcmask 1040384
    %v4870 = vsel %vm4868, %v4863, 0
    %4872 = vmatpush.msra.mxu0 %v4842
    %4873 = vmatpush.msra.mxu0 %v4841
    %4874 = vmatpush.msra.mxu0 %v4840
    %4875 = vmatpush.msra.mxu0 %v4839
    %4876 = vmatpush.msra.mxu0 %v4838
    %4877 = vmatpush.msra.mxu0 %v4837
    %4878 = vmatpush.msra.mxu0 %v4836
    %4879 = vmatpush.msra.mxu0 %v4835
    %4880 = vmatpush.msra.mxu0 %v4834
    %4881 = vmatpush.msra.mxu0 %v4833
    %4882 = vmatpush.msra.mxu0 %v4832
    %4883 = vmatpush.msra.mxu0 %v4831
    %4884 = vmatpush.msra.mxu0 %v4830
    %4885 = vmatpush.msra.mxu0 %v4829
    %4886 = vmatpush.msra.mxu0 %v4828
    %4887 = vmatpush.msra.mxu0 %v4827
    %4888 = vmatmul.f32.gmra.mxu0 %v4820
    %v4889 = vpop.f32.mrf.mxu0
    %v4890 = vadd.f32 0.0, %v4889
    %4891 = vdwg.mxu0
    %4892 = vmatpush.msra.mxu0 %v4858
    %4893 = vmatpush.msra.mxu0 %v4857
    %4894 = vmatpush.msra.mxu0 %v4856
    %4895 = vmatpush.msra.mxu0 %v4855
    %4896 = vmatpush.msra.mxu0 %v4854
    %4897 = vmatpush.msra.mxu0 %v4853
    %4898 = vmatpush.msra.mxu0 %v4852
    %4899 = vmatpush.msra.mxu0 %v4851
    %4900 = vmatpush.msra.mxu0 %v4850
    %4901 = vmatpush.msra.mxu0 %v4849
    %4902 = vmatpush.msra.mxu0 %v4848
    %4903 = vmatpush.msra.mxu0 %v4847
    %4904 = vmatpush.msra.mxu0 %v4846
    %4905 = vmatpush.msra.mxu0 %v4845
    %4906 = vmatpush.msra.mxu0 %v4844
    %4907 = vmatpush.msra.mxu0 %v4843
    %4908 = vmatmul.f32.gmra.mxu0 %v4821
    %v4909 = vpop.f32.mrf.mxu0
    %v4910 = vadd.f32 %v4890, %v4909
    %4911 = vdwg.mxu0
    %4912 = vmatpush.msra.mxu0 0.0
    %4913 = vmatpush.msra.mxu0 0.0
    %4914 = vmatpush.msra.mxu0 0.0
    %4915 = vmatpush.msra.mxu0 0.0
    %4916 = vmatpush.msra.mxu0 0.0
    %4917 = vmatpush.msra.mxu0 0.0
    %4918 = vmatpush.msra.mxu0 0.0
    %4919 = vmatpush.msra.mxu0 0.0
    %4920 = vmatpush.msra.mxu0 0.0
    %4921 = vmatpush.msra.mxu0 0.0
    %4922 = vmatpush.msra.mxu0 0.0
    %4923 = vmatpush.msra.mxu0 %v4870
    %4924 = vmatpush.msra.mxu0 %v4862
    %4925 = vmatpush.msra.mxu0 %v4861
    %4926 = vmatpush.msra.mxu0 %v4860
    %4927 = vmatpush.msra.mxu0 %v4859
    %4928 = vmatmul.f32.gmra.mxu0 %v4866
    %v4929 = vpop.f32.mrf.mxu0
    %v4930 = vadd.f32 %v4910, %v4929
    %4931 = vdwg.mxu0
    %v4932 = vadd.f32 %v4826, %v4930
    %s4933 = scalar_lea.vmem %s7, 296
    %v4934 = vld [vmem:[%s4933] sm:$0xff]
    %v4935 = vld [vmem:[%s4933 + $0x8] sm:$0xff]
    %v4936 = vld [vmem:[%s4933 + $0x10] sm:$0xff]
    %v4937 = vld [vmem:[%s4933 + $0x18] sm:$0xff]
    %v4938 = vld [vmem:[%s4933 + $0x20] sm:$0xff]
    %v4939 = vld [vmem:[%s4933 + $0x28] sm:$0xff]
    %v4940 = vld [vmem:[%s4933 + $0x30] sm:$0xff]
    %v4941 = vld [vmem:[%s4933 + $0x38] sm:$0xff]
    %v4942 = vld [vmem:[%s4933 + $0x40] sm:$0xff]
    %v4943 = vld [vmem:[%s4933 + $0x48] sm:$0xff]
    %v4944 = vld [vmem:[%s4933 + $0x50] sm:$0xff]
    %v4945 = vld [vmem:[%s4933 + $0x58] sm:$0xff]
    %v4946 = vld [vmem:[%s4933 + $0x60] sm:$0xff]
    %v4947 = vld [vmem:[%s4933 + $0x68] sm:$0xff]
    %v4948 = vld [vmem:[%s4933 + $0x70] sm:$0xff]
    %v4949 = vld [vmem:[%s4933 + $0x78] sm:$0xff]
    %v4950 = vld [vmem:[%s4933 + $0x80] sm:$0xff]
    %v4951 = vld [vmem:[%s4933 + $0x88] sm:$0xff]
    %v4952 = vld [vmem:[%s4933 + $0x90] sm:$0xff]
    %v4953 = vld [vmem:[%s4933 + $0x98] sm:$0xff]
    %v4954 = vld [vmem:[%s4933 + $0xa0] sm:$0xff]
    %v4955 = vld [vmem:[%s4933 + $0xa8] sm:$0xff]
    %v4956 = vld [vmem:[%s4933 + $0xb0] sm:$0xff]
    %v4957 = vld [vmem:[%s4933 + $0xb8] sm:$0xff]
    %v4958 = vld [vmem:[%s4933 + $0xc0] sm:$0xff]
    %v4959 = vld [vmem:[%s4933 + $0xc8] sm:$0xff]
    %v4960 = vld [vmem:[%s4933 + $0xd0] sm:$0xff]
    %v4961 = vld [vmem:[%s4933 + $0xd8] sm:$0xff]
    %v4962 = vld [vmem:[%s4933 + $0xe0] sm:$0xff]
    %v4963 = vld [vmem:[%s4933 + $0xe8] sm:$0xff]
    %v4964 = vld [vmem:[%s4933 + $0xf0] sm:$0xff]
    %v4965 = vld [vmem:[%s4933 + $0xf8] sm:$0xff]
    %v4966 = vld [vmem:[%s4933 + $0x100] sm:$0xff]
    %v4967 = vld [vmem:[%s4933 + $0x108] sm:$0xff]
    %v4968 = vld [vmem:[%s4933 + $0x110] sm:$0xff]
    %v4969 = vld [vmem:[%s4933 + $0x118] sm:$0xff]
    %v4970 = vld [vmem:[%s4933 + $0x120] sm:$0x1]
    %v4973 = vrot.slane %v4820, 1
    %v4974 = vrot.slane %v4821, 1
    %v4975 = vrot.slane %v4822, 1
    %v4978 = vsel %vm4864, %v4975, 0
    %v4981 = vsel %vm4868, %v4970, 0
    %4983 = vmatpush.msra.mxu0 %v4949
    %4984 = vmatpush.msra.mxu0 %v4948
    %4985 = vmatpush.msra.mxu0 %v4947
    %4986 = vmatpush.msra.mxu0 %v4946
    %4987 = vmatpush.msra.mxu0 %v4945
    %4988 = vmatpush.msra.mxu0 %v4944
    %4989 = vmatpush.msra.mxu0 %v4943
    %4990 = vmatpush.msra.mxu0 %v4942
    %4991 = vmatpush.msra.mxu0 %v4941
    %4992 = vmatpush.msra.mxu0 %v4940
    %4993 = vmatpush.msra.mxu0 %v4939
    %4994 = vmatpush.msra.mxu0 %v4938
    %4995 = vmatpush.msra.mxu0 %v4937
    %4996 = vmatpush.msra.mxu0 %v4936
    %4997 = vmatpush.msra.mxu0 %v4935
    %4998 = vmatpush.msra.mxu0 %v4934
    %4999 = vmatmul.f32.gmra.mxu0 %v4973
    %v5000 = vpop.f32.mrf.mxu0
    %v5001 = vadd.f32 0.0, %v5000
    %5002 = vdwg.mxu0
    %5003 = vmatpush.msra.mxu0 %v4965
    %5004 = vmatpush.msra.mxu0 %v4964
    %5005 = vmatpush.msra.mxu0 %v4963
    %5006 = vmatpush.msra.mxu0 %v4962
    %5007 = vmatpush.msra.mxu0 %v4961
    %5008 = vmatpush.msra.mxu0 %v4960
    %5009 = vmatpush.msra.mxu0 %v4959
    %5010 = vmatpush.msra.mxu0 %v4958
    %5011 = vmatpush.msra.mxu0 %v4957
    %5012 = vmatpush.msra.mxu0 %v4956
    %5013 = vmatpush.msra.mxu0 %v4955
    %5014 = vmatpush.msra.mxu0 %v4954
    %5015 = vmatpush.msra.mxu0 %v4953
    %5016 = vmatpush.msra.mxu0 %v4952
    %5017 = vmatpush.msra.mxu0 %v4951
    %5018 = vmatpush.msra.mxu0 %v4950
    %5019 = vmatmul.f32.gmra.mxu0 %v4974
    %v5020 = vpop.f32.mrf.mxu0
    %v5021 = vadd.f32 %v5001, %v5020
    %5022 = vdwg.mxu0
    %5023 = vmatpush.msra.mxu0 0.0
    %5024 = vmatpush.msra.mxu0 0.0
    %5025 = vmatpush.msra.mxu0 0.0
    %5026 = vmatpush.msra.mxu0 0.0
    %5027 = vmatpush.msra.mxu0 0.0
    %5028 = vmatpush.msra.mxu0 0.0
    %5029 = vmatpush.msra.mxu0 0.0
    %5030 = vmatpush.msra.mxu0 0.0
    %5031 = vmatpush.msra.mxu0 0.0
    %5032 = vmatpush.msra.mxu0 0.0
    %5033 = vmatpush.msra.mxu0 0.0
    %5034 = vmatpush.msra.mxu0 %v4981
    %5035 = vmatpush.msra.mxu0 %v4969
    %5036 = vmatpush.msra.mxu0 %v4968
    %5037 = vmatpush.msra.mxu0 %v4967
    %5038 = vmatpush.msra.mxu0 %v4966
    %5039 = vmatmul.f32.gmra.mxu0 %v4978
    %v5040 = vpop.f32.mrf.mxu0
    %v5041 = vadd.f32 %v5021, %v5040
    %5042 = vdwg.mxu0
    %v5043 = vadd.f32 %v4932, %v5041
    %s5044 = scalar_lea.vmem %s7, 592
    %v5045 = vld [vmem:[%s5044] sm:$0xff]
    %v5046 = vld [vmem:[%s5044 + $0x8] sm:$0xff]
    %v5047 = vld [vmem:[%s5044 + $0x10] sm:$0xff]
    %v5048 = vld [vmem:[%s5044 + $0x18] sm:$0xff]
    %v5049 = vld [vmem:[%s5044 + $0x20] sm:$0xff]
    %v5050 = vld [vmem:[%s5044 + $0x28] sm:$0xff]
    %v5051 = vld [vmem:[%s5044 + $0x30] sm:$0xff]
    %v5052 = vld [vmem:[%s5044 + $0x38] sm:$0xff]
    %v5053 = vld [vmem:[%s5044 + $0x40] sm:$0xff]
    %v5054 = vld [vmem:[%s5044 + $0x48] sm:$0xff]
    %v5055 = vld [vmem:[%s5044 + $0x50] sm:$0xff]
    %v5056 = vld [vmem:[%s5044 + $0x58] sm:$0xff]
    %v5057 = vld [vmem:[%s5044 + $0x60] sm:$0xff]
    %v5058 = vld [vmem:[%s5044 + $0x68] sm:$0xff]
    %v5059 = vld [vmem:[%s5044 + $0x70] sm:$0xff]
    %v5060 = vld [vmem:[%s5044 + $0x78] sm:$0xff]
    %v5061 = vld [vmem:[%s5044 + $0x80] sm:$0xff]
    %v5062 = vld [vmem:[%s5044 + $0x88] sm:$0xff]
    %v5063 = vld [vmem:[%s5044 + $0x90] sm:$0xff]
    %v5064 = vld [vmem:[%s5044 + $0x98] sm:$0xff]
    %v5065 = vld [vmem:[%s5044 + $0xa0] sm:$0xff]
    %v5066 = vld [vmem:[%s5044 + $0xa8] sm:$0xff]
    %v5067 = vld [vmem:[%s5044 + $0xb0] sm:$0xff]
    %v5068 = vld [vmem:[%s5044 + $0xb8] sm:$0xff]
    %v5069 = vld [vmem:[%s5044 + $0xc0] sm:$0xff]
    %v5070 = vld [vmem:[%s5044 + $0xc8] sm:$0xff]
    %v5071 = vld [vmem:[%s5044 + $0xd0] sm:$0xff]
    %v5072 = vld [vmem:[%s5044 + $0xd8] sm:$0xff]
    %v5073 = vld [vmem:[%s5044 + $0xe0] sm:$0xff]
    %v5074 = vld [vmem:[%s5044 + $0xe8] sm:$0xff]
    %v5075 = vld [vmem:[%s5044 + $0xf0] sm:$0xff]
    %v5076 = vld [vmem:[%s5044 + $0xf8] sm:$0xff]
    %v5077 = vld [vmem:[%s5044 + $0x100] sm:$0xff]
    %v5078 = vld [vmem:[%s5044 + $0x108] sm:$0xff]
    %v5079 = vld [vmem:[%s5044 + $0x110] sm:$0xff]
    %v5080 = vld [vmem:[%s5044 + $0x118] sm:$0xff]
    %v5081 = vld [vmem:[%s5044 + $0x120] sm:$0x1]
    %v5082 = vrot.slane %v4820, 2
    %v5083 = vrot.slane %v4821, 2
    %v5084 = vrot.slane %v4822, 2
    %v5087 = vsel %vm4864, %v5084, 0
    %v5090 = vsel %vm4868, %v5081, 0
    %5092 = vmatpush.msra.mxu0 %v5060
    %5093 = vmatpush.msra.mxu0 %v5059
    %5094 = vmatpush.msra.mxu0 %v5058
    %5095 = vmatpush.msra.mxu0 %v5057
    %5096 = vmatpush.msra.mxu0 %v5056
    %5097 = vmatpush.msra.mxu0 %v5055
    %5098 = vmatpush.msra.mxu0 %v5054
    %5099 = vmatpush.msra.mxu0 %v5053
    %5100 = vmatpush.msra.mxu0 %v5052
    %5101 = vmatpush.msra.mxu0 %v5051
    %5102 = vmatpush.msra.mxu0 %v5050
    %5103 = vmatpush.msra.mxu0 %v5049
    %5104 = vmatpush.msra.mxu0 %v5048
    %5105 = vmatpush.msra.mxu0 %v5047
    %5106 = vmatpush.msra.mxu0 %v5046
    %5107 = vmatpush.msra.mxu0 %v5045
    %5108 = vmatmul.f32.gmra.mxu0 %v5082
    %v5109 = vpop.f32.mrf.mxu0
    %v5110 = vadd.f32 0.0, %v5109
    %5111 = vdwg.mxu0
    %5112 = vmatpush.msra.mxu0 %v5076
    %5113 = vmatpush.msra.mxu0 %v5075
    %5114 = vmatpush.msra.mxu0 %v5074
    %5115 = vmatpush.msra.mxu0 %v5073
    %5116 = vmatpush.msra.mxu0 %v5072
    %5117 = vmatpush.msra.mxu0 %v5071
    %5118 = vmatpush.msra.mxu0 %v5070
    %5119 = vmatpush.msra.mxu0 %v5069
    %5120 = vmatpush.msra.mxu0 %v5068
    %5121 = vmatpush.msra.mxu0 %v5067
    %5122 = vmatpush.msra.mxu0 %v5066
    %5123 = vmatpush.msra.mxu0 %v5065
    %5124 = vmatpush.msra.mxu0 %v5064
    %5125 = vmatpush.msra.mxu0 %v5063
    %5126 = vmatpush.msra.mxu0 %v5062
    %5127 = vmatpush.msra.mxu0 %v5061
    %5128 = vmatmul.f32.gmra.mxu0 %v5083
    %v5129 = vpop.f32.mrf.mxu0
    %v5130 = vadd.f32 %v5110, %v5129
    %5131 = vdwg.mxu0
    %5132 = vmatpush.msra.mxu0 0.0
    %5133 = vmatpush.msra.mxu0 0.0
    %5134 = vmatpush.msra.mxu0 0.0
    %5135 = vmatpush.msra.mxu0 0.0
    %5136 = vmatpush.msra.mxu0 0.0
    %5137 = vmatpush.msra.mxu0 0.0
    %5138 = vmatpush.msra.mxu0 0.0
    %5139 = vmatpush.msra.mxu0 0.0
    %5140 = vmatpush.msra.mxu0 0.0
    %5141 = vmatpush.msra.mxu0 0.0
    %5142 = vmatpush.msra.mxu0 0.0
    %5143 = vmatpush.msra.mxu0 %v5090
    %5144 = vmatpush.msra.mxu0 %v5080
    %5145 = vmatpush.msra.mxu0 %v5079
    %5146 = vmatpush.msra.mxu0 %v5078
    %5147 = vmatpush.msra.mxu0 %v5077
    %5148 = vmatmul.f32.gmra.mxu0 %v5087
    %v5149 = vpop.f32.mrf.mxu0
    %v5150 = vadd.f32 %v5130, %v5149
    %5151 = vdwg.mxu0
    %v5152 = vadd.f32 %v5043, %v5150
    %s5153 = scalar_lea.vmem %s7, 888
    %v5154 = vld [vmem:[%s5153] sm:$0xff]
    %v5155 = vld [vmem:[%s5153 + $0x8] sm:$0xff]
    %v5156 = vld [vmem:[%s5153 + $0x10] sm:$0xff]
    %v5157 = vld [vmem:[%s5153 + $0x18] sm:$0xff]
    %v5158 = vld [vmem:[%s5153 + $0x20] sm:$0xff]
    %v5159 = vld [vmem:[%s5153 + $0x28] sm:$0xff]
    %v5160 = vld [vmem:[%s5153 + $0x30] sm:$0xff]
    %v5161 = vld [vmem:[%s5153 + $0x38] sm:$0xff]
    %v5162 = vld [vmem:[%s5153 + $0x40] sm:$0xff]
    %v5163 = vld [vmem:[%s5153 + $0x48] sm:$0xff]
    %v5164 = vld [vmem:[%s5153 + $0x50] sm:$0xff]
    %v5165 = vld [vmem:[%s5153 + $0x58] sm:$0xff]
    %v5166 = vld [vmem:[%s5153 + $0x60] sm:$0xff]
    %v5167 = vld [vmem:[%s5153 + $0x68] sm:$0xff]
    %v5168 = vld [vmem:[%s5153 + $0x70] sm:$0xff]
    %v5169 = vld [vmem:[%s5153 + $0x78] sm:$0xff]
    %v5170 = vld [vmem:[%s5153 + $0x80] sm:$0xff]
    %v5171 = vld [vmem:[%s5153 + $0x88] sm:$0xff]
    %v5172 = vld [vmem:[%s5153 + $0x90] sm:$0xff]
    %v5173 = vld [vmem:[%s5153 + $0x98] sm:$0xff]
    %v5174 = vld [vmem:[%s5153 + $0xa0] sm:$0xff]
    %v5175 = vld [vmem:[%s5153 + $0xa8] sm:$0xff]
    %v5176 = vld [vmem:[%s5153 + $0xb0] sm:$0xff]
    %v5177 = vld [vmem:[%s5153 + $0xb8] sm:$0xff]
    %v5178 = vld [vmem:[%s5153 + $0xc0] sm:$0xff]
    %v5179 = vld [vmem:[%s5153 + $0xc8] sm:$0xff]
    %v5180 = vld [vmem:[%s5153 + $0xd0] sm:$0xff]
    %v5181 = vld [vmem:[%s5153 + $0xd8] sm:$0xff]
    %v5182 = vld [vmem:[%s5153 + $0xe0] sm:$0xff]
    %v5183 = vld [vmem:[%s5153 + $0xe8] sm:$0xff]
    %v5184 = vld [vmem:[%s5153 + $0xf0] sm:$0xff]
    %v5185 = vld [vmem:[%s5153 + $0xf8] sm:$0xff]
    %v5186 = vld [vmem:[%s5153 + $0x100] sm:$0xff]
    %v5187 = vld [vmem:[%s5153 + $0x108] sm:$0xff]
    %v5188 = vld [vmem:[%s5153 + $0x110] sm:$0xff]
    %v5189 = vld [vmem:[%s5153 + $0x118] sm:$0xff]
    %v5190 = vld [vmem:[%s5153 + $0x120] sm:$0x1]
    %v5191 = vrot.slane %v4820, 3
    %v5192 = vrot.slane %v4821, 3
    %v5193 = vrot.slane %v4822, 3
    %v5196 = vsel %vm4864, %v5193, 0
    %v5199 = vsel %vm4868, %v5190, 0
    %5201 = vmatpush.msra.mxu0 %v5169
    %5202 = vmatpush.msra.mxu0 %v5168
    %5203 = vmatpush.msra.mxu0 %v5167
    %5204 = vmatpush.msra.mxu0 %v5166
    %5205 = vmatpush.msra.mxu0 %v5165
    %5206 = vmatpush.msra.mxu0 %v5164
    %5207 = vmatpush.msra.mxu0 %v5163
    %5208 = vmatpush.msra.mxu0 %v5162
    %5209 = vmatpush.msra.mxu0 %v5161
    %5210 = vmatpush.msra.mxu0 %v5160
    %5211 = vmatpush.msra.mxu0 %v5159
    %5212 = vmatpush.msra.mxu0 %v5158
    %5213 = vmatpush.msra.mxu0 %v5157
    %5214 = vmatpush.msra.mxu0 %v5156
    %5215 = vmatpush.msra.mxu0 %v5155
    %5216 = vmatpush.msra.mxu0 %v5154
    %5217 = vmatmul.f32.gmra.mxu0 %v5191
    %v5218 = vpop.f32.mrf.mxu0
    %v5219 = vadd.f32 0.0, %v5218
    %5220 = vdwg.mxu0
    %5221 = vmatpush.msra.mxu0 %v5185
    %5222 = vmatpush.msra.mxu0 %v5184
    %5223 = vmatpush.msra.mxu0 %v5183
    %5224 = vmatpush.msra.mxu0 %v5182
    %5225 = vmatpush.msra.mxu0 %v5181
    %5226 = vmatpush.msra.mxu0 %v5180
    %5227 = vmatpush.msra.mxu0 %v5179
    %5228 = vmatpush.msra.mxu0 %v5178
    %5229 = vmatpush.msra.mxu0 %v5177
    %5230 = vmatpush.msra.mxu0 %v5176
    %5231 = vmatpush.msra.mxu0 %v5175
    %5232 = vmatpush.msra.mxu0 %v5174
    %5233 = vmatpush.msra.mxu0 %v5173
    %5234 = vmatpush.msra.mxu0 %v5172
    %5235 = vmatpush.msra.mxu0 %v5171
    %5236 = vmatpush.msra.mxu0 %v5170
    %5237 = vmatmul.f32.gmra.mxu0 %v5192
    %v5238 = vpop.f32.mrf.mxu0
    %v5239 = vadd.f32 %v5219, %v5238
    %5240 = vdwg.mxu0
    %5241 = vmatpush.msra.mxu0 0.0
    %5242 = vmatpush.msra.mxu0 0.0
    %5243 = vmatpush.msra.mxu0 0.0
    %5244 = vmatpush.msra.mxu0 0.0
    %5245 = vmatpush.msra.mxu0 0.0
    %5246 = vmatpush.msra.mxu0 0.0
    %5247 = vmatpush.msra.mxu0 0.0
    %5248 = vmatpush.msra.mxu0 0.0
    %5249 = vmatpush.msra.mxu0 0.0
    %5250 = vmatpush.msra.mxu0 0.0
    %5251 = vmatpush.msra.mxu0 0.0
    %5252 = vmatpush.msra.mxu0 %v5199
    %5253 = vmatpush.msra.mxu0 %v5189
    %5254 = vmatpush.msra.mxu0 %v5188
    %5255 = vmatpush.msra.mxu0 %v5187
    %5256 = vmatpush.msra.mxu0 %v5186
    %5257 = vmatmul.f32.gmra.mxu0 %v5196
    %v5258 = vpop.f32.mrf.mxu0
    %v5259 = vadd.f32 %v5239, %v5258
    %5260 = vdwg.mxu0
    %v5261 = vadd.f32 %v5152, %v5259
    %s5262 = scalar_lea.vmem %s7, 1184
    %v5263 = vld [vmem:[%s5262] sm:$0xff]
    %v5264 = vld [vmem:[%s5262 + $0x8] sm:$0xff]
    %v5265 = vld [vmem:[%s5262 + $0x10] sm:$0xff]
    %v5266 = vld [vmem:[%s5262 + $0x18] sm:$0xff]
    %v5267 = vld [vmem:[%s5262 + $0x20] sm:$0xff]
    %v5268 = vld [vmem:[%s5262 + $0x28] sm:$0xff]
    %v5269 = vld [vmem:[%s5262 + $0x30] sm:$0xff]
    %v5270 = vld [vmem:[%s5262 + $0x38] sm:$0xff]
    %v5271 = vld [vmem:[%s5262 + $0x40] sm:$0xff]
    %v5272 = vld [vmem:[%s5262 + $0x48] sm:$0xff]
    %v5273 = vld [vmem:[%s5262 + $0x50] sm:$0xff]
    %v5274 = vld [vmem:[%s5262 + $0x58] sm:$0xff]
    %v5275 = vld [vmem:[%s5262 + $0x60] sm:$0xff]
    %v5276 = vld [vmem:[%s5262 + $0x68] sm:$0xff]
    %v5277 = vld [vmem:[%s5262 + $0x70] sm:$0xff]
    %v5278 = vld [vmem:[%s5262 + $0x78] sm:$0xff]
    %v5279 = vld [vmem:[%s5262 + $0x80] sm:$0xff]
    %v5280 = vld [vmem:[%s5262 + $0x88] sm:$0xff]
    %v5281 = vld [vmem:[%s5262 + $0x90] sm:$0xff]
    %v5282 = vld [vmem:[%s5262 + $0x98] sm:$0xff]
    %v5283 = vld [vmem:[%s5262 + $0xa0] sm:$0xff]
    %v5284 = vld [vmem:[%s5262 + $0xa8] sm:$0xff]
    %v5285 = vld [vmem:[%s5262 + $0xb0] sm:$0xff]
    %v5286 = vld [vmem:[%s5262 + $0xb8] sm:$0xff]
    %v5287 = vld [vmem:[%s5262 + $0xc0] sm:$0xff]
    %v5288 = vld [vmem:[%s5262 + $0xc8] sm:$0xff]
    %v5289 = vld [vmem:[%s5262 + $0xd0] sm:$0xff]
    %v5290 = vld [vmem:[%s5262 + $0xd8] sm:$0xff]
    %v5291 = vld [vmem:[%s5262 + $0xe0] sm:$0xff]
    %v5292 = vld [vmem:[%s5262 + $0xe8] sm:$0xff]
    %v5293 = vld [vmem:[%s5262 + $0xf0] sm:$0xff]
    %v5294 = vld [vmem:[%s5262 + $0xf8] sm:$0xff]
    %v5295 = vld [vmem:[%s5262 + $0x100] sm:$0xff]
    %v5296 = vld [vmem:[%s5262 + $0x108] sm:$0xff]
    %v5297 = vld [vmem:[%s5262 + $0x110] sm:$0xff]
    %v5298 = vld [vmem:[%s5262 + $0x118] sm:$0xff]
    %v5299 = vld [vmem:[%s5262 + $0x120] sm:$0x1]
    %v5300 = vrot.slane %v4820, 4
    %v5301 = vrot.slane %v4821, 4
    %v5302 = vrot.slane %v4822, 4
    %v5305 = vsel %vm4864, %v5302, 0
    %v5308 = vsel %vm4868, %v5299, 0
    %5310 = vmatpush.msra.mxu0 %v5278
    %5311 = vmatpush.msra.mxu0 %v5277
    %5312 = vmatpush.msra.mxu0 %v5276
    %5313 = vmatpush.msra.mxu0 %v5275
    %5314 = vmatpush.msra.mxu0 %v5274
    %5315 = vmatpush.msra.mxu0 %v5273
    %5316 = vmatpush.msra.mxu0 %v5272
    %5317 = vmatpush.msra.mxu0 %v5271
    %5318 = vmatpush.msra.mxu0 %v5270
    %5319 = vmatpush.msra.mxu0 %v5269
    %5320 = vmatpush.msra.mxu0 %v5268
    %5321 = vmatpush.msra.mxu0 %v5267
    %5322 = vmatpush.msra.mxu0 %v5266
    %5323 = vmatpush.msra.mxu0 %v5265
    %5324 = vmatpush.msra.mxu0 %v5264
    %5325 = vmatpush.msra.mxu0 %v5263
    %5326 = vmatmul.f32.gmra.mxu0 %v5300
    %v5327 = vpop.f32.mrf.mxu0
    %v5328 = vadd.f32 0.0, %v5327
    %5329 = vdwg.mxu0
    %5330 = vmatpush.msra.mxu0 %v5294
    %5331 = vmatpush.msra.mxu0 %v5293
    %5332 = vmatpush.msra.mxu0 %v5292
    %5333 = vmatpush.msra.mxu0 %v5291
    %5334 = vmatpush.msra.mxu0 %v5290
    %5335 = vmatpush.msra.mxu0 %v5289
    %5336 = vmatpush.msra.mxu0 %v5288
    %5337 = vmatpush.msra.mxu0 %v5287
    %5338 = vmatpush.msra.mxu0 %v5286
    %5339 = vmatpush.msra.mxu0 %v5285
    %5340 = vmatpush.msra.mxu0 %v5284
    %5341 = vmatpush.msra.mxu0 %v5283
    %5342 = vmatpush.msra.mxu0 %v5282
    %5343 = vmatpush.msra.mxu0 %v5281
    %5344 = vmatpush.msra.mxu0 %v5280
    %5345 = vmatpush.msra.mxu0 %v5279
    %5346 = vmatmul.f32.gmra.mxu0 %v5301
    %v5347 = vpop.f32.mrf.mxu0
    %v5348 = vadd.f32 %v5328, %v5347
    %5349 = vdwg.mxu0
    %5350 = vmatpush.msra.mxu0 0.0
    %5351 = vmatpush.msra.mxu0 0.0
    %5352 = vmatpush.msra.mxu0 0.0
    %5353 = vmatpush.msra.mxu0 0.0
    %5354 = vmatpush.msra.mxu0 0.0
    %5355 = vmatpush.msra.mxu0 0.0
    %5356 = vmatpush.msra.mxu0 0.0
    %5357 = vmatpush.msra.mxu0 0.0
    %5358 = vmatpush.msra.mxu0 0.0
    %5359 = vmatpush.msra.mxu0 0.0
    %5360 = vmatpush.msra.mxu0 0.0
    %5361 = vmatpush.msra.mxu0 %v5308
    %5362 = vmatpush.msra.mxu0 %v5298
    %5363 = vmatpush.msra.mxu0 %v5297
    %5364 = vmatpush.msra.mxu0 %v5296
    %5365 = vmatpush.msra.mxu0 %v5295
    %5366 = vmatmul.f32.gmra.mxu0 %v5305
    %v5367 = vpop.f32.mrf.mxu0
    %v5368 = vadd.f32 %v5348, %v5367
    %5369 = vdwg.mxu0
    %v5370 = vadd.f32 %v5261, %v5368
    %s5371 = scalar_lea.vmem %s7, 1480
    %v5372 = vld [vmem:[%s5371] sm:$0xff]
    %v5373 = vld [vmem:[%s5371 + $0x8] sm:$0xff]
    %v5374 = vld [vmem:[%s5371 + $0x10] sm:$0xff]
    %v5375 = vld [vmem:[%s5371 + $0x18] sm:$0xff]
    %v5376 = vld [vmem:[%s5371 + $0x20] sm:$0xff]
    %v5377 = vld [vmem:[%s5371 + $0x28] sm:$0xff]
    %v5378 = vld [vmem:[%s5371 + $0x30] sm:$0xff]
    %v5379 = vld [vmem:[%s5371 + $0x38] sm:$0xff]
    %v5380 = vld [vmem:[%s5371 + $0x40] sm:$0xff]
    %v5381 = vld [vmem:[%s5371 + $0x48] sm:$0xff]
    %v5382 = vld [vmem:[%s5371 + $0x50] sm:$0xff]
    %v5383 = vld [vmem:[%s5371 + $0x58] sm:$0xff]
    %v5384 = vld [vmem:[%s5371 + $0x60] sm:$0xff]
    %v5385 = vld [vmem:[%s5371 + $0x68] sm:$0xff]
    %v5386 = vld [vmem:[%s5371 + $0x70] sm:$0xff]
    %v5387 = vld [vmem:[%s5371 + $0x78] sm:$0xff]
    %v5388 = vld [vmem:[%s5371 + $0x80] sm:$0xff]
    %v5389 = vld [vmem:[%s5371 + $0x88] sm:$0xff]
    %v5390 = vld [vmem:[%s5371 + $0x90] sm:$0xff]
    %v5391 = vld [vmem:[%s5371 + $0x98] sm:$0xff]
    %v5392 = vld [vmem:[%s5371 + $0xa0] sm:$0xff]
    %v5393 = vld [vmem:[%s5371 + $0xa8] sm:$0xff]
    %v5394 = vld [vmem:[%s5371 + $0xb0] sm:$0xff]
    %v5395 = vld [vmem:[%s5371 + $0xb8] sm:$0xff]
    %v5396 = vld [vmem:[%s5371 + $0xc0] sm:$0xff]
    %v5397 = vld [vmem:[%s5371 + $0xc8] sm:$0xff]
    %v5398 = vld [vmem:[%s5371 + $0xd0] sm:$0xff]
    %v5399 = vld [vmem:[%s5371 + $0xd8] sm:$0xff]
    %v5400 = vld [vmem:[%s5371 + $0xe0] sm:$0xff]
    %v5401 = vld [vmem:[%s5371 + $0xe8] sm:$0xff]
    %v5402 = vld [vmem:[%s5371 + $0xf0] sm:$0xff]
    %v5403 = vld [vmem:[%s5371 + $0xf8] sm:$0xff]
    %v5404 = vld [vmem:[%s5371 + $0x100] sm:$0xff]
    %v5405 = vld [vmem:[%s5371 + $0x108] sm:$0xff]
    %v5406 = vld [vmem:[%s5371 + $0x110] sm:$0xff]
    %v5407 = vld [vmem:[%s5371 + $0x118] sm:$0xff]
    %v5408 = vld [vmem:[%s5371 + $0x120] sm:$0x1]
    %v5409 = vrot.slane %v4820, 5
    %v5410 = vrot.slane %v4821, 5
    %v5411 = vrot.slane %v4822, 5
    %v5414 = vsel %vm4864, %v5411, 0
    %v5417 = vsel %vm4868, %v5408, 0
    %5419 = vmatpush.msra.mxu0 %v5387
    %5420 = vmatpush.msra.mxu0 %v5386
    %5421 = vmatpush.msra.mxu0 %v5385
    %5422 = vmatpush.msra.mxu0 %v5384
    %5423 = vmatpush.msra.mxu0 %v5383
    %5424 = vmatpush.msra.mxu0 %v5382
    %5425 = vmatpush.msra.mxu0 %v5381
    %5426 = vmatpush.msra.mxu0 %v5380
    %5427 = vmatpush.msra.mxu0 %v5379
    %5428 = vmatpush.msra.mxu0 %v5378
    %5429 = vmatpush.msra.mxu0 %v5377
    %5430 = vmatpush.msra.mxu0 %v5376
    %5431 = vmatpush.msra.mxu0 %v5375
    %5432 = vmatpush.msra.mxu0 %v5374
    %5433 = vmatpush.msra.mxu0 %v5373
    %5434 = vmatpush.msra.mxu0 %v5372
    %5435 = vmatmul.f32.gmra.mxu0 %v5409
    %v5436 = vpop.f32.mrf.mxu0
    %v5437 = vadd.f32 0.0, %v5436
    %5438 = vdwg.mxu0
    %5439 = vmatpush.msra.mxu0 %v5403
    %5440 = vmatpush.msra.mxu0 %v5402
    %5441 = vmatpush.msra.mxu0 %v5401
    %5442 = vmatpush.msra.mxu0 %v5400
    %5443 = vmatpush.msra.mxu0 %v5399
    %5444 = vmatpush.msra.mxu0 %v5398
    %5445 = vmatpush.msra.mxu0 %v5397
    %5446 = vmatpush.msra.mxu0 %v5396
    %5447 = vmatpush.msra.mxu0 %v5395
    %5448 = vmatpush.msra.mxu0 %v5394
    %5449 = vmatpush.msra.mxu0 %v5393
    %5450 = vmatpush.msra.mxu0 %v5392
    %5451 = vmatpush.msra.mxu0 %v5391
    %5452 = vmatpush.msra.mxu0 %v5390
    %5453 = vmatpush.msra.mxu0 %v5389
    %5454 = vmatpush.msra.mxu0 %v5388
    %5455 = vmatmul.f32.gmra.mxu0 %v5410
    %v5456 = vpop.f32.mrf.mxu0
    %v5457 = vadd.f32 %v5437, %v5456
    %5458 = vdwg.mxu0
    %5459 = vmatpush.msra.mxu0 0.0
    %5460 = vmatpush.msra.mxu0 0.0
    %5461 = vmatpush.msra.mxu0 0.0
    %5462 = vmatpush.msra.mxu0 0.0
    %5463 = vmatpush.msra.mxu0 0.0
    %5464 = vmatpush.msra.mxu0 0.0
    %5465 = vmatpush.msra.mxu0 0.0
    %5466 = vmatpush.msra.mxu0 0.0
    %5467 = vmatpush.msra.mxu0 0.0
    %5468 = vmatpush.msra.mxu0 0.0
    %5469 = vmatpush.msra.mxu0 0.0
    %5470 = vmatpush.msra.mxu0 %v5417
    %5471 = vmatpush.msra.mxu0 %v5407
    %5472 = vmatpush.msra.mxu0 %v5406
    %5473 = vmatpush.msra.mxu0 %v5405
    %5474 = vmatpush.msra.mxu0 %v5404
    %5475 = vmatmul.f32.gmra.mxu0 %v5414
    %v5476 = vpop.f32.mrf.mxu0
    %v5477 = vadd.f32 %v5457, %v5476
    %5478 = vdwg.mxu0
    %v5479 = vadd.f32 %v5370, %v5477
    %s5480 = scalar_lea.vmem %s7, 1776
    %v5481 = vld [vmem:[%s5480] sm:$0xff]
    %v5482 = vld [vmem:[%s5480 + $0x8] sm:$0xff]
    %v5483 = vld [vmem:[%s5480 + $0x10] sm:$0xff]
    %v5484 = vld [vmem:[%s5480 + $0x18] sm:$0xff]
    %v5485 = vld [vmem:[%s5480 + $0x20] sm:$0xff]
    %v5486 = vld [vmem:[%s5480 + $0x28] sm:$0xff]
    %v5487 = vld [vmem:[%s5480 + $0x30] sm:$0xff]
    %v5488 = vld [vmem:[%s5480 + $0x38] sm:$0xff]
    %v5489 = vld [vmem:[%s5480 + $0x40] sm:$0xff]
    %v5490 = vld [vmem:[%s5480 + $0x48] sm:$0xff]
    %v5491 = vld [vmem:[%s5480 + $0x50] sm:$0xff]
    %v5492 = vld [vmem:[%s5480 + $0x58] sm:$0xff]
    %v5493 = vld [vmem:[%s5480 + $0x60] sm:$0xff]
    %v5494 = vld [vmem:[%s5480 + $0x68] sm:$0xff]
    %v5495 = vld [vmem:[%s5480 + $0x70] sm:$0xff]
    %v5496 = vld [vmem:[%s5480 + $0x78] sm:$0xff]
    %v5497 = vld [vmem:[%s5480 + $0x80] sm:$0xff]
    %v5498 = vld [vmem:[%s5480 + $0x88] sm:$0xff]
    %v5499 = vld [vmem:[%s5480 + $0x90] sm:$0xff]
    %v5500 = vld [vmem:[%s5480 + $0x98] sm:$0xff]
    %v5501 = vld [vmem:[%s5480 + $0xa0] sm:$0xff]
    %v5502 = vld [vmem:[%s5480 + $0xa8] sm:$0xff]
    %v5503 = vld [vmem:[%s5480 + $0xb0] sm:$0xff]
    %v5504 = vld [vmem:[%s5480 + $0xb8] sm:$0xff]
    %v5505 = vld [vmem:[%s5480 + $0xc0] sm:$0xff]
    %v5506 = vld [vmem:[%s5480 + $0xc8] sm:$0xff]
    %v5507 = vld [vmem:[%s5480 + $0xd0] sm:$0xff]
    %v5508 = vld [vmem:[%s5480 + $0xd8] sm:$0xff]
    %v5509 = vld [vmem:[%s5480 + $0xe0] sm:$0xff]
    %v5510 = vld [vmem:[%s5480 + $0xe8] sm:$0xff]
    %v5511 = vld [vmem:[%s5480 + $0xf0] sm:$0xff]
    %v5512 = vld [vmem:[%s5480 + $0xf8] sm:$0xff]
    %v5513 = vld [vmem:[%s5480 + $0x100] sm:$0xff]
    %v5514 = vld [vmem:[%s5480 + $0x108] sm:$0xff]
    %v5515 = vld [vmem:[%s5480 + $0x110] sm:$0xff]
    %v5516 = vld [vmem:[%s5480 + $0x118] sm:$0xff]
    %v5517 = vld [vmem:[%s5480 + $0x120] sm:$0x1]
    %v5518 = vrot.slane %v4820, 6
    %v5519 = vrot.slane %v4821, 6
    %v5520 = vrot.slane %v4822, 6
    %v5523 = vsel %vm4864, %v5520, 0
    %v5526 = vsel %vm4868, %v5517, 0
    %5528 = vmatpush.msra.mxu0 %v5496
    %5529 = vmatpush.msra.mxu0 %v5495
    %5530 = vmatpush.msra.mxu0 %v5494
    %5531 = vmatpush.msra.mxu0 %v5493
    %5532 = vmatpush.msra.mxu0 %v5492
    %5533 = vmatpush.msra.mxu0 %v5491
    %5534 = vmatpush.msra.mxu0 %v5490
    %5535 = vmatpush.msra.mxu0 %v5489
    %5536 = vmatpush.msra.mxu0 %v5488
    %5537 = vmatpush.msra.mxu0 %v5487
    %5538 = vmatpush.msra.mxu0 %v5486
    %5539 = vmatpush.msra.mxu0 %v5485
    %5540 = vmatpush.msra.mxu0 %v5484
    %5541 = vmatpush.msra.mxu0 %v5483
    %5542 = vmatpush.msra.mxu0 %v5482
    %5543 = vmatpush.msra.mxu0 %v5481
    %5544 = vmatmul.f32.gmra.mxu0 %v5518
    %v5545 = vpop.f32.mrf.mxu0
    %v5546 = vadd.f32 0.0, %v5545
    %5547 = vdwg.mxu0
    %5548 = vmatpush.msra.mxu0 %v5512
    %5549 = vmatpush.msra.mxu0 %v5511
    %5550 = vmatpush.msra.mxu0 %v5510
    %5551 = vmatpush.msra.mxu0 %v5509
    %5552 = vmatpush.msra.mxu0 %v5508
    %5553 = vmatpush.msra.mxu0 %v5507
    %5554 = vmatpush.msra.mxu0 %v5506
    %5555 = vmatpush.msra.mxu0 %v5505
    %5556 = vmatpush.msra.mxu0 %v5504
    %5557 = vmatpush.msra.mxu0 %v5503
    %5558 = vmatpush.msra.mxu0 %v5502
    %5559 = vmatpush.msra.mxu0 %v5501
    %5560 = vmatpush.msra.mxu0 %v5500
    %5561 = vmatpush.msra.mxu0 %v5499
    %5562 = vmatpush.msra.mxu0 %v5498
    %5563 = vmatpush.msra.mxu0 %v5497
    %5564 = vmatmul.f32.gmra.mxu0 %v5519
    %v5565 = vpop.f32.mrf.mxu0
    %v5566 = vadd.f32 %v5546, %v5565
    %5567 = vdwg.mxu0
    %5568 = vmatpush.msra.mxu0 0.0
    %5569 = vmatpush.msra.mxu0 0.0
    %5570 = vmatpush.msra.mxu0 0.0
    %5571 = vmatpush.msra.mxu0 0.0
    %5572 = vmatpush.msra.mxu0 0.0
    %5573 = vmatpush.msra.mxu0 0.0
    %5574 = vmatpush.msra.mxu0 0.0
    %5575 = vmatpush.msra.mxu0 0.0
    %5576 = vmatpush.msra.mxu0 0.0
    %5577 = vmatpush.msra.mxu0 0.0
    %5578 = vmatpush.msra.mxu0 0.0
    %5579 = vmatpush.msra.mxu0 %v5526
    %5580 = vmatpush.msra.mxu0 %v5516
    %5581 = vmatpush.msra.mxu0 %v5515
    %5582 = vmatpush.msra.mxu0 %v5514
    %5583 = vmatpush.msra.mxu0 %v5513
    %5584 = vmatmul.f32.gmra.mxu0 %v5523
    %v5585 = vpop.f32.mrf.mxu0
    %v5586 = vadd.f32 %v5566, %v5585
    %5587 = vdwg.mxu0
    %v5588 = vadd.f32 %v5479, %v5586
    %s5589 = scalar_lea.vmem %s7, 2072
    %v5590 = vld [vmem:[%s5589] sm:$0xff]
    %v5591 = vld [vmem:[%s5589 + $0x8] sm:$0xff]
    %v5592 = vld [vmem:[%s5589 + $0x10] sm:$0xff]
    %v5593 = vld [vmem:[%s5589 + $0x18] sm:$0xff]
    %v5594 = vld [vmem:[%s5589 + $0x20] sm:$0xff]
    %v5595 = vld [vmem:[%s5589 + $0x28] sm:$0xff]
    %v5596 = vld [vmem:[%s5589 + $0x30] sm:$0xff]
    %v5597 = vld [vmem:[%s5589 + $0x38] sm:$0xff]
    %v5598 = vld [vmem:[%s5589 + $0x40] sm:$0xff]
    %v5599 = vld [vmem:[%s5589 + $0x48] sm:$0xff]
    %v5600 = vld [vmem:[%s5589 + $0x50] sm:$0xff]
    %v5601 = vld [vmem:[%s5589 + $0x58] sm:$0xff]
    %v5602 = vld [vmem:[%s5589 + $0x60] sm:$0xff]
    %v5603 = vld [vmem:[%s5589 + $0x68] sm:$0xff]
    %v5604 = vld [vmem:[%s5589 + $0x70] sm:$0xff]
    %v5605 = vld [vmem:[%s5589 + $0x78] sm:$0xff]
    %v5606 = vld [vmem:[%s5589 + $0x80] sm:$0xff]
    %v5607 = vld [vmem:[%s5589 + $0x88] sm:$0xff]
    %v5608 = vld [vmem:[%s5589 + $0x90] sm:$0xff]
    %v5609 = vld [vmem:[%s5589 + $0x98] sm:$0xff]
    %v5610 = vld [vmem:[%s5589 + $0xa0] sm:$0xff]
    %v5611 = vld [vmem:[%s5589 + $0xa8] sm:$0xff]
    %v5612 = vld [vmem:[%s5589 + $0xb0] sm:$0xff]
    %v5613 = vld [vmem:[%s5589 + $0xb8] sm:$0xff]
    %v5614 = vld [vmem:[%s5589 + $0xc0] sm:$0xff]
    %v5615 = vld [vmem:[%s5589 + $0xc8] sm:$0xff]
    %v5616 = vld [vmem:[%s5589 + $0xd0] sm:$0xff]
    %v5617 = vld [vmem:[%s5589 + $0xd8] sm:$0xff]
    %v5618 = vld [vmem:[%s5589 + $0xe0] sm:$0xff]
    %v5619 = vld [vmem:[%s5589 + $0xe8] sm:$0xff]
    %v5620 = vld [vmem:[%s5589 + $0xf0] sm:$0xff]
    %v5621 = vld [vmem:[%s5589 + $0xf8] sm:$0xff]
    %v5622 = vld [vmem:[%s5589 + $0x100] sm:$0xff]
    %v5623 = vld [vmem:[%s5589 + $0x108] sm:$0xff]
    %v5624 = vld [vmem:[%s5589 + $0x110] sm:$0xff]
    %v5625 = vld [vmem:[%s5589 + $0x118] sm:$0xff]
    %v5626 = vld [vmem:[%s5589 + $0x120] sm:$0x1]
    %v5627 = vrot.slane %v4820, 7
    %v5628 = vrot.slane %v4821, 7
    %v5629 = vrot.slane %v4822, 7
    %v5632 = vsel %vm4864, %v5629, 0
    %v5635 = vsel %vm4868, %v5626, 0
    %5637 = vmatpush.msra.mxu0 %v5605
    %5638 = vmatpush.msra.mxu0 %v5604
    %5639 = vmatpush.msra.mxu0 %v5603
    %5640 = vmatpush.msra.mxu0 %v5602
    %5641 = vmatpush.msra.mxu0 %v5601
    %5642 = vmatpush.msra.mxu0 %v5600
    %5643 = vmatpush.msra.mxu0 %v5599
    %5644 = vmatpush.msra.mxu0 %v5598
    %5645 = vmatpush.msra.mxu0 %v5597
    %5646 = vmatpush.msra.mxu0 %v5596
    %5647 = vmatpush.msra.mxu0 %v5595
    %5648 = vmatpush.msra.mxu0 %v5594
    %5649 = vmatpush.msra.mxu0 %v5593
    %5650 = vmatpush.msra.mxu0 %v5592
    %5651 = vmatpush.msra.mxu0 %v5591
    %5652 = vmatpush.msra.mxu0 %v5590
    %5653 = vmatmul.f32.gmra.mxu0 %v5627
    %v5654 = vpop.f32.mrf.mxu0
    %v5655 = vadd.f32 0.0, %v5654
    %5656 = vdwg.mxu0
    %5657 = vmatpush.msra.mxu0 %v5621
    %5658 = vmatpush.msra.mxu0 %v5620
    %5659 = vmatpush.msra.mxu0 %v5619
    %5660 = vmatpush.msra.mxu0 %v5618
    %5661 = vmatpush.msra.mxu0 %v5617
    %5662 = vmatpush.msra.mxu0 %v5616
    %5663 = vmatpush.msra.mxu0 %v5615
    %5664 = vmatpush.msra.mxu0 %v5614
    %5665 = vmatpush.msra.mxu0 %v5613
    %5666 = vmatpush.msra.mxu0 %v5612
    %5667 = vmatpush.msra.mxu0 %v5611
    %5668 = vmatpush.msra.mxu0 %v5610
    %5669 = vmatpush.msra.mxu0 %v5609
    %5670 = vmatpush.msra.mxu0 %v5608
    %5671 = vmatpush.msra.mxu0 %v5607
    %5672 = vmatpush.msra.mxu0 %v5606
    %5673 = vmatmul.f32.gmra.mxu0 %v5628
    %v5674 = vpop.f32.mrf.mxu0
    %v5675 = vadd.f32 %v5655, %v5674
    %5676 = vdwg.mxu0
    %5677 = vmatpush.msra.mxu0 0.0
    %5678 = vmatpush.msra.mxu0 0.0
    %5679 = vmatpush.msra.mxu0 0.0
    %5680 = vmatpush.msra.mxu0 0.0
    %5681 = vmatpush.msra.mxu0 0.0
    %5682 = vmatpush.msra.mxu0 0.0
    %5683 = vmatpush.msra.mxu0 0.0
    %5684 = vmatpush.msra.mxu0 0.0
    %5685 = vmatpush.msra.mxu0 0.0
    %5686 = vmatpush.msra.mxu0 0.0
    %5687 = vmatpush.msra.mxu0 0.0
    %5688 = vmatpush.msra.mxu0 %v5635
    %5689 = vmatpush.msra.mxu0 %v5625
    %5690 = vmatpush.msra.mxu0 %v5624
    %5691 = vmatpush.msra.mxu0 %v5623
    %5692 = vmatpush.msra.mxu0 %v5622
    %5693 = vmatmul.f32.gmra.mxu0 %v5632
    %v5694 = vpop.f32.mrf.mxu0
    %v5695 = vadd.f32 %v5675, %v5694
    %5696 = vdwg.mxu0
    %v5697 = vadd.f32 %v5588, %v5695
    %s5698 = scalar_lea.vmem %s7, 2368
    %v5699 = vld [vmem:[%s5698] sm:$0xff]
    %v5700 = vld [vmem:[%s5698 + $0x8] sm:$0xff]
    %v5701 = vld [vmem:[%s5698 + $0x10] sm:$0xff]
    %v5702 = vld [vmem:[%s5698 + $0x18] sm:$0xff]
    %v5703 = vld [vmem:[%s5698 + $0x20] sm:$0xff]
    %v5704 = vld [vmem:[%s5698 + $0x28] sm:$0xff]
    %v5705 = vld [vmem:[%s5698 + $0x30] sm:$0xff]
    %v5706 = vld [vmem:[%s5698 + $0x38] sm:$0xff]
    %v5707 = vld [vmem:[%s5698 + $0x40] sm:$0xff]
    %v5708 = vld [vmem:[%s5698 + $0x48] sm:$0xff]
    %v5709 = vld [vmem:[%s5698 + $0x50] sm:$0xff]
    %v5710 = vld [vmem:[%s5698 + $0x58] sm:$0xff]
    %v5711 = vld [vmem:[%s5698 + $0x60] sm:$0xff]
    %v5712 = vld [vmem:[%s5698 + $0x68] sm:$0xff]
    %v5713 = vld [vmem:[%s5698 + $0x70] sm:$0xff]
    %v5714 = vld [vmem:[%s5698 + $0x78] sm:$0xff]
    %v5715 = vld [vmem:[%s5698 + $0x80] sm:$0xff]
    %v5716 = vld [vmem:[%s5698 + $0x88] sm:$0xff]
    %v5717 = vld [vmem:[%s5698 + $0x90] sm:$0xff]
    %v5718 = vld [vmem:[%s5698 + $0x98] sm:$0xff]
    %v5719 = vld [vmem:[%s5698 + $0xa0] sm:$0xff]
    %v5720 = vld [vmem:[%s5698 + $0xa8] sm:$0xff]
    %v5721 = vld [vmem:[%s5698 + $0xb0] sm:$0xff]
    %v5722 = vld [vmem:[%s5698 + $0xb8] sm:$0xff]
    %v5723 = vld [vmem:[%s5698 + $0xc0] sm:$0xff]
    %v5724 = vld [vmem:[%s5698 + $0xc8] sm:$0xff]
    %v5725 = vld [vmem:[%s5698 + $0xd0] sm:$0xff]
    %v5726 = vld [vmem:[%s5698 + $0xd8] sm:$0xff]
    %v5727 = vld [vmem:[%s5698 + $0xe0] sm:$0xff]
    %v5728 = vld [vmem:[%s5698 + $0xe8] sm:$0xff]
    %v5729 = vld [vmem:[%s5698 + $0xf0] sm:$0xff]
    %v5730 = vld [vmem:[%s5698 + $0xf8] sm:$0xff]
    %v5731 = vld [vmem:[%s5698 + $0x100] sm:$0xff]
    %v5732 = vld [vmem:[%s5698 + $0x108] sm:$0xff]
    %v5733 = vld [vmem:[%s5698 + $0x110] sm:$0xff]
    %v5734 = vld [vmem:[%s5698 + $0x118] sm:$0xff]
    %v5735 = vld [vmem:[%s5698 + $0x120] sm:$0x1]
    %v5737 = vsel %vm4864, %v4825, 0
    %v5740 = vsel %vm4868, %v5735, 0
    %5742 = vmatpush.msra.mxu0 %v5714
    %5743 = vmatpush.msra.mxu0 %v5713
    %5744 = vmatpush.msra.mxu0 %v5712
    %5745 = vmatpush.msra.mxu0 %v5711
    %5746 = vmatpush.msra.mxu0 %v5710
    %5747 = vmatpush.msra.mxu0 %v5709
    %5748 = vmatpush.msra.mxu0 %v5708
    %5749 = vmatpush.msra.mxu0 %v5707
    %5750 = vmatpush.msra.mxu0 %v5706
    %5751 = vmatpush.msra.mxu0 %v5705
    %5752 = vmatpush.msra.mxu0 %v5704
    %5753 = vmatpush.msra.mxu0 %v5703
    %5754 = vmatpush.msra.mxu0 %v5702
    %5755 = vmatpush.msra.mxu0 %v5701
    %5756 = vmatpush.msra.mxu0 %v5700
    %5757 = vmatpush.msra.mxu0 %v5699
    %5758 = vmatmul.f32.gmra.mxu0 %v4823
    %v5759 = vpop.f32.mrf.mxu0
    %v5760 = vadd.f32 0.0, %v5759
    %5761 = vdwg.mxu0
    %5762 = vmatpush.msra.mxu0 %v5730
    %5763 = vmatpush.msra.mxu0 %v5729
    %5764 = vmatpush.msra.mxu0 %v5728
    %5765 = vmatpush.msra.mxu0 %v5727
    %5766 = vmatpush.msra.mxu0 %v5726
    %5767 = vmatpush.msra.mxu0 %v5725
    %5768 = vmatpush.msra.mxu0 %v5724
    %5769 = vmatpush.msra.mxu0 %v5723
    %5770 = vmatpush.msra.mxu0 %v5722
    %5771 = vmatpush.msra.mxu0 %v5721
    %5772 = vmatpush.msra.mxu0 %v5720
    %5773 = vmatpush.msra.mxu0 %v5719
    %5774 = vmatpush.msra.mxu0 %v5718
    %5775 = vmatpush.msra.mxu0 %v5717
    %5776 = vmatpush.msra.mxu0 %v5716
    %5777 = vmatpush.msra.mxu0 %v5715
    %5778 = vmatmul.f32.gmra.mxu0 %v4824
    %v5779 = vpop.f32.mrf.mxu0
    %v5780 = vadd.f32 %v5760, %v5779
    %5781 = vdwg.mxu0
    %5782 = vmatpush.msra.mxu0 0.0
    %5783 = vmatpush.msra.mxu0 0.0
    %5784 = vmatpush.msra.mxu0 0.0
    %5785 = vmatpush.msra.mxu0 0.0
    %5786 = vmatpush.msra.mxu0 0.0
    %5787 = vmatpush.msra.mxu0 0.0
    %5788 = vmatpush.msra.mxu0 0.0
    %5789 = vmatpush.msra.mxu0 0.0
    %5790 = vmatpush.msra.mxu0 0.0
    %5791 = vmatpush.msra.mxu0 0.0
    %5792 = vmatpush.msra.mxu0 0.0
    %5793 = vmatpush.msra.mxu0 %v5740
    %5794 = vmatpush.msra.mxu0 %v5734
    %5795 = vmatpush.msra.mxu0 %v5733
    %5796 = vmatpush.msra.mxu0 %v5732
    %5797 = vmatpush.msra.mxu0 %v5731
    %5798 = vmatmul.f32.gmra.mxu0 %v5737
    %v5799 = vpop.f32.mrf.mxu0
    %v5800 = vadd.f32 %v5780, %v5799
    %5801 = vdwg.mxu0
    %v5802 = vadd.f32 %v5697, %v5800
    %s5803 = scalar_lea.vmem %s7, 2664
    %v5804 = vld [vmem:[%s5803] sm:$0xff]
    %v5805 = vld [vmem:[%s5803 + $0x8] sm:$0xff]
    %v5806 = vld [vmem:[%s5803 + $0x10] sm:$0xff]
    %v5807 = vld [vmem:[%s5803 + $0x18] sm:$0xff]
    %v5808 = vld [vmem:[%s5803 + $0x20] sm:$0xff]
    %v5809 = vld [vmem:[%s5803 + $0x28] sm:$0xff]
    %v5810 = vld [vmem:[%s5803 + $0x30] sm:$0xff]
    %v5811 = vld [vmem:[%s5803 + $0x38] sm:$0xff]
    %v5812 = vld [vmem:[%s5803 + $0x40] sm:$0xff]
    %v5813 = vld [vmem:[%s5803 + $0x48] sm:$0xff]
    %v5814 = vld [vmem:[%s5803 + $0x50] sm:$0xff]
    %v5815 = vld [vmem:[%s5803 + $0x58] sm:$0xff]
    %v5816 = vld [vmem:[%s5803 + $0x60] sm:$0xff]
    %v5817 = vld [vmem:[%s5803 + $0x68] sm:$0xff]
    %v5818 = vld [vmem:[%s5803 + $0x70] sm:$0xff]
    %v5819 = vld [vmem:[%s5803 + $0x78] sm:$0xff]
    %v5820 = vld [vmem:[%s5803 + $0x80] sm:$0xff]
    %v5821 = vld [vmem:[%s5803 + $0x88] sm:$0xff]
    %v5822 = vld [vmem:[%s5803 + $0x90] sm:$0xff]
    %v5823 = vld [vmem:[%s5803 + $0x98] sm:$0xff]
    %v5824 = vld [vmem:[%s5803 + $0xa0] sm:$0xff]
    %v5825 = vld [vmem:[%s5803 + $0xa8] sm:$0xff]
    %v5826 = vld [vmem:[%s5803 + $0xb0] sm:$0xff]
    %v5827 = vld [vmem:[%s5803 + $0xb8] sm:$0xff]
    %v5828 = vld [vmem:[%s5803 + $0xc0] sm:$0xff]
    %v5829 = vld [vmem:[%s5803 + $0xc8] sm:$0xff]
    %v5830 = vld [vmem:[%s5803 + $0xd0] sm:$0xff]
    %v5831 = vld [vmem:[%s5803 + $0xd8] sm:$0xff]
    %v5832 = vld [vmem:[%s5803 + $0xe0] sm:$0xff]
    %v5833 = vld [vmem:[%s5803 + $0xe8] sm:$0xff]
    %v5834 = vld [vmem:[%s5803 + $0xf0] sm:$0xff]
    %v5835 = vld [vmem:[%s5803 + $0xf8] sm:$0xff]
    %v5836 = vld [vmem:[%s5803 + $0x100] sm:$0xff]
    %v5837 = vld [vmem:[%s5803 + $0x108] sm:$0xff]
    %v5838 = vld [vmem:[%s5803 + $0x110] sm:$0xff]
    %v5839 = vld [vmem:[%s5803 + $0x118] sm:$0xff]
    %v5840 = vld [vmem:[%s5803 + $0x120] sm:$0x1]
    %v5843 = vrot.slane %v4823, 1
    %v5844 = vrot.slane %v4824, 1
    %v5845 = vrot.slane %v4825, 1
    %v5848 = vsel %vm4864, %v5845, 0
    %v5851 = vsel %vm4868, %v5840, 0
    %5853 = vmatpush.msra.mxu0 %v5819
    %5854 = vmatpush.msra.mxu0 %v5818
    %5855 = vmatpush.msra.mxu0 %v5817
    %5856 = vmatpush.msra.mxu0 %v5816
    %5857 = vmatpush.msra.mxu0 %v5815
    %5858 = vmatpush.msra.mxu0 %v5814
    %5859 = vmatpush.msra.mxu0 %v5813
    %5860 = vmatpush.msra.mxu0 %v5812
    %5861 = vmatpush.msra.mxu0 %v5811
    %5862 = vmatpush.msra.mxu0 %v5810
    %5863 = vmatpush.msra.mxu0 %v5809
    %5864 = vmatpush.msra.mxu0 %v5808
    %5865 = vmatpush.msra.mxu0 %v5807
    %5866 = vmatpush.msra.mxu0 %v5806
    %5867 = vmatpush.msra.mxu0 %v5805
    %5868 = vmatpush.msra.mxu0 %v5804
    %5869 = vmatmul.f32.gmra.mxu0 %v5843
    %v5870 = vpop.f32.mrf.mxu0
    %v5871 = vadd.f32 0.0, %v5870
    %5872 = vdwg.mxu0
    %5873 = vmatpush.msra.mxu0 %v5835
    %5874 = vmatpush.msra.mxu0 %v5834
    %5875 = vmatpush.msra.mxu0 %v5833
    %5876 = vmatpush.msra.mxu0 %v5832
    %5877 = vmatpush.msra.mxu0 %v5831
    %5878 = vmatpush.msra.mxu0 %v5830
    %5879 = vmatpush.msra.mxu0 %v5829
    %5880 = vmatpush.msra.mxu0 %v5828
    %5881 = vmatpush.msra.mxu0 %v5827
    %5882 = vmatpush.msra.mxu0 %v5826
    %5883 = vmatpush.msra.mxu0 %v5825
    %5884 = vmatpush.msra.mxu0 %v5824
    %5885 = vmatpush.msra.mxu0 %v5823
    %5886 = vmatpush.msra.mxu0 %v5822
    %5887 = vmatpush.msra.mxu0 %v5821
    %5888 = vmatpush.msra.mxu0 %v5820
    %5889 = vmatmul.f32.gmra.mxu0 %v5844
    %v5890 = vpop.f32.mrf.mxu0
    %v5891 = vadd.f32 %v5871, %v5890
    %5892 = vdwg.mxu0
    %5893 = vmatpush.msra.mxu0 0.0
    %5894 = vmatpush.msra.mxu0 0.0
    %5895 = vmatpush.msra.mxu0 0.0
    %5896 = vmatpush.msra.mxu0 0.0
    %5897 = vmatpush.msra.mxu0 0.0
    %5898 = vmatpush.msra.mxu0 0.0
    %5899 = vmatpush.msra.mxu0 0.0
    %5900 = vmatpush.msra.mxu0 0.0
    %5901 = vmatpush.msra.mxu0 0.0
    %5902 = vmatpush.msra.mxu0 0.0
    %5903 = vmatpush.msra.mxu0 0.0
    %5904 = vmatpush.msra.mxu0 %v5851
    %5905 = vmatpush.msra.mxu0 %v5839
    %5906 = vmatpush.msra.mxu0 %v5838
    %5907 = vmatpush.msra.mxu0 %v5837
    %5908 = vmatpush.msra.mxu0 %v5836
    %5909 = vmatmul.f32.gmra.mxu0 %v5848
    %v5910 = vpop.f32.mrf.mxu0
    %v5911 = vadd.f32 %v5891, %v5910
    %5912 = vdwg.mxu0
    %v5913 = vadd.f32 %v5802, %v5911
    %s5914 = scalar_lea.vmem %s7, 2960
    %v5915 = vld [vmem:[%s5914] sm:$0xff]
    %v5916 = vld [vmem:[%s5914 + $0x8] sm:$0xff]
    %v5917 = vld [vmem:[%s5914 + $0x10] sm:$0xff]
    %v5918 = vld [vmem:[%s5914 + $0x18] sm:$0xff]
    %v5919 = vld [vmem:[%s5914 + $0x20] sm:$0xff]
    %v5920 = vld [vmem:[%s5914 + $0x28] sm:$0xff]
    %v5921 = vld [vmem:[%s5914 + $0x30] sm:$0xff]
    %v5922 = vld [vmem:[%s5914 + $0x38] sm:$0xff]
    %v5923 = vld [vmem:[%s5914 + $0x40] sm:$0xff]
    %v5924 = vld [vmem:[%s5914 + $0x48] sm:$0xff]
    %v5925 = vld [vmem:[%s5914 + $0x50] sm:$0xff]
    %v5926 = vld [vmem:[%s5914 + $0x58] sm:$0xff]
    %v5927 = vld [vmem:[%s5914 + $0x60] sm:$0xff]
    %v5928 = vld [vmem:[%s5914 + $0x68] sm:$0xff]
    %v5929 = vld [vmem:[%s5914 + $0x70] sm:$0xff]
    %v5930 = vld [vmem:[%s5914 + $0x78] sm:$0xff]
    %v5931 = vld [vmem:[%s5914 + $0x80] sm:$0xff]
    %v5932 = vld [vmem:[%s5914 + $0x88] sm:$0xff]
    %v5933 = vld [vmem:[%s5914 + $0x90] sm:$0xff]
    %v5934 = vld [vmem:[%s5914 + $0x98] sm:$0xff]
    %v5935 = vld [vmem:[%s5914 + $0xa0] sm:$0xff]
    %v5936 = vld [vmem:[%s5914 + $0xa8] sm:$0xff]
    %v5937 = vld [vmem:[%s5914 + $0xb0] sm:$0xff]
    %v5938 = vld [vmem:[%s5914 + $0xb8] sm:$0xff]
    %v5939 = vld [vmem:[%s5914 + $0xc0] sm:$0xff]
    %v5940 = vld [vmem:[%s5914 + $0xc8] sm:$0xff]
    %v5941 = vld [vmem:[%s5914 + $0xd0] sm:$0xff]
    %v5942 = vld [vmem:[%s5914 + $0xd8] sm:$0xff]
    %v5943 = vld [vmem:[%s5914 + $0xe0] sm:$0xff]
    %v5944 = vld [vmem:[%s5914 + $0xe8] sm:$0xff]
    %v5945 = vld [vmem:[%s5914 + $0xf0] sm:$0xff]
    %v5946 = vld [vmem:[%s5914 + $0xf8] sm:$0xff]
    %v5947 = vld [vmem:[%s5914 + $0x100] sm:$0xff]
    %v5948 = vld [vmem:[%s5914 + $0x108] sm:$0xff]
    %v5949 = vld [vmem:[%s5914 + $0x110] sm:$0xff]
    %v5950 = vld [vmem:[%s5914 + $0x118] sm:$0xff]
    %v5951 = vld [vmem:[%s5914 + $0x120] sm:$0x1]
    %v5952 = vrot.slane %v4823, 2
    %v5953 = vrot.slane %v4824, 2
    %v5954 = vrot.slane %v4825, 2
    %v5957 = vsel %vm4864, %v5954, 0
    %v5960 = vsel %vm4868, %v5951, 0
    %5962 = vmatpush.msra.mxu0 %v5930
    %5963 = vmatpush.msra.mxu0 %v5929
    %5964 = vmatpush.msra.mxu0 %v5928
    %5965 = vmatpush.msra.mxu0 %v5927
    %5966 = vmatpush.msra.mxu0 %v5926
    %5967 = vmatpush.msra.mxu0 %v5925
    %5968 = vmatpush.msra.mxu0 %v5924
    %5969 = vmatpush.msra.mxu0 %v5923
    %5970 = vmatpush.msra.mxu0 %v5922
    %5971 = vmatpush.msra.mxu0 %v5921
    %5972 = vmatpush.msra.mxu0 %v5920
    %5973 = vmatpush.msra.mxu0 %v5919
    %5974 = vmatpush.msra.mxu0 %v5918
    %5975 = vmatpush.msra.mxu0 %v5917
    %5976 = vmatpush.msra.mxu0 %v5916
    %5977 = vmatpush.msra.mxu0 %v5915
    %5978 = vmatmul.f32.gmra.mxu0 %v5952
    %v5979 = vpop.f32.mrf.mxu0
    %v5980 = vadd.f32 0.0, %v5979
    %5981 = vdwg.mxu0
    %5982 = vmatpush.msra.mxu0 %v5946
    %5983 = vmatpush.msra.mxu0 %v5945
    %5984 = vmatpush.msra.mxu0 %v5944
    %5985 = vmatpush.msra.mxu0 %v5943
    %5986 = vmatpush.msra.mxu0 %v5942
    %5987 = vmatpush.msra.mxu0 %v5941
    %5988 = vmatpush.msra.mxu0 %v5940
    %5989 = vmatpush.msra.mxu0 %v5939
    %5990 = vmatpush.msra.mxu0 %v5938
    %5991 = vmatpush.msra.mxu0 %v5937
    %5992 = vmatpush.msra.mxu0 %v5936
    %5993 = vmatpush.msra.mxu0 %v5935
    %5994 = vmatpush.msra.mxu0 %v5934
    %5995 = vmatpush.msra.mxu0 %v5933
    %5996 = vmatpush.msra.mxu0 %v5932
    %5997 = vmatpush.msra.mxu0 %v5931
    %5998 = vmatmul.f32.gmra.mxu0 %v5953
    %v5999 = vpop.f32.mrf.mxu0
    %v6000 = vadd.f32 %v5980, %v5999
    %6001 = vdwg.mxu0
    %6002 = vmatpush.msra.mxu0 0.0
    %6003 = vmatpush.msra.mxu0 0.0
    %6004 = vmatpush.msra.mxu0 0.0
    %6005 = vmatpush.msra.mxu0 0.0
    %6006 = vmatpush.msra.mxu0 0.0
    %6007 = vmatpush.msra.mxu0 0.0
    %6008 = vmatpush.msra.mxu0 0.0
    %6009 = vmatpush.msra.mxu0 0.0
    %6010 = vmatpush.msra.mxu0 0.0
    %6011 = vmatpush.msra.mxu0 0.0
    %6012 = vmatpush.msra.mxu0 0.0
    %6013 = vmatpush.msra.mxu0 %v5960
    %6014 = vmatpush.msra.mxu0 %v5950
    %6015 = vmatpush.msra.mxu0 %v5949
    %6016 = vmatpush.msra.mxu0 %v5948
    %6017 = vmatpush.msra.mxu0 %v5947
    %6018 = vmatmul.f32.gmra.mxu0 %v5957
    %v6019 = vpop.f32.mrf.mxu0
    %v6020 = vadd.f32 %v6000, %v6019
    %6021 = vdwg.mxu0
    %v6022 = vadd.f32 %v5913, %v6020
    %s6023 = scalar_lea.vmem %s7, 3256
    %v6024 = vld [vmem:[%s6023] sm:$0xff]
    %v6025 = vld [vmem:[%s6023 + $0x8] sm:$0xff]
    %v6026 = vld [vmem:[%s6023 + $0x10] sm:$0xff]
    %v6027 = vld [vmem:[%s6023 + $0x18] sm:$0xff]
    %v6028 = vld [vmem:[%s6023 + $0x20] sm:$0xff]
    %v6029 = vld [vmem:[%s6023 + $0x28] sm:$0xff]
    %v6030 = vld [vmem:[%s6023 + $0x30] sm:$0xff]
    %v6031 = vld [vmem:[%s6023 + $0x38] sm:$0xff]
    %v6032 = vld [vmem:[%s6023 + $0x40] sm:$0xff]
    %v6033 = vld [vmem:[%s6023 + $0x48] sm:$0xff]
    %v6034 = vld [vmem:[%s6023 + $0x50] sm:$0xff]
    %v6035 = vld [vmem:[%s6023 + $0x58] sm:$0xff]
    %v6036 = vld [vmem:[%s6023 + $0x60] sm:$0xff]
    %v6037 = vld [vmem:[%s6023 + $0x68] sm:$0xff]
    %v6038 = vld [vmem:[%s6023 + $0x70] sm:$0xff]
    %v6039 = vld [vmem:[%s6023 + $0x78] sm:$0xff]
    %v6040 = vld [vmem:[%s6023 + $0x80] sm:$0xff]
    %v6041 = vld [vmem:[%s6023 + $0x88] sm:$0xff]
    %v6042 = vld [vmem:[%s6023 + $0x90] sm:$0xff]
    %v6043 = vld [vmem:[%s6023 + $0x98] sm:$0xff]
    %v6044 = vld [vmem:[%s6023 + $0xa0] sm:$0xff]
    %v6045 = vld [vmem:[%s6023 + $0xa8] sm:$0xff]
    %v6046 = vld [vmem:[%s6023 + $0xb0] sm:$0xff]
    %v6047 = vld [vmem:[%s6023 + $0xb8] sm:$0xff]
    %v6048 = vld [vmem:[%s6023 + $0xc0] sm:$0xff]
    %v6049 = vld [vmem:[%s6023 + $0xc8] sm:$0xff]
    %v6050 = vld [vmem:[%s6023 + $0xd0] sm:$0xff]
    %v6051 = vld [vmem:[%s6023 + $0xd8] sm:$0xff]
    %v6052 = vld [vmem:[%s6023 + $0xe0] sm:$0xff]
    %v6053 = vld [vmem:[%s6023 + $0xe8] sm:$0xff]
    %v6054 = vld [vmem:[%s6023 + $0xf0] sm:$0xff]
    %v6055 = vld [vmem:[%s6023 + $0xf8] sm:$0xff]
    %v6056 = vld [vmem:[%s6023 + $0x100] sm:$0xff]
    %v6057 = vld [vmem:[%s6023 + $0x108] sm:$0xff]
    %v6058 = vld [vmem:[%s6023 + $0x110] sm:$0xff]
    %v6059 = vld [vmem:[%s6023 + $0x118] sm:$0xff]
    %v6060 = vld [vmem:[%s6023 + $0x120] sm:$0x1]
    %v6061 = vrot.slane %v4823, 3
    %v6062 = vrot.slane %v4824, 3
    %v6063 = vrot.slane %v4825, 3
    %v6066 = vsel %vm4864, %v6063, 0
    %v6069 = vsel %vm4868, %v6060, 0
    %6071 = vmatpush.msra.mxu0 %v6039
    %6072 = vmatpush.msra.mxu0 %v6038
    %6073 = vmatpush.msra.mxu0 %v6037
    %6074 = vmatpush.msra.mxu0 %v6036
    %6075 = vmatpush.msra.mxu0 %v6035
    %6076 = vmatpush.msra.mxu0 %v6034
    %6077 = vmatpush.msra.mxu0 %v6033
    %6078 = vmatpush.msra.mxu0 %v6032
    %6079 = vmatpush.msra.mxu0 %v6031
    %6080 = vmatpush.msra.mxu0 %v6030
    %6081 = vmatpush.msra.mxu0 %v6029
    %6082 = vmatpush.msra.mxu0 %v6028
    %6083 = vmatpush.msra.mxu0 %v6027
    %6084 = vmatpush.msra.mxu0 %v6026
    %6085 = vmatpush.msra.mxu0 %v6025
    %6086 = vmatpush.msra.mxu0 %v6024
    %6087 = vmatmul.f32.gmra.mxu0 %v6061
    %v6088 = vpop.f32.mrf.mxu0
    %v6089 = vadd.f32 0.0, %v6088
    %6090 = vdwg.mxu0
    %6091 = vmatpush.msra.mxu0 %v6055
    %6092 = vmatpush.msra.mxu0 %v6054
    %6093 = vmatpush.msra.mxu0 %v6053
    %6094 = vmatpush.msra.mxu0 %v6052
    %6095 = vmatpush.msra.mxu0 %v6051
    %6096 = vmatpush.msra.mxu0 %v6050
    %6097 = vmatpush.msra.mxu0 %v6049
    %6098 = vmatpush.msra.mxu0 %v6048
    %6099 = vmatpush.msra.mxu0 %v6047
    %6100 = vmatpush.msra.mxu0 %v6046
    %6101 = vmatpush.msra.mxu0 %v6045
    %6102 = vmatpush.msra.mxu0 %v6044
    %6103 = vmatpush.msra.mxu0 %v6043
    %6104 = vmatpush.msra.mxu0 %v6042
    %6105 = vmatpush.msra.mxu0 %v6041
    %6106 = vmatpush.msra.mxu0 %v6040
    %6107 = vmatmul.f32.gmra.mxu0 %v6062
    %v6108 = vpop.f32.mrf.mxu0
    %v6109 = vadd.f32 %v6089, %v6108
    %6110 = vdwg.mxu0
    %6111 = vmatpush.msra.mxu0 0.0
    %6112 = vmatpush.msra.mxu0 0.0
    %6113 = vmatpush.msra.mxu0 0.0
    %6114 = vmatpush.msra.mxu0 0.0
    %6115 = vmatpush.msra.mxu0 0.0
    %6116 = vmatpush.msra.mxu0 0.0
    %6117 = vmatpush.msra.mxu0 0.0
    %6118 = vmatpush.msra.mxu0 0.0
    %6119 = vmatpush.msra.mxu0 0.0
    %6120 = vmatpush.msra.mxu0 0.0
    %6121 = vmatpush.msra.mxu0 0.0
    %6122 = vmatpush.msra.mxu0 %v6069
    %6123 = vmatpush.msra.mxu0 %v6059
    %6124 = vmatpush.msra.mxu0 %v6058
    %6125 = vmatpush.msra.mxu0 %v6057
    %6126 = vmatpush.msra.mxu0 %v6056
    %6127 = vmatmul.f32.gmra.mxu0 %v6066
    %v6128 = vpop.f32.mrf.mxu0
    %v6129 = vadd.f32 %v6109, %v6128
    %6130 = vdwg.mxu0
    %v6131 = vadd.f32 %v6022, %v6129
    %s6132 = scalar_lea.vmem %s7, 3552
    %v6133 = vld [vmem:[%s6132] sm:$0xff]
    %v6134 = vld [vmem:[%s6132 + $0x8] sm:$0xff]
    %v6135 = vld [vmem:[%s6132 + $0x10] sm:$0xff]
    %v6136 = vld [vmem:[%s6132 + $0x18] sm:$0xff]
    %v6137 = vld [vmem:[%s6132 + $0x20] sm:$0xff]
    %v6138 = vld [vmem:[%s6132 + $0x28] sm:$0xff]
    %v6139 = vld [vmem:[%s6132 + $0x30] sm:$0xff]
    %v6140 = vld [vmem:[%s6132 + $0x38] sm:$0xff]
    %v6141 = vld [vmem:[%s6132 + $0x40] sm:$0xff]
    %v6142 = vld [vmem:[%s6132 + $0x48] sm:$0xff]
    %v6143 = vld [vmem:[%s6132 + $0x50] sm:$0xff]
    %v6144 = vld [vmem:[%s6132 + $0x58] sm:$0xff]
    %v6145 = vld [vmem:[%s6132 + $0x60] sm:$0xff]
    %v6146 = vld [vmem:[%s6132 + $0x68] sm:$0xff]
    %v6147 = vld [vmem:[%s6132 + $0x70] sm:$0xff]
    %v6148 = vld [vmem:[%s6132 + $0x78] sm:$0xff]
    %v6149 = vld [vmem:[%s6132 + $0x80] sm:$0xff]
    %v6150 = vld [vmem:[%s6132 + $0x88] sm:$0xff]
    %v6151 = vld [vmem:[%s6132 + $0x90] sm:$0xff]
    %v6152 = vld [vmem:[%s6132 + $0x98] sm:$0xff]
    %v6153 = vld [vmem:[%s6132 + $0xa0] sm:$0xff]
    %v6154 = vld [vmem:[%s6132 + $0xa8] sm:$0xff]
    %v6155 = vld [vmem:[%s6132 + $0xb0] sm:$0xff]
    %v6156 = vld [vmem:[%s6132 + $0xb8] sm:$0xff]
    %v6157 = vld [vmem:[%s6132 + $0xc0] sm:$0xff]
    %v6158 = vld [vmem:[%s6132 + $0xc8] sm:$0xff]
    %v6159 = vld [vmem:[%s6132 + $0xd0] sm:$0xff]
    %v6160 = vld [vmem:[%s6132 + $0xd8] sm:$0xff]
    %v6161 = vld [vmem:[%s6132 + $0xe0] sm:$0xff]
    %v6162 = vld [vmem:[%s6132 + $0xe8] sm:$0xff]
    %v6163 = vld [vmem:[%s6132 + $0xf0] sm:$0xff]
    %v6164 = vld [vmem:[%s6132 + $0xf8] sm:$0xff]
    %v6165 = vld [vmem:[%s6132 + $0x100] sm:$0xff]
    %v6166 = vld [vmem:[%s6132 + $0x108] sm:$0xff]
    %v6167 = vld [vmem:[%s6132 + $0x110] sm:$0xff]
    %v6168 = vld [vmem:[%s6132 + $0x118] sm:$0xff]
    %v6169 = vld [vmem:[%s6132 + $0x120] sm:$0x1]
    %v6170 = vrot.slane %v4823, 4
    %v6171 = vrot.slane %v4824, 4
    %v6172 = vrot.slane %v4825, 4
    %v6175 = vsel %vm4864, %v6172, 0
    %v6178 = vsel %vm4868, %v6169, 0
    %6180 = vmatpush.msra.mxu0 %v6148
    %6181 = vmatpush.msra.mxu0 %v6147
    %6182 = vmatpush.msra.mxu0 %v6146
    %6183 = vmatpush.msra.mxu0 %v6145
    %6184 = vmatpush.msra.mxu0 %v6144
    %6185 = vmatpush.msra.mxu0 %v6143
    %6186 = vmatpush.msra.mxu0 %v6142
    %6187 = vmatpush.msra.mxu0 %v6141
    %6188 = vmatpush.msra.mxu0 %v6140
    %6189 = vmatpush.msra.mxu0 %v6139
    %6190 = vmatpush.msra.mxu0 %v6138
    %6191 = vmatpush.msra.mxu0 %v6137
    %6192 = vmatpush.msra.mxu0 %v6136
    %6193 = vmatpush.msra.mxu0 %v6135
    %6194 = vmatpush.msra.mxu0 %v6134
    %6195 = vmatpush.msra.mxu0 %v6133
    %6196 = vmatmul.f32.gmra.mxu0 %v6170
    %v6197 = vpop.f32.mrf.mxu0
    %v6198 = vadd.f32 0.0, %v6197
    %6199 = vdwg.mxu0
    %6200 = vmatpush.msra.mxu0 %v6164
    %6201 = vmatpush.msra.mxu0 %v6163
    %6202 = vmatpush.msra.mxu0 %v6162
    %6203 = vmatpush.msra.mxu0 %v6161
    %6204 = vmatpush.msra.mxu0 %v6160
    %6205 = vmatpush.msra.mxu0 %v6159
    %6206 = vmatpush.msra.mxu0 %v6158
    %6207 = vmatpush.msra.mxu0 %v6157
    %6208 = vmatpush.msra.mxu0 %v6156
    %6209 = vmatpush.msra.mxu0 %v6155
    %6210 = vmatpush.msra.mxu0 %v6154
    %6211 = vmatpush.msra.mxu0 %v6153
    %6212 = vmatpush.msra.mxu0 %v6152
    %6213 = vmatpush.msra.mxu0 %v6151
    %6214 = vmatpush.msra.mxu0 %v6150
    %6215 = vmatpush.msra.mxu0 %v6149
    %6216 = vmatmul.f32.gmra.mxu0 %v6171
    %v6217 = vpop.f32.mrf.mxu0
    %v6218 = vadd.f32 %v6198, %v6217
    %6219 = vdwg.mxu0
    %6220 = vmatpush.msra.mxu0 0.0
    %6221 = vmatpush.msra.mxu0 0.0
    %6222 = vmatpush.msra.mxu0 0.0
    %6223 = vmatpush.msra.mxu0 0.0
    %6224 = vmatpush.msra.mxu0 0.0
    %6225 = vmatpush.msra.mxu0 0.0
    %6226 = vmatpush.msra.mxu0 0.0
    %6227 = vmatpush.msra.mxu0 0.0
    %6228 = vmatpush.msra.mxu0 0.0
    %6229 = vmatpush.msra.mxu0 0.0
    %6230 = vmatpush.msra.mxu0 0.0
    %6231 = vmatpush.msra.mxu0 %v6178
    %6232 = vmatpush.msra.mxu0 %v6168
    %6233 = vmatpush.msra.mxu0 %v6167
    %6234 = vmatpush.msra.mxu0 %v6166
    %6235 = vmatpush.msra.mxu0 %v6165
    %6236 = vmatmul.f32.gmra.mxu0 %v6175
    %v6237 = vpop.f32.mrf.mxu0
    %v6238 = vadd.f32 %v6218, %v6237
    %6239 = vdwg.mxu0
    %v6240 = vadd.f32 %v6131, %v6238
    %s6241 = scalar_lea.vmem %s7, 3848
    %v6242 = vld [vmem:[%s6241] sm:$0xff]
    %v6243 = vld [vmem:[%s6241 + $0x8] sm:$0xff]
    %v6244 = vld [vmem:[%s6241 + $0x10] sm:$0xff]
    %v6245 = vld [vmem:[%s6241 + $0x18] sm:$0xff]
    %v6246 = vld [vmem:[%s6241 + $0x20] sm:$0xff]
    %v6247 = vld [vmem:[%s6241 + $0x28] sm:$0xff]
    %v6248 = vld [vmem:[%s6241 + $0x30] sm:$0xff]
    %v6249 = vld [vmem:[%s6241 + $0x38] sm:$0xff]
    %v6250 = vld [vmem:[%s6241 + $0x40] sm:$0xff]
    %v6251 = vld [vmem:[%s6241 + $0x48] sm:$0xff]
    %v6252 = vld [vmem:[%s6241 + $0x50] sm:$0xff]
    %v6253 = vld [vmem:[%s6241 + $0x58] sm:$0xff]
    %v6254 = vld [vmem:[%s6241 + $0x60] sm:$0xff]
    %v6255 = vld [vmem:[%s6241 + $0x68] sm:$0xff]
    %v6256 = vld [vmem:[%s6241 + $0x70] sm:$0xff]
    %v6257 = vld [vmem:[%s6241 + $0x78] sm:$0xff]
    %v6258 = vld [vmem:[%s6241 + $0x80] sm:$0xff]
    %v6259 = vld [vmem:[%s6241 + $0x88] sm:$0xff]
    %v6260 = vld [vmem:[%s6241 + $0x90] sm:$0xff]
    %v6261 = vld [vmem:[%s6241 + $0x98] sm:$0xff]
    %v6262 = vld [vmem:[%s6241 + $0xa0] sm:$0xff]
    %v6263 = vld [vmem:[%s6241 + $0xa8] sm:$0xff]
    %v6264 = vld [vmem:[%s6241 + $0xb0] sm:$0xff]
    %v6265 = vld [vmem:[%s6241 + $0xb8] sm:$0xff]
    %v6266 = vld [vmem:[%s6241 + $0xc0] sm:$0xff]
    %v6267 = vld [vmem:[%s6241 + $0xc8] sm:$0xff]
    %v6268 = vld [vmem:[%s6241 + $0xd0] sm:$0xff]
    %v6269 = vld [vmem:[%s6241 + $0xd8] sm:$0xff]
    %v6270 = vld [vmem:[%s6241 + $0xe0] sm:$0xff]
    %v6271 = vld [vmem:[%s6241 + $0xe8] sm:$0xff]
    %v6272 = vld [vmem:[%s6241 + $0xf0] sm:$0xff]
    %v6273 = vld [vmem:[%s6241 + $0xf8] sm:$0xff]
    %v6274 = vld [vmem:[%s6241 + $0x100] sm:$0xff]
    %v6275 = vld [vmem:[%s6241 + $0x108] sm:$0xff]
    %v6276 = vld [vmem:[%s6241 + $0x110] sm:$0xff]
    %v6277 = vld [vmem:[%s6241 + $0x118] sm:$0xff]
    %v6278 = vld [vmem:[%s6241 + $0x120] sm:$0x1]
    %v6279 = vrot.slane %v4823, 5
    %v6280 = vrot.slane %v4824, 5
    %v6281 = vrot.slane %v4825, 5
    %v6284 = vsel %vm4864, %v6281, 0
    %v6287 = vsel %vm4868, %v6278, 0
    %6289 = vmatpush.msra.mxu0 %v6257
    %6290 = vmatpush.msra.mxu0 %v6256
    %6291 = vmatpush.msra.mxu0 %v6255
    %6292 = vmatpush.msra.mxu0 %v6254
    %6293 = vmatpush.msra.mxu0 %v6253
    %6294 = vmatpush.msra.mxu0 %v6252
    %6295 = vmatpush.msra.mxu0 %v6251
    %6296 = vmatpush.msra.mxu0 %v6250
    %6297 = vmatpush.msra.mxu0 %v6249
    %6298 = vmatpush.msra.mxu0 %v6248
    %6299 = vmatpush.msra.mxu0 %v6247
    %6300 = vmatpush.msra.mxu0 %v6246
    %6301 = vmatpush.msra.mxu0 %v6245
    %6302 = vmatpush.msra.mxu0 %v6244
    %6303 = vmatpush.msra.mxu0 %v6243
    %6304 = vmatpush.msra.mxu0 %v6242
    %6305 = vmatmul.f32.gmra.mxu0 %v6279
    %v6306 = vpop.f32.mrf.mxu0
    %v6307 = vadd.f32 0.0, %v6306
    %6308 = vdwg.mxu0
    %6309 = vmatpush.msra.mxu0 %v6273
    %6310 = vmatpush.msra.mxu0 %v6272
    %6311 = vmatpush.msra.mxu0 %v6271
    %6312 = vmatpush.msra.mxu0 %v6270
    %6313 = vmatpush.msra.mxu0 %v6269
    %6314 = vmatpush.msra.mxu0 %v6268
    %6315 = vmatpush.msra.mxu0 %v6267
    %6316 = vmatpush.msra.mxu0 %v6266
    %6317 = vmatpush.msra.mxu0 %v6265
    %6318 = vmatpush.msra.mxu0 %v6264
    %6319 = vmatpush.msra.mxu0 %v6263
    %6320 = vmatpush.msra.mxu0 %v6262
    %6321 = vmatpush.msra.mxu0 %v6261
    %6322 = vmatpush.msra.mxu0 %v6260
    %6323 = vmatpush.msra.mxu0 %v6259
    %6324 = vmatpush.msra.mxu0 %v6258
    %6325 = vmatmul.f32.gmra.mxu0 %v6280
    %v6326 = vpop.f32.mrf.mxu0
    %v6327 = vadd.f32 %v6307, %v6326
    %6328 = vdwg.mxu0
    %6329 = vmatpush.msra.mxu0 0.0
    %6330 = vmatpush.msra.mxu0 0.0
    %6331 = vmatpush.msra.mxu0 0.0
    %6332 = vmatpush.msra.mxu0 0.0
    %6333 = vmatpush.msra.mxu0 0.0
    %6334 = vmatpush.msra.mxu0 0.0
    %6335 = vmatpush.msra.mxu0 0.0
    %6336 = vmatpush.msra.mxu0 0.0
    %6337 = vmatpush.msra.mxu0 0.0
    %6338 = vmatpush.msra.mxu0 0.0
    %6339 = vmatpush.msra.mxu0 0.0
    %6340 = vmatpush.msra.mxu0 %v6287
    %6341 = vmatpush.msra.mxu0 %v6277
    %6342 = vmatpush.msra.mxu0 %v6276
    %6343 = vmatpush.msra.mxu0 %v6275
    %6344 = vmatpush.msra.mxu0 %v6274
    %6345 = vmatmul.f32.gmra.mxu0 %v6284
    %v6346 = vpop.f32.mrf.mxu0
    %v6347 = vadd.f32 %v6327, %v6346
    %6348 = vdwg.mxu0
    %v6349 = vadd.f32 %v6240, %v6347
    %vm6350 = vcmask 73728
    %6351 = vst.msk [vmem:[#allocation2] sm:$0x1] %vm6350, %v6349
    // Predicated region
    $region38: #{model_forward.1} parent=1 // pred_check
      _
    $region39: #{model_forward.1} parent=1 // pred_check_branch
      %6353 = sbr.rel (0) target = $region41
    $region40: #{model_forward.1} parent=1 // pred_region
      %6355 = vsyncadd [#allocation3], 0
      %s6357 = sshll.u32 [#allocation2], 4
      %s6358 = int_to_ptr.vmem [resolvable:$true] %s6357
      %s6359 = sshll.u32 %s9, 4
      %s6360 = int_to_ptr.hbm [resolvable:$true] %s6359
      %6362 = dma.vmem_to_hbm [thread:$0]  %s6358, 16, %s6360, [#allocation3]
    $region41: #{model_forward.1} parent=1 // pred_fallthru
      _
    // Predicated region
    $region42: #{model_forward.1} parent=1 // pred_check
      _
    $region43: #{model_forward.1} parent=1 // pred_check_branch
      %6364 = sbr.rel (0) target = $region45
    $region44: #{model_forward.1} parent=1 // pred_region
      %6366 = dma.done [#allocation3], 16
    $region45: #{model_forward.1} parent=1 // pred_fallthru
      _
    %6367 = vsyncpa [#allocation3], 1

</llo_original>
